<compile_context>
chip_gen: v7x
topology: tpu7x:2x2x1
jax: 0.10.0
libtpu: 0.0.40
codegen_flags: <defaults>
</compile_context>

<pallas_src>
import functools
import math

import jax
import jax.numpy as jnp
from jax.experimental import pallas as pl
from jax.experimental.pallas import tpu as pltpu

LN_EPS = 1e-5          # torch LayerNorm default
_NEG_BIG = -1e30       # additive key-padding mask (safer than -inf)


# --------------------------------- small helpers -------------------------------------

@functools.lru_cache(maxsize=None)
def _vmem_limit_bytes():
    """Per-generation VMEM limit: ~3/4 of physical, falling back to 32 MiB."""
    try:
        cap = int(pltpu.get_tpu_info().vmem_capacity_bytes)
        if cap >= (32 << 20):
            return int(min(cap * 3 // 4, 100 << 20))
    except Exception:
        pass
    return 32 << 20


def _compiler_params(ngrid):
    return pltpu.CompilerParams(
        dimension_semantics=("parallel",) * ngrid,
        vmem_limit_bytes=_vmem_limit_bytes())


def _layernorm(h, g, b):
    mu = jnp.mean(h, axis=-1, keepdims=True)
    var = jnp.mean(jnp.square(h - mu), axis=-1, keepdims=True)
    return (h - mu) * jax.lax.rsqrt(var + LN_EPS) * g + b


def _round_up(n, m):
    return ((n + m - 1) // m) * m


def _pad_seq_len(s):
    """Multiple of 8 (sublane); multiple of 128 (lane-dense scores) when <25% extra."""
    p8, p128 = _round_up(s, 8), _round_up(s, 128)
    return p128 if (p128 - s) * 4 <= s else p8


def _pad_rows(x_bsc, target):
    if x_bsc.shape[1] == target:
        return x_bsc
    return jnp.pad(x_bsc, ((0, 0), (0, target - x_bsc.shape[1]), (0, 0)))


def _row_tile(s):
    for t in (128, 64, 32, 16, 8):
        if s % t == 0:
            return t
    return s


# ------------- fused dual multi-head attention + residual + LayerNorm ----------------

def _attn_kernel(q_ref, kv_ref, wq_ref, bq_ref, wkv_ref, bkv_ref,
                 wo_ref, bo_ref, g_ref, beta_ref, o_ref,
                 *, nhead, dh, scale, sk_valid, sk_pad):
    x = q_ref[0, 0]          # (Sq, C) f32 : query == residual
    y = kv_ref[0]            # (Sk, C) f32 : key/value source
    C = nhead * dh

    # projections (bf16 operands, f32 accumulation); torch scales q after bias.
    q = (jnp.dot(x.astype(jnp.bfloat16), wq_ref[0],
                 preferred_element_type=jnp.float32) + bq_ref[0]) * scale     # (Sq, C)
    kv = jnp.dot(y.astype(jnp.bfloat16), wkv_ref[0],
                 preferred_element_type=jnp.float32) + bkv_ref[0]             # (Sk, 2C)
    kT = kv[:, :C].T.astype(jnp.bfloat16)       # (C, Sk): ONE hoisted transpose
    v = kv[:, C:].astype(jnp.bfloat16)          # (Sk, C)

    if sk_pad > sk_valid:   # static: mask padded keys with a large negative bias
        key_bias = jnp.where(
            jax.lax.broadcasted_iota(jnp.int32, (1, sk_pad), 1) < sk_valid,
            0.0, _NEG_BIG).astype(jnp.float32)
    else:
        key_bias = None

    heads = []
    for h in range(nhead):                      # static unroll, nhead is small
        lo = h * dh
        s = jnp.dot(q[:, lo:lo + dh].astype(jnp.bfloat16), kT[lo:lo + dh, :],
                    preferred_element_type=jnp.float32)                        # (Sq, Sk)
        if key_bias is not None:
            s = s + key_bias
        m = jnp.max(s, axis=-1, keepdims=True)
        p = jnp.exp(s - m)                                  # unnormalized, -> bf16
        inv_l = pl.reciprocal(jnp.sum(p, axis=-1, keepdims=True), approx=True)
        # deferred normalization: scale the (Sq, dh) PV result, not (Sq, Sk) probs
        heads.append(jnp.dot(p.astype(jnp.bfloat16), v[:, lo:lo + dh],
                             preferred_element_type=jnp.float32) * inv_l)
    # single K=C output projection over the concatenated heads
    o_cat = jnp.concatenate(heads, axis=-1).astype(jnp.bfloat16)               # (Sq, C)
    attn = jnp.dot(o_cat, wo_ref[0], preferred_element_type=jnp.float32) + bo_ref[0]
    o_ref[0, 0] = _layernorm(x + attn, g_ref[0], beta_ref[0])


def _attention_call(q_stack, kv, sk_valid, p, ln_w, ln_b, nhead):
    """q_stack: (G, B, Sq, C) stacked queries; weights stacked along axis 0 (G)."""
    G, B, Sq, C = q_stack.shape
    Sk = kv.shape[1]
    dh = C // nhead
    kernel = functools.partial(_attn_kernel, nhead=nhead, dh=dh,
                               scale=1.0 / math.sqrt(dh),
                               sk_valid=sk_valid, sk_pad=Sk)
    flops = 2 * G * B * (Sq * C * C + Sk * C * 2 * C + 2 * Sq * Sk * C + Sq * C * C)
    bytes_accessed = (4 * G * B * Sq * C * 2          # query in + output (f32)
                      + 4 * B * Sk * C                # kv source (f32)
                      + 2 * G * 4 * C * C             # bf16 Wq|Wkv|Wo
                      + 4 * G * 8 * C)                # biases + LN params (f32)
    cost = pl.CostEstimate(flops=flops, transcendentals=G * B * Sq * (Sk + 1),
                           bytes_accessed=bytes_accessed)
    wspec = lambda shape: pl.BlockSpec(shape, lambda g, b: (g, 0, 0))
    return pl.pallas_call(
        kernel,
        out_shape=jax.ShapeDtypeStruct((G, B, Sq, C), jnp.float32),
        grid=(G, B),
        in_specs=[
            pl.BlockSpec((1, 1, Sq, C), lambda g, b: (g, b, 0, 0)),   # query / residual
            pl.BlockSpec((1, Sk, C), lambda g, b: (b, 0, 0)),         # key/value source
            wspec((1, C, C)),        # Wq (bf16)
            wspec((1, 1, C)),        # bq
            wspec((1, C, 2 * C)),    # Wkv (bf16)
            wspec((1, 1, 2 * C)),    # bkv
            wspec((1, C, C)),        # Wo (bf16)
            wspec((1, 1, C)),        # bo
            wspec((1, 1, C)),        # LN gamma
            wspec((1, 1, C)),        # LN beta
        ],
        out_specs=pl.BlockSpec((1, 1, Sq, C), lambda g, b: (g, b, 0, 0)),
        compiler_params=_compiler_params(2),
        cost_estimate=cost,
    )(q_stack, kv, p["wq"], p["bq"], p["wkv"], p["bkv"], p["wo"], p["bo"],
      ln_w, ln_b)


def dual_attention(q_low, q_high, kv, sk_valid, p, ln_w, ln_b, nhead):
    """Slot 0: norm1(q_low + low_attn(q_low, kv, kv));
       slot 1: norm3(q_high + high_attn(q_high, kv, kv))."""
    if q_low.shape == q_high.shape:
        q_stack = jnp.stack([q_low, q_high], axis=0)        # (2, B, Sq, C)
        out = _attention_call(q_stack, kv, sk_valid, p, ln_w, ln_b, nhead)
        return out[0], out[1]
    # different query lengths (only possible in the first layer): two G=1 calls
    take = lambda tree, i: jax.tree_util.tree_map(lambda a: a[i:i + 1], tree)
    lo = _attention_call(q_low[None], kv, sk_valid, take(p, 0),
                         ln_w[0:1], ln_b[0:1], nhead)
    hi = _attention_call(q_high[None], kv, sk_valid, take(p, 1),
                         ln_w[1:2], ln_b[1:2], nhead)
    return lo[0], hi[0]


# ------------- gap channel gate + FFN + residual + norm2 (+ fused final LN) ----------

def _gap_ffn_kernel(gamma_ref, x_ref, ww_ref, w1_ref, b1_ref, w2_ref, b2_ref,
                    n2w_ref, n2b_ref, encw_ref, encb_ref, o_ref, *, apply_final_ln):
    x = x_ref[0]                                   # (ts, C) srcc after norm3
    xg = x + gamma_ref[0, 0] * ww_ref[0] * x       # gap channel modulation
    # FFN hidden (ts, dim_ff) lives only in VMEM/vregs.
    hid = jnp.maximum(
        jnp.dot(xg.astype(jnp.bfloat16), w1_ref[...],
                preferred_element_type=jnp.float32) + b1_ref[...], 0.0)
    ffn = jnp.dot(hid.astype(jnp.bfloat16), w2_ref[...],
                  preferred_element_type=jnp.float32) + b2_ref[...]
    out = _layernorm(xg + ffn, n2w_ref[...], n2b_ref[...])
    if apply_final_ln:                             # fused final encoder LayerNorm
        out = _layernorm(out, encw_ref[...], encb_ref[...])
    o_ref[0] = out


def fused_gap_ffn(x, y, y_valid, p, enc_w, enc_b, apply_final_ln):
    B, S, C = x.shape
    Sy = y.shape[1]
    # gap() squeeze-excite: masked global mean over the VALID rows of y plus two
    # tiny bias-free 1x1 convs; negligible FLOPs, done in plain XLA and fed to the
    # tiled Pallas FFN kernel as a per-batch (1, C) channel gate.
    if y_valid == Sy:
        pooled = jnp.mean(y, axis=1)
    else:
        row_mask = (jnp.arange(Sy) < y_valid)[None, :, None]
        pooled = jnp.sum(jnp.where(row_mask, y, 0.0), axis=1) * (1.0 / y_valid)
    hh = jnp.maximum(jnp.dot(pooled.astype(jnp.bfloat16), p["gap_w1"],
                             preferred_element_type=jnp.float32), 0.0)
    ww = jnp.dot(hh.astype(jnp.bfloat16), p["gap_w2"],
                 preferred_element_type=jnp.float32)[:, None, :]               # (B,1,C)

    Fdim = p["ffn_w1"].shape[1]
    ts = _row_tile(S)                              # S-tiling bounds the f32 hidden
    kernel = functools.partial(_gap_ffn_kernel, apply_final_ln=apply_final_ln)
    flops = 2 * B * S * (C * Fdim + Fdim * C) + 10 * B * S * C
    bytes_accessed = (4 * B * S * C * 2 + 4 * B * C
                      + 2 * 2 * C * Fdim + 4 * (Fdim + 5 * C) + 4)
    cost = pl.CostEstimate(flops=flops, transcendentals=0,
                           bytes_accessed=bytes_accessed)
    cspec = lambda shape: pl.BlockSpec(shape, lambda b, s: (0, 0))
    return pl.pallas_call(
        kernel,
        out_shape=jax.ShapeDtypeStruct((B, S, C), jnp.float32),
        grid=(B, S // ts),
        in_specs=[
            pl.BlockSpec(memory_space=pltpu.MemorySpace.SMEM),    # gap gamma (1,1)
            pl.BlockSpec((1, ts, C), lambda b, s: (b, s, 0)),     # srcc tile (norm3 out)
            pl.BlockSpec((1, 1, C), lambda b, s: (b, 0, 0)),      # ww channel gate
            cspec((C, Fdim)),   # ffn w1 (bf16)
            cspec((1, Fdim)),   # ffn b1
            cspec((Fdim, C)),   # ffn w2 (bf16)
            cspec((1, C)),      # ffn b2
            cspec((1, C)),      # norm2 gamma
            cspec((1, C)),      # norm2 beta
            cspec((1, C)),      # encoder-final LN gamma
            cspec((1, C)),      # encoder-final LN beta
        ],
        out_specs=pl.BlockSpec((1, ts, C), lambda b, s: (b, s, 0)),
        compiler_params=_compiler_params(2),
        cost_estimate=cost,
    )(p["gap_gamma"], x, ww, p["ffn_w1"], p["ffn_b1"], p["ffn_w2"], p["ffn_b2"],
      p["norm2_w"], p["norm2_b"], enc_w, enc_b)


# ---------------------------------- model glue ---------------------------------------

def encoder_layer(out_b, out_valid, srcc_b, srcc_valid, p, enc_w, enc_b,
                  apply_final_ln, nhead):
    """TransformerEncoderLayer.forward(src, srcc); dropout == identity, batch-first."""
    # src  = norm1(src + low_attn(src, srcc, srcc))     [slot 0]
    # srcc = norm3(srcc + high_attn(srcc, srcc, srcc))  [slot 1]
    src_n, srcc_n = dual_attention(out_b, srcc_b, srcc_b, srcc_valid,
                                   p["attn"], p["ln_attn_w"], p["ln_attn_b"], nhead)
    # srcc = gap(srcc, src); srcc = norm2(srcc + FFN(srcc)) [+ fused final enc LN]
    return fused_gap_ffn(srcc_n, src_n, out_valid, p, enc_w, enc_b, apply_final_ln)


def transformer_forward(src, srcc, params, nhead):
    """Transformer.forward == TransformerEncoder.forward(src, srcc) + final LN."""
    Ss, B, C = src.shape
    Sc = srcc.shape[0]
    # (S, B, C) -> (B, S, C) once, pad sequence lengths to sublane/lane friendly sizes.
    out_b = _pad_rows(jnp.transpose(src, (1, 0, 2)), _pad_seq_len(Ss))
    srcc_b = _pad_rows(jnp.transpose(srcc, (1, 0, 2)), _pad_seq_len(Sc))
    out_valid = Ss
    n_layers = len(params["layers"])
    for li, lp in enumerate(params["layers"]):
        out_b = encoder_layer(out_b, out_valid, srcc_b, Sc, lp,
                              params["enc_norm_w"], params["enc_norm_b"],
                              li == n_layers - 1, nhead)
        out_valid = Sc          # after layer 1, the output carries srcc's length
    return jnp.transpose(out_b[:, :Sc, :], (1, 0, 2))


# --------------------------------- parameter init ------------------------------------

def init_params(key, d_model, nhead, dim_ff, num_layers):
    def dense(k, shape):   # matmul weights stored bf16 (f32 accumulation in-kernel)
        return (jax.random.normal(k, shape, jnp.float32) * 0.02).astype(jnp.bfloat16)

    C, F = d_model, dim_ff

    def attn_stack(k):     # slot 0 = low_attn, slot 1 = high_attn
        ks = jax.random.split(k, 4)
        return {"wq": dense(ks[0], (2, C, C)),
                "bq": jnp.zeros((2, 1, C), jnp.float32),
                "wkv": jnp.concatenate([dense(ks[1], (2, C, C)),
                                        dense(ks[2], (2, C, C))], axis=-1),
                "bkv": jnp.zeros((2, 1, 2 * C), jnp.float32),
                "wo": dense(ks[3], (2, C, C)),
                "bo": jnp.zeros((2, 1, C), jnp.float32)}

    layers = []
    for lk in jax.random.split(key, num_layers):
        ks = jax.random.split(lk, 5)
        layers.append({
            "attn": attn_stack(ks[0]),
            "ln_attn_w": jnp.ones((2, 1, C), jnp.float32),    # [norm1, norm3]
            "ln_attn_b": jnp.zeros((2, 1, C), jnp.float32),
            "gap_w1": dense(ks[1], (C, C // 8)),              # 1x1 conv, no bias
            "gap_w2": dense(ks[2], (C // 8, C)),              # 1x1 conv, no bias
            "gap_gamma": jnp.zeros((1, 1), jnp.float32),      # torch: Parameter(zeros(1))
            "ffn_w1": dense(ks[3], (C, F)),
            "ffn_b1": jnp.zeros((1, F), jnp.float32),
            "ffn_w2": dense(ks[4], (F, C)),
            "ffn_b2": jnp.zeros((1, C), jnp.float32),
            "norm2_w": jnp.ones((1, C), jnp.float32),
            "norm2_b": jnp.zeros((1, C), jnp.float32),
        })
    return {"layers": layers,
            "enc_norm_w": jnp.ones((1, C), jnp.float32),
            "enc_norm_b": jnp.zeros((1, C), jnp.float32)}


# --------------------------------------- main ----------------------------------------

if __name__ == "__main__":
    # pysot runs d_model=256, nhead=8, dim_ff=2048, S=484 (22x22) for both inputs.
    # Small, module-consistent shapes here: perfect-square sequence lengths,
    # intentionally ragged (36 and 25) to exercise padding, key masking and the
    # unequal-length first-layer path.
    d_model, nhead, dim_ff, n_layers = 32, 4, 64, 2
    B, S_src, S_srcc = 2, 36, 25

    key = jax.random.PRNGKey(0)
    k1, k2, k3 = jax.random.split(key, 3)
    src = jax.random.normal(k1, (S_src, B, d_model), jnp.float32)
    srcc = jax.random.normal(k2, (S_srcc, B, d_model), jnp.float32)
    params = init_params(k3, d_model, nhead, dim_ff, n_layers)

    fwd = jax.jit(transformer_forward, static_argnums=(3,))
    out = jax.block_until_ready(fwd(src, srcc, params, nhead))
    assert out.shape == (S_srcc, B, d_model), out.shape
    assert bool(jnp.all(jnp.isfinite(out)))
    print("KERNEL_OK")
</pallas_src>

<mosaic_0001>
module attributes {stable_mosaic.version = 11 : i64} {
  func.func @_attn_kernel(%arg0: i32, %arg1: i32, %arg2: memref<1x1x40x32xf32, #tpu.memory_space<vmem>>, %arg3: memref<1x32x32xf32, #tpu.memory_space<vmem>>, %arg4: memref<1x32x32xbf16, #tpu.memory_space<vmem>>, %arg5: memref<1x1x32xf32, #tpu.memory_space<vmem>>, %arg6: memref<1x32x64xbf16, #tpu.memory_space<vmem>>, %arg7: memref<1x1x64xf32, #tpu.memory_space<vmem>>, %arg8: memref<1x32x32xbf16, #tpu.memory_space<vmem>>, %arg9: memref<1x1x32xf32, #tpu.memory_space<vmem>>, %arg10: memref<1x1x32xf32, #tpu.memory_space<vmem>>, %arg11: memref<1x1x32xf32, #tpu.memory_space<vmem>>, %arg12: memref<1x1x40x32xf32, #tpu.memory_space<vmem>>) attributes {dimension_semantics = [#tpu.dimension_semantics<parallel>, #tpu.dimension_semantics<parallel>], iteration_bounds = array<i64: 1, 2>, scalar_prefetch = 0 : i64, scratch_operands = 0 : i64, tpu.core_type = #tpu.core_type<tc>, window_params = [{transform_indices = @transform_0, window_bounds = array<i64: 1, 1, 40, 32>}, {transform_indices = @transform_1, window_bounds = array<i64: 1, 32, 32>}, {transform_indices = @transform_2, window_bounds = array<i64: 1, 32, 32>}, {transform_indices = @transform_3, window_bounds = array<i64: 1, 1, 32>}, {transform_indices = @transform_4, window_bounds = array<i64: 1, 32, 64>}, {transform_indices = @transform_5, window_bounds = array<i64: 1, 1, 64>}, {transform_indices = @transform_6, window_bounds = array<i64: 1, 32, 32>}, {transform_indices = @transform_7, window_bounds = array<i64: 1, 1, 32>}, {transform_indices = @transform_8, window_bounds = array<i64: 1, 1, 32>}, {transform_indices = @transform_9, window_bounds = array<i64: 1, 1, 32>}, {transform_indices = @transform_10, window_bounds = array<i64: 1, 1, 40, 32>}]} {
    %c0 = arith.constant 0 : index
    %c0_0 = arith.constant 0 : index
    %c0_1 = arith.constant 0 : index
    %c0_2 = arith.constant 0 : index
    %0 = vector.load %arg2[%c0, %c0_0, %c0_1, %c0_2] : memref<1x1x40x32xf32, #tpu.memory_space<vmem>>, vector<1x1x40x32xf32>
    %1 = vector.shape_cast %0 : vector<1x1x40x32xf32> to vector<40x32xf32>
    %c0_3 = arith.constant 0 : index
    %c0_4 = arith.constant 0 : index
    %c0_5 = arith.constant 0 : index
    %2 = vector.load %arg3[%c0_3, %c0_4, %c0_5] : memref<1x32x32xf32, #tpu.memory_space<vmem>>, vector<1x32x32xf32>
    %3 = vector.shape_cast %2 : vector<1x32x32xf32> to vector<32x32xf32>
    %4 = arith.truncf %1 : vector<40x32xf32> to vector<40x32xbf16>
    %c0_6 = arith.constant 0 : index
    %c0_7 = arith.constant 0 : index
    %c0_8 = arith.constant 0 : index
    %5 = vector.load %arg4[%c0_6, %c0_7, %c0_8] : memref<1x32x32xbf16, #tpu.memory_space<vmem>>, vector<1x32x32xbf16>
    %6 = vector.shape_cast %5 : vector<1x32x32xbf16> to vector<32x32xbf16>
    %cst = arith.constant dense<0.000000e+00> : vector<40x32xf32>
    %7 = tpu.matmul %4, %6, %cst {dimension_numbers = #tpu.dot_dimension_numbers<[1], [0], [0], [1], [0, 0, 1, 1], [], []>} : vector<40x32xbf16>, vector<32x32xbf16>, vector<40x32xf32> -> vector<40x32xf32>
    %c0_9 = arith.constant 0 : index
    %c0_10 = arith.constant 0 : index
    %c0_11 = arith.constant 0 : index
    %8 = vector.load %arg5[%c0_9, %c0_10, %c0_11] : memref<1x1x32xf32, #tpu.memory_space<vmem>>, vector<1x1x32xf32>
    %9 = vector.shape_cast %8 : vector<1x1x32xf32> to vector<1x32xf32>
    %10 = vector.broadcast %9 : vector<1x32xf32> to vector<40x32xf32>
    %11 = arith.addf %7, %10 : vector<40x32xf32>
    %cst_12 = arith.constant 0.353553385 : f32
    %12 = vector.broadcast %cst_12 : f32 to vector<40x32xf32>
    %13 = arith.mulf %11, %12 : vector<40x32xf32>
    %14 = arith.truncf %3 : vector<32x32xf32> to vector<32x32xbf16>
    %c0_13 = arith.constant 0 : index
    %c0_14 = arith.constant 0 : index
    %c0_15 = arith.constant 0 : index
    %15 = vector.load %arg6[%c0_13, %c0_14, %c0_15] : memref<1x32x64xbf16, #tpu.memory_space<vmem>>, vector<1x32x64xbf16>
    %16 = vector.shape_cast %15 : vector<1x32x64xbf16> to vector<32x64xbf16>
    %cst_16 = arith.constant dense<0.000000e+00> : vector<32x64xf32>
    %17 = tpu.matmul %14, %16, %cst_16 {dimension_numbers = #tpu.dot_dimension_numbers<[1], [0], [0], [1], [0, 0, 1, 1], [], []>} : vector<32x32xbf16>, vector<32x64xbf16>, vector<32x64xf32> -> vector<32x64xf32>
    %c0_17 = arith.constant 0 : index
    %c0_18 = arith.constant 0 : index
    %c0_19 = arith.constant 0 : index
    %18 = vector.load %arg7[%c0_17, %c0_18, %c0_19] : memref<1x1x64xf32, #tpu.memory_space<vmem>>, vector<1x1x64xf32>
    %19 = vector.shape_cast %18 : vector<1x1x64xf32> to vector<1x64xf32>
    %20 = vector.broadcast %19 : vector<1x64xf32> to vector<32x64xf32>
    %21 = arith.addf %17, %20 : vector<32x64xf32>
    %22 = vector.extract_strided_slice %21 {offsets = [0, 0], sizes = [32, 32], strides = [1, 1]} : vector<32x64xf32> to vector<32x32xf32>
    %23 = tpu.transpose %22, [1, 0] : vector<32x32xf32> -> vector<32x32xf32>
    %24 = arith.truncf %23 : vector<32x32xf32> to vector<32x32xbf16>
    %25 = vector.extract_strided_slice %21 {offsets = [0, 32], sizes = [32, 32], strides = [1, 1]} : vector<32x64xf32> to vector<32x32xf32>
    %26 = arith.truncf %25 : vector<32x32xf32> to vector<32x32xbf16>
    %27 = tpu.iota {dimensions = array<i32: 1>} : vector<1x32xi32>
    %c25_i32 = arith.constant 25 : i32
    %28 = vector.broadcast %c25_i32 : i32 to vector<1x32xi32>
    %29 = arith.cmpi slt, %27, %28 : vector<1x32xi32>
    %cst_20 = arith.constant 0.000000e+00 : f32
    %cst_21 = arith.constant -1.000000e+30 : f32
    %30 = vector.broadcast %cst_20 : f32 to vector<1x32xf32>
    %31 = vector.broadcast %cst_21 : f32 to vector<1x32xf32>
    %32 = arith.select %29, %30, %31 : vector<1x32xi1>, vector<1x32xf32>
    %33 = vector.extract_strided_slice %13 {offsets = [0, 0], sizes = [40, 8], strides = [1, 1]} : vector<40x32xf32> to vector<40x8xf32>
    %34 = arith.truncf %33 : vector<40x8xf32> to vector<40x8xbf16>
    %35 = vector.extract_strided_slice %24 {offsets = [0, 0], sizes = [8, 32], strides = [1, 1]} : vector<32x32xbf16> to vector<8x32xbf16>
    %cst_22 = arith.constant dense<0.000000e+00> : vector<40x32xf32>
    %36 = tpu.matmul %34, %35, %cst_22 {dimension_numbers = #tpu.dot_dimension_numbers<[1], [0], [0], [1], [0, 0, 1, 1], [], []>} : vector<40x8xbf16>, vector<8x32xbf16>, vector<40x32xf32> -> vector<40x32xf32>
    %37 = vector.broadcast %32 : vector<1x32xf32> to vector<40x32xf32>
    %38 = arith.addf %36, %37 : vector<40x32xf32>
    %cst_23 = arith.constant dense<0xFF800000> : vector<40xf32>
    %39 = vector.multi_reduction <maximumf>, %38, %cst_23 [1] : vector<40x32xf32> to vector<40xf32>
    %40 = vector.shape_cast %39 : vector<40xf32> to vector<40x1xf32>
    %41 = vector.broadcast %40 : vector<40x1xf32> to vector<40x32xf32>
    %42 = arith.subf %38, %41 : vector<40x32xf32>
    %43 = math.exp %42 : vector<40x32xf32>
    %cst_24 = arith.constant dense<0.000000e+00> : vector<40xf32>
    %44 = vector.multi_reduction <add>, %43, %cst_24 [1] : vector<40x32xf32> to vector<40xf32>
    %45 = vector.shape_cast %44 : vector<40xf32> to vector<40x1xf32>
    %46 = tpu.reciprocal %45 {approx = true} : vector<40x1xf32> -> vector<40x1xf32>
    %47 = arith.truncf %43 : vector<40x32xf32> to vector<40x32xbf16>
    %48 = vector.extract_strided_slice %26 {offsets = [0, 0], sizes = [32, 8], strides = [1, 1]} : vector<32x32xbf16> to vector<32x8xbf16>
    %cst_25 = arith.constant dense<0.000000e+00> : vector<40x8xf32>
    %49 = tpu.matmul %47, %48, %cst_25 {dimension_numbers = #tpu.dot_dimension_numbers<[1], [0], [0], [1], [0, 0, 1, 1], [], []>} : vector<40x32xbf16>, vector<32x8xbf16>, vector<40x8xf32> -> vector<40x8xf32>
    %50 = vector.broadcast %46 : vector<40x1xf32> to vector<40x8xf32>
    %51 = arith.mulf %49, %50 : vector<40x8xf32>
    %52 = vector.extract_strided_slice %13 {offsets = [0, 8], sizes = [40, 8], strides = [1, 1]} : vector<40x32xf32> to vector<40x8xf32>
    %53 = arith.truncf %52 : vector<40x8xf32> to vector<40x8xbf16>
    %54 = vector.extract_strided_slice %24 {offsets = [8, 0], sizes = [8, 32], strides = [1, 1]} : vector<32x32xbf16> to vector<8x32xbf16>
    %cst_26 = arith.constant dense<0.000000e+00> : vector<40x32xf32>
    %55 = tpu.matmul %53, %54, %cst_26 {dimension_numbers = #tpu.dot_dimension_numbers<[1], [0], [0], [1], [0, 0, 1, 1], [], []>} : vector<40x8xbf16>, vector<8x32xbf16>, vector<40x32xf32> -> vector<40x32xf32>
    %56 = vector.broadcast %32 : vector<1x32xf32> to vector<40x32xf32>
    %57 = arith.addf %55, %56 : vector<40x32xf32>
    %cst_27 = arith.constant dense<0xFF800000> : vector<40xf32>
    %58 = vector.multi_reduction <maximumf>, %57, %cst_27 [1] : vector<40x32xf32> to vector<40xf32>
    %59 = vector.shape_cast %58 : vector<40xf32> to vector<40x1xf32>
    %60 = vector.broadcast %59 : vector<40x1xf32> to vector<40x32xf32>
    %61 = arith.subf %57, %60 : vector<40x32xf32>
    %62 = math.exp %61 : vector<40x32xf32>
    %cst_28 = arith.constant dense<0.000000e+00> : vector<40xf32>
    %63 = vector.multi_reduction <add>, %62, %cst_28 [1] : vector<40x32xf32> to vector<40xf32>
    %64 = vector.shape_cast %63 : vector<40xf32> to vector<40x1xf32>
    %65 = tpu.reciprocal %64 {approx = true} : vector<40x1xf32> -> vector<40x1xf32>
    %66 = arith.truncf %62 : vector<40x32xf32> to vector<40x32xbf16>
    %67 = vector.extract_strided_slice %26 {offsets = [0, 8], sizes = [32, 8], strides = [1, 1]} : vector<32x32xbf16> to vector<32x8xbf16>
    %cst_29 = arith.constant dense<0.000000e+00> : vector<40x8xf32>
    %68 = tpu.matmul %66, %67, %cst_29 {dimension_numbers = #tpu.dot_dimension_numbers<[1], [0], [0], [1], [0, 0, 1, 1], [], []>} : vector<40x32xbf16>, vector<32x8xbf16>, vector<40x8xf32> -> vector<40x8xf32>
    %69 = vector.broadcast %65 : vector<40x1xf32> to vector<40x8xf32>
    %70 = arith.mulf %68, %69 : vector<40x8xf32>
    %71 = vector.extract_strided_slice %13 {offsets = [0, 16], sizes = [40, 8], strides = [1, 1]} : vector<40x32xf32> to vector<40x8xf32>
    %72 = arith.truncf %71 : vector<40x8xf32> to vector<40x8xbf16>
    %73 = vector.extract_strided_slice %24 {offsets = [16, 0], sizes = [8, 32], strides = [1, 1]} : vector<32x32xbf16> to vector<8x32xbf16>
    %cst_30 = arith.constant dense<0.000000e+00> : vector<40x32xf32>
    %74 = tpu.matmul %72, %73, %cst_30 {dimension_numbers = #tpu.dot_dimension_numbers<[1], [0], [0], [1], [0, 0, 1, 1], [], []>} : vector<40x8xbf16>, vector<8x32xbf16>, vector<40x32xf32> -> vector<40x32xf32>
    %75 = vector.broadcast %32 : vector<1x32xf32> to vector<40x32xf32>
    %76 = arith.addf %74, %75 : vector<40x32xf32>
    %cst_31 = arith.constant dense<0xFF800000> : vector<40xf32>
    %77 = vector.multi_reduction <maximumf>, %76, %cst_31 [1] : vector<40x32xf32> to vector<40xf32>
    %78 = vector.shape_cast %77 : vector<40xf32> to vector<40x1xf32>
    %79 = vector.broadcast %78 : vector<40x1xf32> to vector<40x32xf32>
    %80 = arith.subf %76, %79 : vector<40x32xf32>
    %81 = math.exp %80 : vector<40x32xf32>
    %cst_32 = arith.constant dense<0.000000e+00> : vector<40xf32>
    %82 = vector.multi_reduction <add>, %81, %cst_32 [1] : vector<40x32xf32> to vector<40xf32>
    %83 = vector.shape_cast %82 : vector<40xf32> to vector<40x1xf32>
    %84 = tpu.reciprocal %83 {approx = true} : vector<40x1xf32> -> vector<40x1xf32>
    %85 = arith.truncf %81 : vector<40x32xf32> to vector<40x32xbf16>
    %86 = vector.extract_strided_slice %26 {offsets = [0, 16], sizes = [32, 8], strides = [1, 1]} : vector<32x32xbf16> to vector<32x8xbf16>
    %cst_33 = arith.constant dense<0.000000e+00> : vector<40x8xf32>
    %87 = tpu.matmul %85, %86, %cst_33 {dimension_numbers = #tpu.dot_dimension_numbers<[1], [0], [0], [1], [0, 0, 1, 1], [], []>} : vector<40x32xbf16>, vector<32x8xbf16>, vector<40x8xf32> -> vector<40x8xf32>
    %88 = vector.broadcast %84 : vector<40x1xf32> to vector<40x8xf32>
    %89 = arith.mulf %87, %88 : vector<40x8xf32>
    %90 = vector.extract_strided_slice %13 {offsets = [0, 24], sizes = [40, 8], strides = [1, 1]} : vector<40x32xf32> to vector<40x8xf32>
    %91 = arith.truncf %90 : vector<40x8xf32> to vector<40x8xbf16>
    %92 = vector.extract_strided_slice %24 {offsets = [24, 0], sizes = [8, 32], strides = [1, 1]} : vector<32x32xbf16> to vector<8x32xbf16>
    %cst_34 = arith.constant dense<0.000000e+00> : vector<40x32xf32>
    %93 = tpu.matmul %91, %92, %cst_34 {dimension_numbers = #tpu.dot_dimension_numbers<[1], [0], [0], [1], [0, 0, 1, 1], [], []>} : vector<40x8xbf16>, vector<8x32xbf16>, vector<40x32xf32> -> vector<40x32xf32>
    %94 = vector.broadcast %32 : vector<1x32xf32> to vector<40x32xf32>
    %95 = arith.addf %93, %94 : vector<40x32xf32>
    %cst_35 = arith.constant dense<0xFF800000> : vector<40xf32>
    %96 = vector.multi_reduction <maximumf>, %95, %cst_35 [1] : vector<40x32xf32> to vector<40xf32>
    %97 = vector.shape_cast %96 : vector<40xf32> to vector<40x1xf32>
    %98 = vector.broadcast %97 : vector<40x1xf32> to vector<40x32xf32>
    %99 = arith.subf %95, %98 : vector<40x32xf32>
    %100 = math.exp %99 : vector<40x32xf32>
    %cst_36 = arith.constant dense<0.000000e+00> : vector<40xf32>
    %101 = vector.multi_reduction <add>, %100, %cst_36 [1] : vector<40x32xf32> to vector<40xf32>
    %102 = vector.shape_cast %101 : vector<40xf32> to vector<40x1xf32>
    %103 = tpu.reciprocal %102 {approx = true} : vector<40x1xf32> -> vector<40x1xf32>
    %104 = arith.truncf %100 : vector<40x32xf32> to vector<40x32xbf16>
    %105 = vector.extract_strided_slice %26 {offsets = [0, 24], sizes = [32, 8], strides = [1, 1]} : vector<32x32xbf16> to vector<32x8xbf16>
    %cst_37 = arith.constant dense<0.000000e+00> : vector<40x8xf32>
    %106 = tpu.matmul %104, %105, %cst_37 {dimension_numbers = #tpu.dot_dimension_numbers<[1], [0], [0], [1], [0, 0, 1, 1], [], []>} : vector<40x32xbf16>, vector<32x8xbf16>, vector<40x8xf32> -> vector<40x8xf32>
    %107 = vector.broadcast %103 : vector<40x1xf32> to vector<40x8xf32>
    %108 = arith.mulf %106, %107 : vector<40x8xf32>
    %109 = tpu.concatenate %51, %70, %89, %108 in 1 : vector<40x8xf32>, vector<40x8xf32>, vector<40x8xf32>, vector<40x8xf32> -> vector<40x32xf32>
    %110 = arith.truncf %109 : vector<40x32xf32> to vector<40x32xbf16>
    %c0_38 = arith.constant 0 : index
    %c0_39 = arith.constant 0 : index
    %c0_40 = arith.constant 0 : index
    %111 = vector.load %arg8[%c0_38, %c0_39, %c0_40] : memref<1x32x32xbf16, #tpu.memory_space<vmem>>, vector<1x32x32xbf16>
    %112 = vector.shape_cast %111 : vector<1x32x32xbf16> to vector<32x32xbf16>
    %cst_41 = arith.constant dense<0.000000e+00> : vector<40x32xf32>
    %113 = tpu.matmul %110, %112, %cst_41 {dimension_numbers = #tpu.dot_dimension_numbers<[1], [0], [0], [1], [0, 0, 1, 1], [], []>} : vector<40x32xbf16>, vector<32x32xbf16>, vector<40x32xf32> -> vector<40x32xf32>
    %c0_42 = arith.constant 0 : index
    %c0_43 = arith.constant 0 : index
    %c0_44 = arith.constant 0 : index
    %114 = vector.load %arg9[%c0_42, %c0_43, %c0_44] : memref<1x1x32xf32, #tpu.memory_space<vmem>>, vector<1x1x32xf32>
    %115 = vector.shape_cast %114 : vector<1x1x32xf32> to vector<1x32xf32>
    %116 = vector.broadcast %115 : vector<1x32xf32> to vector<40x32xf32>
    %117 = arith.addf %113, %116 : vector<40x32xf32>
    %118 = arith.addf %1, %117 : vector<40x32xf32>
    %c0_45 = arith.constant 0 : index
    %c0_46 = arith.constant 0 : index
    %c0_47 = arith.constant 0 : index
    %119 = vector.load %arg10[%c0_45, %c0_46, %c0_47] : memref<1x1x32xf32, #tpu.memory_space<vmem>>, vector<1x1x32xf32>
    %120 = vector.shape_cast %119 : vector<1x1x32xf32> to vector<1x32xf32>
    %c0_48 = arith.constant 0 : index
    %c0_49 = arith.constant 0 : index
    %c0_50 = arith.constant 0 : index
    %121 = vector.load %arg11[%c0_48, %c0_49, %c0_50] : memref<1x1x32xf32, #tpu.memory_space<vmem>>, vector<1x1x32xf32>
    %122 = vector.shape_cast %121 : vector<1x1x32xf32> to vector<1x32xf32>
    %cst_51 = arith.constant dense<0.000000e+00> : vector<40xf32>
    %123 = vector.multi_reduction <add>, %118, %cst_51 [1] : vector<40x32xf32> to vector<40xf32>
    %124 = vector.shape_cast %123 : vector<40xf32> to vector<40x1xf32>
    %cst_52 = arith.constant 3.200000e+01 : f32
    %125 = vector.broadcast %cst_52 : f32 to vector<40x1xf32>
    %126 = arith.divf %124, %125 : vector<40x1xf32>
    %127 = vector.broadcast %126 : vector<40x1xf32> to vector<40x32xf32>
    %128 = arith.subf %118, %127 : vector<40x32xf32>
    %129 = arith.mulf %128, %128 : vector<40x32xf32>
    %cst_53 = arith.constant dense<0.000000e+00> : vector<40xf32>
    %130 = vector.multi_reduction <add>, %129, %cst_53 [1] : vector<40x32xf32> to vector<40xf32>
    %131 = vector.shape_cast %130 : vector<40xf32> to vector<40x1xf32>
    %cst_54 = arith.constant 3.200000e+01 : f32
    %132 = vector.broadcast %cst_54 : f32 to vector<40x1xf32>
    %133 = arith.divf %131, %132 : vector<40x1xf32>
    %134 = vector.broadcast %126 : vector<40x1xf32> to vector<40x32xf32>
    %135 = arith.subf %118, %134 : vector<40x32xf32>
    %cst_55 = arith.constant 9.99999974E-6 : f32
    %136 = vector.broadcast %cst_55 : f32 to vector<40x1xf32>
    %137 = arith.addf %133, %136 : vector<40x1xf32>
    %138 = math.rsqrt %137 : vector<40x1xf32>
    %139 = vector.broadcast %138 : vector<40x1xf32> to vector<40x32xf32>
    %140 = arith.mulf %135, %139 : vector<40x32xf32>
    %141 = vector.broadcast %120 : vector<1x32xf32> to vector<40x32xf32>
    %142 = arith.mulf %140, %141 : vector<40x32xf32>
    %143 = vector.broadcast %122 : vector<1x32xf32> to vector<40x32xf32>
    %144 = arith.addf %142, %143 : vector<40x32xf32>
    %c0_56 = arith.constant 0 : index
    %c0_57 = arith.constant 0 : index
    %c0_58 = arith.constant 0 : index
    %c0_59 = arith.constant 0 : index
    %145 = vector.load %arg12[%c0_56, %c0_57, %c0_58, %c0_59] : memref<1x1x40x32xf32, #tpu.memory_space<vmem>>, vector<1x1x40x32xf32>
    %146 = vector.shape_cast %145 : vector<1x1x40x32xf32> to vector<40x32xf32>
    %147 = vector.shape_cast %144 : vector<40x32xf32> to vector<1x1x40x32xf32>
    tpu.vector_store %arg12[%c0_56, %c0_57, %c0_58, %c0_59], %147 {strides = array<i32>} : memref<1x1x40x32xf32, #tpu.memory_space<vmem>>, vector<1x1x40x32xf32>,
    return
  }
  func.func @transform_0(%arg0: i32, %arg1: i32) -> (i32, i32, i32, i32) {
    %c0_i32 = arith.constant 0 : i32
    %c0_i32_0 = arith.constant 0 : i32
    %c0_i32_1 = arith.constant 0 : i32
    return %arg0, %arg1, %c0_i32, %c0_i32_0 : i32, i32, i32, i32
  }
  func.func @transform_1(%arg0: i32, %arg1: i32) -> (i32, i32, i32) {
    %c0_i32 = arith.constant 0 : i32
    %c0_i32_0 = arith.constant 0 : i32
    %c0_i32_1 = arith.constant 0 : i32
    return %arg1, %c0_i32, %c0_i32_0 : i32, i32, i32
  }
  func.func @transform_2(%arg0: i32, %arg1: i32) -> (i32, i32, i32) {
    %c0_i32 = arith.constant 0 : i32
    %c0_i32_0 = arith.constant 0 : i32
    %c0_i32_1 = arith.constant 0 : i32
    return %arg0, %c0_i32, %c0_i32_0 : i32, i32, i32
  }
  func.func @transform_3(%arg0: i32, %arg1: i32) -> (i32, i32, i32) {
    %c0_i32 = arith.constant 0 : i32
    %c0_i32_0 = arith.constant 0 : i32
    %c0_i32_1 = arith.constant 0 : i32
    return %arg0, %c0_i32, %c0_i32_0 : i32, i32, i32
  }
  func.func @transform_4(%arg0: i32, %arg1: i32) -> (i32, i32, i32) {
    %c0_i32 = arith.constant 0 : i32
    %c0_i32_0 = arith.constant 0 : i32
    %c0_i32_1 = arith.constant 0 : i32
    return %arg0, %c0_i32, %c0_i32_0 : i32, i32, i32
  }
  func.func @transform_5(%arg0: i32, %arg1: i32) -> (i32, i32, i32) {
    %c0_i32 = arith.constant 0 : i32
    %c0_i32_0 = arith.constant 0 : i32
    %c0_i32_1 = arith.constant 0 : i32
    return %arg0, %c0_i32, %c0_i32_0 : i32, i32, i32
  }
  func.func @transform_6(%arg0: i32, %arg1: i32) -> (i32, i32, i32) {
    %c0_i32 = arith.constant 0 : i32
    %c0_i32_0 = arith.constant 0 : i32
    %c0_i32_1 = arith.constant 0 : i32
    return %arg0, %c0_i32, %c0_i32_0 : i32, i32, i32
  }
  func.func @transform_7(%arg0: i32, %arg1: i32) -> (i32, i32, i32) {
    %c0_i32 = arith.constant 0 : i32
    %c0_i32_0 = arith.constant 0 : i32
    %c0_i32_1 = arith.constant 0 : i32
    return %arg0, %c0_i32, %c0_i32_0 : i32, i32, i32
  }
  func.func @transform_8(%arg0: i32, %arg1: i32) -> (i32, i32, i32) {
    %c0_i32 = arith.constant 0 : i32
    %c0_i32_0 = arith.constant 0 : i32
    %c0_i32_1 = arith.constant 0 : i32
    return %arg0, %c0_i32, %c0_i32_0 : i32, i32, i32
  }
  func.func @transform_9(%arg0: i32, %arg1: i32) -> (i32, i32, i32) {
    %c0_i32 = arith.constant 0 : i32
    %c0_i32_0 = arith.constant 0 : i32
    %c0_i32_1 = arith.constant 0 : i32
    return %arg0, %c0_i32, %c0_i32_0 : i32, i32, i32
  }
  func.func @transform_10(%arg0: i32, %arg1: i32) -> (i32, i32, i32, i32) {
    %c0_i32 = arith.constant 0 : i32
    %c0_i32_0 = arith.constant 0 : i32
    %c0_i32_1 = arith.constant 0 : i32
    return %arg0, %arg1, %c0_i32, %c0_i32_0 : i32, i32, i32, i32
  }
}

module attributes {stable_mosaic.version = 11 : i64} {
  func.func @_gap_ffn_kernel(%arg0: i32, %arg1: i32, %arg2: memref<1x1xf32, #tpu.memory_space<smem>>, %arg3: memref<1x32x32xf32, #tpu.memory_space<vmem>>, %arg4: memref<1x1x32xf32, #tpu.memory_space<vmem>>, %arg5: memref<32x64xbf16, #tpu.memory_space<vmem>>, %arg6: memref<1x64xf32, #tpu.memory_space<vmem>>, %arg7: memref<64x32xbf16, #tpu.memory_space<vmem>>, %arg8: memref<1x32xf32, #tpu.memory_space<vmem>>, %arg9: memref<1x32xf32, #tpu.memory_space<vmem>>, %arg10: memref<1x32xf32, #tpu.memory_space<vmem>>, %arg11: memref<1x32xf32, #tpu.memory_space<vmem>>, %arg12: memref<1x32xf32, #tpu.memory_space<vmem>>, %arg13: memref<1x32x32xf32, #tpu.memory_space<vmem>>) attributes {dimension_semantics = [#tpu.dimension_semantics<parallel>, #tpu.dimension_semantics<parallel>], iteration_bounds = array<i64: 2, 1>, scalar_prefetch = 0 : i64, scratch_operands = 0 : i64, tpu.core_type = #tpu.core_type<tc>, window_params = [{transform_indices = @transform_0, window_bounds = array<i64: 1, 1>}, {transform_indices = @transform_1, window_bounds = array<i64: 1, 32, 32>}, {transform_indices = @transform_2, window_bounds = array<i64: 1, 1, 32>}, {pipeline_mode = #tpu.pipeline_mode<synchronous>, transform_indices = @transform_3, window_bounds = array<i64: 32, 64>}, {pipeline_mode = #tpu.pipeline_mode<synchronous>, transform_indices = @transform_4, window_bounds = array<i64: 1, 64>}, {pipeline_mode = #tpu.pipeline_mode<synchronous>, transform_indices = @transform_5, window_bounds = array<i64: 64, 32>}, {pipeline_mode = #tpu.pipeline_mode<synchronous>, transform_indices = @transform_6, window_bounds = array<i64: 1, 32>}, {pipeline_mode = #tpu.pipeline_mode<synchronous>, transform_indices = @transform_7, window_bounds = array<i64: 1, 32>}, {pipeline_mode = #tpu.pipeline_mode<synchronous>, transform_indices = @transform_8, window_bounds = array<i64: 1, 32>}, {pipeline_mode = #tpu.pipeline_mode<synchronous>, transform_indices = @transform_9, window_bounds = array<i64: 1, 32>}, {pipeline_mode = #tpu.pipeline_mode<synchronous>, transform_indices = @transform_10, window_bounds = array<i64: 1, 32>}, {transform_indices = @transform_11, window_bounds = array<i64: 1, 32, 32>}]} {
    %c0 = arith.constant 0 : index
    %c0_0 = arith.constant 0 : index
    %c0_1 = arith.constant 0 : index
    %0 = vector.load %arg3[%c0, %c0_0, %c0_1] : memref<1x32x32xf32, #tpu.memory_space<vmem>>, vector<1x32x32xf32>
    %1 = vector.shape_cast %0 : vector<1x32x32xf32> to vector<32x32xf32>
    %c0_2 = arith.constant 0 : index
    %c0_3 = arith.constant 0 : index
    %2 = memref.load %arg2[%c0_2, %c0_3] : memref<1x1xf32, #tpu.memory_space<smem>>
    %c0_4 = arith.constant 0 : index
    %c0_5 = arith.constant 0 : index
    %c0_6 = arith.constant 0 : index
    %3 = vector.load %arg4[%c0_4, %c0_5, %c0_6] : memref<1x1x32xf32, #tpu.memory_space<vmem>>, vector<1x1x32xf32>
    %4 = vector.shape_cast %3 : vector<1x1x32xf32> to vector<1x32xf32>
    %5 = vector.broadcast %2 : f32 to vector<1x32xf32>
    %6 = arith.mulf %5, %4 : vector<1x32xf32>
    %7 = vector.broadcast %6 : vector<1x32xf32> to vector<32x32xf32>
    %8 = arith.mulf %7, %1 : vector<32x32xf32>
    %9 = arith.addf %1, %8 : vector<32x32xf32>
    %10 = arith.truncf %9 : vector<32x32xf32> to vector<32x32xbf16>
    %c0_7 = arith.constant 0 : index
    %c0_8 = arith.constant 0 : index
    %11 = vector.load %arg5[%c0_7, %c0_8] : memref<32x64xbf16, #tpu.memory_space<vmem>>, vector<32x64xbf16>
    %cst = arith.constant dense<0.000000e+00> : vector<32x64xf32>
    %12 = tpu.matmul %10, %11, %cst {dimension_numbers = #tpu.dot_dimension_numbers<[1], [0], [0], [1], [0, 0, 1, 1], [], []>} : vector<32x32xbf16>, vector<32x64xbf16>, vector<32x64xf32> -> vector<32x64xf32>
    %c0_9 = arith.constant 0 : index
    %c0_10 = arith.constant 0 : index
    %13 = vector.load %arg6[%c0_9, %c0_10] : memref<1x64xf32, #tpu.memory_space<vmem>>, vector<1x64xf32>
    %14 = vector.broadcast %13 : vector<1x64xf32> to vector<32x64xf32>
    %15 = arith.addf %12, %14 : vector<32x64xf32>
    %cst_11 = arith.constant 0.000000e+00 : f32
    %16 = vector.broadcast %cst_11 : f32 to vector<32x64xf32>
    %17 = arith.maximumf %15, %16 : vector<32x64xf32>
    %18 = arith.truncf %17 : vector<32x64xf32> to vector<32x64xbf16>
    %c0_12 = arith.constant 0 : index
    %c0_13 = arith.constant 0 : index
    %19 = vector.load %arg7[%c0_12, %c0_13] : memref<64x32xbf16, #tpu.memory_space<vmem>>, vector<64x32xbf16>
    %cst_14 = arith.constant dense<0.000000e+00> : vector<32x32xf32>
    %20 = tpu.matmul %18, %19, %cst_14 {dimension_numbers = #tpu.dot_dimension_numbers<[1], [0], [0], [1], [0, 0, 1, 1], [], []>} : vector<32x64xbf16>, vector<64x32xbf16>, vector<32x32xf32> -> vector<32x32xf32>
    %c0_15 = arith.constant 0 : index
    %c0_16 = arith.constant 0 : index
    %21 = vector.load %arg8[%c0_15, %c0_16] : memref<1x32xf32, #tpu.memory_space<vmem>>, vector<1x32xf32>
    %22 = vector.broadcast %21 : vector<1x32xf32> to vector<32x32xf32>
    %23 = arith.addf %20, %22 : vector<32x32xf32>
    %24 = arith.addf %9, %23 : vector<32x32xf32>
    %c0_17 = arith.constant 0 : index
    %c0_18 = arith.constant 0 : index
    %25 = vector.load %arg9[%c0_17, %c0_18] : memref<1x32xf32, #tpu.memory_space<vmem>>, vector<1x32xf32>
    %c0_19 = arith.constant 0 : index
    %c0_20 = arith.constant 0 : index
    %26 = vector.load %arg10[%c0_19, %c0_20] : memref<1x32xf32, #tpu.memory_space<vmem>>, vector<1x32xf32>
    %cst_21 = arith.constant dense<0.000000e+00> : vector<32xf32>
    %27 = vector.multi_reduction <add>, %24, %cst_21 [1] : vector<32x32xf32> to vector<32xf32>
    %28 = vector.shape_cast %27 : vector<32xf32> to vector<32x1xf32>
    %cst_22 = arith.constant 3.200000e+01 : f32
    %29 = vector.broadcast %cst_22 : f32 to vector<32x1xf32>
    %30 = arith.divf %28, %29 : vector<32x1xf32>
    %31 = vector.broadcast %30 : vector<32x1xf32> to vector<32x32xf32>
    %32 = arith.subf %24, %31 : vector<32x32xf32>
    %33 = arith.mulf %32, %32 : vector<32x32xf32>
    %cst_23 = arith.constant dense<0.000000e+00> : vector<32xf32>
    %34 = vector.multi_reduction <add>, %33, %cst_23 [1] : vector<32x32xf32> to vector<32xf32>
    %35 = vector.shape_cast %34 : vector<32xf32> to vector<32x1xf32>
    %cst_24 = arith.constant 3.200000e+01 : f32
    %36 = vector.broadcast %cst_24 : f32 to vector<32x1xf32>
    %37 = arith.divf %35, %36 : vector<32x1xf32>
    %38 = vector.broadcast %30 : vector<32x1xf32> to vector<32x32xf32>
    %39 = arith.subf %24, %38 : vector<32x32xf32>
    %cst_25 = arith.constant 9.99999974E-6 : f32
    %40 = vector.broadcast %cst_25 : f32 to vector<32x1xf32>
    %41 = arith.addf %37, %40 : vector<32x1xf32>
    %42 = math.rsqrt %41 : vector<32x1xf32>
    %43 = vector.broadcast %42 : vector<32x1xf32> to vector<32x32xf32>
    %44 = arith.mulf %39, %43 : vector<32x32xf32>
    %45 = vector.broadcast %25 : vector<1x32xf32> to vector<32x32xf32>
    %46 = arith.mulf %44, %45 : vector<32x32xf32>
    %47 = vector.broadcast %26 : vector<1x32xf32> to vector<32x32xf32>
    %48 = arith.addf %46, %47 : vector<32x32xf32>
    %c0_26 = arith.constant 0 : index
    %c0_27 = arith.constant 0 : index
    %c0_28 = arith.constant 0 : index
    %49 = vector.load %arg13[%c0_26, %c0_27, %c0_28] : memref<1x32x32xf32, #tpu.memory_space<vmem>>, vector<1x32x32xf32>
    %50 = vector.shape_cast %49 : vector<1x32x32xf32> to vector<32x32xf32>
    %51 = vector.shape_cast %48 : vector<32x32xf32> to vector<1x32x32xf32>
    tpu.vector_store %arg13[%c0_26, %c0_27, %c0_28], %51 {strides = array<i32>} : memref<1x32x32xf32, #tpu.memory_space<vmem>>, vector<1x32x32xf32>,
    return
  }
  func.func @transform_0(%arg0: i32, %arg1: i32) -> (i32, i32) {
    %c0_i32 = arith.constant 0 : i32
    %c0_i32_0 = arith.constant 0 : i32
    %c0_i32_1 = arith.constant 0 : i32
    return %c0_i32, %c0_i32_0 : i32, i32
  }
  func.func @transform_1(%arg0: i32, %arg1: i32) -> (i32, i32, i32) {
    %c0_i32 = arith.constant 0 : i32
    %c0_i32_0 = arith.constant 0 : i32
    return %arg0, %arg1, %c0_i32 : i32, i32, i32
  }
  func.func @transform_2(%arg0: i32, %arg1: i32) -> (i32, i32, i32) {
    %c0_i32 = arith.constant 0 : i32
    %c0_i32_0 = arith.constant 0 : i32
    %c0_i32_1 = arith.constant 0 : i32
    return %arg0, %c0_i32, %c0_i32_0 : i32, i32, i32
  }
  func.func @transform_3(%arg0: i32, %arg1: i32) -> (i32, i32) {
    %c0_i32 = arith.constant 0 : i32
    %c0_i32_0 = arith.constant 0 : i32
    %c0_i32_1 = arith.constant 0 : i32
    return %c0_i32, %c0_i32_0 : i32, i32
  }
  func.func @transform_4(%arg0: i32, %arg1: i32) -> (i32, i32) {
    %c0_i32 = arith.constant 0 : i32
    %c0_i32_0 = arith.constant 0 : i32
    %c0_i32_1 = arith.constant 0 : i32
    return %c0_i32, %c0_i32_0 : i32, i32
  }
  func.func @transform_5(%arg0: i32, %arg1: i32) -> (i32, i32) {
    %c0_i32 = arith.constant 0 : i32
    %c0_i32_0 = arith.constant 0 : i32
    %c0_i32_1 = arith.constant 0 : i32
    return %c0_i32, %c0_i32_0 : i32, i32
  }
  func.func @transform_6(%arg0: i32, %arg1: i32) -> (i32, i32) {
    %c0_i32 = arith.constant 0 : i32
    %c0_i32_0 = arith.constant 0 : i32
    %c0_i32_1 = arith.constant 0 : i32
    return %c0_i32, %c0_i32_0 : i32, i32
  }
  func.func @transform_7(%arg0: i32, %arg1: i32) -> (i32, i32) {
    %c0_i32 = arith.constant 0 : i32
    %c0_i32_0 = arith.constant 0 : i32
    %c0_i32_1 = arith.constant 0 : i32
    return %c0_i32, %c0_i32_0 : i32, i32
  }
  func.func @transform_8(%arg0: i32, %arg1: i32) -> (i32, i32) {
    %c0_i32 = arith.constant 0 : i32
    %c0_i32_0 = arith.constant 0 : i32
    %c0_i32_1 = arith.constant 0 : i32
    return %c0_i32, %c0_i32_0 : i32, i32
  }
  func.func @transform_9(%arg0: i32, %arg1: i32) -> (i32, i32) {
    %c0_i32 = arith.constant 0 : i32
    %c0_i32_0 = arith.constant 0 : i32
    %c0_i32_1 = arith.constant 0 : i32
    return %c0_i32, %c0_i32_0 : i32, i32
  }
  func.func @transform_10(%arg0: i32, %arg1: i32) -> (i32, i32) {
    %c0_i32 = arith.constant 0 : i32
    %c0_i32_0 = arith.constant 0 : i32
    %c0_i32_1 = arith.constant 0 : i32
    return %c0_i32, %c0_i32_0 : i32, i32
  }
  func.func @transform_11(%arg0: i32, %arg1: i32) -> (i32, i32, i32) {
    %c0_i32 = arith.constant 0 : i32
    %c0_i32_0 = arith.constant 0 : i32
    return %arg0, %arg1, %c0_i32 : i32, i32, i32
  }
}

module attributes {stable_mosaic.version = 11 : i64} {
  func.func @_attn_kernel(%arg0: i32, %arg1: i32, %arg2: memref<1x1x32x32xf32, #tpu.memory_space<vmem>>, %arg3: memref<1x32x32xf32, #tpu.memory_space<vmem>>, %arg4: memref<1x32x32xbf16, #tpu.memory_space<vmem>>, %arg5: memref<1x1x32xf32, #tpu.memory_space<vmem>>, %arg6: memref<1x32x64xbf16, #tpu.memory_space<vmem>>, %arg7: memref<1x1x64xf32, #tpu.memory_space<vmem>>, %arg8: memref<1x32x32xbf16, #tpu.memory_space<vmem>>, %arg9: memref<1x1x32xf32, #tpu.memory_space<vmem>>, %arg10: memref<1x1x32xf32, #tpu.memory_space<vmem>>, %arg11: memref<1x1x32xf32, #tpu.memory_space<vmem>>, %arg12: memref<1x1x32x32xf32, #tpu.memory_space<vmem>>) attributes {dimension_semantics = [#tpu.dimension_semantics<parallel>, #tpu.dimension_semantics<parallel>], iteration_bounds = array<i64: 1, 2>, scalar_prefetch = 0 : i64, scratch_operands = 0 : i64, tpu.core_type = #tpu.core_type<tc>, window_params = [{transform_indices = @transform_0, window_bounds = array<i64: 1, 1, 32, 32>}, {transform_indices = @transform_1, window_bounds = array<i64: 1, 32, 32>}, {transform_indices = @transform_2, window_bounds = array<i64: 1, 32, 32>}, {transform_indices = @transform_3, window_bounds = array<i64: 1, 1, 32>}, {transform_indices = @transform_4, window_bounds = array<i64: 1, 32, 64>}, {transform_indices = @transform_5, window_bounds = array<i64: 1, 1, 64>}, {transform_indices = @transform_6, window_bounds = array<i64: 1, 32, 32>}, {transform_indices = @transform_7, window_bounds = array<i64: 1, 1, 32>}, {transform_indices = @transform_8, window_bounds = array<i64: 1, 1, 32>}, {transform_indices = @transform_9, window_bounds = array<i64: 1, 1, 32>}, {transform_indices = @transform_10, window_bounds = array<i64: 1, 1, 32, 32>}]} {
    %c0 = arith.constant 0 : index
    %c0_0 = arith.constant 0 : index
    %c0_1 = arith.constant 0 : index
    %c0_2 = arith.constant 0 : index
    %0 = vector.load %arg2[%c0, %c0_0, %c0_1, %c0_2] : memref<1x1x32x32xf32, #tpu.memory_space<vmem>>, vector<1x1x32x32xf32>
    %1 = vector.shape_cast %0 : vector<1x1x32x32xf32> to vector<32x32xf32>
    %c0_3 = arith.constant 0 : index
    %c0_4 = arith.constant 0 : index
    %c0_5 = arith.constant 0 : index
    %2 = vector.load %arg3[%c0_3, %c0_4, %c0_5] : memref<1x32x32xf32, #tpu.memory_space<vmem>>, vector<1x32x32xf32>
    %3 = vector.shape_cast %2 : vector<1x32x32xf32> to vector<32x32xf32>
    %4 = arith.truncf %1 : vector<32x32xf32> to vector<32x32xbf16>
    %c0_6 = arith.constant 0 : index
    %c0_7 = arith.constant 0 : index
    %c0_8 = arith.constant 0 : index
    %5 = vector.load %arg4[%c0_6, %c0_7, %c0_8] : memref<1x32x32xbf16, #tpu.memory_space<vmem>>, vector<1x32x32xbf16>
    %6 = vector.shape_cast %5 : vector<1x32x32xbf16> to vector<32x32xbf16>
    %cst = arith.constant dense<0.000000e+00> : vector<32x32xf32>
    %7 = tpu.matmul %4, %6, %cst {dimension_numbers = #tpu.dot_dimension_numbers<[1], [0], [0], [1], [0, 0, 1, 1], [], []>} : vector<32x32xbf16>, vector<32x32xbf16>, vector<32x32xf32> -> vector<32x32xf32>
    %c0_9 = arith.constant 0 : index
    %c0_10 = arith.constant 0 : index
    %c0_11 = arith.constant 0 : index
    %8 = vector.load %arg5[%c0_9, %c0_10, %c0_11] : memref<1x1x32xf32, #tpu.memory_space<vmem>>, vector<1x1x32xf32>
    %9 = vector.shape_cast %8 : vector<1x1x32xf32> to vector<1x32xf32>
    %10 = vector.broadcast %9 : vector<1x32xf32> to vector<32x32xf32>
    %11 = arith.addf %7, %10 : vector<32x32xf32>
    %cst_12 = arith.constant 0.353553385 : f32
    %12 = vector.broadcast %cst_12 : f32 to vector<32x32xf32>
    %13 = arith.mulf %11, %12 : vector<32x32xf32>
    %14 = arith.truncf %3 : vector<32x32xf32> to vector<32x32xbf16>
    %c0_13 = arith.constant 0 : index
    %c0_14 = arith.constant 0 : index
    %c0_15 = arith.constant 0 : index
    %15 = vector.load %arg6[%c0_13, %c0_14, %c0_15] : memref<1x32x64xbf16, #tpu.memory_space<vmem>>, vector<1x32x64xbf16>
    %16 = vector.shape_cast %15 : vector<1x32x64xbf16> to vector<32x64xbf16>
    %cst_16 = arith.constant dense<0.000000e+00> : vector<32x64xf32>
    %17 = tpu.matmul %14, %16, %cst_16 {dimension_numbers = #tpu.dot_dimension_numbers<[1], [0], [0], [1], [0, 0, 1, 1], [], []>} : vector<32x32xbf16>, vector<32x64xbf16>, vector<32x64xf32> -> vector<32x64xf32>
    %c0_17 = arith.constant 0 : index
    %c0_18 = arith.constant 0 : index
    %c0_19 = arith.constant 0 : index
    %18 = vector.load %arg7[%c0_17, %c0_18, %c0_19] : memref<1x1x64xf32, #tpu.memory_space<vmem>>, vector<1x1x64xf32>
    %19 = vector.shape_cast %18 : vector<1x1x64xf32> to vector<1x64xf32>
    %20 = vector.broadcast %19 : vector<1x64xf32> to vector<32x64xf32>
    %21 = arith.addf %17, %20 : vector<32x64xf32>
    %22 = vector.extract_strided_slice %21 {offsets = [0, 0], sizes = [32, 32], strides = [1, 1]} : vector<32x64xf32> to vector<32x32xf32>
    %23 = tpu.transpose %22, [1, 0] : vector<32x32xf32> -> vector<32x32xf32>
    %24 = arith.truncf %23 : vector<32x32xf32> to vector<32x32xbf16>
    %25 = vector.extract_strided_slice %21 {offsets = [0, 32], sizes = [32, 32], strides = [1, 1]} : vector<32x64xf32> to vector<32x32xf32>
    %26 = arith.truncf %25 : vector<32x32xf32> to vector<32x32xbf16>
    %27 = tpu.iota {dimensions = array<i32: 1>} : vector<1x32xi32>
    %c25_i32 = arith.constant 25 : i32
    %28 = vector.broadcast %c25_i32 : i32 to vector<1x32xi32>
    %29 = arith.cmpi slt, %27, %28 : vector<1x32xi32>
    %cst_20 = arith.constant 0.000000e+00 : f32
    %cst_21 = arith.constant -1.000000e+30 : f32
    %30 = vector.broadcast %cst_20 : f32 to vector<1x32xf32>
    %31 = vector.broadcast %cst_21 : f32 to vector<1x32xf32>
    %32 = arith.select %29, %30, %31 : vector<1x32xi1>, vector<1x32xf32>
    %33 = vector.extract_strided_slice %13 {offsets = [0, 0], sizes = [32, 8], strides = [1, 1]} : vector<32x32xf32> to vector<32x8xf32>
    %34 = arith.truncf %33 : vector<32x8xf32> to vector<32x8xbf16>
    %35 = vector.extract_strided_slice %24 {offsets = [0, 0], sizes = [8, 32], strides = [1, 1]} : vector<32x32xbf16> to vector<8x32xbf16>
    %cst_22 = arith.constant dense<0.000000e+00> : vector<32x32xf32>
    %36 = tpu.matmul %34, %35, %cst_22 {dimension_numbers = #tpu.dot_dimension_numbers<[1], [0], [0], [1], [0, 0, 1, 1], [], []>} : vector<32x8xbf16>, vector<8x32xbf16>, vector<32x32xf32> -> vector<32x32xf32>
    %37 = vector.broadcast %32 : vector<1x32xf32> to vector<32x32xf32>
    %38 = arith.addf %36, %37 : vector<32x32xf32>
    %cst_23 = arith.constant dense<0xFF800000> : vector<32xf32>
    %39 = vector.multi_reduction <maximumf>, %38, %cst_23 [1] : vector<32x32xf32> to vector<32xf32>
    %40 = vector.shape_cast %39 : vector<32xf32> to vector<32x1xf32>
    %41 = vector.broadcast %40 : vector<32x1xf32> to vector<32x32xf32>
    %42 = arith.subf %38, %41 : vector<32x32xf32>
    %43 = math.exp %42 : vector<32x32xf32>
    %cst_24 = arith.constant dense<0.000000e+00> : vector<32xf32>
    %44 = vector.multi_reduction <add>, %43, %cst_24 [1] : vector<32x32xf32> to vector<32xf32>
    %45 = vector.shape_cast %44 : vector<32xf32> to vector<32x1xf32>
    %46 = tpu.reciprocal %45 {approx = true} : vector<32x1xf32> -> vector<32x1xf32>
    %47 = arith.truncf %43 : vector<32x32xf32> to vector<32x32xbf16>
    %48 = vector.extract_strided_slice %26 {offsets = [0, 0], sizes = [32, 8], strides = [1, 1]} : vector<32x32xbf16> to vector<32x8xbf16>
    %cst_25 = arith.constant dense<0.000000e+00> : vector<32x8xf32>
    %49 = tpu.matmul %47, %48, %cst_25 {dimension_numbers = #tpu.dot_dimension_numbers<[1], [0], [0], [1], [0, 0, 1, 1], [], []>} : vector<32x32xbf16>, vector<32x8xbf16>, vector<32x8xf32> -> vector<32x8xf32>
    %50 = vector.broadcast %46 : vector<32x1xf32> to vector<32x8xf32>
    %51 = arith.mulf %49, %50 : vector<32x8xf32>
    %52 = vector.extract_strided_slice %13 {offsets = [0, 8], sizes = [32, 8], strides = [1, 1]} : vector<32x32xf32> to vector<32x8xf32>
    %53 = arith.truncf %52 : vector<32x8xf32> to vector<32x8xbf16>
    %54 = vector.extract_strided_slice %24 {offsets = [8, 0], sizes = [8, 32], strides = [1, 1]} : vector<32x32xbf16> to vector<8x32xbf16>
    %cst_26 = arith.constant dense<0.000000e+00> : vector<32x32xf32>
    %55 = tpu.matmul %53, %54, %cst_26 {dimension_numbers = #tpu.dot_dimension_numbers<[1], [0], [0], [1], [0, 0, 1, 1], [], []>} : vector<32x8xbf16>, vector<8x32xbf16>, vector<32x32xf32> -> vector<32x32xf32>
    %56 = vector.broadcast %32 : vector<1x32xf32> to vector<32x32xf32>
    %57 = arith.addf %55, %56 : vector<32x32xf32>
    %cst_27 = arith.constant dense<0xFF800000> : vector<32xf32>
    %58 = vector.multi_reduction <maximumf>, %57, %cst_27 [1] : vector<32x32xf32> to vector<32xf32>
    %59 = vector.shape_cast %58 : vector<32xf32> to vector<32x1xf32>
    %60 = vector.broadcast %59 : vector<32x1xf32> to vector<32x32xf32>
    %61 = arith.subf %57, %60 : vector<32x32xf32>
    %62 = math.exp %61 : vector<32x32xf32>
    %cst_28 = arith.constant dense<0.000000e+00> : vector<32xf32>
    %63 = vector.multi_reduction <add>, %62, %cst_28 [1] : vector<32x32xf32> to vector<32xf32>
    %64 = vector.shape_cast %63 : vector<32xf32> to vector<32x1xf32>
    %65 = tpu.reciprocal %64 {approx = true} : vector<32x1xf32> -> vector<32x1xf32>
    %66 = arith.truncf %62 : vector<32x32xf32> to vector<32x32xbf16>
    %67 = vector.extract_strided_slice %26 {offsets = [0, 8], sizes = [32, 8], strides = [1, 1]} : vector<32x32xbf16> to vector<32x8xbf16>
    %cst_29 = arith.constant dense<0.000000e+00> : vector<32x8xf32>
    %68 = tpu.matmul %66, %67, %cst_29 {dimension_numbers = #tpu.dot_dimension_numbers<[1], [0], [0], [1], [0, 0, 1, 1], [], []>} : vector<32x32xbf16>, vector<32x8xbf16>, vector<32x8xf32> -> vector<32x8xf32>
    %69 = vector.broadcast %65 : vector<32x1xf32> to vector<32x8xf32>
    %70 = arith.mulf %68, %69 : vector<32x8xf32>
    %71 = vector.extract_strided_slice %13 {offsets = [0, 16], sizes = [32, 8], strides = [1, 1]} : vector<32x32xf32> to vector<32x8xf32>
    %72 = arith.truncf %71 : vector<32x8xf32> to vector<32x8xbf16>
    %73 = vector.extract_strided_slice %24 {offsets = [16, 0], sizes = [8, 32], strides = [1, 1]} : vector<32x32xbf16> to vector<8x32xbf16>
    %cst_30 = arith.constant dense<0.000000e+00> : vector<32x32xf32>
    %74 = tpu.matmul %72, %73, %cst_30 {dimension_numbers = #tpu.dot_dimension_numbers<[1], [0], [0], [1], [0, 0, 1, 1], [], []>} : vector<32x8xbf16>, vector<8x32xbf16>, vector<32x32xf32> -> vector<32x32xf32>
    %75 = vector.broadcast %32 : vector<1x32xf32> to vector<32x32xf32>
    %76 = arith.addf %74, %75 : vector<32x32xf32>
    %cst_31 = arith.constant dense<0xFF800000> : vector<32xf32>
    %77 = vector.multi_reduction <maximumf>, %76, %cst_31 [1] : vector<32x32xf32> to vector<32xf32>
    %78 = vector.shape_cast %77 : vector<32xf32> to vector<32x1xf32>
    %79 = vector.broadcast %78 : vector<32x1xf32> to vector<32x32xf32>
    %80 = arith.subf %76, %79 : vector<32x32xf32>
    %81 = math.exp %80 : vector<32x32xf32>
    %cst_32 = arith.constant dense<0.000000e+00> : vector<32xf32>
    %82 = vector.multi_reduction <add>, %81, %cst_32 [1] : vector<32x32xf32> to vector<32xf32>
    %83 = vector.shape_cast %82 : vector<32xf32> to vector<32x1xf32>
    %84 = tpu.reciprocal %83 {approx = true} : vector<32x1xf32> -> vector<32x1xf32>
    %85 = arith.truncf %81 : vector<32x32xf32> to vector<32x32xbf16>
    %86 = vector.extract_strided_slice %26 {offsets = [0, 16], sizes = [32, 8], strides = [1, 1]} : vector<32x32xbf16> to vector<32x8xbf16>
    %cst_33 = arith.constant dense<0.000000e+00> : vector<32x8xf32>
    %87 = tpu.matmul %85, %86, %cst_33 {dimension_numbers = #tpu.dot_dimension_numbers<[1], [0], [0], [1], [0, 0, 1, 1], [], []>} : vector<32x32xbf16>, vector<32x8xbf16>, vector<32x8xf32> -> vector<32x8xf32>
    %88 = vector.broadcast %84 : vector<32x1xf32> to vector<32x8xf32>
    %89 = arith.mulf %87, %88 : vector<32x8xf32>
    %90 = vector.extract_strided_slice %13 {offsets = [0, 24], sizes = [32, 8], strides = [1, 1]} : vector<32x32xf32> to vector<32x8xf32>
    %91 = arith.truncf %90 : vector<32x8xf32> to vector<32x8xbf16>
    %92 = vector.extract_strided_slice %24 {offsets = [24, 0], sizes = [8, 32], strides = [1, 1]} : vector<32x32xbf16> to vector<8x32xbf16>
    %cst_34 = arith.constant dense<0.000000e+00> : vector<32x32xf32>
    %93 = tpu.matmul %91, %92, %cst_34 {dimension_numbers = #tpu.dot_dimension_numbers<[1], [0], [0], [1], [0, 0, 1, 1], [], []>} : vector<32x8xbf16>, vector<8x32xbf16>, vector<32x32xf32> -> vector<32x32xf32>
    %94 = vector.broadcast %32 : vector<1x32xf32> to vector<32x32xf32>
    %95 = arith.addf %93, %94 : vector<32x32xf32>
    %cst_35 = arith.constant dense<0xFF800000> : vector<32xf32>
    %96 = vector.multi_reduction <maximumf>, %95, %cst_35 [1] : vector<32x32xf32> to vector<32xf32>
    %97 = vector.shape_cast %96 : vector<32xf32> to vector<32x1xf32>
    %98 = vector.broadcast %97 : vector<32x1xf32> to vector<32x32xf32>
    %99 = arith.subf %95, %98 : vector<32x32xf32>
    %100 = math.exp %99 : vector<32x32xf32>
    %cst_36 = arith.constant dense<0.000000e+00> : vector<32xf32>
    %101 = vector.multi_reduction <add>, %100, %cst_36 [1] : vector<32x32xf32> to vector<32xf32>
    %102 = vector.shape_cast %101 : vector<32xf32> to vector<32x1xf32>
    %103 = tpu.reciprocal %102 {approx = true} : vector<32x1xf32> -> vector<32x1xf32>
    %104 = arith.truncf %100 : vector<32x32xf32> to vector<32x32xbf16>
    %105 = vector.extract_strided_slice %26 {offsets = [0, 24], sizes = [32, 8], strides = [1, 1]} : vector<32x32xbf16> to vector<32x8xbf16>
    %cst_37 = arith.constant dense<0.000000e+00> : vector<32x8xf32>
    %106 = tpu.matmul %104, %105, %cst_37 {dimension_numbers = #tpu.dot_dimension_numbers<[1], [0], [0], [1], [0, 0, 1, 1], [], []>} : vector<32x32xbf16>, vector<32x8xbf16>, vector<32x8xf32> -> vector<32x8xf32>
    %107 = vector.broadcast %103 : vector<32x1xf32> to vector<32x8xf32>
    %108 = arith.mulf %106, %107 : vector<32x8xf32>
    %109 = tpu.concatenate %51, %70, %89, %108 in 1 : vector<32x8xf32>, vector<32x8xf32>, vector<32x8xf32>, vector<32x8xf32> -> vector<32x32xf32>
    %110 = arith.truncf %109 : vector<32x32xf32> to vector<32x32xbf16>
    %c0_38 = arith.constant 0 : index
    %c0_39 = arith.constant 0 : index
    %c0_40 = arith.constant 0 : index
    %111 = vector.load %arg8[%c0_38, %c0_39, %c0_40] : memref<1x32x32xbf16, #tpu.memory_space<vmem>>, vector<1x32x32xbf16>
    %112 = vector.shape_cast %111 : vector<1x32x32xbf16> to vector<32x32xbf16>
    %cst_41 = arith.constant dense<0.000000e+00> : vector<32x32xf32>
    %113 = tpu.matmul %110, %112, %cst_41 {dimension_numbers = #tpu.dot_dimension_numbers<[1], [0], [0], [1], [0, 0, 1, 1], [], []>} : vector<32x32xbf16>, vector<32x32xbf16>, vector<32x32xf32> -> vector<32x32xf32>
    %c0_42 = arith.constant 0 : index
    %c0_43 = arith.constant 0 : index
    %c0_44 = arith.constant 0 : index
    %114 = vector.load %arg9[%c0_42, %c0_43, %c0_44] : memref<1x1x32xf32, #tpu.memory_space<vmem>>, vector<1x1x32xf32>
    %115 = vector.shape_cast %114 : vector<1x1x32xf32> to vector<1x32xf32>
    %116 = vector.broadcast %115 : vector<1x32xf32> to vector<32x32xf32>
    %117 = arith.addf %113, %116 : vector<32x32xf32>
    %118 = arith.addf %1, %117 : vector<32x32xf32>
    %c0_45 = arith.constant 0 : index
    %c0_46 = arith.constant 0 : index
    %c0_47 = arith.constant 0 : index
    %119 = vector.load %arg10[%c0_45, %c0_46, %c0_47] : memref<1x1x32xf32, #tpu.memory_space<vmem>>, vector<1x1x32xf32>
    %120 = vector.shape_cast %119 : vector<1x1x32xf32> to vector<1x32xf32>
    %c0_48 = arith.constant 0 : index
    %c0_49 = arith.constant 0 : index
    %c0_50 = arith.constant 0 : index
    %121 = vector.load %arg11[%c0_48, %c0_49, %c0_50] : memref<1x1x32xf32, #tpu.memory_space<vmem>>, vector<1x1x32xf32>
    %122 = vector.shape_cast %121 : vector<1x1x32xf32> to vector<1x32xf32>
    %cst_51 = arith.constant dense<0.000000e+00> : vector<32xf32>
    %123 = vector.multi_reduction <add>, %118, %cst_51 [1] : vector<32x32xf32> to vector<32xf32>
    %124 = vector.shape_cast %123 : vector<32xf32> to vector<32x1xf32>
    %cst_52 = arith.constant 3.200000e+01 : f32
    %125 = vector.broadcast %cst_52 : f32 to vector<32x1xf32>
    %126 = arith.divf %124, %125 : vector<32x1xf32>
    %127 = vector.broadcast %126 : vector<32x1xf32> to vector<32x32xf32>
    %128 = arith.subf %118, %127 : vector<32x32xf32>
    %129 = arith.mulf %128, %128 : vector<32x32xf32>
    %cst_53 = arith.constant dense<0.000000e+00> : vector<32xf32>
    %130 = vector.multi_reduction <add>, %129, %cst_53 [1] : vector<32x32xf32> to vector<32xf32>
    %131 = vector.shape_cast %130 : vector<32xf32> to vector<32x1xf32>
    %cst_54 = arith.constant 3.200000e+01 : f32
    %132 = vector.broadcast %cst_54 : f32 to vector<32x1xf32>
    %133 = arith.divf %131, %132 : vector<32x1xf32>
    %134 = vector.broadcast %126 : vector<32x1xf32> to vector<32x32xf32>
    %135 = arith.subf %118, %134 : vector<32x32xf32>
    %cst_55 = arith.constant 9.99999974E-6 : f32
    %136 = vector.broadcast %cst_55 : f32 to vector<32x1xf32>
    %137 = arith.addf %133, %136 : vector<32x1xf32>
    %138 = math.rsqrt %137 : vector<32x1xf32>
    %139 = vector.broadcast %138 : vector<32x1xf32> to vector<32x32xf32>
    %140 = arith.mulf %135, %139 : vector<32x32xf32>
    %141 = vector.broadcast %120 : vector<1x32xf32> to vector<32x32xf32>
    %142 = arith.mulf %140, %141 : vector<32x32xf32>
    %143 = vector.broadcast %122 : vector<1x32xf32> to vector<32x32xf32>
    %144 = arith.addf %142, %143 : vector<32x32xf32>
    %c0_56 = arith.constant 0 : index
    %c0_57 = arith.constant 0 : index
    %c0_58 = arith.constant 0 : index
    %c0_59 = arith.constant 0 : index
    %145 = vector.load %arg12[%c0_56, %c0_57, %c0_58, %c0_59] : memref<1x1x32x32xf32, #tpu.memory_space<vmem>>, vector<1x1x32x32xf32>
    %146 = vector.shape_cast %145 : vector<1x1x32x32xf32> to vector<32x32xf32>
    %147 = vector.shape_cast %144 : vector<32x32xf32> to vector<1x1x32x32xf32>
    tpu.vector_store %arg12[%c0_56, %c0_57, %c0_58, %c0_59], %147 {strides = array<i32>} : memref<1x1x32x32xf32, #tpu.memory_space<vmem>>, vector<1x1x32x32xf32>,
    return
  }
  func.func @transform_0(%arg0: i32, %arg1: i32) -> (i32, i32, i32, i32) {
    %c0_i32 = arith.constant 0 : i32
    %c0_i32_0 = arith.constant 0 : i32
    %c0_i32_1 = arith.constant 0 : i32
    return %arg0, %arg1, %c0_i32, %c0_i32_0 : i32, i32, i32, i32
  }
  func.func @transform_1(%arg0: i32, %arg1: i32) -> (i32, i32, i32) {
    %c0_i32 = arith.constant 0 : i32
    %c0_i32_0 = arith.constant 0 : i32
    %c0_i32_1 = arith.constant 0 : i32
    return %arg1, %c0_i32, %c0_i32_0 : i32, i32, i32
  }
  func.func @transform_2(%arg0: i32, %arg1: i32) -> (i32, i32, i32) {
    %c0_i32 = arith.constant 0 : i32
    %c0_i32_0 = arith.constant 0 : i32
    %c0_i32_1 = arith.constant 0 : i32
    return %arg0, %c0_i32, %c0_i32_0 : i32, i32, i32
  }
  func.func @transform_3(%arg0: i32, %arg1: i32) -> (i32, i32, i32) {
    %c0_i32 = arith.constant 0 : i32
    %c0_i32_0 = arith.constant 0 : i32
    %c0_i32_1 = arith.constant 0 : i32
    return %arg0, %c0_i32, %c0_i32_0 : i32, i32, i32
  }
  func.func @transform_4(%arg0: i32, %arg1: i32) -> (i32, i32, i32) {
    %c0_i32 = arith.constant 0 : i32
    %c0_i32_0 = arith.constant 0 : i32
    %c0_i32_1 = arith.constant 0 : i32
    return %arg0, %c0_i32, %c0_i32_0 : i32, i32, i32
  }
  func.func @transform_5(%arg0: i32, %arg1: i32) -> (i32, i32, i32) {
    %c0_i32 = arith.constant 0 : i32
    %c0_i32_0 = arith.constant 0 : i32
    %c0_i32_1 = arith.constant 0 : i32
    return %arg0, %c0_i32, %c0_i32_0 : i32, i32, i32
  }
  func.func @transform_6(%arg0: i32, %arg1: i32) -> (i32, i32, i32) {
    %c0_i32 = arith.constant 0 : i32
    %c0_i32_0 = arith.constant 0 : i32
    %c0_i32_1 = arith.constant 0 : i32
    return %arg0, %c0_i32, %c0_i32_0 : i32, i32, i32
  }
  func.func @transform_7(%arg0: i32, %arg1: i32) -> (i32, i32, i32) {
    %c0_i32 = arith.constant 0 : i32
    %c0_i32_0 = arith.constant 0 : i32
    %c0_i32_1 = arith.constant 0 : i32
    return %arg0, %c0_i32, %c0_i32_0 : i32, i32, i32
  }
  func.func @transform_8(%arg0: i32, %arg1: i32) -> (i32, i32, i32) {
    %c0_i32 = arith.constant 0 : i32
    %c0_i32_0 = arith.constant 0 : i32
    %c0_i32_1 = arith.constant 0 : i32
    return %arg0, %c0_i32, %c0_i32_0 : i32, i32, i32
  }
  func.func @transform_9(%arg0: i32, %arg1: i32) -> (i32, i32, i32) {
    %c0_i32 = arith.constant 0 : i32
    %c0_i32_0 = arith.constant 0 : i32
    %c0_i32_1 = arith.constant 0 : i32
    return %arg0, %c0_i32, %c0_i32_0 : i32, i32, i32
  }
  func.func @transform_10(%arg0: i32, %arg1: i32) -> (i32, i32, i32, i32) {
    %c0_i32 = arith.constant 0 : i32
    %c0_i32_0 = arith.constant 0 : i32
    %c0_i32_1 = arith.constant 0 : i32
    return %arg0, %arg1, %c0_i32, %c0_i32_0 : i32, i32, i32, i32
  }
}

module attributes {stable_mosaic.version = 11 : i64} {
  func.func @_attn_kernel(%arg0: i32, %arg1: i32, %arg2: memref<1x1x32x32xf32, #tpu.memory_space<vmem>>, %arg3: memref<1x32x32xf32, #tpu.memory_space<vmem>>, %arg4: memref<1x32x32xbf16, #tpu.memory_space<vmem>>, %arg5: memref<1x1x32xf32, #tpu.memory_space<vmem>>, %arg6: memref<1x32x64xbf16, #tpu.memory_space<vmem>>, %arg7: memref<1x1x64xf32, #tpu.memory_space<vmem>>, %arg8: memref<1x32x32xbf16, #tpu.memory_space<vmem>>, %arg9: memref<1x1x32xf32, #tpu.memory_space<vmem>>, %arg10: memref<1x1x32xf32, #tpu.memory_space<vmem>>, %arg11: memref<1x1x32xf32, #tpu.memory_space<vmem>>, %arg12: memref<1x1x32x32xf32, #tpu.memory_space<vmem>>) attributes {dimension_semantics = [#tpu.dimension_semantics<parallel>, #tpu.dimension_semantics<parallel>], iteration_bounds = array<i64: 2, 2>, scalar_prefetch = 0 : i64, scratch_operands = 0 : i64, tpu.core_type = #tpu.core_type<tc>, window_params = [{transform_indices = @transform_0, window_bounds = array<i64: 1, 1, 32, 32>}, {transform_indices = @transform_1, window_bounds = array<i64: 1, 32, 32>}, {transform_indices = @transform_2, window_bounds = array<i64: 1, 32, 32>}, {transform_indices = @transform_3, window_bounds = array<i64: 1, 1, 32>}, {transform_indices = @transform_4, window_bounds = array<i64: 1, 32, 64>}, {transform_indices = @transform_5, window_bounds = array<i64: 1, 1, 64>}, {transform_indices = @transform_6, window_bounds = array<i64: 1, 32, 32>}, {transform_indices = @transform_7, window_bounds = array<i64: 1, 1, 32>}, {transform_indices = @transform_8, window_bounds = array<i64: 1, 1, 32>}, {transform_indices = @transform_9, window_bounds = array<i64: 1, 1, 32>}, {transform_indices = @transform_10, window_bounds = array<i64: 1, 1, 32, 32>}]} {
    %c0 = arith.constant 0 : index
    %c0_0 = arith.constant 0 : index
    %c0_1 = arith.constant 0 : index
    %c0_2 = arith.constant 0 : index
    %0 = vector.load %arg2[%c0, %c0_0, %c0_1, %c0_2] : memref<1x1x32x32xf32, #tpu.memory_space<vmem>>, vector<1x1x32x32xf32>
    %1 = vector.shape_cast %0 : vector<1x1x32x32xf32> to vector<32x32xf32>
    %c0_3 = arith.constant 0 : index
    %c0_4 = arith.constant 0 : index
    %c0_5 = arith.constant 0 : index
    %2 = vector.load %arg3[%c0_3, %c0_4, %c0_5] : memref<1x32x32xf32, #tpu.memory_space<vmem>>, vector<1x32x32xf32>
    %3 = vector.shape_cast %2 : vector<1x32x32xf32> to vector<32x32xf32>
    %4 = arith.truncf %1 : vector<32x32xf32> to vector<32x32xbf16>
    %c0_6 = arith.constant 0 : index
    %c0_7 = arith.constant 0 : index
    %c0_8 = arith.constant 0 : index
    %5 = vector.load %arg4[%c0_6, %c0_7, %c0_8] : memref<1x32x32xbf16, #tpu.memory_space<vmem>>, vector<1x32x32xbf16>
    %6 = vector.shape_cast %5 : vector<1x32x32xbf16> to vector<32x32xbf16>
    %cst = arith.constant dense<0.000000e+00> : vector<32x32xf32>
    %7 = tpu.matmul %4, %6, %cst {dimension_numbers = #tpu.dot_dimension_numbers<[1], [0], [0], [1], [0, 0, 1, 1], [], []>} : vector<32x32xbf16>, vector<32x32xbf16>, vector<32x32xf32> -> vector<32x32xf32>
    %c0_9 = arith.constant 0 : index
    %c0_10 = arith.constant 0 : index
    %c0_11 = arith.constant 0 : index
    %8 = vector.load %arg5[%c0_9, %c0_10, %c0_11] : memref<1x1x32xf32, #tpu.memory_space<vmem>>, vector<1x1x32xf32>
    %9 = vector.shape_cast %8 : vector<1x1x32xf32> to vector<1x32xf32>
    %10 = vector.broadcast %9 : vector<1x32xf32> to vector<32x32xf32>
    %11 = arith.addf %7, %10 : vector<32x32xf32>
    %cst_12 = arith.constant 0.353553385 : f32
    %12 = vector.broadcast %cst_12 : f32 to vector<32x32xf32>
    %13 = arith.mulf %11, %12 : vector<32x32xf32>
    %14 = arith.truncf %3 : vector<32x32xf32> to vector<32x32xbf16>
    %c0_13 = arith.constant 0 : index
    %c0_14 = arith.constant 0 : index
    %c0_15 = arith.constant 0 : index
    %15 = vector.load %arg6[%c0_13, %c0_14, %c0_15] : memref<1x32x64xbf16, #tpu.memory_space<vmem>>, vector<1x32x64xbf16>
    %16 = vector.shape_cast %15 : vector<1x32x64xbf16> to vector<32x64xbf16>
    %cst_16 = arith.constant dense<0.000000e+00> : vector<32x64xf32>
    %17 = tpu.matmul %14, %16, %cst_16 {dimension_numbers = #tpu.dot_dimension_numbers<[1], [0], [0], [1], [0, 0, 1, 1], [], []>} : vector<32x32xbf16>, vector<32x64xbf16>, vector<32x64xf32> -> vector<32x64xf32>
    %c0_17 = arith.constant 0 : index
    %c0_18 = arith.constant 0 : index
    %c0_19 = arith.constant 0 : index
    %18 = vector.load %arg7[%c0_17, %c0_18, %c0_19] : memref<1x1x64xf32, #tpu.memory_space<vmem>>, vector<1x1x64xf32>
    %19 = vector.shape_cast %18 : vector<1x1x64xf32> to vector<1x64xf32>
    %20 = vector.broadcast %19 : vector<1x64xf32> to vector<32x64xf32>
    %21 = arith.addf %17, %20 : vector<32x64xf32>
    %22 = vector.extract_strided_slice %21 {offsets = [0, 0], sizes = [32, 32], strides = [1, 1]} : vector<32x64xf32> to vector<32x32xf32>
    %23 = tpu.transpose %22, [1, 0] : vector<32x32xf32> -> vector<32x32xf32>
    %24 = arith.truncf %23 : vector<32x32xf32> to vector<32x32xbf16>
    %25 = vector.extract_strided_slice %21 {offsets = [0, 32], sizes = [32, 32], strides = [1, 1]} : vector<32x64xf32> to vector<32x32xf32>
    %26 = arith.truncf %25 : vector<32x32xf32> to vector<32x32xbf16>
    %27 = tpu.iota {dimensions = array<i32: 1>} : vector<1x32xi32>
    %c25_i32 = arith.constant 25 : i32
    %28 = vector.broadcast %c25_i32 : i32 to vector<1x32xi32>
    %29 = arith.cmpi slt, %27, %28 : vector<1x32xi32>
    %cst_20 = arith.constant 0.000000e+00 : f32
    %cst_21 = arith.constant -1.000000e+30 : f32
    %30 = vector.broadcast %cst_20 : f32 to vector<1x32xf32>
    %31 = vector.broadcast %cst_21 : f32 to vector<1x32xf32>
    %32 = arith.select %29, %30, %31 : vector<1x32xi1>, vector<1x32xf32>
    %33 = vector.extract_strided_slice %13 {offsets = [0, 0], sizes = [32, 8], strides = [1, 1]} : vector<32x32xf32> to vector<32x8xf32>
    %34 = arith.truncf %33 : vector<32x8xf32> to vector<32x8xbf16>
    %35 = vector.extract_strided_slice %24 {offsets = [0, 0], sizes = [8, 32], strides = [1, 1]} : vector<32x32xbf16> to vector<8x32xbf16>
    %cst_22 = arith.constant dense<0.000000e+00> : vector<32x32xf32>
    %36 = tpu.matmul %34, %35, %cst_22 {dimension_numbers = #tpu.dot_dimension_numbers<[1], [0], [0], [1], [0, 0, 1, 1], [], []>} : vector<32x8xbf16>, vector<8x32xbf16>, vector<32x32xf32> -> vector<32x32xf32>
    %37 = vector.broadcast %32 : vector<1x32xf32> to vector<32x32xf32>
    %38 = arith.addf %36, %37 : vector<32x32xf32>
    %cst_23 = arith.constant dense<0xFF800000> : vector<32xf32>
    %39 = vector.multi_reduction <maximumf>, %38, %cst_23 [1] : vector<32x32xf32> to vector<32xf32>
    %40 = vector.shape_cast %39 : vector<32xf32> to vector<32x1xf32>
    %41 = vector.broadcast %40 : vector<32x1xf32> to vector<32x32xf32>
    %42 = arith.subf %38, %41 : vector<32x32xf32>
    %43 = math.exp %42 : vector<32x32xf32>
    %cst_24 = arith.constant dense<0.000000e+00> : vector<32xf32>
    %44 = vector.multi_reduction <add>, %43, %cst_24 [1] : vector<32x32xf32> to vector<32xf32>
    %45 = vector.shape_cast %44 : vector<32xf32> to vector<32x1xf32>
    %46 = tpu.reciprocal %45 {approx = true} : vector<32x1xf32> -> vector<32x1xf32>
    %47 = arith.truncf %43 : vector<32x32xf32> to vector<32x32xbf16>
    %48 = vector.extract_strided_slice %26 {offsets = [0, 0], sizes = [32, 8], strides = [1, 1]} : vector<32x32xbf16> to vector<32x8xbf16>
    %cst_25 = arith.constant dense<0.000000e+00> : vector<32x8xf32>
    %49 = tpu.matmul %47, %48, %cst_25 {dimension_numbers = #tpu.dot_dimension_numbers<[1], [0], [0], [1], [0, 0, 1, 1], [], []>} : vector<32x32xbf16>, vector<32x8xbf16>, vector<32x8xf32> -> vector<32x8xf32>
    %50 = vector.broadcast %46 : vector<32x1xf32> to vector<32x8xf32>
    %51 = arith.mulf %49, %50 : vector<32x8xf32>
    %52 = vector.extract_strided_slice %13 {offsets = [0, 8], sizes = [32, 8], strides = [1, 1]} : vector<32x32xf32> to vector<32x8xf32>
    %53 = arith.truncf %52 : vector<32x8xf32> to vector<32x8xbf16>
    %54 = vector.extract_strided_slice %24 {offsets = [8, 0], sizes = [8, 32], strides = [1, 1]} : vector<32x32xbf16> to vector<8x32xbf16>
    %cst_26 = arith.constant dense<0.000000e+00> : vector<32x32xf32>
    %55 = tpu.matmul %53, %54, %cst_26 {dimension_numbers = #tpu.dot_dimension_numbers<[1], [0], [0], [1], [0, 0, 1, 1], [], []>} : vector<32x8xbf16>, vector<8x32xbf16>, vector<32x32xf32> -> vector<32x32xf32>
    %56 = vector.broadcast %32 : vector<1x32xf32> to vector<32x32xf32>
    %57 = arith.addf %55, %56 : vector<32x32xf32>
    %cst_27 = arith.constant dense<0xFF800000> : vector<32xf32>
    %58 = vector.multi_reduction <maximumf>, %57, %cst_27 [1] : vector<32x32xf32> to vector<32xf32>
    %59 = vector.shape_cast %58 : vector<32xf32> to vector<32x1xf32>
    %60 = vector.broadcast %59 : vector<32x1xf32> to vector<32x32xf32>
    %61 = arith.subf %57, %60 : vector<32x32xf32>
    %62 = math.exp %61 : vector<32x32xf32>
    %cst_28 = arith.constant dense<0.000000e+00> : vector<32xf32>
    %63 = vector.multi_reduction <add>, %62, %cst_28 [1] : vector<32x32xf32> to vector<32xf32>
    %64 = vector.shape_cast %63 : vector<32xf32> to vector<32x1xf32>
    %65 = tpu.reciprocal %64 {approx = true} : vector<32x1xf32> -> vector<32x1xf32>
    %66 = arith.truncf %62 : vector<32x32xf32> to vector<32x32xbf16>
    %67 = vector.extract_strided_slice %26 {offsets = [0, 8], sizes = [32, 8], strides = [1, 1]} : vector<32x32xbf16> to vector<32x8xbf16>
    %cst_29 = arith.constant dense<0.000000e+00> : vector<32x8xf32>
    %68 = tpu.matmul %66, %67, %cst_29 {dimension_numbers = #tpu.dot_dimension_numbers<[1], [0], [0], [1], [0, 0, 1, 1], [], []>} : vector<32x32xbf16>, vector<32x8xbf16>, vector<32x8xf32> -> vector<32x8xf32>
    %69 = vector.broadcast %65 : vector<32x1xf32> to vector<32x8xf32>
    %70 = arith.mulf %68, %69 : vector<32x8xf32>
    %71 = vector.extract_strided_slice %13 {offsets = [0, 16], sizes = [32, 8], strides = [1, 1]} : vector<32x32xf32> to vector<32x8xf32>
    %72 = arith.truncf %71 : vector<32x8xf32> to vector<32x8xbf16>
    %73 = vector.extract_strided_slice %24 {offsets = [16, 0], sizes = [8, 32], strides = [1, 1]} : vector<32x32xbf16> to vector<8x32xbf16>
    %cst_30 = arith.constant dense<0.000000e+00> : vector<32x32xf32>
    %74 = tpu.matmul %72, %73, %cst_30 {dimension_numbers = #tpu.dot_dimension_numbers<[1], [0], [0], [1], [0, 0, 1, 1], [], []>} : vector<32x8xbf16>, vector<8x32xbf16>, vector<32x32xf32> -> vector<32x32xf32>
    %75 = vector.broadcast %32 : vector<1x32xf32> to vector<32x32xf32>
    %76 = arith.addf %74, %75 : vector<32x32xf32>
    %cst_31 = arith.constant dense<0xFF800000> : vector<32xf32>
    %77 = vector.multi_reduction <maximumf>, %76, %cst_31 [1] : vector<32x32xf32> to vector<32xf32>
    %78 = vector.shape_cast %77 : vector<32xf32> to vector<32x1xf32>
    %79 = vector.broadcast %78 : vector<32x1xf32> to vector<32x32xf32>
    %80 = arith.subf %76, %79 : vector<32x32xf32>
    %81 = math.exp %80 : vector<32x32xf32>
    %cst_32 = arith.constant dense<0.000000e+00> : vector<32xf32>
    %82 = vector.multi_reduction <add>, %81, %cst_32 [1] : vector<32x32xf32> to vector<32xf32>
    %83 = vector.shape_cast %82 : vector<32xf32> to vector<32x1xf32>
    %84 = tpu.reciprocal %83 {approx = true} : vector<32x1xf32> -> vector<32x1xf32>
    %85 = arith.truncf %81 : vector<32x32xf32> to vector<32x32xbf16>
    %86 = vector.extract_strided_slice %26 {offsets = [0, 16], sizes = [32, 8], strides = [1, 1]} : vector<32x32xbf16> to vector<32x8xbf16>
    %cst_33 = arith.constant dense<0.000000e+00> : vector<32x8xf32>
    %87 = tpu.matmul %85, %86, %cst_33 {dimension_numbers = #tpu.dot_dimension_numbers<[1], [0], [0], [1], [0, 0, 1, 1], [], []>} : vector<32x32xbf16>, vector<32x8xbf16>, vector<32x8xf32> -> vector<32x8xf32>
    %88 = vector.broadcast %84 : vector<32x1xf32> to vector<32x8xf32>
    %89 = arith.mulf %87, %88 : vector<32x8xf32>
    %90 = vector.extract_strided_slice %13 {offsets = [0, 24], sizes = [32, 8], strides = [1, 1]} : vector<32x32xf32> to vector<32x8xf32>
    %91 = arith.truncf %90 : vector<32x8xf32> to vector<32x8xbf16>
    %92 = vector.extract_strided_slice %24 {offsets = [24, 0], sizes = [8, 32], strides = [1, 1]} : vector<32x32xbf16> to vector<8x32xbf16>
    %cst_34 = arith.constant dense<0.000000e+00> : vector<32x32xf32>
    %93 = tpu.matmul %91, %92, %cst_34 {dimension_numbers = #tpu.dot_dimension_numbers<[1], [0], [0], [1], [0, 0, 1, 1], [], []>} : vector<32x8xbf16>, vector<8x32xbf16>, vector<32x32xf32> -> vector<32x32xf32>
    %94 = vector.broadcast %32 : vector<1x32xf32> to vector<32x32xf32>
    %95 = arith.addf %93, %94 : vector<32x32xf32>
    %cst_35 = arith.constant dense<0xFF800000> : vector<32xf32>
    %96 = vector.multi_reduction <maximumf>, %95, %cst_35 [1] : vector<32x32xf32> to vector<32xf32>
    %97 = vector.shape_cast %96 : vector<32xf32> to vector<32x1xf32>
    %98 = vector.broadcast %97 : vector<32x1xf32> to vector<32x32xf32>
    %99 = arith.subf %95, %98 : vector<32x32xf32>
    %100 = math.exp %99 : vector<32x32xf32>
    %cst_36 = arith.constant dense<0.000000e+00> : vector<32xf32>
    %101 = vector.multi_reduction <add>, %100, %cst_36 [1] : vector<32x32xf32> to vector<32xf32>
    %102 = vector.shape_cast %101 : vector<32xf32> to vector<32x1xf32>
    %103 = tpu.reciprocal %102 {approx = true} : vector<32x1xf32> -> vector<32x1xf32>
    %104 = arith.truncf %100 : vector<32x32xf32> to vector<32x32xbf16>
    %105 = vector.extract_strided_slice %26 {offsets = [0, 24], sizes = [32, 8], strides = [1, 1]} : vector<32x32xbf16> to vector<32x8xbf16>
    %cst_37 = arith.constant dense<0.000000e+00> : vector<32x8xf32>
    %106 = tpu.matmul %104, %105, %cst_37 {dimension_numbers = #tpu.dot_dimension_numbers<[1], [0], [0], [1], [0, 0, 1, 1], [], []>} : vector<32x32xbf16>, vector<32x8xbf16>, vector<32x8xf32> -> vector<32x8xf32>
    %107 = vector.broadcast %103 : vector<32x1xf32> to vector<32x8xf32>
    %108 = arith.mulf %106, %107 : vector<32x8xf32>
    %109 = tpu.concatenate %51, %70, %89, %108 in 1 : vector<32x8xf32>, vector<32x8xf32>, vector<32x8xf32>, vector<32x8xf32> -> vector<32x32xf32>
    %110 = arith.truncf %109 : vector<32x32xf32> to vector<32x32xbf16>
    %c0_38 = arith.constant 0 : index
    %c0_39 = arith.constant 0 : index
    %c0_40 = arith.constant 0 : index
    %111 = vector.load %arg8[%c0_38, %c0_39, %c0_40] : memref<1x32x32xbf16, #tpu.memory_space<vmem>>, vector<1x32x32xbf16>
    %112 = vector.shape_cast %111 : vector<1x32x32xbf16> to vector<32x32xbf16>
    %cst_41 = arith.constant dense<0.000000e+00> : vector<32x32xf32>
    %113 = tpu.matmul %110, %112, %cst_41 {dimension_numbers = #tpu.dot_dimension_numbers<[1], [0], [0], [1], [0, 0, 1, 1], [], []>} : vector<32x32xbf16>, vector<32x32xbf16>, vector<32x32xf32> -> vector<32x32xf32>
    %c0_42 = arith.constant 0 : index
    %c0_43 = arith.constant 0 : index
    %c0_44 = arith.constant 0 : index
    %114 = vector.load %arg9[%c0_42, %c0_43, %c0_44] : memref<1x1x32xf32, #tpu.memory_space<vmem>>, vector<1x1x32xf32>
    %115 = vector.shape_cast %114 : vector<1x1x32xf32> to vector<1x32xf32>
    %116 = vector.broadcast %115 : vector<1x32xf32> to vector<32x32xf32>
    %117 = arith.addf %113, %116 : vector<32x32xf32>
    %118 = arith.addf %1, %117 : vector<32x32xf32>
    %c0_45 = arith.constant 0 : index
    %c0_46 = arith.constant 0 : index
    %c0_47 = arith.constant 0 : index
    %119 = vector.load %arg10[%c0_45, %c0_46, %c0_47] : memref<1x1x32xf32, #tpu.memory_space<vmem>>, vector<1x1x32xf32>
    %120 = vector.shape_cast %119 : vector<1x1x32xf32> to vector<1x32xf32>
    %c0_48 = arith.constant 0 : index
    %c0_49 = arith.constant 0 : index
    %c0_50 = arith.constant 0 : index
    %121 = vector.load %arg11[%c0_48, %c0_49, %c0_50] : memref<1x1x32xf32, #tpu.memory_space<vmem>>, vector<1x1x32xf32>
    %122 = vector.shape_cast %121 : vector<1x1x32xf32> to vector<1x32xf32>
    %cst_51 = arith.constant dense<0.000000e+00> : vector<32xf32>
    %123 = vector.multi_reduction <add>, %118, %cst_51 [1] : vector<32x32xf32> to vector<32xf32>
    %124 = vector.shape_cast %123 : vector<32xf32> to vector<32x1xf32>
    %cst_52 = arith.constant 3.200000e+01 : f32
    %125 = vector.broadcast %cst_52 : f32 to vector<32x1xf32>
    %126 = arith.divf %124, %125 : vector<32x1xf32>
    %127 = vector.broadcast %126 : vector<32x1xf32> to vector<32x32xf32>
    %128 = arith.subf %118, %127 : vector<32x32xf32>
    %129 = arith.mulf %128, %128 : vector<32x32xf32>
    %cst_53 = arith.constant dense<0.000000e+00> : vector<32xf32>
    %130 = vector.multi_reduction <add>, %129, %cst_53 [1] : vector<32x32xf32> to vector<32xf32>
    %131 = vector.shape_cast %130 : vector<32xf32> to vector<32x1xf32>
    %cst_54 = arith.constant 3.200000e+01 : f32
    %132 = vector.broadcast %cst_54 : f32 to vector<32x1xf32>
    %133 = arith.divf %131, %132 : vector<32x1xf32>
    %134 = vector.broadcast %126 : vector<32x1xf32> to vector<32x32xf32>
    %135 = arith.subf %118, %134 : vector<32x32xf32>
    %cst_55 = arith.constant 9.99999974E-6 : f32
    %136 = vector.broadcast %cst_55 : f32 to vector<32x1xf32>
    %137 = arith.addf %133, %136 : vector<32x1xf32>
    %138 = math.rsqrt %137 : vector<32x1xf32>
    %139 = vector.broadcast %138 : vector<32x1xf32> to vector<32x32xf32>
    %140 = arith.mulf %135, %139 : vector<32x32xf32>
    %141 = vector.broadcast %120 : vector<1x32xf32> to vector<32x32xf32>
    %142 = arith.mulf %140, %141 : vector<32x32xf32>
    %143 = vector.broadcast %122 : vector<1x32xf32> to vector<32x32xf32>
    %144 = arith.addf %142, %143 : vector<32x32xf32>
    %c0_56 = arith.constant 0 : index
    %c0_57 = arith.constant 0 : index
    %c0_58 = arith.constant 0 : index
    %c0_59 = arith.constant 0 : index
    %145 = vector.load %arg12[%c0_56, %c0_57, %c0_58, %c0_59] : memref<1x1x32x32xf32, #tpu.memory_space<vmem>>, vector<1x1x32x32xf32>
    %146 = vector.shape_cast %145 : vector<1x1x32x32xf32> to vector<32x32xf32>
    %147 = vector.shape_cast %144 : vector<32x32xf32> to vector<1x1x32x32xf32>
    tpu.vector_store %arg12[%c0_56, %c0_57, %c0_58, %c0_59], %147 {strides = array<i32>} : memref<1x1x32x32xf32, #tpu.memory_space<vmem>>, vector<1x1x32x32xf32>,
    return
  }
  func.func @transform_0(%arg0: i32, %arg1: i32) -> (i32, i32, i32, i32) {
    %c0_i32 = arith.constant 0 : i32
    %c0_i32_0 = arith.constant 0 : i32
    %c0_i32_1 = arith.constant 0 : i32
    return %arg0, %arg1, %c0_i32, %c0_i32_0 : i32, i32, i32, i32
  }
  func.func @transform_1(%arg0: i32, %arg1: i32) -> (i32, i32, i32) {
    %c0_i32 = arith.constant 0 : i32
    %c0_i32_0 = arith.constant 0 : i32
    %c0_i32_1 = arith.constant 0 : i32
    return %arg1, %c0_i32, %c0_i32_0 : i32, i32, i32
  }
  func.func @transform_2(%arg0: i32, %arg1: i32) -> (i32, i32, i32) {
    %c0_i32 = arith.constant 0 : i32
    %c0_i32_0 = arith.constant 0 : i32
    %c0_i32_1 = arith.constant 0 : i32
    return %arg0, %c0_i32, %c0_i32_0 : i32, i32, i32
  }
  func.func @transform_3(%arg0: i32, %arg1: i32) -> (i32, i32, i32) {
    %c0_i32 = arith.constant 0 : i32
    %c0_i32_0 = arith.constant 0 : i32
    %c0_i32_1 = arith.constant 0 : i32
    return %arg0, %c0_i32, %c0_i32_0 : i32, i32, i32
  }
  func.func @transform_4(%arg0: i32, %arg1: i32) -> (i32, i32, i32) {
    %c0_i32 = arith.constant 0 : i32
    %c0_i32_0 = arith.constant 0 : i32
    %c0_i32_1 = arith.constant 0 : i32
    return %arg0, %c0_i32, %c0_i32_0 : i32, i32, i32
  }
  func.func @transform_5(%arg0: i32, %arg1: i32) -> (i32, i32, i32) {
    %c0_i32 = arith.constant 0 : i32
    %c0_i32_0 = arith.constant 0 : i32
    %c0_i32_1 = arith.constant 0 : i32
    return %arg0, %c0_i32, %c0_i32_0 : i32, i32, i32
  }
  func.func @transform_6(%arg0: i32, %arg1: i32) -> (i32, i32, i32) {
    %c0_i32 = arith.constant 0 : i32
    %c0_i32_0 = arith.constant 0 : i32
    %c0_i32_1 = arith.constant 0 : i32
    return %arg0, %c0_i32, %c0_i32_0 : i32, i32, i32
  }
  func.func @transform_7(%arg0: i32, %arg1: i32) -> (i32, i32, i32) {
    %c0_i32 = arith.constant 0 : i32
    %c0_i32_0 = arith.constant 0 : i32
    %c0_i32_1 = arith.constant 0 : i32
    return %arg0, %c0_i32, %c0_i32_0 : i32, i32, i32
  }
  func.func @transform_8(%arg0: i32, %arg1: i32) -> (i32, i32, i32) {
    %c0_i32 = arith.constant 0 : i32
    %c0_i32_0 = arith.constant 0 : i32
    %c0_i32_1 = arith.constant 0 : i32
    return %arg0, %c0_i32, %c0_i32_0 : i32, i32, i32
  }
  func.func @transform_9(%arg0: i32, %arg1: i32) -> (i32, i32, i32) {
    %c0_i32 = arith.constant 0 : i32
    %c0_i32_0 = arith.constant 0 : i32
    %c0_i32_1 = arith.constant 0 : i32
    return %arg0, %c0_i32, %c0_i32_0 : i32, i32, i32
  }
  func.func @transform_10(%arg0: i32, %arg1: i32) -> (i32, i32, i32, i32) {
    %c0_i32 = arith.constant 0 : i32
    %c0_i32_0 = arith.constant 0 : i32
    %c0_i32_1 = arith.constant 0 : i32
    return %arg0, %arg1, %c0_i32, %c0_i32_0 : i32, i32, i32, i32
  }
}

module attributes {stable_mosaic.version = 11 : i64} {
  func.func @_gap_ffn_kernel(%arg0: i32, %arg1: i32, %arg2: memref<1x1xf32, #tpu.memory_space<smem>>, %arg3: memref<1x32x32xf32, #tpu.memory_space<vmem>>, %arg4: memref<1x1x32xf32, #tpu.memory_space<vmem>>, %arg5: memref<32x64xbf16, #tpu.memory_space<vmem>>, %arg6: memref<1x64xf32, #tpu.memory_space<vmem>>, %arg7: memref<64x32xbf16, #tpu.memory_space<vmem>>, %arg8: memref<1x32xf32, #tpu.memory_space<vmem>>, %arg9: memref<1x32xf32, #tpu.memory_space<vmem>>, %arg10: memref<1x32xf32, #tpu.memory_space<vmem>>, %arg11: memref<1x32xf32, #tpu.memory_space<vmem>>, %arg12: memref<1x32xf32, #tpu.memory_space<vmem>>, %arg13: memref<1x32x32xf32, #tpu.memory_space<vmem>>) attributes {dimension_semantics = [#tpu.dimension_semantics<parallel>, #tpu.dimension_semantics<parallel>], iteration_bounds = array<i64: 2, 1>, scalar_prefetch = 0 : i64, scratch_operands = 0 : i64, tpu.core_type = #tpu.core_type<tc>, window_params = [{transform_indices = @transform_0, window_bounds = array<i64: 1, 1>}, {transform_indices = @transform_1, window_bounds = array<i64: 1, 32, 32>}, {transform_indices = @transform_2, window_bounds = array<i64: 1, 1, 32>}, {pipeline_mode = #tpu.pipeline_mode<synchronous>, transform_indices = @transform_3, window_bounds = array<i64: 32, 64>}, {pipeline_mode = #tpu.pipeline_mode<synchronous>, transform_indices = @transform_4, window_bounds = array<i64: 1, 64>}, {pipeline_mode = #tpu.pipeline_mode<synchronous>, transform_indices = @transform_5, window_bounds = array<i64: 64, 32>}, {pipeline_mode = #tpu.pipeline_mode<synchronous>, transform_indices = @transform_6, window_bounds = array<i64: 1, 32>}, {pipeline_mode = #tpu.pipeline_mode<synchronous>, transform_indices = @transform_7, window_bounds = array<i64: 1, 32>}, {pipeline_mode = #tpu.pipeline_mode<synchronous>, transform_indices = @transform_8, window_bounds = array<i64: 1, 32>}, {pipeline_mode = #tpu.pipeline_mode<synchronous>, transform_indices = @transform_9, window_bounds = array<i64: 1, 32>}, {pipeline_mode = #tpu.pipeline_mode<synchronous>, transform_indices = @transform_10, window_bounds = array<i64: 1, 32>}, {transform_indices = @transform_11, window_bounds = array<i64: 1, 32, 32>}]} {
    %c0 = arith.constant 0 : index
    %c0_0 = arith.constant 0 : index
    %c0_1 = arith.constant 0 : index
    %0 = vector.load %arg3[%c0, %c0_0, %c0_1] : memref<1x32x32xf32, #tpu.memory_space<vmem>>, vector<1x32x32xf32>
    %1 = vector.shape_cast %0 : vector<1x32x32xf32> to vector<32x32xf32>
    %c0_2 = arith.constant 0 : index
    %c0_3 = arith.constant 0 : index
    %2 = memref.load %arg2[%c0_2, %c0_3] : memref<1x1xf32, #tpu.memory_space<smem>>
    %c0_4 = arith.constant 0 : index
    %c0_5 = arith.constant 0 : index
    %c0_6 = arith.constant 0 : index
    %3 = vector.load %arg4[%c0_4, %c0_5, %c0_6] : memref<1x1x32xf32, #tpu.memory_space<vmem>>, vector<1x1x32xf32>
    %4 = vector.shape_cast %3 : vector<1x1x32xf32> to vector<1x32xf32>
    %5 = vector.broadcast %2 : f32 to vector<1x32xf32>
    %6 = arith.mulf %5, %4 : vector<1x32xf32>
    %7 = vector.broadcast %6 : vector<1x32xf32> to vector<32x32xf32>
    %8 = arith.mulf %7, %1 : vector<32x32xf32>
    %9 = arith.addf %1, %8 : vector<32x32xf32>
    %10 = arith.truncf %9 : vector<32x32xf32> to vector<32x32xbf16>
    %c0_7 = arith.constant 0 : index
    %c0_8 = arith.constant 0 : index
    %11 = vector.load %arg5[%c0_7, %c0_8] : memref<32x64xbf16, #tpu.memory_space<vmem>>, vector<32x64xbf16>
    %cst = arith.constant dense<0.000000e+00> : vector<32x64xf32>
    %12 = tpu.matmul %10, %11, %cst {dimension_numbers = #tpu.dot_dimension_numbers<[1], [0], [0], [1], [0, 0, 1, 1], [], []>} : vector<32x32xbf16>, vector<32x64xbf16>, vector<32x64xf32> -> vector<32x64xf32>
    %c0_9 = arith.constant 0 : index
    %c0_10 = arith.constant 0 : index
    %13 = vector.load %arg6[%c0_9, %c0_10] : memref<1x64xf32, #tpu.memory_space<vmem>>, vector<1x64xf32>
    %14 = vector.broadcast %13 : vector<1x64xf32> to vector<32x64xf32>
    %15 = arith.addf %12, %14 : vector<32x64xf32>
    %cst_11 = arith.constant 0.000000e+00 : f32
    %16 = vector.broadcast %cst_11 : f32 to vector<32x64xf32>
    %17 = arith.maximumf %15, %16 : vector<32x64xf32>
    %18 = arith.truncf %17 : vector<32x64xf32> to vector<32x64xbf16>
    %c0_12 = arith.constant 0 : index
    %c0_13 = arith.constant 0 : index
    %19 = vector.load %arg7[%c0_12, %c0_13] : memref<64x32xbf16, #tpu.memory_space<vmem>>, vector<64x32xbf16>
    %cst_14 = arith.constant dense<0.000000e+00> : vector<32x32xf32>
    %20 = tpu.matmul %18, %19, %cst_14 {dimension_numbers = #tpu.dot_dimension_numbers<[1], [0], [0], [1], [0, 0, 1, 1], [], []>} : vector<32x64xbf16>, vector<64x32xbf16>, vector<32x32xf32> -> vector<32x32xf32>
    %c0_15 = arith.constant 0 : index
    %c0_16 = arith.constant 0 : index
    %21 = vector.load %arg8[%c0_15, %c0_16] : memref<1x32xf32, #tpu.memory_space<vmem>>, vector<1x32xf32>
    %22 = vector.broadcast %21 : vector<1x32xf32> to vector<32x32xf32>
    %23 = arith.addf %20, %22 : vector<32x32xf32>
    %24 = arith.addf %9, %23 : vector<32x32xf32>
    %c0_17 = arith.constant 0 : index
    %c0_18 = arith.constant 0 : index
    %25 = vector.load %arg9[%c0_17, %c0_18] : memref<1x32xf32, #tpu.memory_space<vmem>>, vector<1x32xf32>
    %c0_19 = arith.constant 0 : index
    %c0_20 = arith.constant 0 : index
    %26 = vector.load %arg10[%c0_19, %c0_20] : memref<1x32xf32, #tpu.memory_space<vmem>>, vector<1x32xf32>
    %cst_21 = arith.constant dense<0.000000e+00> : vector<32xf32>
    %27 = vector.multi_reduction <add>, %24, %cst_21 [1] : vector<32x32xf32> to vector<32xf32>
    %28 = vector.shape_cast %27 : vector<32xf32> to vector<32x1xf32>
    %cst_22 = arith.constant 3.200000e+01 : f32
    %29 = vector.broadcast %cst_22 : f32 to vector<32x1xf32>
    %30 = arith.divf %28, %29 : vector<32x1xf32>
    %31 = vector.broadcast %30 : vector<32x1xf32> to vector<32x32xf32>
    %32 = arith.subf %24, %31 : vector<32x32xf32>
    %33 = arith.mulf %32, %32 : vector<32x32xf32>
    %cst_23 = arith.constant dense<0.000000e+00> : vector<32xf32>
    %34 = vector.multi_reduction <add>, %33, %cst_23 [1] : vector<32x32xf32> to vector<32xf32>
    %35 = vector.shape_cast %34 : vector<32xf32> to vector<32x1xf32>
    %cst_24 = arith.constant 3.200000e+01 : f32
    %36 = vector.broadcast %cst_24 : f32 to vector<32x1xf32>
    %37 = arith.divf %35, %36 : vector<32x1xf32>
    %38 = vector.broadcast %30 : vector<32x1xf32> to vector<32x32xf32>
    %39 = arith.subf %24, %38 : vector<32x32xf32>
    %cst_25 = arith.constant 9.99999974E-6 : f32
    %40 = vector.broadcast %cst_25 : f32 to vector<32x1xf32>
    %41 = arith.addf %37, %40 : vector<32x1xf32>
    %42 = math.rsqrt %41 : vector<32x1xf32>
    %43 = vector.broadcast %42 : vector<32x1xf32> to vector<32x32xf32>
    %44 = arith.mulf %39, %43 : vector<32x32xf32>
    %45 = vector.broadcast %25 : vector<1x32xf32> to vector<32x32xf32>
    %46 = arith.mulf %44, %45 : vector<32x32xf32>
    %47 = vector.broadcast %26 : vector<1x32xf32> to vector<32x32xf32>
    %48 = arith.addf %46, %47 : vector<32x32xf32>
    %c0_26 = arith.constant 0 : index
    %c0_27 = arith.constant 0 : index
    %49 = vector.load %arg11[%c0_26, %c0_27] : memref<1x32xf32, #tpu.memory_space<vmem>>, vector<1x32xf32>
    %c0_28 = arith.constant 0 : index
    %c0_29 = arith.constant 0 : index
    %50 = vector.load %arg12[%c0_28, %c0_29] : memref<1x32xf32, #tpu.memory_space<vmem>>, vector<1x32xf32>
    %cst_30 = arith.constant dense<0.000000e+00> : vector<32xf32>
    %51 = vector.multi_reduction <add>, %48, %cst_30 [1] : vector<32x32xf32> to vector<32xf32>
    %52 = vector.shape_cast %51 : vector<32xf32> to vector<32x1xf32>
    %cst_31 = arith.constant 3.200000e+01 : f32
    %53 = vector.broadcast %cst_31 : f32 to vector<32x1xf32>
    %54 = arith.divf %52, %53 : vector<32x1xf32>
    %55 = vector.broadcast %54 : vector<32x1xf32> to vector<32x32xf32>
    %56 = arith.subf %48, %55 : vector<32x32xf32>
    %57 = arith.mulf %56, %56 : vector<32x32xf32>
    %cst_32 = arith.constant dense<0.000000e+00> : vector<32xf32>
    %58 = vector.multi_reduction <add>, %57, %cst_32 [1] : vector<32x32xf32> to vector<32xf32>
    %59 = vector.shape_cast %58 : vector<32xf32> to vector<32x1xf32>
    %cst_33 = arith.constant 3.200000e+01 : f32
    %60 = vector.broadcast %cst_33 : f32 to vector<32x1xf32>
    %61 = arith.divf %59, %60 : vector<32x1xf32>
    %62 = vector.broadcast %54 : vector<32x1xf32> to vector<32x32xf32>
    %63 = arith.subf %48, %62 : vector<32x32xf32>
    %cst_34 = arith.constant 9.99999974E-6 : f32
    %64 = vector.broadcast %cst_34 : f32 to vector<32x1xf32>
    %65 = arith.addf %61, %64 : vector<32x1xf32>
    %66 = math.rsqrt %65 : vector<32x1xf32>
    %67 = vector.broadcast %66 : vector<32x1xf32> to vector<32x32xf32>
    %68 = arith.mulf %63, %67 : vector<32x32xf32>
    %69 = vector.broadcast %49 : vector<1x32xf32> to vector<32x32xf32>
    %70 = arith.mulf %68, %69 : vector<32x32xf32>
    %71 = vector.broadcast %50 : vector<1x32xf32> to vector<32x32xf32>
    %72 = arith.addf %70, %71 : vector<32x32xf32>
    %c0_35 = arith.constant 0 : index
    %c0_36 = arith.constant 0 : index
    %c0_37 = arith.constant 0 : index
    %73 = vector.load %arg13[%c0_35, %c0_36, %c0_37] : memref<1x32x32xf32, #tpu.memory_space<vmem>>, vector<1x32x32xf32>
    %74 = vector.shape_cast %73 : vector<1x32x32xf32> to vector<32x32xf32>
    %75 = vector.shape_cast %72 : vector<32x32xf32> to vector<1x32x32xf32>
    tpu.vector_store %arg13[%c0_35, %c0_36, %c0_37], %75 {strides = array<i32>} : memref<1x32x32xf32, #tpu.memory_space<vmem>>, vector<1x32x32xf32>,
    return
  }
  func.func @transform_0(%arg0: i32, %arg1: i32) -> (i32, i32) {
    %c0_i32 = arith.constant 0 : i32
    %c0_i32_0 = arith.constant 0 : i32
    %c0_i32_1 = arith.constant 0 : i32
    return %c0_i32, %c0_i32_0 : i32, i32
  }
  func.func @transform_1(%arg0: i32, %arg1: i32) -> (i32, i32, i32) {
    %c0_i32 = arith.constant 0 : i32
    %c0_i32_0 = arith.constant 0 : i32
    return %arg0, %arg1, %c0_i32 : i32, i32, i32
  }
  func.func @transform_2(%arg0: i32, %arg1: i32) -> (i32, i32, i32) {
    %c0_i32 = arith.constant 0 : i32
    %c0_i32_0 = arith.constant 0 : i32
    %c0_i32_1 = arith.constant 0 : i32
    return %arg0, %c0_i32, %c0_i32_0 : i32, i32, i32
  }
  func.func @transform_3(%arg0: i32, %arg1: i32) -> (i32, i32) {
    %c0_i32 = arith.constant 0 : i32
    %c0_i32_0 = arith.constant 0 : i32
    %c0_i32_1 = arith.constant 0 : i32
    return %c0_i32, %c0_i32_0 : i32, i32
  }
  func.func @transform_4(%arg0: i32, %arg1: i32) -> (i32, i32) {
    %c0_i32 = arith.constant 0 : i32
    %c0_i32_0 = arith.constant 0 : i32
    %c0_i32_1 = arith.constant 0 : i32
    return %c0_i32, %c0_i32_0 : i32, i32
  }
  func.func @transform_5(%arg0: i32, %arg1: i32) -> (i32, i32) {
    %c0_i32 = arith.constant 0 : i32
    %c0_i32_0 = arith.constant 0 : i32
    %c0_i32_1 = arith.constant 0 : i32
    return %c0_i32, %c0_i32_0 : i32, i32
  }
  func.func @transform_6(%arg0: i32, %arg1: i32) -> (i32, i32) {
    %c0_i32 = arith.constant 0 : i32
    %c0_i32_0 = arith.constant 0 : i32
    %c0_i32_1 = arith.constant 0 : i32
    return %c0_i32, %c0_i32_0 : i32, i32
  }
  func.func @transform_7(%arg0: i32, %arg1: i32) -> (i32, i32) {
    %c0_i32 = arith.constant 0 : i32
    %c0_i32_0 = arith.constant 0 : i32
    %c0_i32_1 = arith.constant 0 : i32
    return %c0_i32, %c0_i32_0 : i32, i32
  }
  func.func @transform_8(%arg0: i32, %arg1: i32) -> (i32, i32) {
    %c0_i32 = arith.constant 0 : i32
    %c0_i32_0 = arith.constant 0 : i32
    %c0_i32_1 = arith.constant 0 : i32
    return %c0_i32, %c0_i32_0 : i32, i32
  }
  func.func @transform_9(%arg0: i32, %arg1: i32) -> (i32, i32) {
    %c0_i32 = arith.constant 0 : i32
    %c0_i32_0 = arith.constant 0 : i32
    %c0_i32_1 = arith.constant 0 : i32
    return %c0_i32, %c0_i32_0 : i32, i32
  }
  func.func @transform_10(%arg0: i32, %arg1: i32) -> (i32, i32) {
    %c0_i32 = arith.constant 0 : i32
    %c0_i32_0 = arith.constant 0 : i32
    %c0_i32_1 = arith.constant 0 : i32
    return %c0_i32, %c0_i32_0 : i32, i32
  }
  func.func @transform_11(%arg0: i32, %arg1: i32) -> (i32, i32, i32) {
    %c0_i32 = arith.constant 0 : i32
    %c0_i32_0 = arith.constant 0 : i32
    return %arg0, %arg1, %c0_i32 : i32, i32, i32
  }
}

</mosaic_0001>

<llo_original>
// kernel: transformer_forward.7
$region0: #{transformer_forward.7}
  #allocation0 [shape = 'u32[]', space=smem, size = 0x4, offset = 0x4, fixed_abs, tag = 'smem constant byte address 0x4 - core index']
  #allocation1 [shape = 'u32[144,128]{1,0:T(1,128)}', space=vmem, size = 0x12000, scoped, tag = 'internal scratch']
  #allocation2 [shape = 'f32[1,1]{1,0:T(1,128)S(6)}', space=smem, size = 0x200, scoped, tag = 'scoped memory for transformer_forward.7']
  %s0 = inlined_call_operand.<no memory space> [shape: f32[1,1], index: 0, kind: input, shape index: {}]
  %s1 = inlined_call_operand.vmem [shape: f32[2,32,32], index: 1, kind: input, shape index: {}]
  %s2 = inlined_call_operand.vmem [shape: f32[2,1,32], index: 2, kind: input, shape index: {}]
  %s3 = inlined_call_operand.vmem [shape: bf16[32,64], index: 3, kind: input, shape index: {}]
  %s4 = inlined_call_operand.vmem [shape: f32[1,64], index: 4, kind: input, shape index: {}]
  %s5 = inlined_call_operand.vmem [shape: bf16[64,32], index: 5, kind: input, shape index: {}]
  %s6 = inlined_call_operand.vmem [shape: f32[1,32], index: 6, kind: input, shape index: {}]
  %s7 = inlined_call_operand.vmem [shape: f32[1,32], index: 7, kind: input, shape index: {}]
  %s8 = inlined_call_operand.vmem [shape: f32[1,32], index: 8, kind: input, shape index: {}]
  %s9 = inlined_call_operand.vmem [shape: f32[1,32], index: 9, kind: input, shape index: {}]
  %s10 = inlined_call_operand.vmem [shape: f32[1,32], index: 10, kind: input, shape index: {}]
  %s11 = inlined_call_operand.vmem [shape: f32[2,32,32], index: 11, kind: output, shape index: {}]
  %s12 = sld [smem:[#allocation0]]
  $region77: #{transformer_forward.7} parent=0
    _
  %s14 = ssub.s32 1, %s12
  %s15 = scalar_select 0, %s14, %s12
  %16 = sst [smem:[#allocation2]] %s0
  loop: start=0, step=1, limit=4
  $region2: #{transformer_forward.7} parent=0 // loop_pre_header
    _
  $region3: #{transformer_forward.7} parent=0 // loop_header
    %s18 = sphi 0, %s22
    %p19 = scmp.ge.s32.totalorder %s18, 4
    %s25 = sphi 0, %s37
    %s26 = sphi 0, %s33
    %s27 = sphi 0, %s25
    %s28 = sphi 0, %s26
    %s29 = sphi 0, %s27
    %s30 = sphi 0, %s28
    %s38 = sphi 0, %s38
    %s40 = sphi 0, %s38
    %s41 = sphi 0, %s40
    %s55 = sphi 0, %s41
    %s63 = sphi 0, %s65
    %s66 = sphi 0, %s63
    %s67 = sphi 0, %s66
    %s83 = sphi 0, %s67
    %s89 = sphi 0, %s91
    %s92 = sphi 0, %s89
    %s93 = sphi 0, %s92
    %s109 = sphi 0, %s93
    %s113 = sphi 0, %s113
    %s115 = sphi 0, %s113
    %s116 = sphi 0, %s115
    %s130 = sphi 0, %s116
    %s134 = sphi 0, %s134
    %s136 = sphi 0, %s134
    %s137 = sphi 0, %s136
    %s151 = sphi 0, %s137
    %s155 = sphi 0, %s155
    %s157 = sphi 0, %s155
    %s158 = sphi 0, %s157
    %s172 = sphi 0, %s158
    %s176 = sphi 0, %s176
    %s178 = sphi 0, %s176
    %s179 = sphi 0, %s178
    %s193 = sphi 0, %s179
    %s197 = sphi 0, %s197
    %s199 = sphi 0, %s197
    %s200 = sphi 0, %s199
    %s214 = sphi 0, %s200
    %s218 = sphi 0, %s218
    %s220 = sphi 0, %s218
    %s221 = sphi 0, %s220
    %s235 = sphi 0, %s221
    %s239 = sphi 0, %s239
    %s241 = sphi 0, %s239
    %s242 = sphi 0, %s241
    %s256 = sphi 0, %s242
    %s260 = sphi 0, %s260
    %s262 = sphi 0, %s260
    %s263 = sphi 0, %s262
    %s277 = sphi 0, %s263
    %s285 = sphi 0, %s287
    %s288 = sphi 0, %s285
    %s289 = sphi 0, %s288
    %s305 = sphi 0, %s289
  $region4: #{transformer_forward.7} parent=0 // loop_header_branch
    %21 = sbr.rel (%p19) target = $region8
  $region5: #{transformer_forward.7} parent=0 // loop_body
    %s23 = ssub.s32 %s18, 1
    %s24 = ssub.s32 %s18, 2
    %s31 = sadd.s32 1, %s26
    %p32 = scmp.ge.s32.totalorder %s31, 1
    %s33 = scalar_select %p32, 0, %s31
    %s34 = sadd.s32 1, %s25
    %s35 = scalar_select %p32, %s34, %s25
    %p36 = scmp.ge.s32.totalorder %s35, 2
    %s37 = scalar_select %p36, 0, %s35
    %s39 = sadd.s32 %s38, 1
    %p42 = scmp.eq.s32.totalorder %s18, 1
    %p43 = scmp.ne.s32.totalorder %s38, %s40
    %p44 = scmp.eq.s32.totalorder %s18, 0
    %p45 = por %p43, %p44
    %p46 = scmp.ne.s32.totalorder %s38, %s40
    %p47 = scmp.eq.s32.totalorder %s23, 1
    %p48 = por %p46, %p47
    %p49 = scmp.ne.s32.totalorder %s40, %s41
    %p50 = scmp.eq.s32.totalorder %s23, 0
    %p51 = por %p49, %p50
    %p52 = scmp.ne.s32.totalorder %s40, %s41
    %p53 = scmp.eq.s32.totalorder %s24, 1
    %p54 = por %p52, %p53
    %p56 = scmp.ne.s32.totalorder %s41, %s55
    %p57 = scmp.eq.s32.totalorder %s24, 0
    %p58 = por %p56, %p57
    %s59 = ssub.s32 %s25, %s37
    %s60 = ssub.s32 %s26, %s33
    %s61 = sor.u32 %s59, %s60
    %p62 = scmp.eq.s32.totalorder %s61, 0
    %s64 = sadd.s32 %s63, 1
    %s65 = scalar_select %p62, %s63, %s64
    %p68 = pneg %p62
    %p69 = scmp.eq.s32.totalorder %s18, 1
    %p70 = por %p68, %p69
    %p71 = scmp.ne.s32.totalorder %s63, %s66
    %p72 = scmp.eq.s32.totalorder %s18, 0
    %p73 = por %p71, %p72
    %p74 = scmp.ne.s32.totalorder %s63, %s66
    %p75 = scmp.eq.s32.totalorder %s23, 1
    %p76 = por %p74, %p75
    %p77 = scmp.ne.s32.totalorder %s66, %s67
    %p78 = scmp.eq.s32.totalorder %s23, 0
    %p79 = por %p77, %p78
    %p80 = scmp.ne.s32.totalorder %s66, %s67
    %p81 = scmp.eq.s32.totalorder %s24, 1
    %p82 = por %p80, %p81
    %p84 = scmp.ne.s32.totalorder %s67, %s83
    %p85 = scmp.eq.s32.totalorder %s24, 0
    %p86 = por %p84, %p85
    %s87 = ssub.s32 %s25, %s37
    %p88 = scmp.eq.s32.totalorder %s87, 0
    %s90 = sadd.s32 %s89, 1
    %s91 = scalar_select %p88, %s89, %s90
    %p94 = pneg %p88
    %p95 = scmp.eq.s32.totalorder %s18, 1
    %p96 = por %p94, %p95
    %p97 = scmp.ne.s32.totalorder %s89, %s92
    %p98 = scmp.eq.s32.totalorder %s18, 0
    %p99 = por %p97, %p98
    %p100 = scmp.ne.s32.totalorder %s89, %s92
    %p101 = scmp.eq.s32.totalorder %s23, 1
    %p102 = por %p100, %p101
    %p103 = scmp.ne.s32.totalorder %s92, %s93
    %p104 = scmp.eq.s32.totalorder %s23, 0
    %p105 = por %p103, %p104
    %p106 = scmp.ne.s32.totalorder %s92, %s93
    %p107 = scmp.eq.s32.totalorder %s24, 1
    %p108 = por %p106, %p107
    %p110 = scmp.ne.s32.totalorder %s93, %s109
    %p111 = scmp.eq.s32.totalorder %s24, 0
    %p112 = por %p110, %p111
    %s114 = sadd.s32 %s113, 1
    %p117 = scmp.eq.s32.totalorder %s18, 1
    %p118 = scmp.ne.s32.totalorder %s113, %s115
    %p119 = scmp.eq.s32.totalorder %s18, 0
    %p120 = por %p118, %p119
    %p121 = scmp.ne.s32.totalorder %s113, %s115
    %p122 = scmp.eq.s32.totalorder %s23, 1
    %p123 = por %p121, %p122
    %p124 = scmp.ne.s32.totalorder %s115, %s116
    %p125 = scmp.eq.s32.totalorder %s23, 0
    %p126 = por %p124, %p125
    %p127 = scmp.ne.s32.totalorder %s115, %s116
    %p128 = scmp.eq.s32.totalorder %s24, 1
    %p129 = por %p127, %p128
    %p131 = scmp.ne.s32.totalorder %s116, %s130
    %p132 = scmp.eq.s32.totalorder %s24, 0
    %p133 = por %p131, %p132
    %s135 = sadd.s32 %s134, 1
    %p138 = scmp.eq.s32.totalorder %s18, 1
    %p139 = scmp.ne.s32.totalorder %s134, %s136
    %p140 = scmp.eq.s32.totalorder %s18, 0
    %p141 = por %p139, %p140
    %p142 = scmp.ne.s32.totalorder %s134, %s136
    %p143 = scmp.eq.s32.totalorder %s23, 1
    %p144 = por %p142, %p143
    %p145 = scmp.ne.s32.totalorder %s136, %s137
    %p146 = scmp.eq.s32.totalorder %s23, 0
    %p147 = por %p145, %p146
    %p148 = scmp.ne.s32.totalorder %s136, %s137
    %p149 = scmp.eq.s32.totalorder %s24, 1
    %p150 = por %p148, %p149
    %p152 = scmp.ne.s32.totalorder %s137, %s151
    %p153 = scmp.eq.s32.totalorder %s24, 0
    %p154 = por %p152, %p153
    %s156 = sadd.s32 %s155, 1
    %p159 = scmp.eq.s32.totalorder %s18, 1
    %p160 = scmp.ne.s32.totalorder %s155, %s157
    %p161 = scmp.eq.s32.totalorder %s18, 0
    %p162 = por %p160, %p161
    %p163 = scmp.ne.s32.totalorder %s155, %s157
    %p164 = scmp.eq.s32.totalorder %s23, 1
    %p165 = por %p163, %p164
    %p166 = scmp.ne.s32.totalorder %s157, %s158
    %p167 = scmp.eq.s32.totalorder %s23, 0
    %p168 = por %p166, %p167
    %p169 = scmp.ne.s32.totalorder %s157, %s158
    %p170 = scmp.eq.s32.totalorder %s24, 1
    %p171 = por %p169, %p170
    %p173 = scmp.ne.s32.totalorder %s158, %s172
    %p174 = scmp.eq.s32.totalorder %s24, 0
    %p175 = por %p173, %p174
    %s177 = sadd.s32 %s176, 1
    %p180 = scmp.eq.s32.totalorder %s18, 1
    %p181 = scmp.ne.s32.totalorder %s176, %s178
    %p182 = scmp.eq.s32.totalorder %s18, 0
    %p183 = por %p181, %p182
    %p184 = scmp.ne.s32.totalorder %s176, %s178
    %p185 = scmp.eq.s32.totalorder %s23, 1
    %p186 = por %p184, %p185
    %p187 = scmp.ne.s32.totalorder %s178, %s179
    %p188 = scmp.eq.s32.totalorder %s23, 0
    %p189 = por %p187, %p188
    %p190 = scmp.ne.s32.totalorder %s178, %s179
    %p191 = scmp.eq.s32.totalorder %s24, 1
    %p192 = por %p190, %p191
    %p194 = scmp.ne.s32.totalorder %s179, %s193
    %p195 = scmp.eq.s32.totalorder %s24, 0
    %p196 = por %p194, %p195
    %s198 = sadd.s32 %s197, 1
    %p201 = scmp.eq.s32.totalorder %s18, 1
    %p202 = scmp.ne.s32.totalorder %s197, %s199
    %p203 = scmp.eq.s32.totalorder %s18, 0
    %p204 = por %p202, %p203
    %p205 = scmp.ne.s32.totalorder %s197, %s199
    %p206 = scmp.eq.s32.totalorder %s23, 1
    %p207 = por %p205, %p206
    %p208 = scmp.ne.s32.totalorder %s199, %s200
    %p209 = scmp.eq.s32.totalorder %s23, 0
    %p210 = por %p208, %p209
    %p211 = scmp.ne.s32.totalorder %s199, %s200
    %p212 = scmp.eq.s32.totalorder %s24, 1
    %p213 = por %p211, %p212
    %p215 = scmp.ne.s32.totalorder %s200, %s214
    %p216 = scmp.eq.s32.totalorder %s24, 0
    %p217 = por %p215, %p216
    %s219 = sadd.s32 %s218, 1
    %p222 = scmp.eq.s32.totalorder %s18, 1
    %p223 = scmp.ne.s32.totalorder %s218, %s220
    %p224 = scmp.eq.s32.totalorder %s18, 0
    %p225 = por %p223, %p224
    %p226 = scmp.ne.s32.totalorder %s218, %s220
    %p227 = scmp.eq.s32.totalorder %s23, 1
    %p228 = por %p226, %p227
    %p229 = scmp.ne.s32.totalorder %s220, %s221
    %p230 = scmp.eq.s32.totalorder %s23, 0
    %p231 = por %p229, %p230
    %p232 = scmp.ne.s32.totalorder %s220, %s221
    %p233 = scmp.eq.s32.totalorder %s24, 1
    %p234 = por %p232, %p233
    %p236 = scmp.ne.s32.totalorder %s221, %s235
    %p237 = scmp.eq.s32.totalorder %s24, 0
    %p238 = por %p236, %p237
    %s240 = sadd.s32 %s239, 1
    %p243 = scmp.eq.s32.totalorder %s18, 1
    %p244 = scmp.ne.s32.totalorder %s239, %s241
    %p245 = scmp.eq.s32.totalorder %s18, 0
    %p246 = por %p244, %p245
    %p247 = scmp.ne.s32.totalorder %s239, %s241
    %p248 = scmp.eq.s32.totalorder %s23, 1
    %p249 = por %p247, %p248
    %p250 = scmp.ne.s32.totalorder %s241, %s242
    %p251 = scmp.eq.s32.totalorder %s23, 0
    %p252 = por %p250, %p251
    %p253 = scmp.ne.s32.totalorder %s241, %s242
    %p254 = scmp.eq.s32.totalorder %s24, 1
    %p255 = por %p253, %p254
    %p257 = scmp.ne.s32.totalorder %s242, %s256
    %p258 = scmp.eq.s32.totalorder %s24, 0
    %p259 = por %p257, %p258
    %s261 = sadd.s32 %s260, 1
    %p264 = scmp.eq.s32.totalorder %s18, 1
    %p265 = scmp.ne.s32.totalorder %s260, %s262
    %p266 = scmp.eq.s32.totalorder %s18, 0
    %p267 = por %p265, %p266
    %p268 = scmp.ne.s32.totalorder %s260, %s262
    %p269 = scmp.eq.s32.totalorder %s23, 1
    %p270 = por %p268, %p269
    %p271 = scmp.ne.s32.totalorder %s262, %s263
    %p272 = scmp.eq.s32.totalorder %s23, 0
    %p273 = por %p271, %p272
    %p274 = scmp.ne.s32.totalorder %s262, %s263
    %p275 = scmp.eq.s32.totalorder %s24, 1
    %p276 = por %p274, %p275
    %p278 = scmp.ne.s32.totalorder %s263, %s277
    %p279 = scmp.eq.s32.totalorder %s24, 0
    %p280 = por %p278, %p279
    %s281 = ssub.s32 %s25, %s37
    %s282 = ssub.s32 %s26, %s33
    %s283 = sor.u32 %s281, %s282
    %p284 = scmp.eq.s32.totalorder %s283, 0
    %s286 = sadd.s32 %s285, 1
    %s287 = scalar_select %p284, %s285, %s286
    %p290 = pneg %p284
    %p291 = scmp.eq.s32.totalorder %s18, 1
    %p292 = por %p290, %p291
    %p293 = scmp.ne.s32.totalorder %s285, %s288
    %p294 = scmp.eq.s32.totalorder %s18, 0
    %p295 = por %p293, %p294
    %p296 = scmp.ne.s32.totalorder %s285, %s288
    %p297 = scmp.eq.s32.totalorder %s23, 1
    %p298 = por %p296, %p297
    %p299 = scmp.ne.s32.totalorder %s288, %s289
    %p300 = scmp.eq.s32.totalorder %s23, 0
    %p301 = por %p299, %p300
    %p302 = scmp.ne.s32.totalorder %s288, %s289
    %p303 = scmp.eq.s32.totalorder %s24, 1
    %p304 = por %p302, %p303
    %p306 = scmp.ne.s32.totalorder %s289, %s305
    %p307 = scmp.eq.s32.totalorder %s24, 0
    %p308 = por %p306, %p307
    %p309 = scmp.le.s32.totalorder 1, %s18
    %p310 = scmp.lt.s32.totalorder %s18, 3
    %p311 = pnand %p309, %p310
    %p312 = pneg %p311
    // Predicated region
    $region9: #{transformer_forward.7} parent=5 // pred_check
      _
    $region10: #{transformer_forward.7} parent=5 // pred_check_branch
      %314 = sbr.rel (%p311) target = $region12
    $region11: #{transformer_forward.7} parent=5 // pred_region
      %s315 = ssub.s32 %s18, 1
      // Predicated region
      $region13: #{transformer_forward.7} parent=11 // pred_check
        %p316 = pneg %p51
      $region14: #{transformer_forward.7} parent=11 // pred_check_branch
        %318 = sbr.rel (%p316) target = $region16
      $region15: #{transformer_forward.7} parent=11 // pred_region
        _
      $region16: #{transformer_forward.7} parent=11 // pred_fallthru
        _
      // Predicated region
      $region17: #{transformer_forward.7} parent=11 // pred_check
        %p319 = pneg %p126
      $region18: #{transformer_forward.7} parent=11 // pred_check_branch
        %321 = sbr.rel (%p319) target = $region20
      $region19: #{transformer_forward.7} parent=11 // pred_region
        _
      $region20: #{transformer_forward.7} parent=11 // pred_fallthru
        _
      // Predicated region
      $region21: #{transformer_forward.7} parent=11 // pred_check
        %p322 = pneg %p147
      $region22: #{transformer_forward.7} parent=11 // pred_check_branch
        %324 = sbr.rel (%p322) target = $region24
      $region23: #{transformer_forward.7} parent=11 // pred_region
        _
      $region24: #{transformer_forward.7} parent=11 // pred_fallthru
        _
      // Predicated region
      $region25: #{transformer_forward.7} parent=11 // pred_check
        %p325 = pneg %p168
      $region26: #{transformer_forward.7} parent=11 // pred_check_branch
        %327 = sbr.rel (%p325) target = $region28
      $region27: #{transformer_forward.7} parent=11 // pred_region
        _
      $region28: #{transformer_forward.7} parent=11 // pred_fallthru
        _
      // Predicated region
      $region29: #{transformer_forward.7} parent=11 // pred_check
        %p328 = pneg %p189
      $region30: #{transformer_forward.7} parent=11 // pred_check_branch
        %330 = sbr.rel (%p328) target = $region32
      $region31: #{transformer_forward.7} parent=11 // pred_region
        _
      $region32: #{transformer_forward.7} parent=11 // pred_fallthru
        _
      // Predicated region
      $region33: #{transformer_forward.7} parent=11 // pred_check
        %p331 = pneg %p210
      $region34: #{transformer_forward.7} parent=11 // pred_check_branch
        %333 = sbr.rel (%p331) target = $region36
      $region35: #{transformer_forward.7} parent=11 // pred_region
        _
      $region36: #{transformer_forward.7} parent=11 // pred_fallthru
        _
      // Predicated region
      $region37: #{transformer_forward.7} parent=11 // pred_check
        %p334 = pneg %p231
      $region38: #{transformer_forward.7} parent=11 // pred_check_branch
        %336 = sbr.rel (%p334) target = $region40
      $region39: #{transformer_forward.7} parent=11 // pred_region
        _
      $region40: #{transformer_forward.7} parent=11 // pred_fallthru
        _
      // Predicated region
      $region41: #{transformer_forward.7} parent=11 // pred_check
        %p337 = pneg %p252
      $region42: #{transformer_forward.7} parent=11 // pred_check_branch
        %339 = sbr.rel (%p337) target = $region44
      $region43: #{transformer_forward.7} parent=11 // pred_region
        _
      $region44: #{transformer_forward.7} parent=11 // pred_fallthru
        _
      // Predicated region
      $region45: #{transformer_forward.7} parent=11 // pred_check
        %p340 = pneg %p273
      $region46: #{transformer_forward.7} parent=11 // pred_check_branch
        %342 = sbr.rel (%p340) target = $region48
      $region47: #{transformer_forward.7} parent=11 // pred_region
        _
      $region48: #{transformer_forward.7} parent=11 // pred_fallthru
        _
    $region12: #{transformer_forward.7} parent=5 // pred_fallthru
      _
    %p343 = scmp.lt.s32.totalorder %s18, 2
    // Predicated region
    $region49: #{transformer_forward.7} parent=5 // pred_check
      %p344 = pneg %p343
    $region50: #{transformer_forward.7} parent=5 // pred_check_branch
      %346 = sbr.rel (%p344) target = $region52
    $region51: #{transformer_forward.7} parent=5 // pred_region
      // Predicated region
      $region53: #{transformer_forward.7} parent=51 // pred_check
        %p347 = pneg %p73
      $region54: #{transformer_forward.7} parent=51 // pred_check_branch
        %349 = sbr.rel (%p347) target = $region56
      $region55: #{transformer_forward.7} parent=51 // pred_region
        %s350 = smul.u32 4, %s26
        %p351 = scmp.lt.s32.totalorder %s25, 1
        %s352 = scalar_select %p351, %s25, 1
        %p353 = scmp.lt.s32.totalorder %s350, 3
        %s354 = scalar_select %p353, %s350, 3
        %s355 = smul.addr %s352, 4
        %s356 = sadd.s32 %s354, %s355
        %s357 = smul.addr %s356, 8
        %s358 = scalar_lea.vmem %s1, %s357
        %s359 = smul.u32 4, %s26
      $region56: #{transformer_forward.7} parent=51 // pred_fallthru
        _
      // Predicated region
      $region57: #{transformer_forward.7} parent=51 // pred_check
        %p360 = pneg %p99
      $region58: #{transformer_forward.7} parent=51 // pred_check_branch
        %362 = sbr.rel (%p360) target = $region60
      $region59: #{transformer_forward.7} parent=51 // pred_region
        %p363 = scmp.lt.s32.totalorder %s25, 1
        %s364 = scalar_select %p363, %s25, 1
        %s365 = scalar_lea.vmem %s2, %s364
      $region60: #{transformer_forward.7} parent=51 // pred_fallthru
        _
    $region52: #{transformer_forward.7} parent=5 // pred_fallthru
      _
    %p366 = scmp.le.s32.totalorder 1, %s18
    %p367 = scmp.lt.s32.totalorder %s18, 3
    %p368 = pnand %p366, %p367
    %p369 = pneg %p368
    // Predicated region
    $region61: #{transformer_forward.7} parent=5 // pred_check
      _
    $region62: #{transformer_forward.7} parent=5 // pred_check_branch
      %371 = sbr.rel (%p368) target = $region64
    $region63: #{transformer_forward.7} parent=5 // pred_region
      %s372 = ssub.s32 %s18, 1
      %p373 = pneg %p51
      %p374 = pneg %p48
      %s375 = smul.u32 4, %s28
      %p376 = scmp.lt.s32.totalorder %s27, 1
      %s377 = scalar_select %p376, %s27, 1
      %p378 = scmp.lt.s32.totalorder %s375, 3
      %s379 = scalar_select %p378, %s375, 3
      %s380 = smul.addr %s377, 4
      %s381 = sadd.s32 %s379, %s380
      %s382 = smul.addr %s381, 8
      %s383 = scalar_lea.vmem %s1, %s382
      %p384 = pneg %p79
      %p385 = pneg %p76
      %p386 = scmp.lt.s32.totalorder %s27, 1
      %s387 = scalar_select %p386, %s27, 1
      %s388 = scalar_lea.vmem %s2, %s387
      %p389 = pneg %p105
      %p390 = pneg %p102
      %p391 = pneg %p126
      %p392 = pneg %p123
      %p393 = pneg %p147
      %p394 = pneg %p144
      %p395 = pneg %p168
      %p396 = pneg %p165
      %p397 = pneg %p189
      %p398 = pneg %p186
      %p399 = pneg %p210
      %p400 = pneg %p207
      %p401 = pneg %p231
      %p402 = pneg %p228
      %p403 = pneg %p252
      %p404 = pneg %p249
      %p405 = pneg %p273
      %p406 = pneg %p270
      %p407 = pneg %p301
      %p408 = pneg %p298
      %s409 = smul.u32 4, %s28
      %p410 = scmp.lt.s32.totalorder %s27, 1
      %s411 = scalar_select %p410, %s27, 1
      %p412 = scmp.lt.s32.totalorder %s409, 3
      %s413 = scalar_select %p412, %s409, 3
      %s414 = smul.addr %s411, 4
      %s415 = sadd.s32 %s413, %s414
      %s416 = smul.addr %s415, 8
      %s417 = scalar_lea.vmem %s11, %s416
      %s418 = smul.u32 4, %s28
      %p419 = scmp.lt.s32.totalorder %s27, 1
      %s420 = scalar_select %p419, %s27, 1
      %p421 = scmp.lt.s32.totalorder %s418, 3
      %s422 = scalar_select %p421, %s418, 3
      %s423 = smul.addr %s420, 4
      %s424 = sadd.s32 %s422, %s423
      %s425 = smul.addr %s424, 8
      %s426 = scalar_lea.vmem %s1, %s425
      %s427 = smul.u32 4, %s28
      %p428 = scmp.lt.s32.totalorder %s27, 1
      %s429 = scalar_select %p428, %s27, 1
      %s430 = scalar_lea.vmem %s2, %s429
      %s431 = smul.u32 4, %s28
      %p432 = scmp.lt.s32.totalorder %s27, 1
      %s433 = scalar_select %p432, %s27, 1
      %p434 = scmp.lt.s32.totalorder %s431, 3
      %s435 = scalar_select %p434, %s431, 3
      %s436 = smul.addr %s433, 4
      %s437 = sadd.s32 %s435, %s436
      %s438 = smul.addr %s437, 8
      %s439 = scalar_lea.vmem %s11, %s438
      %s440 = smul.u32 4, %s28
      %v442 = vld [vmem:[%s426] sm:$0xff]
      %v443 = vld [vmem:[%s426 + $0x8] sm:$0xff]
      %v444 = vld [vmem:[%s426 + $0x10] sm:$0xff]
      %v445 = vld [vmem:[%s426 + $0x18] sm:$0xff]
      %s446 = sld [smem:[#allocation2]]
      %v447 = vld [vmem:[%s430] sm:$0x1]
      %v448 = vstv %s446
      %v449 = vmul.f32 %v448, %v447
      %v451 = vlaneseq
      %v452 = vshrl.u32 %v451, 7
      %v453 = vsub.s32 0, %v452
      %v454 = vrot.slane %v449, %v453
      %v456 = vmul.f32 %v454, %v442
      %v457 = vmul.f32 %v454, %v443
      %v458 = vmul.f32 %v454, %v444
      %v459 = vmul.f32 %v454, %v445
      %v460 = vadd.f32 %v442, %v456
      %v461 = vadd.f32 %v443, %v457
      %v462 = vadd.f32 %v444, %v458
      %v463 = vadd.f32 %v445, %v459
      %v464 = vpack.c.bf16 %v461, %v460
      %v465 = vpack.c.bf16 %v463, %v462
      %v466 = vld [vmem:[%s3] sm:$0xf]
      %v467 = vld [vmem:[%s3 + $0x4] sm:$0xf]
      %v468 = vld [vmem:[%s3 + $0x8] sm:$0xf]
      %v469 = vld [vmem:[%s3 + $0xc] sm:$0xf]
      %v470 = vld [vmem:[%s4] sm:$0x1]
      %v472 = vlaneseq
      %v473 = vshrl.u32 %v472, 7
      %v474 = vsub.s32 0, %v473
      %v475 = vrot.slane %v470, %v474
      %v481 = vunpack.c.l.b16 %v466
      %v482 = vunpack.c.l.b16 %v467
      %v483 = vunpack.c.l.b16 %v468
      %v484 = vunpack.c.l.b16 %v469
      %v485 = vpack.c.b16 %v482, %v481
      %v486 = vpack.c.b16 %v484, %v483
      %vm489 = vcmask 261120
      %v491 = vsel %vm489, %v464, 0
      %v494 = vsel %vm489, %v465, 0
      %496 = vmatprep.subr.bf16.mxu0 0
      %497 = vmatpush1.bf16.msra.mxu0 %v485
      %498 = vmatprep.subr.bf16.mxu0 0
      %499 = vmatpush1.bf16.msra.mxu0 %v486
      %500 = vmatprep.subr.bf16.mxu0 0
      %501 = vmatpush1.bf16.msra.mxu0 0
      %502 = vmatprep.subr.bf16.mxu0 0
      %503 = vmatpush1.bf16.msra.mxu0 0
      %504 = vmatprep.subr.bf16.mxu0 0
      %505 = vmatpush1.bf16.msra.mxu0 0
      %506 = vmatprep.subr.bf16.mxu0 0
      %507 = vmatpush1.bf16.msra.mxu0 0
      %508 = vmatprep.subr.bf16.mxu0 0
      %509 = vmatpush1.bf16.msra.mxu0 0
      %510 = vmatprep.subr.bf16.mxu0 0
      %511 = vmatpush1.bf16.msra.mxu0 0
      %512 = vmatprep.subr.bf16.mxu0 0
      %513 = vmatpush1.bf16.msra.mxu0 0
      %514 = vmatprep.subr.bf16.mxu0 0
      %515 = vmatpush1.bf16.msra.mxu0 0
      %516 = vmatprep.subr.bf16.mxu0 0
      %517 = vmatpush1.bf16.msra.mxu0 0
      %518 = vmatprep.subr.bf16.mxu0 0
      %519 = vmatpush1.bf16.msra.mxu0 0
      %520 = vmatprep.subr.bf16.mxu0 0
      %521 = vmatpush1.bf16.msra.mxu0 0
      %522 = vmatprep.subr.bf16.mxu0 0
      %523 = vmatpush1.bf16.msra.mxu0 0
      %524 = vmatprep.subr.bf16.mxu0 0
      %525 = vmatpush1.bf16.msra.mxu0 0
      %526 = vmatprep.subr.bf16.mxu0 0
      %527 = vmatpush1.bf16.msra.mxu0 0
      %528 = vmatprep.mubr.bf16.mxu0 0
      %529 = vmatmul.mubr.bf16.gmra.mrb[0].mxu0 %v491
      %v530 = vpop.f32.mrb[0].mxu0
      %v531 = vadd.f32 %v475, %v530
      %v532 = vpop.f32.mrb[0].mxu0
      %v533 = vpop.f32.mrb[0].mxu0
      %v534 = vadd.f32 %v475, %v533
      %v535 = vpop.f32.mrb[0].mxu0
      %536 = vmatprep.mubr.bf16.mxu0 0
      %537 = vmatmul.mubr.bf16.gmra.mrb[0].mxu0 %v494
      %v538 = vpop.f32.mrb[0].mxu0
      %v539 = vadd.f32 %v475, %v538
      %v540 = vpop.f32.mrb[0].mxu0
      %v541 = vpop.f32.mrb[0].mxu0
      %v542 = vadd.f32 %v475, %v541
      %v543 = vpop.f32.mrb[0].mxu0
      %544 = vdwg.mxu0
      %v545 = vmax.f32 %v531, 0.0
      %v546 = vmax.f32 %v534, 0.0
      %v547 = vmax.f32 %v539, 0.0
      %v548 = vmax.f32 %v542, 0.0
      %v549 = vpack.c.bf16 %v546, %v545
      %v550 = vpack.c.bf16 %v548, %v547
      %v551 = vld [vmem:[%s5] sm:$0xf]
      %v552 = vld [vmem:[%s5 + $0x4] sm:$0xf]
      %v553 = vld [vmem:[%s5 + $0x8] sm:$0xf]
      %v554 = vld [vmem:[%s5 + $0xc] sm:$0xf]
      %v555 = vld [vmem:[%s5 + $0x10] sm:$0xf]
      %v556 = vld [vmem:[%s5 + $0x14] sm:$0xf]
      %v557 = vld [vmem:[%s5 + $0x18] sm:$0xf]
      %v558 = vld [vmem:[%s5 + $0x1c] sm:$0xf]
      %v559 = vld [vmem:[%s6] sm:$0x1]
      %v561 = vlaneseq
      %v562 = vshrl.u32 %v561, 7
      %v563 = vsub.s32 0, %v562
      %v564 = vrot.slane %v559, %v563
      %v574 = vunpack.c.l.b16 %v551
      %v575 = vunpack.c.l.b16 %v552
      %v576 = vunpack.c.l.b16 %v553
      %v577 = vunpack.c.l.b16 %v554
      %v578 = vunpack.c.l.b16 %v555
      %v579 = vunpack.c.l.b16 %v556
      %v580 = vunpack.c.l.b16 %v557
      %v581 = vunpack.c.l.b16 %v558
      %v582 = vpack.c.b16 %v575, %v574
      %v583 = vpack.c.b16 %v577, %v576
      %v584 = vpack.c.b16 %v579, %v578
      %v585 = vpack.c.b16 %v581, %v580
      %vm590 = vcmask 523264
      %v592 = vsel %vm590, %v549, 0
      %v595 = vsel %vm590, %v550, 0
      %597 = vmatprep.subr.bf16.mxu0 0
      %598 = vmatpush1.bf16.msra.mxu0 %v582
      %599 = vmatprep.subr.bf16.mxu0 0
      %600 = vmatpush1.bf16.msra.mxu0 %v583
      %601 = vmatprep.subr.bf16.mxu0 0
      %602 = vmatpush1.bf16.msra.mxu0 %v584
      %603 = vmatprep.subr.bf16.mxu0 0
      %604 = vmatpush1.bf16.msra.mxu0 %v585
      %605 = vmatprep.subr.bf16.mxu0 0
      %606 = vmatpush1.bf16.msra.mxu0 0
      %607 = vmatprep.subr.bf16.mxu0 0
      %608 = vmatpush1.bf16.msra.mxu0 0
      %609 = vmatprep.subr.bf16.mxu0 0
      %610 = vmatpush1.bf16.msra.mxu0 0
      %611 = vmatprep.subr.bf16.mxu0 0
      %612 = vmatpush1.bf16.msra.mxu0 0
      %613 = vmatprep.subr.bf16.mxu0 0
      %614 = vmatpush1.bf16.msra.mxu0 0
      %615 = vmatprep.subr.bf16.mxu0 0
      %616 = vmatpush1.bf16.msra.mxu0 0
      %617 = vmatprep.subr.bf16.mxu0 0
      %618 = vmatpush1.bf16.msra.mxu0 0
      %619 = vmatprep.subr.bf16.mxu0 0
      %620 = vmatpush1.bf16.msra.mxu0 0
      %621 = vmatprep.subr.bf16.mxu0 0
      %622 = vmatpush1.bf16.msra.mxu0 0
      %623 = vmatprep.subr.bf16.mxu0 0
      %624 = vmatpush1.bf16.msra.mxu0 0
      %625 = vmatprep.subr.bf16.mxu0 0
      %626 = vmatpush1.bf16.msra.mxu0 0
      %627 = vmatprep.subr.bf16.mxu0 0
      %628 = vmatpush1.bf16.msra.mxu0 0
      %629 = vmatprep.mubr.bf16.mxu0 0
      %630 = vmatmul.mubr.bf16.gmra.mrb[0].mxu0 %v592
      %v631 = vpop.f32.mrb[0].mxu0
      %v632 = vadd.f32 %v564, %v631
      %v633 = vpop.f32.mrb[0].mxu0
      %v634 = vpop.f32.mrb[0].mxu0
      %v635 = vadd.f32 %v564, %v634
      %v636 = vpop.f32.mrb[0].mxu0
      %637 = vmatprep.mubr.bf16.mxu0 0
      %638 = vmatmul.mubr.bf16.gmra.mrb[0].mxu0 %v595
      %v639 = vpop.f32.mrb[0].mxu0
      %v640 = vadd.f32 %v564, %v639
      %v641 = vpop.f32.mrb[0].mxu0
      %v642 = vpop.f32.mrb[0].mxu0
      %v643 = vadd.f32 %v564, %v642
      %v644 = vpop.f32.mrb[0].mxu0
      %645 = vdwg.mxu0
      %v646 = vadd.f32 %v460, %v632
      %v647 = vadd.f32 %v461, %v635
      %v648 = vadd.f32 %v462, %v640
      %v649 = vadd.f32 %v463, %v643
      %v650 = vld [vmem:[%s7] sm:$0x1]
      %v651 = vld [vmem:[%s8] sm:$0x1]
      %v652 = vsel %vm489, %v646, 0.0
      %653 = vadd.xlane.f32.xlu0 %v652
      %v654 = vpop.xlane.xlu0 %653
      %v655 = vsel %vm489, %v647, 0.0
      %656 = vadd.xlane.f32.xlu0 %v655
      %v657 = vpop.xlane.xlu0 %656
      %v658 = vsel %vm489, %v648, 0.0
      %659 = vadd.xlane.f32.xlu0 %v658
      %v660 = vpop.xlane.xlu0 %659
      %v661 = vsel %vm489, %v649, 0.0
      %662 = vadd.xlane.f32.xlu0 %v661
      %v663 = vpop.xlane.xlu0 %662
      %v664 = vrcp.pop 32.0
      %v665 = vmul.f32 %v654, %v664
      %v666 = vmul.f32 %v657, %v664
      %v667 = vmul.f32 %v660, %v664
      %v668 = vmul.f32 %v663, %v664
      %v669 = vsub.f32 %v646, %v665
      %v670 = vsub.f32 %v647, %v666
      %v671 = vsub.f32 %v648, %v667
      %v672 = vsub.f32 %v649, %v668
      %v673 = vmul.f32 %v669, %v669
      %v674 = vmul.f32 %v670, %v670
      %v675 = vmul.f32 %v671, %v671
      %v676 = vmul.f32 %v672, %v672
      %v677 = vsel %vm489, %v673, 0.0
      %678 = vadd.xlane.f32.xlu0 %v677
      %v679 = vpop.xlane.xlu0 %678
      %v680 = vsel %vm489, %v674, 0.0
      %681 = vadd.xlane.f32.xlu0 %v680
      %v682 = vpop.xlane.xlu0 %681
      %v683 = vsel %vm489, %v675, 0.0
      %684 = vadd.xlane.f32.xlu0 %v683
      %v685 = vpop.xlane.xlu0 %684
      %v686 = vsel %vm489, %v676, 0.0
      %687 = vadd.xlane.f32.xlu0 %v686
      %v688 = vpop.xlane.xlu0 %687
      %v689 = vmul.f32 %v679, %v664
      %v690 = vmul.f32 %v682, %v664
      %v691 = vmul.f32 %v685, %v664
      %v692 = vmul.f32 %v688, %v664
      %v693 = vadd.f32 %v689, 1e-05
      %v694 = vadd.f32 %v690, 1e-05
      %v695 = vadd.f32 %v691, 1e-05
      %v696 = vadd.f32 %v692, 1e-05
      %v697 = vrsqrt.pop %v693
      %v698 = vrsqrt.pop %v694
      %v699 = vrsqrt.pop %v695
      %v700 = vrsqrt.pop %v696
      %v701 = vmul.f32 %v669, %v697
      %v702 = vmul.f32 %v670, %v698
      %v703 = vmul.f32 %v671, %v699
      %v704 = vmul.f32 %v672, %v700
      %v706 = vlaneseq
      %v707 = vshrl.u32 %v706, 7
      %v708 = vsub.s32 0, %v707
      %v709 = vrot.slane %v650, %v708
      %v711 = vmul.f32 %v701, %v709
      %v712 = vmul.f32 %v702, %v709
      %v713 = vmul.f32 %v703, %v709
      %v714 = vmul.f32 %v704, %v709
      %v716 = vlaneseq
      %v717 = vshrl.u32 %v716, 7
      %v718 = vsub.s32 0, %v717
      %v719 = vrot.slane %v651, %v718
      %v721 = vadd.f32 %v711, %v719
      %v722 = vadd.f32 %v712, %v719
      %v723 = vadd.f32 %v713, %v719
      %v724 = vadd.f32 %v714, %v719
      %725 = vst.msk [vmem:[%s439] sm:$0xff] %vm489, %v721
      %726 = vst.msk [vmem:[%s439 + $0x8] sm:$0xff] %vm489, %v722
      %727 = vst.msk [vmem:[%s439 + $0x10] sm:$0xff] %vm489, %v723
      %728 = vst.msk [vmem:[%s439 + $0x18] sm:$0xff] %vm489, %v724
      %s729 = smul.u32 4, %s28
      %p730 = scmp.lt.s32.totalorder %s27, 1
      %s731 = scalar_select %p730, %s27, 1
      %p732 = scmp.lt.s32.totalorder %s729, 3
      %s733 = scalar_select %p732, %s729, 3
      %s734 = smul.addr %s731, 4
      %s735 = sadd.s32 %s733, %s734
      %s736 = smul.addr %s735, 8
      %s737 = scalar_lea.vmem %s11, %s736
      // Predicated region
      $region65: #{transformer_forward.7} parent=63 // pred_check
        %p738 = pneg %p298
      $region66: #{transformer_forward.7} parent=63 // pred_check_branch
        %740 = sbr.rel (%p738) target = $region68
      $region67: #{transformer_forward.7} parent=63 // pred_region
        %s741 = smul.u32 4, %s28
      $region68: #{transformer_forward.7} parent=63 // pred_fallthru
        _
    $region64: #{transformer_forward.7} parent=5 // pred_fallthru
      _
    %p742 = scmp.le.s32.totalorder 2, %s18
    // Predicated region
    $region69: #{transformer_forward.7} parent=5 // pred_check
      %p743 = pneg %p742
    $region70: #{transformer_forward.7} parent=5 // pred_check_branch
      %745 = sbr.rel (%p743) target = $region72
    $region71: #{transformer_forward.7} parent=5 // pred_region
      %s746 = ssub.s32 %s18, 2
      // Predicated region
      $region73: #{transformer_forward.7} parent=71 // pred_check
        %p747 = pneg %p304
      $region74: #{transformer_forward.7} parent=71 // pred_check_branch
        %749 = sbr.rel (%p747) target = $region76
      $region75: #{transformer_forward.7} parent=71 // pred_region
        %s750 = smul.u32 4, %s30
        %p751 = scmp.lt.s32.totalorder %s29, 1
        %s752 = scalar_select %p751, %s29, 1
        %p753 = scmp.lt.s32.totalorder %s750, 3
        %s754 = scalar_select %p753, %s750, 3
        %s755 = smul.addr %s752, 4
        %s756 = sadd.s32 %s754, %s755
        %s757 = smul.addr %s756, 8
        %s758 = scalar_lea.vmem %s11, %s757
      $region76: #{transformer_forward.7} parent=71 // pred_fallthru
        _
    $region72: #{transformer_forward.7} parent=5 // pred_fallthru
      _
  $region6: #{transformer_forward.7} parent=0 // loop_footer
    %s22 = sadd.s32 1, %s18
  $region7: #{transformer_forward.7} parent=0 // loop_footer_branch
    %17 = sbr.rel target = $region3
  $region8: #{transformer_forward.7} parent=0 // loop_exit
    _

// kernel: transformer_forward.6
$region0: #{transformer_forward.6}
  #allocation0 [shape = 'u32[]', space=smem, size = 0x4, offset = 0x4, fixed_abs, tag = 'smem constant byte address 0x4 - core index']
  #allocation1 [shape = 'u32[144,128]{1,0:T(1,128)}', space=vmem, size = 0x12000, scoped, tag = 'internal scratch']
  %s0 = inlined_call_operand.vmem [shape: f32[1,2,32,32], index: 0, kind: input, shape index: {}]
  %s1 = inlined_call_operand.vmem [shape: f32[2,32,32], index: 1, kind: input, shape index: {}]
  %s2 = inlined_call_operand.vmem [shape: bf16[1,32,32], index: 2, kind: input, shape index: {}]
  %s3 = inlined_call_operand.vmem [shape: f32[1,1,32], index: 3, kind: input, shape index: {}]
  %s4 = inlined_call_operand.vmem [shape: bf16[1,32,64], index: 4, kind: input, shape index: {}]
  %s5 = inlined_call_operand.vmem [shape: f32[1,1,64], index: 5, kind: input, shape index: {}]
  %s6 = inlined_call_operand.vmem [shape: bf16[1,32,32], index: 6, kind: input, shape index: {}]
  %s7 = inlined_call_operand.vmem [shape: f32[1,1,32], index: 7, kind: input, shape index: {}]
  %s8 = inlined_call_operand.vmem [shape: f32[1,1,32], index: 8, kind: input, shape index: {}]
  %s9 = inlined_call_operand.vmem [shape: f32[1,1,32], index: 9, kind: input, shape index: {}]
  %s10 = inlined_call_operand.vmem [shape: f32[1,2,32,32], index: 10, kind: output, shape index: {}]
  %s11 = sld [smem:[#allocation0]]
  $region73: #{transformer_forward.6} parent=0
    _
  %s13 = ssub.s32 1, %s11
  %s14 = scalar_select 0, %s13, %s11
  loop: start=0, step=1, limit=4
  $region2: #{transformer_forward.6} parent=0 // loop_pre_header
    _
  $region3: #{transformer_forward.6} parent=0 // loop_header
    %s16 = sphi 0, %s20
    %p17 = scmp.ge.s32.totalorder %s16, 4
    %s23 = sphi 0, %s35
    %s24 = sphi 0, %s31
    %s25 = sphi 0, %s23
    %s26 = sphi 0, %s24
    %s27 = sphi 0, %s25
    %s28 = sphi 0, %s26
    %s40 = sphi 0, %s42
    %s43 = sphi 0, %s40
    %s44 = sphi 0, %s43
    %s60 = sphi 0, %s44
    %s66 = sphi 0, %s68
    %s69 = sphi 0, %s66
    %s70 = sphi 0, %s69
    %s86 = sphi 0, %s70
    %s92 = sphi 0, %s94
    %s95 = sphi 0, %s92
    %s96 = sphi 0, %s95
    %s112 = sphi 0, %s96
    %s118 = sphi 0, %s120
    %s121 = sphi 0, %s118
    %s122 = sphi 0, %s121
    %s138 = sphi 0, %s122
    %s144 = sphi 0, %s146
    %s147 = sphi 0, %s144
    %s148 = sphi 0, %s147
    %s164 = sphi 0, %s148
    %s170 = sphi 0, %s172
    %s173 = sphi 0, %s170
    %s174 = sphi 0, %s173
    %s190 = sphi 0, %s174
    %s196 = sphi 0, %s198
    %s199 = sphi 0, %s196
    %s200 = sphi 0, %s199
    %s216 = sphi 0, %s200
    %s222 = sphi 0, %s224
    %s225 = sphi 0, %s222
    %s226 = sphi 0, %s225
    %s242 = sphi 0, %s226
    %s248 = sphi 0, %s250
    %s251 = sphi 0, %s248
    %s252 = sphi 0, %s251
    %s268 = sphi 0, %s252
    %s274 = sphi 0, %s276
    %s277 = sphi 0, %s274
    %s278 = sphi 0, %s277
    %s294 = sphi 0, %s278
    %s302 = sphi 0, %s304
    %s305 = sphi 0, %s302
    %s306 = sphi 0, %s305
    %s322 = sphi 0, %s306
  $region4: #{transformer_forward.6} parent=0 // loop_header_branch
    %19 = sbr.rel (%p17) target = $region8
  $region5: #{transformer_forward.6} parent=0 // loop_body
    %s21 = ssub.s32 %s16, 1
    %s22 = ssub.s32 %s16, 2
    %s29 = sadd.s32 1, %s24
    %p30 = scmp.ge.s32.totalorder %s29, 2
    %s31 = scalar_select %p30, 0, %s29
    %s32 = sadd.s32 1, %s23
    %s33 = scalar_select %p30, %s32, %s23
    %p34 = scmp.ge.s32.totalorder %s33, 1
    %s35 = scalar_select %p34, 0, %s33
    %s36 = ssub.s32 %s23, %s35
    %s37 = ssub.s32 %s24, %s31
    %s38 = sor.u32 %s36, %s37
    %p39 = scmp.eq.s32.totalorder %s38, 0
    %s41 = sadd.s32 %s40, 1
    %s42 = scalar_select %p39, %s40, %s41
    %p45 = pneg %p39
    %p46 = scmp.eq.s32.totalorder %s16, 1
    %p47 = por %p45, %p46
    %p48 = scmp.ne.s32.totalorder %s40, %s43
    %p49 = scmp.eq.s32.totalorder %s16, 0
    %p50 = por %p48, %p49
    %p51 = scmp.ne.s32.totalorder %s40, %s43
    %p52 = scmp.eq.s32.totalorder %s21, 1
    %p53 = por %p51, %p52
    %p54 = scmp.ne.s32.totalorder %s43, %s44
    %p55 = scmp.eq.s32.totalorder %s21, 0
    %p56 = por %p54, %p55
    %p57 = scmp.ne.s32.totalorder %s43, %s44
    %p58 = scmp.eq.s32.totalorder %s22, 1
    %p59 = por %p57, %p58
    %p61 = scmp.ne.s32.totalorder %s44, %s60
    %p62 = scmp.eq.s32.totalorder %s22, 0
    %p63 = por %p61, %p62
    %s64 = ssub.s32 %s24, %s31
    %p65 = scmp.eq.s32.totalorder %s64, 0
    %s67 = sadd.s32 %s66, 1
    %s68 = scalar_select %p65, %s66, %s67
    %p71 = pneg %p65
    %p72 = scmp.eq.s32.totalorder %s16, 1
    %p73 = por %p71, %p72
    %p74 = scmp.ne.s32.totalorder %s66, %s69
    %p75 = scmp.eq.s32.totalorder %s16, 0
    %p76 = por %p74, %p75
    %p77 = scmp.ne.s32.totalorder %s66, %s69
    %p78 = scmp.eq.s32.totalorder %s21, 1
    %p79 = por %p77, %p78
    %p80 = scmp.ne.s32.totalorder %s69, %s70
    %p81 = scmp.eq.s32.totalorder %s21, 0
    %p82 = por %p80, %p81
    %p83 = scmp.ne.s32.totalorder %s69, %s70
    %p84 = scmp.eq.s32.totalorder %s22, 1
    %p85 = por %p83, %p84
    %p87 = scmp.ne.s32.totalorder %s70, %s86
    %p88 = scmp.eq.s32.totalorder %s22, 0
    %p89 = por %p87, %p88
    %s90 = ssub.s32 %s23, %s35
    %p91 = scmp.eq.s32.totalorder %s90, 0
    %s93 = sadd.s32 %s92, 1
    %s94 = scalar_select %p91, %s92, %s93
    %p97 = pneg %p91
    %p98 = scmp.eq.s32.totalorder %s16, 1
    %p99 = por %p97, %p98
    %p100 = scmp.ne.s32.totalorder %s92, %s95
    %p101 = scmp.eq.s32.totalorder %s16, 0
    %p102 = por %p100, %p101
    %p103 = scmp.ne.s32.totalorder %s92, %s95
    %p104 = scmp.eq.s32.totalorder %s21, 1
    %p105 = por %p103, %p104
    %p106 = scmp.ne.s32.totalorder %s95, %s96
    %p107 = scmp.eq.s32.totalorder %s21, 0
    %p108 = por %p106, %p107
    %p109 = scmp.ne.s32.totalorder %s95, %s96
    %p110 = scmp.eq.s32.totalorder %s22, 1
    %p111 = por %p109, %p110
    %p113 = scmp.ne.s32.totalorder %s96, %s112
    %p114 = scmp.eq.s32.totalorder %s22, 0
    %p115 = por %p113, %p114
    %s116 = ssub.s32 %s23, %s35
    %p117 = scmp.eq.s32.totalorder %s116, 0
    %s119 = sadd.s32 %s118, 1
    %s120 = scalar_select %p117, %s118, %s119
    %p123 = pneg %p117
    %p124 = scmp.eq.s32.totalorder %s16, 1
    %p125 = por %p123, %p124
    %p126 = scmp.ne.s32.totalorder %s118, %s121
    %p127 = scmp.eq.s32.totalorder %s16, 0
    %p128 = por %p126, %p127
    %p129 = scmp.ne.s32.totalorder %s118, %s121
    %p130 = scmp.eq.s32.totalorder %s21, 1
    %p131 = por %p129, %p130
    %p132 = scmp.ne.s32.totalorder %s121, %s122
    %p133 = scmp.eq.s32.totalorder %s21, 0
    %p134 = por %p132, %p133
    %p135 = scmp.ne.s32.totalorder %s121, %s122
    %p136 = scmp.eq.s32.totalorder %s22, 1
    %p137 = por %p135, %p136
    %p139 = scmp.ne.s32.totalorder %s122, %s138
    %p140 = scmp.eq.s32.totalorder %s22, 0
    %p141 = por %p139, %p140
    %s142 = ssub.s32 %s23, %s35
    %p143 = scmp.eq.s32.totalorder %s142, 0
    %s145 = sadd.s32 %s144, 1
    %s146 = scalar_select %p143, %s144, %s145
    %p149 = pneg %p143
    %p150 = scmp.eq.s32.totalorder %s16, 1
    %p151 = por %p149, %p150
    %p152 = scmp.ne.s32.totalorder %s144, %s147
    %p153 = scmp.eq.s32.totalorder %s16, 0
    %p154 = por %p152, %p153
    %p155 = scmp.ne.s32.totalorder %s144, %s147
    %p156 = scmp.eq.s32.totalorder %s21, 1
    %p157 = por %p155, %p156
    %p158 = scmp.ne.s32.totalorder %s147, %s148
    %p159 = scmp.eq.s32.totalorder %s21, 0
    %p160 = por %p158, %p159
    %p161 = scmp.ne.s32.totalorder %s147, %s148
    %p162 = scmp.eq.s32.totalorder %s22, 1
    %p163 = por %p161, %p162
    %p165 = scmp.ne.s32.totalorder %s148, %s164
    %p166 = scmp.eq.s32.totalorder %s22, 0
    %p167 = por %p165, %p166
    %s168 = ssub.s32 %s23, %s35
    %p169 = scmp.eq.s32.totalorder %s168, 0
    %s171 = sadd.s32 %s170, 1
    %s172 = scalar_select %p169, %s170, %s171
    %p175 = pneg %p169
    %p176 = scmp.eq.s32.totalorder %s16, 1
    %p177 = por %p175, %p176
    %p178 = scmp.ne.s32.totalorder %s170, %s173
    %p179 = scmp.eq.s32.totalorder %s16, 0
    %p180 = por %p178, %p179
    %p181 = scmp.ne.s32.totalorder %s170, %s173
    %p182 = scmp.eq.s32.totalorder %s21, 1
    %p183 = por %p181, %p182
    %p184 = scmp.ne.s32.totalorder %s173, %s174
    %p185 = scmp.eq.s32.totalorder %s21, 0
    %p186 = por %p184, %p185
    %p187 = scmp.ne.s32.totalorder %s173, %s174
    %p188 = scmp.eq.s32.totalorder %s22, 1
    %p189 = por %p187, %p188
    %p191 = scmp.ne.s32.totalorder %s174, %s190
    %p192 = scmp.eq.s32.totalorder %s22, 0
    %p193 = por %p191, %p192
    %s194 = ssub.s32 %s23, %s35
    %p195 = scmp.eq.s32.totalorder %s194, 0
    %s197 = sadd.s32 %s196, 1
    %s198 = scalar_select %p195, %s196, %s197
    %p201 = pneg %p195
    %p202 = scmp.eq.s32.totalorder %s16, 1
    %p203 = por %p201, %p202
    %p204 = scmp.ne.s32.totalorder %s196, %s199
    %p205 = scmp.eq.s32.totalorder %s16, 0
    %p206 = por %p204, %p205
    %p207 = scmp.ne.s32.totalorder %s196, %s199
    %p208 = scmp.eq.s32.totalorder %s21, 1
    %p209 = por %p207, %p208
    %p210 = scmp.ne.s32.totalorder %s199, %s200
    %p211 = scmp.eq.s32.totalorder %s21, 0
    %p212 = por %p210, %p211
    %p213 = scmp.ne.s32.totalorder %s199, %s200
    %p214 = scmp.eq.s32.totalorder %s22, 1
    %p215 = por %p213, %p214
    %p217 = scmp.ne.s32.totalorder %s200, %s216
    %p218 = scmp.eq.s32.totalorder %s22, 0
    %p219 = por %p217, %p218
    %s220 = ssub.s32 %s23, %s35
    %p221 = scmp.eq.s32.totalorder %s220, 0
    %s223 = sadd.s32 %s222, 1
    %s224 = scalar_select %p221, %s222, %s223
    %p227 = pneg %p221
    %p228 = scmp.eq.s32.totalorder %s16, 1
    %p229 = por %p227, %p228
    %p230 = scmp.ne.s32.totalorder %s222, %s225
    %p231 = scmp.eq.s32.totalorder %s16, 0
    %p232 = por %p230, %p231
    %p233 = scmp.ne.s32.totalorder %s222, %s225
    %p234 = scmp.eq.s32.totalorder %s21, 1
    %p235 = por %p233, %p234
    %p236 = scmp.ne.s32.totalorder %s225, %s226
    %p237 = scmp.eq.s32.totalorder %s21, 0
    %p238 = por %p236, %p237
    %p239 = scmp.ne.s32.totalorder %s225, %s226
    %p240 = scmp.eq.s32.totalorder %s22, 1
    %p241 = por %p239, %p240
    %p243 = scmp.ne.s32.totalorder %s226, %s242
    %p244 = scmp.eq.s32.totalorder %s22, 0
    %p245 = por %p243, %p244
    %s246 = ssub.s32 %s23, %s35
    %p247 = scmp.eq.s32.totalorder %s246, 0
    %s249 = sadd.s32 %s248, 1
    %s250 = scalar_select %p247, %s248, %s249
    %p253 = pneg %p247
    %p254 = scmp.eq.s32.totalorder %s16, 1
    %p255 = por %p253, %p254
    %p256 = scmp.ne.s32.totalorder %s248, %s251
    %p257 = scmp.eq.s32.totalorder %s16, 0
    %p258 = por %p256, %p257
    %p259 = scmp.ne.s32.totalorder %s248, %s251
    %p260 = scmp.eq.s32.totalorder %s21, 1
    %p261 = por %p259, %p260
    %p262 = scmp.ne.s32.totalorder %s251, %s252
    %p263 = scmp.eq.s32.totalorder %s21, 0
    %p264 = por %p262, %p263
    %p265 = scmp.ne.s32.totalorder %s251, %s252
    %p266 = scmp.eq.s32.totalorder %s22, 1
    %p267 = por %p265, %p266
    %p269 = scmp.ne.s32.totalorder %s252, %s268
    %p270 = scmp.eq.s32.totalorder %s22, 0
    %p271 = por %p269, %p270
    %s272 = ssub.s32 %s23, %s35
    %p273 = scmp.eq.s32.totalorder %s272, 0
    %s275 = sadd.s32 %s274, 1
    %s276 = scalar_select %p273, %s274, %s275
    %p279 = pneg %p273
    %p280 = scmp.eq.s32.totalorder %s16, 1
    %p281 = por %p279, %p280
    %p282 = scmp.ne.s32.totalorder %s274, %s277
    %p283 = scmp.eq.s32.totalorder %s16, 0
    %p284 = por %p282, %p283
    %p285 = scmp.ne.s32.totalorder %s274, %s277
    %p286 = scmp.eq.s32.totalorder %s21, 1
    %p287 = por %p285, %p286
    %p288 = scmp.ne.s32.totalorder %s277, %s278
    %p289 = scmp.eq.s32.totalorder %s21, 0
    %p290 = por %p288, %p289
    %p291 = scmp.ne.s32.totalorder %s277, %s278
    %p292 = scmp.eq.s32.totalorder %s22, 1
    %p293 = por %p291, %p292
    %p295 = scmp.ne.s32.totalorder %s278, %s294
    %p296 = scmp.eq.s32.totalorder %s22, 0
    %p297 = por %p295, %p296
    %s298 = ssub.s32 %s23, %s35
    %s299 = ssub.s32 %s24, %s31
    %s300 = sor.u32 %s298, %s299
    %p301 = scmp.eq.s32.totalorder %s300, 0
    %s303 = sadd.s32 %s302, 1
    %s304 = scalar_select %p301, %s302, %s303
    %p307 = pneg %p301
    %p308 = scmp.eq.s32.totalorder %s16, 1
    %p309 = por %p307, %p308
    %p310 = scmp.ne.s32.totalorder %s302, %s305
    %p311 = scmp.eq.s32.totalorder %s16, 0
    %p312 = por %p310, %p311
    %p313 = scmp.ne.s32.totalorder %s302, %s305
    %p314 = scmp.eq.s32.totalorder %s21, 1
    %p315 = por %p313, %p314
    %p316 = scmp.ne.s32.totalorder %s305, %s306
    %p317 = scmp.eq.s32.totalorder %s21, 0
    %p318 = por %p316, %p317
    %p319 = scmp.ne.s32.totalorder %s305, %s306
    %p320 = scmp.eq.s32.totalorder %s22, 1
    %p321 = por %p319, %p320
    %p323 = scmp.ne.s32.totalorder %s306, %s322
    %p324 = scmp.eq.s32.totalorder %s22, 0
    %p325 = por %p323, %p324
    %p326 = scmp.le.s32.totalorder 1, %s16
    %p327 = scmp.lt.s32.totalorder %s16, 3
    %p328 = pnand %p326, %p327
    %p329 = pneg %p328
    // Predicated region
    $region9: #{transformer_forward.6} parent=5 // pred_check
      _
    $region10: #{transformer_forward.6} parent=5 // pred_check_branch
      %331 = sbr.rel (%p328) target = $region12
    $region11: #{transformer_forward.6} parent=5 // pred_region
      %s332 = ssub.s32 %s16, 1
      // Predicated region
      $region13: #{transformer_forward.6} parent=11 // pred_check
        %p333 = pneg %p108
      $region14: #{transformer_forward.6} parent=11 // pred_check_branch
        %335 = sbr.rel (%p333) target = $region16
      $region15: #{transformer_forward.6} parent=11 // pred_region
        %p336 = scmp.lt.s32.totalorder %s25, 0
        %s337 = scalar_select %p336, %s25, 0
        %s338 = smul.addr %s337, 4
        %s339 = smul.addr %s338, 4
        %s340 = scalar_lea.vmem %s2, %s339
      $region16: #{transformer_forward.6} parent=11 // pred_fallthru
        _
      // Predicated region
      $region17: #{transformer_forward.6} parent=11 // pred_check
        %p341 = pneg %p134
      $region18: #{transformer_forward.6} parent=11 // pred_check_branch
        %343 = sbr.rel (%p341) target = $region20
      $region19: #{transformer_forward.6} parent=11 // pred_region
        %p344 = scmp.lt.s32.totalorder %s25, 0
        %s345 = scalar_select %p344, %s25, 0
        %s346 = scalar_lea.vmem %s3, %s345
      $region20: #{transformer_forward.6} parent=11 // pred_fallthru
        _
      // Predicated region
      $region21: #{transformer_forward.6} parent=11 // pred_check
        %p347 = pneg %p160
      $region22: #{transformer_forward.6} parent=11 // pred_check_branch
        %349 = sbr.rel (%p347) target = $region24
      $region23: #{transformer_forward.6} parent=11 // pred_region
        %p350 = scmp.lt.s32.totalorder %s25, 0
        %s351 = scalar_select %p350, %s25, 0
        %s352 = smul.addr %s351, 4
        %s353 = smul.addr %s352, 4
        %s354 = scalar_lea.vmem %s4, %s353
      $region24: #{transformer_forward.6} parent=11 // pred_fallthru
        _
      // Predicated region
      $region25: #{transformer_forward.6} parent=11 // pred_check
        %p355 = pneg %p186
      $region26: #{transformer_forward.6} parent=11 // pred_check_branch
        %357 = sbr.rel (%p355) target = $region28
      $region27: #{transformer_forward.6} parent=11 // pred_region
        %p358 = scmp.lt.s32.totalorder %s25, 0
        %s359 = scalar_select %p358, %s25, 0
        %s360 = scalar_lea.vmem %s5, %s359
      $region28: #{transformer_forward.6} parent=11 // pred_fallthru
        _
      // Predicated region
      $region29: #{transformer_forward.6} parent=11 // pred_check
        %p361 = pneg %p212
      $region30: #{transformer_forward.6} parent=11 // pred_check_branch
        %363 = sbr.rel (%p361) target = $region32
      $region31: #{transformer_forward.6} parent=11 // pred_region
        %p364 = scmp.lt.s32.totalorder %s25, 0
        %s365 = scalar_select %p364, %s25, 0
        %s366 = smul.addr %s365, 4
        %s367 = smul.addr %s366, 4
        %s368 = scalar_lea.vmem %s6, %s367
      $region32: #{transformer_forward.6} parent=11 // pred_fallthru
        _
      // Predicated region
      $region33: #{transformer_forward.6} parent=11 // pred_check
        %p369 = pneg %p238
      $region34: #{transformer_forward.6} parent=11 // pred_check_branch
        %371 = sbr.rel (%p369) target = $region36
      $region35: #{transformer_forward.6} parent=11 // pred_region
        %p372 = scmp.lt.s32.totalorder %s25, 0
        %s373 = scalar_select %p372, %s25, 0
        %s374 = scalar_lea.vmem %s7, %s373
      $region36: #{transformer_forward.6} parent=11 // pred_fallthru
        _
      // Predicated region
      $region37: #{transformer_forward.6} parent=11 // pred_check
        %p375 = pneg %p264
      $region38: #{transformer_forward.6} parent=11 // pred_check_branch
        %377 = sbr.rel (%p375) target = $region40
      $region39: #{transformer_forward.6} parent=11 // pred_region
        %p378 = scmp.lt.s32.totalorder %s25, 0
        %s379 = scalar_select %p378, %s25, 0
        %s380 = scalar_lea.vmem %s8, %s379
      $region40: #{transformer_forward.6} parent=11 // pred_fallthru
        _
      // Predicated region
      $region41: #{transformer_forward.6} parent=11 // pred_check
        %p381 = pneg %p290
      $region42: #{transformer_forward.6} parent=11 // pred_check_branch
        %383 = sbr.rel (%p381) target = $region44
      $region43: #{transformer_forward.6} parent=11 // pred_region
        %p384 = scmp.lt.s32.totalorder %s25, 0
        %s385 = scalar_select %p384, %s25, 0
        %s386 = scalar_lea.vmem %s9, %s385
      $region44: #{transformer_forward.6} parent=11 // pred_fallthru
        _
    $region12: #{transformer_forward.6} parent=5 // pred_fallthru
      _
    %p387 = scmp.lt.s32.totalorder %s16, 2
    // Predicated region
    $region45: #{transformer_forward.6} parent=5 // pred_check
      %p388 = pneg %p387
    $region46: #{transformer_forward.6} parent=5 // pred_check_branch
      %390 = sbr.rel (%p388) target = $region48
    $region47: #{transformer_forward.6} parent=5 // pred_region
      // Predicated region
      $region49: #{transformer_forward.6} parent=47 // pred_check
        %p391 = pneg %p50
      $region50: #{transformer_forward.6} parent=47 // pred_check_branch
        %393 = sbr.rel (%p391) target = $region52
      $region51: #{transformer_forward.6} parent=47 // pred_region
        %p394 = scmp.lt.s32.totalorder %s23, 0
        %s395 = scalar_select %p394, %s23, 0
        %p396 = scmp.lt.s32.totalorder %s24, 1
        %s397 = scalar_select %p396, %s24, 1
        %s398 = smul.addr %s397, 4
        %s399 = smul.addr %s395, 8
        %s400 = sadd.s32 %s398, %s399
        %s401 = smul.addr %s400, 8
        %s402 = scalar_lea.vmem %s0, %s401
      $region52: #{transformer_forward.6} parent=47 // pred_fallthru
        _
      // Predicated region
      $region53: #{transformer_forward.6} parent=47 // pred_check
        %p403 = pneg %p76
      $region54: #{transformer_forward.6} parent=47 // pred_check_branch
        %405 = sbr.rel (%p403) target = $region56
      $region55: #{transformer_forward.6} parent=47 // pred_region
        %p406 = scmp.lt.s32.totalorder %s24, 1
        %s407 = scalar_select %p406, %s24, 1
        %s408 = smul.addr %s407, 4
        %s409 = smul.addr %s408, 8
        %s410 = scalar_lea.vmem %s1, %s409
      $region56: #{transformer_forward.6} parent=47 // pred_fallthru
        _
    $region48: #{transformer_forward.6} parent=5 // pred_fallthru
      _
    %p411 = scmp.le.s32.totalorder 1, %s16
    %p412 = scmp.lt.s32.totalorder %s16, 3
    %p413 = pnand %p411, %p412
    %p414 = pneg %p413
    // Predicated region
    $region57: #{transformer_forward.6} parent=5 // pred_check
      _
    $region58: #{transformer_forward.6} parent=5 // pred_check_branch
      %416 = sbr.rel (%p413) target = $region60
    $region59: #{transformer_forward.6} parent=5 // pred_region
      %s417 = ssub.s32 %s16, 1
      %p418 = scmp.lt.s32.totalorder %s25, 0
      %s419 = scalar_select %p418, %s25, 0
      %p420 = scmp.lt.s32.totalorder %s26, 1
      %s421 = scalar_select %p420, %s26, 1
      %s422 = smul.addr %s421, 4
      %s423 = smul.addr %s419, 8
      %s424 = sadd.s32 %s422, %s423
      %s425 = smul.addr %s424, 8
      %s426 = scalar_lea.vmem %s0, %s425
      %p427 = pneg %p56
      %p428 = pneg %p53
      %p429 = scmp.lt.s32.totalorder %s26, 1
      %s430 = scalar_select %p429, %s26, 1
      %s431 = smul.addr %s430, 4
      %s432 = smul.addr %s431, 8
      %s433 = scalar_lea.vmem %s1, %s432
      %p434 = pneg %p82
      %p435 = pneg %p79
      %p436 = scmp.lt.s32.totalorder %s25, 0
      %s437 = scalar_select %p436, %s25, 0
      %s438 = smul.addr %s437, 4
      %s439 = smul.addr %s438, 4
      %s440 = scalar_lea.vmem %s2, %s439
      %p441 = pneg %p108
      %p442 = pneg %p105
      %p443 = scmp.lt.s32.totalorder %s25, 0
      %s444 = scalar_select %p443, %s25, 0
      %s445 = scalar_lea.vmem %s3, %s444
      %p446 = pneg %p134
      %p447 = pneg %p131
      %p448 = scmp.lt.s32.totalorder %s25, 0
      %s449 = scalar_select %p448, %s25, 0
      %s450 = smul.addr %s449, 4
      %s451 = smul.addr %s450, 4
      %s452 = scalar_lea.vmem %s4, %s451
      %p453 = pneg %p160
      %p454 = pneg %p157
      %p455 = scmp.lt.s32.totalorder %s25, 0
      %s456 = scalar_select %p455, %s25, 0
      %s457 = scalar_lea.vmem %s5, %s456
      %p458 = pneg %p186
      %p459 = pneg %p183
      %p460 = scmp.lt.s32.totalorder %s25, 0
      %s461 = scalar_select %p460, %s25, 0
      %s462 = smul.addr %s461, 4
      %s463 = smul.addr %s462, 4
      %s464 = scalar_lea.vmem %s6, %s463
      %p465 = pneg %p212
      %p466 = pneg %p209
      %p467 = scmp.lt.s32.totalorder %s25, 0
      %s468 = scalar_select %p467, %s25, 0
      %s469 = scalar_lea.vmem %s7, %s468
      %p470 = pneg %p238
      %p471 = pneg %p235
      %p472 = scmp.lt.s32.totalorder %s25, 0
      %s473 = scalar_select %p472, %s25, 0
      %s474 = scalar_lea.vmem %s8, %s473
      %p475 = pneg %p264
      %p476 = pneg %p261
      %p477 = scmp.lt.s32.totalorder %s25, 0
      %s478 = scalar_select %p477, %s25, 0
      %s479 = scalar_lea.vmem %s9, %s478
      %p480 = pneg %p290
      %p481 = pneg %p287
      %p482 = pneg %p318
      %p483 = pneg %p315
      %p484 = scmp.lt.s32.totalorder %s25, 0
      %s485 = scalar_select %p484, %s25, 0
      %p486 = scmp.lt.s32.totalorder %s26, 1
      %s487 = scalar_select %p486, %s26, 1
      %s488 = smul.addr %s487, 4
      %s489 = smul.addr %s485, 8
      %s490 = sadd.s32 %s488, %s489
      %s491 = smul.addr %s490, 8
      %s492 = scalar_lea.vmem %s10, %s491
      %p493 = scmp.lt.s32.totalorder %s25, 0
      %s494 = scalar_select %p493, %s25, 0
      %p495 = scmp.lt.s32.totalorder %s26, 1
      %s496 = scalar_select %p495, %s26, 1
      %s497 = smul.addr %s496, 4
      %s498 = smul.addr %s494, 8
      %s499 = sadd.s32 %s497, %s498
      %s500 = smul.addr %s499, 8
      %s501 = scalar_lea.vmem %s0, %s500
      %p502 = scmp.lt.s32.totalorder %s26, 1
      %s503 = scalar_select %p502, %s26, 1
      %s504 = smul.addr %s503, 4
      %s505 = smul.addr %s504, 8
      %s506 = scalar_lea.vmem %s1, %s505
      %p507 = scmp.lt.s32.totalorder %s25, 0
      %s508 = scalar_select %p507, %s25, 0
      %s509 = smul.addr %s508, 4
      %s510 = smul.addr %s509, 4
      %s511 = scalar_lea.vmem %s2, %s510
      %p512 = scmp.lt.s32.totalorder %s25, 0
      %s513 = scalar_select %p512, %s25, 0
      %s514 = scalar_lea.vmem %s3, %s513
      %p515 = scmp.lt.s32.totalorder %s25, 0
      %s516 = scalar_select %p515, %s25, 0
      %s517 = smul.addr %s516, 4
      %s518 = smul.addr %s517, 4
      %s519 = scalar_lea.vmem %s4, %s518
      %p520 = scmp.lt.s32.totalorder %s25, 0
      %s521 = scalar_select %p520, %s25, 0
      %s522 = scalar_lea.vmem %s5, %s521
      %p523 = scmp.lt.s32.totalorder %s25, 0
      %s524 = scalar_select %p523, %s25, 0
      %s525 = smul.addr %s524, 4
      %s526 = smul.addr %s525, 4
      %s527 = scalar_lea.vmem %s6, %s526
      %p528 = scmp.lt.s32.totalorder %s25, 0
      %s529 = scalar_select %p528, %s25, 0
      %s530 = scalar_lea.vmem %s7, %s529
      %p531 = scmp.lt.s32.totalorder %s25, 0
      %s532 = scalar_select %p531, %s25, 0
      %s533 = scalar_lea.vmem %s8, %s532
      %p534 = scmp.lt.s32.totalorder %s25, 0
      %s535 = scalar_select %p534, %s25, 0
      %s536 = scalar_lea.vmem %s9, %s535
      %p537 = scmp.lt.s32.totalorder %s25, 0
      %s538 = scalar_select %p537, %s25, 0
      %p539 = scmp.lt.s32.totalorder %s26, 1
      %s540 = scalar_select %p539, %s26, 1
      %s541 = smul.addr %s540, 4
      %s542 = smul.addr %s538, 8
      %s543 = sadd.s32 %s541, %s542
      %s544 = smul.addr %s543, 8
      %s545 = scalar_lea.vmem %s10, %s544
      %v547 = vld [vmem:[%s501] sm:$0xff]
      %v548 = vld [vmem:[%s501 + $0x8] sm:$0xff]
      %v549 = vld [vmem:[%s501 + $0x10] sm:$0xff]
      %v550 = vld [vmem:[%s501 + $0x18] sm:$0xff]
      %v551 = vld [vmem:[%s506] sm:$0xff]
      %v552 = vld [vmem:[%s506 + $0x8] sm:$0xff]
      %v553 = vld [vmem:[%s506 + $0x10] sm:$0xff]
      %v554 = vld [vmem:[%s506 + $0x18] sm:$0xff]
      %v555 = vpack.c.bf16 %v548, %v547
      %v556 = vpack.c.bf16 %v550, %v549
      %v557 = vld [vmem:[%s511] sm:$0xf]
      %v558 = vld [vmem:[%s511 + $0x4] sm:$0xf]
      %v559 = vld [vmem:[%s511 + $0x8] sm:$0xf]
      %v560 = vld [vmem:[%s511 + $0xc] sm:$0xf]
      %v561 = vld [vmem:[%s514] sm:$0x1]
      %v563 = vlaneseq
      %v564 = vshrl.u32 %v563, 7
      %v565 = vsub.s32 0, %v564
      %v566 = vrot.slane %v561, %v565
      %v572 = vunpack.c.l.b16 %v557
      %v573 = vunpack.c.l.b16 %v558
      %v574 = vunpack.c.l.b16 %v559
      %v575 = vunpack.c.l.b16 %v560
      %v576 = vpack.c.b16 %v573, %v572
      %v577 = vpack.c.b16 %v575, %v574
      %vm580 = vcmask 261120
      %v582 = vsel %vm580, %v555, 0
      %v585 = vsel %vm580, %v556, 0
      %587 = vmatprep.subr.bf16.mxu0 0
      %588 = vmatpush1.bf16.msra.mxu0 %v576
      %589 = vmatprep.subr.bf16.mxu0 0
      %590 = vmatpush1.bf16.msra.mxu0 %v577
      %591 = vmatprep.subr.bf16.mxu0 0
      %592 = vmatpush1.bf16.msra.mxu0 0
      %593 = vmatprep.subr.bf16.mxu0 0
      %594 = vmatpush1.bf16.msra.mxu0 0
      %595 = vmatprep.subr.bf16.mxu0 0
      %596 = vmatpush1.bf16.msra.mxu0 0
      %597 = vmatprep.subr.bf16.mxu0 0
      %598 = vmatpush1.bf16.msra.mxu0 0
      %599 = vmatprep.subr.bf16.mxu0 0
      %600 = vmatpush1.bf16.msra.mxu0 0
      %601 = vmatprep.subr.bf16.mxu0 0
      %602 = vmatpush1.bf16.msra.mxu0 0
      %603 = vmatprep.subr.bf16.mxu0 0
      %604 = vmatpush1.bf16.msra.mxu0 0
      %605 = vmatprep.subr.bf16.mxu0 0
      %606 = vmatpush1.bf16.msra.mxu0 0
      %607 = vmatprep.subr.bf16.mxu0 0
      %608 = vmatpush1.bf16.msra.mxu0 0
      %609 = vmatprep.subr.bf16.mxu0 0
      %610 = vmatpush1.bf16.msra.mxu0 0
      %611 = vmatprep.subr.bf16.mxu0 0
      %612 = vmatpush1.bf16.msra.mxu0 0
      %613 = vmatprep.subr.bf16.mxu0 0
      %614 = vmatpush1.bf16.msra.mxu0 0
      %615 = vmatprep.subr.bf16.mxu0 0
      %616 = vmatpush1.bf16.msra.mxu0 0
      %617 = vmatprep.subr.bf16.mxu0 0
      %618 = vmatpush1.bf16.msra.mxu0 0
      %619 = vmatprep.mubr.bf16.mxu0 0
      %620 = vmatmul.mubr.bf16.gmra.mrb[0].mxu0 %v582
      %v621 = vpop.f32.mrb[0].mxu0
      %v622 = vadd.f32 %v566, %v621
      %v623 = vpop.f32.mrb[0].mxu0
      %v624 = vpop.f32.mrb[0].mxu0
      %v625 = vadd.f32 %v566, %v624
      %v626 = vpop.f32.mrb[0].mxu0
      %627 = vmatprep.mubr.bf16.mxu0 0
      %628 = vmatmul.mubr.bf16.gmra.mrb[0].mxu0 %v585
      %v629 = vpop.f32.mrb[0].mxu0
      %v630 = vadd.f32 %v566, %v629
      %v631 = vpop.f32.mrb[0].mxu0
      %v632 = vpop.f32.mrb[0].mxu0
      %v633 = vadd.f32 %v566, %v632
      %v634 = vpop.f32.mrb[0].mxu0
      %635 = vdwg.mxu0
      %v636 = vmul.f32 %v622, 0.35355338
      %v637 = vmul.f32 %v625, 0.35355338
      %v638 = vmul.f32 %v630, 0.35355338
      %v639 = vmul.f32 %v633, 0.35355338
      %v640 = vpack.c.bf16 %v552, %v551
      %v641 = vpack.c.bf16 %v554, %v553
      %v642 = vld [vmem:[%s519] sm:$0xf]
      %v643 = vld [vmem:[%s519 + $0x4] sm:$0xf]
      %v644 = vld [vmem:[%s519 + $0x8] sm:$0xf]
      %v645 = vld [vmem:[%s519 + $0xc] sm:$0xf]
      %v646 = vld [vmem:[%s522] sm:$0x1]
      %v648 = vlaneseq
      %v649 = vshrl.u32 %v648, 7
      %v650 = vsub.s32 0, %v649
      %v651 = vrot.slane %v646, %v650
      %v657 = vunpack.c.l.b16 %v642
      %v658 = vunpack.c.l.b16 %v643
      %v659 = vunpack.c.l.b16 %v644
      %v660 = vunpack.c.l.b16 %v645
      %v661 = vpack.c.b16 %v658, %v657
      %v662 = vpack.c.b16 %v660, %v659
      %v666 = vsel %vm580, %v640, 0
      %v669 = vsel %vm580, %v641, 0
      %671 = vmatprep.subr.bf16.mxu0 0
      %672 = vmatpush1.bf16.msra.mxu0 %v661
      %673 = vmatprep.subr.bf16.mxu0 0
      %674 = vmatpush1.bf16.msra.mxu0 %v662
      %675 = vmatprep.subr.bf16.mxu0 0
      %676 = vmatpush1.bf16.msra.mxu0 0
      %677 = vmatprep.subr.bf16.mxu0 0
      %678 = vmatpush1.bf16.msra.mxu0 0
      %679 = vmatprep.subr.bf16.mxu0 0
      %680 = vmatpush1.bf16.msra.mxu0 0
      %681 = vmatprep.subr.bf16.mxu0 0
      %682 = vmatpush1.bf16.msra.mxu0 0
      %683 = vmatprep.subr.bf16.mxu0 0
      %684 = vmatpush1.bf16.msra.mxu0 0
      %685 = vmatprep.subr.bf16.mxu0 0
      %686 = vmatpush1.bf16.msra.mxu0 0
      %687 = vmatprep.subr.bf16.mxu0 0
      %688 = vmatpush1.bf16.msra.mxu0 0
      %689 = vmatprep.subr.bf16.mxu0 0
      %690 = vmatpush1.bf16.msra.mxu0 0
      %691 = vmatprep.subr.bf16.mxu0 0
      %692 = vmatpush1.bf16.msra.mxu0 0
      %693 = vmatprep.subr.bf16.mxu0 0
      %694 = vmatpush1.bf16.msra.mxu0 0
      %695 = vmatprep.subr.bf16.mxu0 0
      %696 = vmatpush1.bf16.msra.mxu0 0
      %697 = vmatprep.subr.bf16.mxu0 0
      %698 = vmatpush1.bf16.msra.mxu0 0
      %699 = vmatprep.subr.bf16.mxu0 0
      %700 = vmatpush1.bf16.msra.mxu0 0
      %701 = vmatprep.subr.bf16.mxu0 0
      %702 = vmatpush1.bf16.msra.mxu0 0
      %703 = vmatprep.mubr.bf16.mxu0 0
      %704 = vmatmul.mubr.bf16.gmra.mrb[0].mxu0 %v666
      %v705 = vpop.f32.mrb[0].mxu0
      %v706 = vadd.f32 %v651, %v705
      %v707 = vpop.f32.mrb[0].mxu0
      %v708 = vpop.f32.mrb[0].mxu0
      %v709 = vadd.f32 %v651, %v708
      %v710 = vpop.f32.mrb[0].mxu0
      %711 = vmatprep.mubr.bf16.mxu0 0
      %712 = vmatmul.mubr.bf16.gmra.mrb[0].mxu0 %v669
      %v713 = vpop.f32.mrb[0].mxu0
      %v714 = vadd.f32 %v651, %v713
      %v715 = vpop.f32.mrb[0].mxu0
      %v716 = vpop.f32.mrb[0].mxu0
      %v717 = vadd.f32 %v651, %v716
      %v718 = vpop.f32.mrb[0].mxu0
      %719 = vdwg.mxu0
      %720 = vxpose.xlu0.b32.start [1/16] %v706, 128
      %721 = vxpose.xlu0.b32.cont [2/16] %v709, 128
      %722 = vxpose.xlu0.b32.cont [3/16] %v714, 128
      %723 = vxpose.xlu0.b32.cont [4/16] %v717, 128
      %724 = vxpose.xlu0.b32.cont [5/16] 0.0, 128
      %725 = vxpose.xlu0.b32.cont [6/16] 0.0, 128
      %726 = vxpose.xlu0.b32.cont [7/16] 0.0, 128
      %727 = vxpose.xlu0.b32.cont [8/16] 0.0, 128
      %728 = vxpose.xlu0.b32.cont [9/16] 0.0, 128
      %729 = vxpose.xlu0.b32.cont [10/16] 0.0, 128
      %730 = vxpose.xlu0.b32.cont [11/16] 0.0, 128
      %731 = vxpose.xlu0.b32.cont [12/16] 0.0, 128
      %732 = vxpose.xlu0.b32.cont [13/16] 0.0, 128
      %733 = vxpose.xlu0.b32.cont [14/16] 0.0, 128
      %734 = vxpose.xlu0.b32.cont [15/16] 0.0, 128
      %735 = vxpose.xlu0.b32.end [16/16] 0.0, 128
      %v736 = vpop.trf.xlu0
      %v737 = vpop.trf.xlu0
      %v738 = vpop.trf.xlu0
      %v739 = vpop.trf.xlu0
      %v740 = vpop.trf.xlu0
      %v741 = vpop.trf.xlu0
      %v742 = vpop.trf.xlu0
      %v743 = vpop.trf.xlu0
      %v744 = vpop.trf.xlu0
      %v745 = vpop.trf.xlu0
      %v746 = vpop.trf.xlu0
      %v747 = vpop.trf.xlu0
      %v748 = vpop.trf.xlu0
      %v749 = vpop.trf.xlu0
      %v750 = vpop.trf.xlu0
      %v751 = vpop.trf.xlu0
      %v752 = vpack.c.bf16 %v737, %v736
      %v753 = vpack.c.bf16 %v739, %v738
      %v754 = vpack.c.bf16 %v709, %v706
      %v755 = vpack.c.bf16 %v717, %v714
      %v756 = vlaneseq
      %v757 = vand.u32 %v756, 127
      %vm758 = vcmp.lt.s32.totalorder %v757, 25
      %v759 = vsel %vm758, 0.0, -1e+30
      %v760 = vpack.c.bf16 %v637, %v636
      %v761 = vpack.c.bf16 %v639, %v638
      %vm762 = vcmask 64512
      %v764 = vsel %vm762, %v760, 0
      %v767 = vsel %vm762, %v761, 0
      %vm769 = vcmask 1043456
      %v771 = vsel %vm769, %v752, 0
      %773 = vmatprep.subr.bf16.mxu0 0
      %774 = vmatpush1.bf16.msra.mxu0 %v771
      %775 = vmatprep.subr.bf16.mxu0 0
      %776 = vmatpush1.bf16.msra.mxu0 0
      %777 = vmatprep.subr.bf16.mxu0 0
      %778 = vmatpush1.bf16.msra.mxu0 0
      %779 = vmatprep.subr.bf16.mxu0 0
      %780 = vmatpush1.bf16.msra.mxu0 0
      %781 = vmatprep.subr.bf16.mxu0 0
      %782 = vmatpush1.bf16.msra.mxu0 0
      %783 = vmatprep.subr.bf16.mxu0 0
      %784 = vmatpush1.bf16.msra.mxu0 0
      %785 = vmatprep.subr.bf16.mxu0 0
      %786 = vmatpush1.bf16.msra.mxu0 0
      %787 = vmatprep.subr.bf16.mxu0 0
      %788 = vmatpush1.bf16.msra.mxu0 0
      %789 = vmatprep.subr.bf16.mxu0 0
      %790 = vmatpush1.bf16.msra.mxu0 0
      %791 = vmatprep.subr.bf16.mxu0 0
      %792 = vmatpush1.bf16.msra.mxu0 0
      %793 = vmatprep.subr.bf16.mxu0 0
      %794 = vmatpush1.bf16.msra.mxu0 0
      %795 = vmatprep.subr.bf16.mxu0 0
      %796 = vmatpush1.bf16.msra.mxu0 0
      %797 = vmatprep.subr.bf16.mxu0 0
      %798 = vmatpush1.bf16.msra.mxu0 0
      %799 = vmatprep.subr.bf16.mxu0 0
      %800 = vmatpush1.bf16.msra.mxu0 0
      %801 = vmatprep.subr.bf16.mxu0 0
      %802 = vmatpush1.bf16.msra.mxu0 0
      %803 = vmatprep.subr.bf16.mxu0 0
      %804 = vmatpush1.bf16.msra.mxu0 0
      %805 = vmatprep.mubr.bf16.mxu0 0
      %806 = vmatmul.mubr.bf16.gmra.mrb[0].mxu0 %v764
      %v807 = vpop.f32.mrb[0].mxu0
      %v808 = vadd.f32 %v759, %v807
      %v809 = vpop.f32.mrb[0].mxu0
      %v810 = vpop.f32.mrb[0].mxu0
      %v811 = vadd.f32 %v759, %v810
      %v812 = vpop.f32.mrb[0].mxu0
      %813 = vmatprep.mubr.bf16.mxu0 0
      %814 = vmatmul.mubr.bf16.gmra.mrb[0].mxu0 %v767
      %v815 = vpop.f32.mrb[0].mxu0
      %v816 = vadd.f32 %v759, %v815
      %v817 = vpop.f32.mrb[0].mxu0
      %v818 = vpop.f32.mrb[0].mxu0
      %v819 = vadd.f32 %v759, %v818
      %v820 = vpop.f32.mrb[0].mxu0
      %821 = vdwg.mxu0
      %v822 = vsel %vm580, %v808, -inf
      %823 = vmax.xlane.f32.xlu0 %v822
      %v824 = vpop.xlane.xlu0 %823
      %v825 = vsel %vm580, %v811, -inf
      %826 = vmax.xlane.f32.xlu0 %v825
      %v827 = vpop.xlane.xlu0 %826
      %v828 = vsel %vm580, %v816, -inf
      %829 = vmax.xlane.f32.xlu0 %v828
      %v830 = vpop.xlane.xlu0 %829
      %v831 = vsel %vm580, %v819, -inf
      %832 = vmax.xlane.f32.xlu0 %v831
      %v833 = vpop.xlane.xlu0 %832
      %v834 = vsub.f32 %v808, %v824
      %v835 = vsub.f32 %v811, %v827
      %v836 = vsub.f32 %v816, %v830
      %v837 = vsub.f32 %v819, %v833
      %v838 = vmul.f32 %v834, 1.442695
      %v839 = vpow.pop %v838
      %v840 = vmul.f32 %v835, 1.442695
      %v841 = vpow.pop %v840
      %v842 = vmul.f32 %v836, 1.442695
      %v843 = vpow.pop %v842
      %v844 = vmul.f32 %v837, 1.442695
      %v845 = vpow.pop %v844
      %v846 = vsel %vm580, %v839, 0.0
      %847 = vadd.xlane.f32.xlu0 %v846
      %v848 = vpop.xlane.xlu0 %847
      %v849 = vsel %vm580, %v841, 0.0
      %850 = vadd.xlane.f32.xlu0 %v849
      %v851 = vpop.xlane.xlu0 %850
      %v852 = vsel %vm580, %v843, 0.0
      %853 = vadd.xlane.f32.xlu0 %v852
      %v854 = vpop.xlane.xlu0 %853
      %v855 = vsel %vm580, %v845, 0.0
      %856 = vadd.xlane.f32.xlu0 %v855
      %v857 = vpop.xlane.xlu0 %856
      %v858 = vrcp.pop %v848
      %v859 = vrcp.pop %v851
      %v860 = vrcp.pop %v854
      %v861 = vrcp.pop %v857
      %v862 = vpack.c.bf16 %v841, %v839
      %v863 = vpack.c.bf16 %v845, %v843
      %866 = vrot.lane.b32.xlu0 %v754, 96
      %v867 = vpop.permute.xlu0 %866
      %868 = vrot.lane.b32.xlu0 %v755, 96
      %v869 = vpop.permute.xlu0 %868
      %v873 = vsel %vm580, %v862, 0
      %v876 = vsel %vm580, %v863, 0
      %878 = vmatprep.subr.bf16.mxu0 0
      %879 = vmatpush1.bf16.msra.mxu0 %v867
      %880 = vmatprep.subr.bf16.mxu0 0
      %881 = vmatpush1.bf16.msra.mxu0 %v869
      %882 = vmatprep.subr.bf16.mxu0 0
      %883 = vmatpush1.bf16.msra.mxu0 0
      %884 = vmatprep.subr.bf16.mxu0 0
      %885 = vmatpush1.bf16.msra.mxu0 0
      %886 = vmatprep.subr.bf16.mxu0 0
      %887 = vmatpush1.bf16.msra.mxu0 0
      %888 = vmatprep.subr.bf16.mxu0 0
      %889 = vmatpush1.bf16.msra.mxu0 0
      %890 = vmatprep.subr.bf16.mxu0 0
      %891 = vmatpush1.bf16.msra.mxu0 0
      %892 = vmatprep.subr.bf16.mxu0 0
      %893 = vmatpush1.bf16.msra.mxu0 0
      %894 = vmatprep.subr.bf16.mxu0 0
      %895 = vmatpush1.bf16.msra.mxu0 0
      %896 = vmatprep.subr.bf16.mxu0 0
      %897 = vmatpush1.bf16.msra.mxu0 0
      %898 = vmatprep.subr.bf16.mxu0 0
      %899 = vmatpush1.bf16.msra.mxu0 0
      %900 = vmatprep.subr.bf16.mxu0 0
      %901 = vmatpush1.bf16.msra.mxu0 0
      %902 = vmatprep.subr.bf16.mxu0 0
      %903 = vmatpush1.bf16.msra.mxu0 0
      %904 = vmatprep.subr.bf16.mxu0 0
      %905 = vmatpush1.bf16.msra.mxu0 0
      %906 = vmatprep.subr.bf16.mxu0 0
      %907 = vmatpush1.bf16.msra.mxu0 0
      %908 = vmatprep.subr.bf16.mxu0 0
      %909 = vmatpush1.bf16.msra.mxu0 0
      %910 = vmatprep.mubr.bf16.mxu0 0
      %911 = vmatmul.mubr.bf16.gmra.mrb[0].mxu0 %v873
      %v912 = vpop.f32.mrb[0].mxu0
      %v913 = vadd.f32 0.0, %v912
      %v914 = vpop.f32.mrb[0].mxu0
      %v915 = vpop.f32.mrb[0].mxu0
      %v916 = vadd.f32 0.0, %v915
      %v917 = vpop.f32.mrb[0].mxu0
      %918 = vmatprep.mubr.bf16.mxu0 0
      %919 = vmatmul.mubr.bf16.gmra.mrb[0].mxu0 %v876
      %v920 = vpop.f32.mrb[0].mxu0
      %v921 = vadd.f32 0.0, %v920
      %v922 = vpop.f32.mrb[0].mxu0
      %v923 = vpop.f32.mrb[0].mxu0
      %v924 = vadd.f32 0.0, %v923
      %v925 = vpop.f32.mrb[0].mxu0
      %926 = vdwg.mxu0
      %v927 = vmul.f32 %v913, %v858
      %v928 = vmul.f32 %v916, %v859
      %v929 = vmul.f32 %v921, %v860
      %v930 = vmul.f32 %v924, %v861
      %933 = vrot.lane.b32.xlu0 %v760, 120
      %v934 = vpop.permute.xlu0 %933
      %935 = vrot.lane.b32.xlu0 %v761, 120
      %v936 = vpop.permute.xlu0 %935
      %v938 = vrot.slane %v752, 4
      %v940 = vsel %vm762, %v934, 0
      %v943 = vsel %vm762, %v936, 0
      %v946 = vsel %vm769, %v938, 0
      %948 = vmatprep.subr.bf16.mxu0 0
      %949 = vmatpush1.bf16.msra.mxu0 %v946
      %950 = vmatprep.subr.bf16.mxu0 0
      %951 = vmatpush1.bf16.msra.mxu0 0
      %952 = vmatprep.subr.bf16.mxu0 0
      %953 = vmatpush1.bf16.msra.mxu0 0
      %954 = vmatprep.subr.bf16.mxu0 0
      %955 = vmatpush1.bf16.msra.mxu0 0
      %956 = vmatprep.subr.bf16.mxu0 0
      %957 = vmatpush1.bf16.msra.mxu0 0
      %958 = vmatprep.subr.bf16.mxu0 0
      %959 = vmatpush1.bf16.msra.mxu0 0
      %960 = vmatprep.subr.bf16.mxu0 0
      %961 = vmatpush1.bf16.msra.mxu0 0
      %962 = vmatprep.subr.bf16.mxu0 0
      %963 = vmatpush1.bf16.msra.mxu0 0
      %964 = vmatprep.subr.bf16.mxu0 0
      %965 = vmatpush1.bf16.msra.mxu0 0
      %966 = vmatprep.subr.bf16.mxu0 0
      %967 = vmatpush1.bf16.msra.mxu0 0
      %968 = vmatprep.subr.bf16.mxu0 0
      %969 = vmatpush1.bf16.msra.mxu0 0
      %970 = vmatprep.subr.bf16.mxu0 0
      %971 = vmatpush1.bf16.msra.mxu0 0
      %972 = vmatprep.subr.bf16.mxu0 0
      %973 = vmatpush1.bf16.msra.mxu0 0
      %974 = vmatprep.subr.bf16.mxu0 0
      %975 = vmatpush1.bf16.msra.mxu0 0
      %976 = vmatprep.subr.bf16.mxu0 0
      %977 = vmatpush1.bf16.msra.mxu0 0
      %978 = vmatprep.subr.bf16.mxu0 0
      %979 = vmatpush1.bf16.msra.mxu0 0
      %980 = vmatprep.mubr.bf16.mxu0 0
      %981 = vmatmul.mubr.bf16.gmra.mrb[0].mxu0 %v940
      %v982 = vpop.f32.mrb[0].mxu0
      %v983 = vadd.f32 %v759, %v982
      %v984 = vpop.f32.mrb[0].mxu0
      %v985 = vpop.f32.mrb[0].mxu0
      %v986 = vadd.f32 %v759, %v985
      %v987 = vpop.f32.mrb[0].mxu0
      %988 = vmatprep.mubr.bf16.mxu0 0
      %989 = vmatmul.mubr.bf16.gmra.mrb[0].mxu0 %v943
      %v990 = vpop.f32.mrb[0].mxu0
      %v991 = vadd.f32 %v759, %v990
      %v992 = vpop.f32.mrb[0].mxu0
      %v993 = vpop.f32.mrb[0].mxu0
      %v994 = vadd.f32 %v759, %v993
      %v995 = vpop.f32.mrb[0].mxu0
      %996 = vdwg.mxu0
      %v997 = vsel %vm580, %v983, -inf
      %998 = vmax.xlane.f32.xlu0 %v997
      %v999 = vpop.xlane.xlu0 %998
      %v1000 = vsel %vm580, %v986, -inf
      %1001 = vmax.xlane.f32.xlu0 %v1000
      %v1002 = vpop.xlane.xlu0 %1001
      %v1003 = vsel %vm580, %v991, -inf
      %1004 = vmax.xlane.f32.xlu0 %v1003
      %v1005 = vpop.xlane.xlu0 %1004
      %v1006 = vsel %vm580, %v994, -inf
      %1007 = vmax.xlane.f32.xlu0 %v1006
      %v1008 = vpop.xlane.xlu0 %1007
      %v1009 = vsub.f32 %v983, %v999
      %v1010 = vsub.f32 %v986, %v1002
      %v1011 = vsub.f32 %v991, %v1005
      %v1012 = vsub.f32 %v994, %v1008
      %v1013 = vmul.f32 %v1009, 1.442695
      %v1014 = vpow.pop %v1013
      %v1015 = vmul.f32 %v1010, 1.442695
      %v1016 = vpow.pop %v1015
      %v1017 = vmul.f32 %v1011, 1.442695
      %v1018 = vpow.pop %v1017
      %v1019 = vmul.f32 %v1012, 1.442695
      %v1020 = vpow.pop %v1019
      %v1021 = vsel %vm580, %v1014, 0.0
      %1022 = vadd.xlane.f32.xlu0 %v1021
      %v1023 = vpop.xlane.xlu0 %1022
      %v1024 = vsel %vm580, %v1016, 0.0
      %1025 = vadd.xlane.f32.xlu0 %v1024
      %v1026 = vpop.xlane.xlu0 %1025
      %v1027 = vsel %vm580, %v1018, 0.0
      %1028 = vadd.xlane.f32.xlu0 %v1027
      %v1029 = vpop.xlane.xlu0 %1028
      %v1030 = vsel %vm580, %v1020, 0.0
      %1031 = vadd.xlane.f32.xlu0 %v1030
      %v1032 = vpop.xlane.xlu0 %1031
      %v1033 = vrcp.pop %v1023
      %v1034 = vrcp.pop %v1026
      %v1035 = vrcp.pop %v1029
      %v1036 = vrcp.pop %v1032
      %v1037 = vpack.c.bf16 %v1016, %v1014
      %v1038 = vpack.c.bf16 %v1020, %v1018
      %1039 = vrot.lane.b32.xlu0 %v754, 88
      %v1040 = vpop.permute.xlu0 %1039
      %1041 = vrot.lane.b32.xlu0 %v755, 88
      %v1042 = vpop.permute.xlu0 %1041
      %v1046 = vsel %vm580, %v1037, 0
      %v1049 = vsel %vm580, %v1038, 0
      %1051 = vmatprep.subr.bf16.mxu0 0
      %1052 = vmatpush1.bf16.msra.mxu0 %v1040
      %1053 = vmatprep.subr.bf16.mxu0 0
      %1054 = vmatpush1.bf16.msra.mxu0 %v1042
      %1055 = vmatprep.subr.bf16.mxu0 0
      %1056 = vmatpush1.bf16.msra.mxu0 0
      %1057 = vmatprep.subr.bf16.mxu0 0
      %1058 = vmatpush1.bf16.msra.mxu0 0
      %1059 = vmatprep.subr.bf16.mxu0 0
      %1060 = vmatpush1.bf16.msra.mxu0 0
      %1061 = vmatprep.subr.bf16.mxu0 0
      %1062 = vmatpush1.bf16.msra.mxu0 0
      %1063 = vmatprep.subr.bf16.mxu0 0
      %1064 = vmatpush1.bf16.msra.mxu0 0
      %1065 = vmatprep.subr.bf16.mxu0 0
      %1066 = vmatpush1.bf16.msra.mxu0 0
      %1067 = vmatprep.subr.bf16.mxu0 0
      %1068 = vmatpush1.bf16.msra.mxu0 0
      %1069 = vmatprep.subr.bf16.mxu0 0
      %1070 = vmatpush1.bf16.msra.mxu0 0
      %1071 = vmatprep.subr.bf16.mxu0 0
      %1072 = vmatpush1.bf16.msra.mxu0 0
      %1073 = vmatprep.subr.bf16.mxu0 0
      %1074 = vmatpush1.bf16.msra.mxu0 0
      %1075 = vmatprep.subr.bf16.mxu0 0
      %1076 = vmatpush1.bf16.msra.mxu0 0
      %1077 = vmatprep.subr.bf16.mxu0 0
      %1078 = vmatpush1.bf16.msra.mxu0 0
      %1079 = vmatprep.subr.bf16.mxu0 0
      %1080 = vmatpush1.bf16.msra.mxu0 0
      %1081 = vmatprep.subr.bf16.mxu0 0
      %1082 = vmatpush1.bf16.msra.mxu0 0
      %1083 = vmatprep.mubr.bf16.mxu0 0
      %1084 = vmatmul.mubr.bf16.gmra.mrb[0].mxu0 %v1046
      %v1085 = vpop.f32.mrb[0].mxu0
      %v1086 = vadd.f32 0.0, %v1085
      %v1087 = vpop.f32.mrb[0].mxu0
      %v1088 = vpop.f32.mrb[0].mxu0
      %v1089 = vadd.f32 0.0, %v1088
      %v1090 = vpop.f32.mrb[0].mxu0
      %1091 = vmatprep.mubr.bf16.mxu0 0
      %1092 = vmatmul.mubr.bf16.gmra.mrb[0].mxu0 %v1049
      %v1093 = vpop.f32.mrb[0].mxu0
      %v1094 = vadd.f32 0.0, %v1093
      %v1095 = vpop.f32.mrb[0].mxu0
      %v1096 = vpop.f32.mrb[0].mxu0
      %v1097 = vadd.f32 0.0, %v1096
      %v1098 = vpop.f32.mrb[0].mxu0
      %1099 = vdwg.mxu0
      %v1100 = vmul.f32 %v1086, %v1033
      %v1101 = vmul.f32 %v1089, %v1034
      %v1102 = vmul.f32 %v1094, %v1035
      %v1103 = vmul.f32 %v1097, %v1036
      %1104 = vrot.lane.b32.xlu0 %v760, 112
      %v1105 = vpop.permute.xlu0 %1104
      %1106 = vrot.lane.b32.xlu0 %v761, 112
      %v1107 = vpop.permute.xlu0 %1106
      %v1109 = vsel %vm762, %v1105, 0
      %v1112 = vsel %vm762, %v1107, 0
      %v1115 = vsel %vm769, %v753, 0
      %1117 = vmatprep.subr.bf16.mxu0 0
      %1118 = vmatpush1.bf16.msra.mxu0 %v1115
      %1119 = vmatprep.subr.bf16.mxu0 0
      %1120 = vmatpush1.bf16.msra.mxu0 0
      %1121 = vmatprep.subr.bf16.mxu0 0
      %1122 = vmatpush1.bf16.msra.mxu0 0
      %1123 = vmatprep.subr.bf16.mxu0 0
      %1124 = vmatpush1.bf16.msra.mxu0 0
      %1125 = vmatprep.subr.bf16.mxu0 0
      %1126 = vmatpush1.bf16.msra.mxu0 0
      %1127 = vmatprep.subr.bf16.mxu0 0
      %1128 = vmatpush1.bf16.msra.mxu0 0
      %1129 = vmatprep.subr.bf16.mxu0 0
      %1130 = vmatpush1.bf16.msra.mxu0 0
      %1131 = vmatprep.subr.bf16.mxu0 0
      %1132 = vmatpush1.bf16.msra.mxu0 0
      %1133 = vmatprep.subr.bf16.mxu0 0
      %1134 = vmatpush1.bf16.msra.mxu0 0
      %1135 = vmatprep.subr.bf16.mxu0 0
      %1136 = vmatpush1.bf16.msra.mxu0 0
      %1137 = vmatprep.subr.bf16.mxu0 0
      %1138 = vmatpush1.bf16.msra.mxu0 0
      %1139 = vmatprep.subr.bf16.mxu0 0
      %1140 = vmatpush1.bf16.msra.mxu0 0
      %1141 = vmatprep.subr.bf16.mxu0 0
      %1142 = vmatpush1.bf16.msra.mxu0 0
      %1143 = vmatprep.subr.bf16.mxu0 0
      %1144 = vmatpush1.bf16.msra.mxu0 0
      %1145 = vmatprep.subr.bf16.mxu0 0
      %1146 = vmatpush1.bf16.msra.mxu0 0
      %1147 = vmatprep.subr.bf16.mxu0 0
      %1148 = vmatpush1.bf16.msra.mxu0 0
      %1149 = vmatprep.mubr.bf16.mxu0 0
      %1150 = vmatmul.mubr.bf16.gmra.mrb[0].mxu0 %v1109
      %v1151 = vpop.f32.mrb[0].mxu0
      %v1152 = vadd.f32 %v759, %v1151
      %v1153 = vpop.f32.mrb[0].mxu0
      %v1154 = vpop.f32.mrb[0].mxu0
      %v1155 = vadd.f32 %v759, %v1154
      %v1156 = vpop.f32.mrb[0].mxu0
      %1157 = vmatprep.mubr.bf16.mxu0 0
      %1158 = vmatmul.mubr.bf16.gmra.mrb[0].mxu0 %v1112
      %v1159 = vpop.f32.mrb[0].mxu0
      %v1160 = vadd.f32 %v759, %v1159
      %v1161 = vpop.f32.mrb[0].mxu0
      %v1162 = vpop.f32.mrb[0].mxu0
      %v1163 = vadd.f32 %v759, %v1162
      %v1164 = vpop.f32.mrb[0].mxu0
      %1165 = vdwg.mxu0
      %v1166 = vsel %vm580, %v1152, -inf
      %1167 = vmax.xlane.f32.xlu0 %v1166
      %v1168 = vpop.xlane.xlu0 %1167
      %v1169 = vsel %vm580, %v1155, -inf
      %1170 = vmax.xlane.f32.xlu0 %v1169
      %v1171 = vpop.xlane.xlu0 %1170
      %v1172 = vsel %vm580, %v1160, -inf
      %1173 = vmax.xlane.f32.xlu0 %v1172
      %v1174 = vpop.xlane.xlu0 %1173
      %v1175 = vsel %vm580, %v1163, -inf
      %1176 = vmax.xlane.f32.xlu0 %v1175
      %v1177 = vpop.xlane.xlu0 %1176
      %v1178 = vsub.f32 %v1152, %v1168
      %v1179 = vsub.f32 %v1155, %v1171
      %v1180 = vsub.f32 %v1160, %v1174
      %v1181 = vsub.f32 %v1163, %v1177
      %v1182 = vmul.f32 %v1178, 1.442695
      %v1183 = vpow.pop %v1182
      %v1184 = vmul.f32 %v1179, 1.442695
      %v1185 = vpow.pop %v1184
      %v1186 = vmul.f32 %v1180, 1.442695
      %v1187 = vpow.pop %v1186
      %v1188 = vmul.f32 %v1181, 1.442695
      %v1189 = vpow.pop %v1188
      %v1190 = vsel %vm580, %v1183, 0.0
      %1191 = vadd.xlane.f32.xlu0 %v1190
      %v1192 = vpop.xlane.xlu0 %1191
      %v1193 = vsel %vm580, %v1185, 0.0
      %1194 = vadd.xlane.f32.xlu0 %v1193
      %v1195 = vpop.xlane.xlu0 %1194
      %v1196 = vsel %vm580, %v1187, 0.0
      %1197 = vadd.xlane.f32.xlu0 %v1196
      %v1198 = vpop.xlane.xlu0 %1197
      %v1199 = vsel %vm580, %v1189, 0.0
      %1200 = vadd.xlane.f32.xlu0 %v1199
      %v1201 = vpop.xlane.xlu0 %1200
      %v1202 = vrcp.pop %v1192
      %v1203 = vrcp.pop %v1195
      %v1204 = vrcp.pop %v1198
      %v1205 = vrcp.pop %v1201
      %v1206 = vpack.c.bf16 %v1185, %v1183
      %v1207 = vpack.c.bf16 %v1189, %v1187
      %1208 = vrot.lane.b32.xlu0 %v754, 80
      %v1209 = vpop.permute.xlu0 %1208
      %1210 = vrot.lane.b32.xlu0 %v755, 80
      %v1211 = vpop.permute.xlu0 %1210
      %v1215 = vsel %vm580, %v1206, 0
      %v1218 = vsel %vm580, %v1207, 0
      %1220 = vmatprep.subr.bf16.mxu0 0
      %1221 = vmatpush1.bf16.msra.mxu0 %v1209
      %1222 = vmatprep.subr.bf16.mxu0 0
      %1223 = vmatpush1.bf16.msra.mxu0 %v1211
      %1224 = vmatprep.subr.bf16.mxu0 0
      %1225 = vmatpush1.bf16.msra.mxu0 0
      %1226 = vmatprep.subr.bf16.mxu0 0
      %1227 = vmatpush1.bf16.msra.mxu0 0
      %1228 = vmatprep.subr.bf16.mxu0 0
      %1229 = vmatpush1.bf16.msra.mxu0 0
      %1230 = vmatprep.subr.bf16.mxu0 0
      %1231 = vmatpush1.bf16.msra.mxu0 0
      %1232 = vmatprep.subr.bf16.mxu0 0
      %1233 = vmatpush1.bf16.msra.mxu0 0
      %1234 = vmatprep.subr.bf16.mxu0 0
      %1235 = vmatpush1.bf16.msra.mxu0 0
      %1236 = vmatprep.subr.bf16.mxu0 0
      %1237 = vmatpush1.bf16.msra.mxu0 0
      %1238 = vmatprep.subr.bf16.mxu0 0
      %1239 = vmatpush1.bf16.msra.mxu0 0
      %1240 = vmatprep.subr.bf16.mxu0 0
      %1241 = vmatpush1.bf16.msra.mxu0 0
      %1242 = vmatprep.subr.bf16.mxu0 0
      %1243 = vmatpush1.bf16.msra.mxu0 0
      %1244 = vmatprep.subr.bf16.mxu0 0
      %1245 = vmatpush1.bf16.msra.mxu0 0
      %1246 = vmatprep.subr.bf16.mxu0 0
      %1247 = vmatpush1.bf16.msra.mxu0 0
      %1248 = vmatprep.subr.bf16.mxu0 0
      %1249 = vmatpush1.bf16.msra.mxu0 0
      %1250 = vmatprep.subr.bf16.mxu0 0
      %1251 = vmatpush1.bf16.msra.mxu0 0
      %1252 = vmatprep.mubr.bf16.mxu0 0
      %1253 = vmatmul.mubr.bf16.gmra.mrb[0].mxu0 %v1215
      %v1254 = vpop.f32.mrb[0].mxu0
      %v1255 = vadd.f32 0.0, %v1254
      %v1256 = vpop.f32.mrb[0].mxu0
      %v1257 = vpop.f32.mrb[0].mxu0
      %v1258 = vadd.f32 0.0, %v1257
      %v1259 = vpop.f32.mrb[0].mxu0
      %1260 = vmatprep.mubr.bf16.mxu0 0
      %1261 = vmatmul.mubr.bf16.gmra.mrb[0].mxu0 %v1218
      %v1262 = vpop.f32.mrb[0].mxu0
      %v1263 = vadd.f32 0.0, %v1262
      %v1264 = vpop.f32.mrb[0].mxu0
      %v1265 = vpop.f32.mrb[0].mxu0
      %v1266 = vadd.f32 0.0, %v1265
      %v1267 = vpop.f32.mrb[0].mxu0
      %1268 = vdwg.mxu0
      %v1269 = vmul.f32 %v1255, %v1202
      %v1270 = vmul.f32 %v1258, %v1203
      %v1271 = vmul.f32 %v1263, %v1204
      %v1272 = vmul.f32 %v1266, %v1205
      %1273 = vrot.lane.b32.xlu0 %v760, 104
      %v1274 = vpop.permute.xlu0 %1273
      %1275 = vrot.lane.b32.xlu0 %v761, 104
      %v1276 = vpop.permute.xlu0 %1275
      %v1278 = vrot.slane %v753, 4
      %v1280 = vsel %vm762, %v1274, 0
      %v1283 = vsel %vm762, %v1276, 0
      %v1286 = vsel %vm769, %v1278, 0
      %1288 = vmatprep.subr.bf16.mxu0 0
      %1289 = vmatpush1.bf16.msra.mxu0 %v1286
      %1290 = vmatprep.subr.bf16.mxu0 0
      %1291 = vmatpush1.bf16.msra.mxu0 0
      %1292 = vmatprep.subr.bf16.mxu0 0
      %1293 = vmatpush1.bf16.msra.mxu0 0
      %1294 = vmatprep.subr.bf16.mxu0 0
      %1295 = vmatpush1.bf16.msra.mxu0 0
      %1296 = vmatprep.subr.bf16.mxu0 0
      %1297 = vmatpush1.bf16.msra.mxu0 0
      %1298 = vmatprep.subr.bf16.mxu0 0
      %1299 = vmatpush1.bf16.msra.mxu0 0
      %1300 = vmatprep.subr.bf16.mxu0 0
      %1301 = vmatpush1.bf16.msra.mxu0 0
      %1302 = vmatprep.subr.bf16.mxu0 0
      %1303 = vmatpush1.bf16.msra.mxu0 0
      %1304 = vmatprep.subr.bf16.mxu0 0
      %1305 = vmatpush1.bf16.msra.mxu0 0
      %1306 = vmatprep.subr.bf16.mxu0 0
      %1307 = vmatpush1.bf16.msra.mxu0 0
      %1308 = vmatprep.subr.bf16.mxu0 0
      %1309 = vmatpush1.bf16.msra.mxu0 0
      %1310 = vmatprep.subr.bf16.mxu0 0
      %1311 = vmatpush1.bf16.msra.mxu0 0
      %1312 = vmatprep.subr.bf16.mxu0 0
      %1313 = vmatpush1.bf16.msra.mxu0 0
      %1314 = vmatprep.subr.bf16.mxu0 0
      %1315 = vmatpush1.bf16.msra.mxu0 0
      %1316 = vmatprep.subr.bf16.mxu0 0
      %1317 = vmatpush1.bf16.msra.mxu0 0
      %1318 = vmatprep.subr.bf16.mxu0 0
      %1319 = vmatpush1.bf16.msra.mxu0 0
      %1320 = vmatprep.mubr.bf16.mxu0 0
      %1321 = vmatmul.mubr.bf16.gmra.mrb[0].mxu0 %v1280
      %v1322 = vpop.f32.mrb[0].mxu0
      %v1323 = vadd.f32 %v759, %v1322
      %v1324 = vpop.f32.mrb[0].mxu0
      %v1325 = vpop.f32.mrb[0].mxu0
      %v1326 = vadd.f32 %v759, %v1325
      %v1327 = vpop.f32.mrb[0].mxu0
      %1328 = vmatprep.mubr.bf16.mxu0 0
      %1329 = vmatmul.mubr.bf16.gmra.mrb[0].mxu0 %v1283
      %v1330 = vpop.f32.mrb[0].mxu0
      %v1331 = vadd.f32 %v759, %v1330
      %v1332 = vpop.f32.mrb[0].mxu0
      %v1333 = vpop.f32.mrb[0].mxu0
      %v1334 = vadd.f32 %v759, %v1333
      %v1335 = vpop.f32.mrb[0].mxu0
      %1336 = vdwg.mxu0
      %v1337 = vsel %vm580, %v1323, -inf
      %1338 = vmax.xlane.f32.xlu0 %v1337
      %v1339 = vpop.xlane.xlu0 %1338
      %v1340 = vsel %vm580, %v1326, -inf
      %1341 = vmax.xlane.f32.xlu0 %v1340
      %v1342 = vpop.xlane.xlu0 %1341
      %v1343 = vsel %vm580, %v1331, -inf
      %1344 = vmax.xlane.f32.xlu0 %v1343
      %v1345 = vpop.xlane.xlu0 %1344
      %v1346 = vsel %vm580, %v1334, -inf
      %1347 = vmax.xlane.f32.xlu0 %v1346
      %v1348 = vpop.xlane.xlu0 %1347
      %v1349 = vsub.f32 %v1323, %v1339
      %v1350 = vsub.f32 %v1326, %v1342
      %v1351 = vsub.f32 %v1331, %v1345
      %v1352 = vsub.f32 %v1334, %v1348
      %v1353 = vmul.f32 %v1349, 1.442695
      %v1354 = vpow.pop %v1353
      %v1355 = vmul.f32 %v1350, 1.442695
      %v1356 = vpow.pop %v1355
      %v1357 = vmul.f32 %v1351, 1.442695
      %v1358 = vpow.pop %v1357
      %v1359 = vmul.f32 %v1352, 1.442695
      %v1360 = vpow.pop %v1359
      %v1361 = vsel %vm580, %v1354, 0.0
      %1362 = vadd.xlane.f32.xlu0 %v1361
      %v1363 = vpop.xlane.xlu0 %1362
      %v1364 = vsel %vm580, %v1356, 0.0
      %1365 = vadd.xlane.f32.xlu0 %v1364
      %v1366 = vpop.xlane.xlu0 %1365
      %v1367 = vsel %vm580, %v1358, 0.0
      %1368 = vadd.xlane.f32.xlu0 %v1367
      %v1369 = vpop.xlane.xlu0 %1368
      %v1370 = vsel %vm580, %v1360, 0.0
      %1371 = vadd.xlane.f32.xlu0 %v1370
      %v1372 = vpop.xlane.xlu0 %1371
      %v1373 = vrcp.pop %v1363
      %v1374 = vrcp.pop %v1366
      %v1375 = vrcp.pop %v1369
      %v1376 = vrcp.pop %v1372
      %v1377 = vpack.c.bf16 %v1356, %v1354
      %v1378 = vpack.c.bf16 %v1360, %v1358
      %1379 = vrot.lane.b32.xlu0 %v754, 72
      %v1380 = vpop.permute.xlu0 %1379
      %1381 = vrot.lane.b32.xlu0 %v755, 72
      %v1382 = vpop.permute.xlu0 %1381
      %v1386 = vsel %vm580, %v1377, 0
      %v1389 = vsel %vm580, %v1378, 0
      %1391 = vmatprep.subr.bf16.mxu0 0
      %1392 = vmatpush1.bf16.msra.mxu0 %v1380
      %1393 = vmatprep.subr.bf16.mxu0 0
      %1394 = vmatpush1.bf16.msra.mxu0 %v1382
      %1395 = vmatprep.subr.bf16.mxu0 0
      %1396 = vmatpush1.bf16.msra.mxu0 0
      %1397 = vmatprep.subr.bf16.mxu0 0
      %1398 = vmatpush1.bf16.msra.mxu0 0
      %1399 = vmatprep.subr.bf16.mxu0 0
      %1400 = vmatpush1.bf16.msra.mxu0 0
      %1401 = vmatprep.subr.bf16.mxu0 0
      %1402 = vmatpush1.bf16.msra.mxu0 0
      %1403 = vmatprep.subr.bf16.mxu0 0
      %1404 = vmatpush1.bf16.msra.mxu0 0
      %1405 = vmatprep.subr.bf16.mxu0 0
      %1406 = vmatpush1.bf16.msra.mxu0 0
      %1407 = vmatprep.subr.bf16.mxu0 0
      %1408 = vmatpush1.bf16.msra.mxu0 0
      %1409 = vmatprep.subr.bf16.mxu0 0
      %1410 = vmatpush1.bf16.msra.mxu0 0
      %1411 = vmatprep.subr.bf16.mxu0 0
      %1412 = vmatpush1.bf16.msra.mxu0 0
      %1413 = vmatprep.subr.bf16.mxu0 0
      %1414 = vmatpush1.bf16.msra.mxu0 0
      %1415 = vmatprep.subr.bf16.mxu0 0
      %1416 = vmatpush1.bf16.msra.mxu0 0
      %1417 = vmatprep.subr.bf16.mxu0 0
      %1418 = vmatpush1.bf16.msra.mxu0 0
      %1419 = vmatprep.subr.bf16.mxu0 0
      %1420 = vmatpush1.bf16.msra.mxu0 0
      %1421 = vmatprep.subr.bf16.mxu0 0
      %1422 = vmatpush1.bf16.msra.mxu0 0
      %1423 = vmatprep.mubr.bf16.mxu0 0
      %1424 = vmatmul.mubr.bf16.gmra.mrb[0].mxu0 %v1386
      %v1425 = vpop.f32.mrb[0].mxu0
      %v1426 = vadd.f32 0.0, %v1425
      %v1427 = vpop.f32.mrb[0].mxu0
      %v1428 = vpop.f32.mrb[0].mxu0
      %v1429 = vadd.f32 0.0, %v1428
      %v1430 = vpop.f32.mrb[0].mxu0
      %1431 = vmatprep.mubr.bf16.mxu0 0
      %1432 = vmatmul.mubr.bf16.gmra.mrb[0].mxu0 %v1389
      %v1433 = vpop.f32.mrb[0].mxu0
      %v1434 = vadd.f32 0.0, %v1433
      %v1435 = vpop.f32.mrb[0].mxu0
      %v1436 = vpop.f32.mrb[0].mxu0
      %v1437 = vadd.f32 0.0, %v1436
      %v1438 = vpop.f32.mrb[0].mxu0
      %1439 = vdwg.mxu0
      %v1440 = vmul.f32 %v1426, %v1373
      %v1441 = vmul.f32 %v1429, %v1374
      %v1442 = vmul.f32 %v1434, %v1375
      %v1443 = vmul.f32 %v1437, %v1376
      %1448 = vrot.lane.b32.xlu0 %v1100, 8
      %v1449 = vpop.permute.xlu0 %1448
      %1450 = vrot.lane.b32.xlu0 %v1101, 8
      %v1451 = vpop.permute.xlu0 %1450
      %1452 = vrot.lane.b32.xlu0 %v1102, 8
      %v1453 = vpop.permute.xlu0 %1452
      %1454 = vrot.lane.b32.xlu0 %v1103, 8
      %v1455 = vpop.permute.xlu0 %1454
      %1464 = vrot.lane.b32.xlu0 %v1269, 16
      %v1465 = vpop.permute.xlu0 %1464
      %1466 = vrot.lane.b32.xlu0 %v1270, 16
      %v1467 = vpop.permute.xlu0 %1466
      %1468 = vrot.lane.b32.xlu0 %v1271, 16
      %v1469 = vpop.permute.xlu0 %1468
      %1470 = vrot.lane.b32.xlu0 %v1272, 16
      %v1471 = vpop.permute.xlu0 %1470
      %1480 = vrot.lane.b32.xlu0 %v1440, 24
      %v1481 = vpop.permute.xlu0 %1480
      %1482 = vrot.lane.b32.xlu0 %v1441, 24
      %v1483 = vpop.permute.xlu0 %1482
      %1484 = vrot.lane.b32.xlu0 %v1442, 24
      %v1485 = vpop.permute.xlu0 %1484
      %1486 = vrot.lane.b32.xlu0 %v1443, 24
      %v1487 = vpop.permute.xlu0 %1486
      %v1492 = vsel %vm762, %v927, %v1449
      %v1493 = vsel %vm762, %v928, %v1451
      %v1494 = vsel %vm762, %v929, %v1453
      %v1495 = vsel %vm762, %v930, %v1455
      %vm1496 = vcmask 130048
      %v1497 = vsel %vm1496, %v1492, %v1465
      %v1498 = vsel %vm1496, %v1493, %v1467
      %v1499 = vsel %vm1496, %v1494, %v1469
      %v1500 = vsel %vm1496, %v1495, %v1471
      %vm1501 = vcmask 195584
      %v1502 = vsel %vm1501, %v1497, %v1481
      %v1503 = vsel %vm1501, %v1498, %v1483
      %v1504 = vsel %vm1501, %v1499, %v1485
      %v1505 = vsel %vm1501, %v1500, %v1487
      %v1506 = vpack.c.bf16 %v1503, %v1502
      %v1507 = vpack.c.bf16 %v1505, %v1504
      %v1508 = vld [vmem:[%s527] sm:$0xf]
      %v1509 = vld [vmem:[%s527 + $0x4] sm:$0xf]
      %v1510 = vld [vmem:[%s527 + $0x8] sm:$0xf]
      %v1511 = vld [vmem:[%s527 + $0xc] sm:$0xf]
      %v1512 = vld [vmem:[%s530] sm:$0x1]
      %v1514 = vlaneseq
      %v1515 = vshrl.u32 %v1514, 7
      %v1516 = vsub.s32 0, %v1515
      %v1517 = vrot.slane %v1512, %v1516
      %v1523 = vunpack.c.l.b16 %v1508
      %v1524 = vunpack.c.l.b16 %v1509
      %v1525 = vunpack.c.l.b16 %v1510
      %v1526 = vunpack.c.l.b16 %v1511
      %v1527 = vpack.c.b16 %v1524, %v1523
      %v1528 = vpack.c.b16 %v1526, %v1525
      %v1532 = vsel %vm580, %v1506, 0
      %v1535 = vsel %vm580, %v1507, 0
      %1537 = vmatprep.subr.bf16.mxu0 0
      %1538 = vmatpush1.bf16.msra.mxu0 %v1527
      %1539 = vmatprep.subr.bf16.mxu0 0
      %1540 = vmatpush1.bf16.msra.mxu0 %v1528
      %1541 = vmatprep.subr.bf16.mxu0 0
      %1542 = vmatpush1.bf16.msra.mxu0 0
      %1543 = vmatprep.subr.bf16.mxu0 0
      %1544 = vmatpush1.bf16.msra.mxu0 0
      %1545 = vmatprep.subr.bf16.mxu0 0
      %1546 = vmatpush1.bf16.msra.mxu0 0
      %1547 = vmatprep.subr.bf16.mxu0 0
      %1548 = vmatpush1.bf16.msra.mxu0 0
      %1549 = vmatprep.subr.bf16.mxu0 0
      %1550 = vmatpush1.bf16.msra.mxu0 0
      %1551 = vmatprep.subr.bf16.mxu0 0
      %1552 = vmatpush1.bf16.msra.mxu0 0
      %1553 = vmatprep.subr.bf16.mxu0 0
      %1554 = vmatpush1.bf16.msra.mxu0 0
      %1555 = vmatprep.subr.bf16.mxu0 0
      %1556 = vmatpush1.bf16.msra.mxu0 0
      %1557 = vmatprep.subr.bf16.mxu0 0
      %1558 = vmatpush1.bf16.msra.mxu0 0
      %1559 = vmatprep.subr.bf16.mxu0 0
      %1560 = vmatpush1.bf16.msra.mxu0 0
      %1561 = vmatprep.subr.bf16.mxu0 0
      %1562 = vmatpush1.bf16.msra.mxu0 0
      %1563 = vmatprep.subr.bf16.mxu0 0
      %1564 = vmatpush1.bf16.msra.mxu0 0
      %1565 = vmatprep.subr.bf16.mxu0 0
      %1566 = vmatpush1.bf16.msra.mxu0 0
      %1567 = vmatprep.subr.bf16.mxu0 0
      %1568 = vmatpush1.bf16.msra.mxu0 0
      %1569 = vmatprep.mubr.bf16.mxu0 0
      %1570 = vmatmul.mubr.bf16.gmra.mrb[0].mxu0 %v1532
      %v1571 = vpop.f32.mrb[0].mxu0
      %v1572 = vadd.f32 %v1517, %v1571
      %v1573 = vpop.f32.mrb[0].mxu0
      %v1574 = vpop.f32.mrb[0].mxu0
      %v1575 = vadd.f32 %v1517, %v1574
      %v1576 = vpop.f32.mrb[0].mxu0
      %1577 = vmatprep.mubr.bf16.mxu0 0
      %1578 = vmatmul.mubr.bf16.gmra.mrb[0].mxu0 %v1535
      %v1579 = vpop.f32.mrb[0].mxu0
      %v1580 = vadd.f32 %v1517, %v1579
      %v1581 = vpop.f32.mrb[0].mxu0
      %v1582 = vpop.f32.mrb[0].mxu0
      %v1583 = vadd.f32 %v1517, %v1582
      %v1584 = vpop.f32.mrb[0].mxu0
      %1585 = vdwg.mxu0
      %v1586 = vadd.f32 %v547, %v1572
      %v1587 = vadd.f32 %v548, %v1575
      %v1588 = vadd.f32 %v549, %v1580
      %v1589 = vadd.f32 %v550, %v1583
      %v1590 = vld [vmem:[%s533] sm:$0x1]
      %v1591 = vld [vmem:[%s536] sm:$0x1]
      %v1592 = vsel %vm580, %v1586, 0.0
      %1593 = vadd.xlane.f32.xlu0 %v1592
      %v1594 = vpop.xlane.xlu0 %1593
      %v1595 = vsel %vm580, %v1587, 0.0
      %1596 = vadd.xlane.f32.xlu0 %v1595
      %v1597 = vpop.xlane.xlu0 %1596
      %v1598 = vsel %vm580, %v1588, 0.0
      %1599 = vadd.xlane.f32.xlu0 %v1598
      %v1600 = vpop.xlane.xlu0 %1599
      %v1601 = vsel %vm580, %v1589, 0.0
      %1602 = vadd.xlane.f32.xlu0 %v1601
      %v1603 = vpop.xlane.xlu0 %1602
      %v1604 = vrcp.pop 32.0
      %v1605 = vmul.f32 %v1594, %v1604
      %v1606 = vmul.f32 %v1597, %v1604
      %v1607 = vmul.f32 %v1600, %v1604
      %v1608 = vmul.f32 %v1603, %v1604
      %v1609 = vsub.f32 %v1586, %v1605
      %v1610 = vsub.f32 %v1587, %v1606
      %v1611 = vsub.f32 %v1588, %v1607
      %v1612 = vsub.f32 %v1589, %v1608
      %v1613 = vmul.f32 %v1609, %v1609
      %v1614 = vmul.f32 %v1610, %v1610
      %v1615 = vmul.f32 %v1611, %v1611
      %v1616 = vmul.f32 %v1612, %v1612
      %v1617 = vsel %vm580, %v1613, 0.0
      %1618 = vadd.xlane.f32.xlu0 %v1617
      %v1619 = vpop.xlane.xlu0 %1618
      %v1620 = vsel %vm580, %v1614, 0.0
      %1621 = vadd.xlane.f32.xlu0 %v1620
      %v1622 = vpop.xlane.xlu0 %1621
      %v1623 = vsel %vm580, %v1615, 0.0
      %1624 = vadd.xlane.f32.xlu0 %v1623
      %v1625 = vpop.xlane.xlu0 %1624
      %v1626 = vsel %vm580, %v1616, 0.0
      %1627 = vadd.xlane.f32.xlu0 %v1626
      %v1628 = vpop.xlane.xlu0 %1627
      %v1629 = vmul.f32 %v1619, %v1604
      %v1630 = vmul.f32 %v1622, %v1604
      %v1631 = vmul.f32 %v1625, %v1604
      %v1632 = vmul.f32 %v1628, %v1604
      %v1633 = vadd.f32 %v1629, 1e-05
      %v1634 = vadd.f32 %v1630, 1e-05
      %v1635 = vadd.f32 %v1631, 1e-05
      %v1636 = vadd.f32 %v1632, 1e-05
      %v1637 = vrsqrt.pop %v1633
      %v1638 = vrsqrt.pop %v1634
      %v1639 = vrsqrt.pop %v1635
      %v1640 = vrsqrt.pop %v1636
      %v1641 = vmul.f32 %v1609, %v1637
      %v1642 = vmul.f32 %v1610, %v1638
      %v1643 = vmul.f32 %v1611, %v1639
      %v1644 = vmul.f32 %v1612, %v1640
      %v1646 = vlaneseq
      %v1647 = vshrl.u32 %v1646, 7
      %v1648 = vsub.s32 0, %v1647
      %v1649 = vrot.slane %v1590, %v1648
      %v1651 = vmul.f32 %v1641, %v1649
      %v1652 = vmul.f32 %v1642, %v1649
      %v1653 = vmul.f32 %v1643, %v1649
      %v1654 = vmul.f32 %v1644, %v1649
      %v1656 = vlaneseq
      %v1657 = vshrl.u32 %v1656, 7
      %v1658 = vsub.s32 0, %v1657
      %v1659 = vrot.slane %v1591, %v1658
      %v1661 = vadd.f32 %v1651, %v1659
      %v1662 = vadd.f32 %v1652, %v1659
      %v1663 = vadd.f32 %v1653, %v1659
      %v1664 = vadd.f32 %v1654, %v1659
      %1665 = vst.msk [vmem:[%s545] sm:$0xff] %vm580, %v1661
      %1666 = vst.msk [vmem:[%s545 + $0x8] sm:$0xff] %vm580, %v1662
      %1667 = vst.msk [vmem:[%s545 + $0x10] sm:$0xff] %vm580, %v1663
      %1668 = vst.msk [vmem:[%s545 + $0x18] sm:$0xff] %vm580, %v1664
      %p1669 = scmp.lt.s32.totalorder %s25, 0
      %s1670 = scalar_select %p1669, %s25, 0
      %p1671 = scmp.lt.s32.totalorder %s26, 1
      %s1672 = scalar_select %p1671, %s26, 1
      %s1673 = smul.addr %s1672, 4
      %s1674 = smul.addr %s1670, 8
      %s1675 = sadd.s32 %s1673, %s1674
      %s1676 = smul.addr %s1675, 8
      %s1677 = scalar_lea.vmem %s10, %s1676
      // Predicated region
      $region61: #{transformer_forward.6} parent=59 // pred_check
        %p1678 = pneg %p315
      $region62: #{transformer_forward.6} parent=59 // pred_check_branch
        %1680 = sbr.rel (%p1678) target = $region64
      $region63: #{transformer_forward.6} parent=59 // pred_region
        _
      $region64: #{transformer_forward.6} parent=59 // pred_fallthru
        _
    $region60: #{transformer_forward.6} parent=5 // pred_fallthru
      _
    %p1681 = scmp.le.s32.totalorder 2, %s16
    // Predicated region
    $region65: #{transformer_forward.6} parent=5 // pred_check
      %p1682 = pneg %p1681
    $region66: #{transformer_forward.6} parent=5 // pred_check_branch
      %1684 = sbr.rel (%p1682) target = $region68
    $region67: #{transformer_forward.6} parent=5 // pred_region
      %s1685 = ssub.s32 %s16, 2
      // Predicated region
      $region69: #{transformer_forward.6} parent=67 // pred_check
        %p1686 = pneg %p321
      $region70: #{transformer_forward.6} parent=67 // pred_check_branch
        %1688 = sbr.rel (%p1686) target = $region72
      $region71: #{transformer_forward.6} parent=67 // pred_region
        %p1689 = scmp.lt.s32.totalorder %s27, 0
        %s1690 = scalar_select %p1689, %s27, 0
        %p1691 = scmp.lt.s32.totalorder %s28, 1
        %s1692 = scalar_select %p1691, %s28, 1
        %s1693 = smul.addr %s1692, 4
        %s1694 = smul.addr %s1690, 8
        %s1695 = sadd.s32 %s1693, %s1694
        %s1696 = smul.addr %s1695, 8
        %s1697 = scalar_lea.vmem %s10, %s1696
      $region72: #{transformer_forward.6} parent=67 // pred_fallthru
        _
    $region68: #{transformer_forward.6} parent=5 // pred_fallthru
      _
  $region6: #{transformer_forward.6} parent=0 // loop_footer
    %s20 = sadd.s32 1, %s16
  $region7: #{transformer_forward.6} parent=0 // loop_footer_branch
    %15 = sbr.rel target = $region3
  $region8: #{transformer_forward.6} parent=0 // loop_exit
    _

// kernel: transformer_forward.5
$region0: #{transformer_forward.5}
  #allocation0 [shape = 'u32[]', space=smem, size = 0x4, offset = 0x4, fixed_abs, tag = 'smem constant byte address 0x4 - core index']
  #allocation1 [shape = 'u32[144,128]{1,0:T(1,128)}', space=vmem, size = 0x12000, scoped, tag = 'internal scratch']
  %s0 = inlined_call_operand.vmem [shape: f32[1,2,40,32], index: 0, kind: input, shape index: {}]
  %s1 = inlined_call_operand.vmem [shape: f32[2,32,32], index: 1, kind: input, shape index: {}]
  %s2 = inlined_call_operand.vmem [shape: bf16[1,32,32], index: 2, kind: input, shape index: {}]
  %s3 = inlined_call_operand.vmem [shape: f32[1,1,32], index: 3, kind: input, shape index: {}]
  %s4 = inlined_call_operand.vmem [shape: bf16[1,32,64], index: 4, kind: input, shape index: {}]
  %s5 = inlined_call_operand.vmem [shape: f32[1,1,64], index: 5, kind: input, shape index: {}]
  %s6 = inlined_call_operand.vmem [shape: bf16[1,32,32], index: 6, kind: input, shape index: {}]
  %s7 = inlined_call_operand.vmem [shape: f32[1,1,32], index: 7, kind: input, shape index: {}]
  %s8 = inlined_call_operand.vmem [shape: f32[1,1,32], index: 8, kind: input, shape index: {}]
  %s9 = inlined_call_operand.vmem [shape: f32[1,1,32], index: 9, kind: input, shape index: {}]
  %s10 = inlined_call_operand.vmem [shape: f32[1,2,40,32], index: 10, kind: output, shape index: {}]
  %s11 = sld [smem:[#allocation0]]
  $region73: #{transformer_forward.5} parent=0
    _
  %s13 = ssub.s32 1, %s11
  %s14 = scalar_select 0, %s13, %s11
  loop: start=0, step=1, limit=4
  $region2: #{transformer_forward.5} parent=0 // loop_pre_header
    _
  $region3: #{transformer_forward.5} parent=0 // loop_header
    %s16 = sphi 0, %s20
    %p17 = scmp.ge.s32.totalorder %s16, 4
    %s23 = sphi 0, %s35
    %s24 = sphi 0, %s31
    %s25 = sphi 0, %s23
    %s26 = sphi 0, %s24
    %s27 = sphi 0, %s25
    %s28 = sphi 0, %s26
    %s40 = sphi 0, %s42
    %s43 = sphi 0, %s40
    %s44 = sphi 0, %s43
    %s60 = sphi 0, %s44
    %s66 = sphi 0, %s68
    %s69 = sphi 0, %s66
    %s70 = sphi 0, %s69
    %s86 = sphi 0, %s70
    %s92 = sphi 0, %s94
    %s95 = sphi 0, %s92
    %s96 = sphi 0, %s95
    %s112 = sphi 0, %s96
    %s118 = sphi 0, %s120
    %s121 = sphi 0, %s118
    %s122 = sphi 0, %s121
    %s138 = sphi 0, %s122
    %s144 = sphi 0, %s146
    %s147 = sphi 0, %s144
    %s148 = sphi 0, %s147
    %s164 = sphi 0, %s148
    %s170 = sphi 0, %s172
    %s173 = sphi 0, %s170
    %s174 = sphi 0, %s173
    %s190 = sphi 0, %s174
    %s196 = sphi 0, %s198
    %s199 = sphi 0, %s196
    %s200 = sphi 0, %s199
    %s216 = sphi 0, %s200
    %s222 = sphi 0, %s224
    %s225 = sphi 0, %s222
    %s226 = sphi 0, %s225
    %s242 = sphi 0, %s226
    %s248 = sphi 0, %s250
    %s251 = sphi 0, %s248
    %s252 = sphi 0, %s251
    %s268 = sphi 0, %s252
    %s274 = sphi 0, %s276
    %s277 = sphi 0, %s274
    %s278 = sphi 0, %s277
    %s294 = sphi 0, %s278
    %s302 = sphi 0, %s304
    %s305 = sphi 0, %s302
    %s306 = sphi 0, %s305
    %s322 = sphi 0, %s306
  $region4: #{transformer_forward.5} parent=0 // loop_header_branch
    %19 = sbr.rel (%p17) target = $region8
  $region5: #{transformer_forward.5} parent=0 // loop_body
    %s21 = ssub.s32 %s16, 1
    %s22 = ssub.s32 %s16, 2
    %s29 = sadd.s32 1, %s24
    %p30 = scmp.ge.s32.totalorder %s29, 2
    %s31 = scalar_select %p30, 0, %s29
    %s32 = sadd.s32 1, %s23
    %s33 = scalar_select %p30, %s32, %s23
    %p34 = scmp.ge.s32.totalorder %s33, 1
    %s35 = scalar_select %p34, 0, %s33
    %s36 = ssub.s32 %s23, %s35
    %s37 = ssub.s32 %s24, %s31
    %s38 = sor.u32 %s36, %s37
    %p39 = scmp.eq.s32.totalorder %s38, 0
    %s41 = sadd.s32 %s40, 1
    %s42 = scalar_select %p39, %s40, %s41
    %p45 = pneg %p39
    %p46 = scmp.eq.s32.totalorder %s16, 1
    %p47 = por %p45, %p46
    %p48 = scmp.ne.s32.totalorder %s40, %s43
    %p49 = scmp.eq.s32.totalorder %s16, 0
    %p50 = por %p48, %p49
    %p51 = scmp.ne.s32.totalorder %s40, %s43
    %p52 = scmp.eq.s32.totalorder %s21, 1
    %p53 = por %p51, %p52
    %p54 = scmp.ne.s32.totalorder %s43, %s44
    %p55 = scmp.eq.s32.totalorder %s21, 0
    %p56 = por %p54, %p55
    %p57 = scmp.ne.s32.totalorder %s43, %s44
    %p58 = scmp.eq.s32.totalorder %s22, 1
    %p59 = por %p57, %p58
    %p61 = scmp.ne.s32.totalorder %s44, %s60
    %p62 = scmp.eq.s32.totalorder %s22, 0
    %p63 = por %p61, %p62
    %s64 = ssub.s32 %s24, %s31
    %p65 = scmp.eq.s32.totalorder %s64, 0
    %s67 = sadd.s32 %s66, 1
    %s68 = scalar_select %p65, %s66, %s67
    %p71 = pneg %p65
    %p72 = scmp.eq.s32.totalorder %s16, 1
    %p73 = por %p71, %p72
    %p74 = scmp.ne.s32.totalorder %s66, %s69
    %p75 = scmp.eq.s32.totalorder %s16, 0
    %p76 = por %p74, %p75
    %p77 = scmp.ne.s32.totalorder %s66, %s69
    %p78 = scmp.eq.s32.totalorder %s21, 1
    %p79 = por %p77, %p78
    %p80 = scmp.ne.s32.totalorder %s69, %s70
    %p81 = scmp.eq.s32.totalorder %s21, 0
    %p82 = por %p80, %p81
    %p83 = scmp.ne.s32.totalorder %s69, %s70
    %p84 = scmp.eq.s32.totalorder %s22, 1
    %p85 = por %p83, %p84
    %p87 = scmp.ne.s32.totalorder %s70, %s86
    %p88 = scmp.eq.s32.totalorder %s22, 0
    %p89 = por %p87, %p88
    %s90 = ssub.s32 %s23, %s35
    %p91 = scmp.eq.s32.totalorder %s90, 0
    %s93 = sadd.s32 %s92, 1
    %s94 = scalar_select %p91, %s92, %s93
    %p97 = pneg %p91
    %p98 = scmp.eq.s32.totalorder %s16, 1
    %p99 = por %p97, %p98
    %p100 = scmp.ne.s32.totalorder %s92, %s95
    %p101 = scmp.eq.s32.totalorder %s16, 0
    %p102 = por %p100, %p101
    %p103 = scmp.ne.s32.totalorder %s92, %s95
    %p104 = scmp.eq.s32.totalorder %s21, 1
    %p105 = por %p103, %p104
    %p106 = scmp.ne.s32.totalorder %s95, %s96
    %p107 = scmp.eq.s32.totalorder %s21, 0
    %p108 = por %p106, %p107
    %p109 = scmp.ne.s32.totalorder %s95, %s96
    %p110 = scmp.eq.s32.totalorder %s22, 1
    %p111 = por %p109, %p110
    %p113 = scmp.ne.s32.totalorder %s96, %s112
    %p114 = scmp.eq.s32.totalorder %s22, 0
    %p115 = por %p113, %p114
    %s116 = ssub.s32 %s23, %s35
    %p117 = scmp.eq.s32.totalorder %s116, 0
    %s119 = sadd.s32 %s118, 1
    %s120 = scalar_select %p117, %s118, %s119
    %p123 = pneg %p117
    %p124 = scmp.eq.s32.totalorder %s16, 1
    %p125 = por %p123, %p124
    %p126 = scmp.ne.s32.totalorder %s118, %s121
    %p127 = scmp.eq.s32.totalorder %s16, 0
    %p128 = por %p126, %p127
    %p129 = scmp.ne.s32.totalorder %s118, %s121
    %p130 = scmp.eq.s32.totalorder %s21, 1
    %p131 = por %p129, %p130
    %p132 = scmp.ne.s32.totalorder %s121, %s122
    %p133 = scmp.eq.s32.totalorder %s21, 0
    %p134 = por %p132, %p133
    %p135 = scmp.ne.s32.totalorder %s121, %s122
    %p136 = scmp.eq.s32.totalorder %s22, 1
    %p137 = por %p135, %p136
    %p139 = scmp.ne.s32.totalorder %s122, %s138
    %p140 = scmp.eq.s32.totalorder %s22, 0
    %p141 = por %p139, %p140
    %s142 = ssub.s32 %s23, %s35
    %p143 = scmp.eq.s32.totalorder %s142, 0
    %s145 = sadd.s32 %s144, 1
    %s146 = scalar_select %p143, %s144, %s145
    %p149 = pneg %p143
    %p150 = scmp.eq.s32.totalorder %s16, 1
    %p151 = por %p149, %p150
    %p152 = scmp.ne.s32.totalorder %s144, %s147
    %p153 = scmp.eq.s32.totalorder %s16, 0
    %p154 = por %p152, %p153
    %p155 = scmp.ne.s32.totalorder %s144, %s147
    %p156 = scmp.eq.s32.totalorder %s21, 1
    %p157 = por %p155, %p156
    %p158 = scmp.ne.s32.totalorder %s147, %s148
    %p159 = scmp.eq.s32.totalorder %s21, 0
    %p160 = por %p158, %p159
    %p161 = scmp.ne.s32.totalorder %s147, %s148
    %p162 = scmp.eq.s32.totalorder %s22, 1
    %p163 = por %p161, %p162
    %p165 = scmp.ne.s32.totalorder %s148, %s164
    %p166 = scmp.eq.s32.totalorder %s22, 0
    %p167 = por %p165, %p166
    %s168 = ssub.s32 %s23, %s35
    %p169 = scmp.eq.s32.totalorder %s168, 0
    %s171 = sadd.s32 %s170, 1
    %s172 = scalar_select %p169, %s170, %s171
    %p175 = pneg %p169
    %p176 = scmp.eq.s32.totalorder %s16, 1
    %p177 = por %p175, %p176
    %p178 = scmp.ne.s32.totalorder %s170, %s173
    %p179 = scmp.eq.s32.totalorder %s16, 0
    %p180 = por %p178, %p179
    %p181 = scmp.ne.s32.totalorder %s170, %s173
    %p182 = scmp.eq.s32.totalorder %s21, 1
    %p183 = por %p181, %p182
    %p184 = scmp.ne.s32.totalorder %s173, %s174
    %p185 = scmp.eq.s32.totalorder %s21, 0
    %p186 = por %p184, %p185
    %p187 = scmp.ne.s32.totalorder %s173, %s174
    %p188 = scmp.eq.s32.totalorder %s22, 1
    %p189 = por %p187, %p188
    %p191 = scmp.ne.s32.totalorder %s174, %s190
    %p192 = scmp.eq.s32.totalorder %s22, 0
    %p193 = por %p191, %p192
    %s194 = ssub.s32 %s23, %s35
    %p195 = scmp.eq.s32.totalorder %s194, 0
    %s197 = sadd.s32 %s196, 1
    %s198 = scalar_select %p195, %s196, %s197
    %p201 = pneg %p195
    %p202 = scmp.eq.s32.totalorder %s16, 1
    %p203 = por %p201, %p202
    %p204 = scmp.ne.s32.totalorder %s196, %s199
    %p205 = scmp.eq.s32.totalorder %s16, 0
    %p206 = por %p204, %p205
    %p207 = scmp.ne.s32.totalorder %s196, %s199
    %p208 = scmp.eq.s32.totalorder %s21, 1
    %p209 = por %p207, %p208
    %p210 = scmp.ne.s32.totalorder %s199, %s200
    %p211 = scmp.eq.s32.totalorder %s21, 0
    %p212 = por %p210, %p211
    %p213 = scmp.ne.s32.totalorder %s199, %s200
    %p214 = scmp.eq.s32.totalorder %s22, 1
    %p215 = por %p213, %p214
    %p217 = scmp.ne.s32.totalorder %s200, %s216
    %p218 = scmp.eq.s32.totalorder %s22, 0
    %p219 = por %p217, %p218
    %s220 = ssub.s32 %s23, %s35
    %p221 = scmp.eq.s32.totalorder %s220, 0
    %s223 = sadd.s32 %s222, 1
    %s224 = scalar_select %p221, %s222, %s223
    %p227 = pneg %p221
    %p228 = scmp.eq.s32.totalorder %s16, 1
    %p229 = por %p227, %p228
    %p230 = scmp.ne.s32.totalorder %s222, %s225
    %p231 = scmp.eq.s32.totalorder %s16, 0
    %p232 = por %p230, %p231
    %p233 = scmp.ne.s32.totalorder %s222, %s225
    %p234 = scmp.eq.s32.totalorder %s21, 1
    %p235 = por %p233, %p234
    %p236 = scmp.ne.s32.totalorder %s225, %s226
    %p237 = scmp.eq.s32.totalorder %s21, 0
    %p238 = por %p236, %p237
    %p239 = scmp.ne.s32.totalorder %s225, %s226
    %p240 = scmp.eq.s32.totalorder %s22, 1
    %p241 = por %p239, %p240
    %p243 = scmp.ne.s32.totalorder %s226, %s242
    %p244 = scmp.eq.s32.totalorder %s22, 0
    %p245 = por %p243, %p244
    %s246 = ssub.s32 %s23, %s35
    %p247 = scmp.eq.s32.totalorder %s246, 0
    %s249 = sadd.s32 %s248, 1
    %s250 = scalar_select %p247, %s248, %s249
    %p253 = pneg %p247
    %p254 = scmp.eq.s32.totalorder %s16, 1
    %p255 = por %p253, %p254
    %p256 = scmp.ne.s32.totalorder %s248, %s251
    %p257 = scmp.eq.s32.totalorder %s16, 0
    %p258 = por %p256, %p257
    %p259 = scmp.ne.s32.totalorder %s248, %s251
    %p260 = scmp.eq.s32.totalorder %s21, 1
    %p261 = por %p259, %p260
    %p262 = scmp.ne.s32.totalorder %s251, %s252
    %p263 = scmp.eq.s32.totalorder %s21, 0
    %p264 = por %p262, %p263
    %p265 = scmp.ne.s32.totalorder %s251, %s252
    %p266 = scmp.eq.s32.totalorder %s22, 1
    %p267 = por %p265, %p266
    %p269 = scmp.ne.s32.totalorder %s252, %s268
    %p270 = scmp.eq.s32.totalorder %s22, 0
    %p271 = por %p269, %p270
    %s272 = ssub.s32 %s23, %s35
    %p273 = scmp.eq.s32.totalorder %s272, 0
    %s275 = sadd.s32 %s274, 1
    %s276 = scalar_select %p273, %s274, %s275
    %p279 = pneg %p273
    %p280 = scmp.eq.s32.totalorder %s16, 1
    %p281 = por %p279, %p280
    %p282 = scmp.ne.s32.totalorder %s274, %s277
    %p283 = scmp.eq.s32.totalorder %s16, 0
    %p284 = por %p282, %p283
    %p285 = scmp.ne.s32.totalorder %s274, %s277
    %p286 = scmp.eq.s32.totalorder %s21, 1
    %p287 = por %p285, %p286
    %p288 = scmp.ne.s32.totalorder %s277, %s278
    %p289 = scmp.eq.s32.totalorder %s21, 0
    %p290 = por %p288, %p289
    %p291 = scmp.ne.s32.totalorder %s277, %s278
    %p292 = scmp.eq.s32.totalorder %s22, 1
    %p293 = por %p291, %p292
    %p295 = scmp.ne.s32.totalorder %s278, %s294
    %p296 = scmp.eq.s32.totalorder %s22, 0
    %p297 = por %p295, %p296
    %s298 = ssub.s32 %s23, %s35
    %s299 = ssub.s32 %s24, %s31
    %s300 = sor.u32 %s298, %s299
    %p301 = scmp.eq.s32.totalorder %s300, 0
    %s303 = sadd.s32 %s302, 1
    %s304 = scalar_select %p301, %s302, %s303
    %p307 = pneg %p301
    %p308 = scmp.eq.s32.totalorder %s16, 1
    %p309 = por %p307, %p308
    %p310 = scmp.ne.s32.totalorder %s302, %s305
    %p311 = scmp.eq.s32.totalorder %s16, 0
    %p312 = por %p310, %p311
    %p313 = scmp.ne.s32.totalorder %s302, %s305
    %p314 = scmp.eq.s32.totalorder %s21, 1
    %p315 = por %p313, %p314
    %p316 = scmp.ne.s32.totalorder %s305, %s306
    %p317 = scmp.eq.s32.totalorder %s21, 0
    %p318 = por %p316, %p317
    %p319 = scmp.ne.s32.totalorder %s305, %s306
    %p320 = scmp.eq.s32.totalorder %s22, 1
    %p321 = por %p319, %p320
    %p323 = scmp.ne.s32.totalorder %s306, %s322
    %p324 = scmp.eq.s32.totalorder %s22, 0
    %p325 = por %p323, %p324
    %p326 = scmp.le.s32.totalorder 1, %s16
    %p327 = scmp.lt.s32.totalorder %s16, 3
    %p328 = pnand %p326, %p327
    %p329 = pneg %p328
    // Predicated region
    $region9: #{transformer_forward.5} parent=5 // pred_check
      _
    $region10: #{transformer_forward.5} parent=5 // pred_check_branch
      %331 = sbr.rel (%p328) target = $region12
    $region11: #{transformer_forward.5} parent=5 // pred_region
      %s332 = ssub.s32 %s16, 1
      // Predicated region
      $region13: #{transformer_forward.5} parent=11 // pred_check
        %p333 = pneg %p108
      $region14: #{transformer_forward.5} parent=11 // pred_check_branch
        %335 = sbr.rel (%p333) target = $region16
      $region15: #{transformer_forward.5} parent=11 // pred_region
        %p336 = scmp.lt.s32.totalorder %s25, 0
        %s337 = scalar_select %p336, %s25, 0
        %s338 = smul.addr %s337, 4
        %s339 = smul.addr %s338, 4
        %s340 = scalar_lea.vmem %s2, %s339
      $region16: #{transformer_forward.5} parent=11 // pred_fallthru
        _
      // Predicated region
      $region17: #{transformer_forward.5} parent=11 // pred_check
        %p341 = pneg %p134
      $region18: #{transformer_forward.5} parent=11 // pred_check_branch
        %343 = sbr.rel (%p341) target = $region20
      $region19: #{transformer_forward.5} parent=11 // pred_region
        %p344 = scmp.lt.s32.totalorder %s25, 0
        %s345 = scalar_select %p344, %s25, 0
        %s346 = scalar_lea.vmem %s3, %s345
      $region20: #{transformer_forward.5} parent=11 // pred_fallthru
        _
      // Predicated region
      $region21: #{transformer_forward.5} parent=11 // pred_check
        %p347 = pneg %p160
      $region22: #{transformer_forward.5} parent=11 // pred_check_branch
        %349 = sbr.rel (%p347) target = $region24
      $region23: #{transformer_forward.5} parent=11 // pred_region
        %p350 = scmp.lt.s32.totalorder %s25, 0
        %s351 = scalar_select %p350, %s25, 0
        %s352 = smul.addr %s351, 4
        %s353 = smul.addr %s352, 4
        %s354 = scalar_lea.vmem %s4, %s353
      $region24: #{transformer_forward.5} parent=11 // pred_fallthru
        _
      // Predicated region
      $region25: #{transformer_forward.5} parent=11 // pred_check
        %p355 = pneg %p186
      $region26: #{transformer_forward.5} parent=11 // pred_check_branch
        %357 = sbr.rel (%p355) target = $region28
      $region27: #{transformer_forward.5} parent=11 // pred_region
        %p358 = scmp.lt.s32.totalorder %s25, 0
        %s359 = scalar_select %p358, %s25, 0
        %s360 = scalar_lea.vmem %s5, %s359
      $region28: #{transformer_forward.5} parent=11 // pred_fallthru
        _
      // Predicated region
      $region29: #{transformer_forward.5} parent=11 // pred_check
        %p361 = pneg %p212
      $region30: #{transformer_forward.5} parent=11 // pred_check_branch
        %363 = sbr.rel (%p361) target = $region32
      $region31: #{transformer_forward.5} parent=11 // pred_region
        %p364 = scmp.lt.s32.totalorder %s25, 0
        %s365 = scalar_select %p364, %s25, 0
        %s366 = smul.addr %s365, 4
        %s367 = smul.addr %s366, 4
        %s368 = scalar_lea.vmem %s6, %s367
      $region32: #{transformer_forward.5} parent=11 // pred_fallthru
        _
      // Predicated region
      $region33: #{transformer_forward.5} parent=11 // pred_check
        %p369 = pneg %p238
      $region34: #{transformer_forward.5} parent=11 // pred_check_branch
        %371 = sbr.rel (%p369) target = $region36
      $region35: #{transformer_forward.5} parent=11 // pred_region
        %p372 = scmp.lt.s32.totalorder %s25, 0
        %s373 = scalar_select %p372, %s25, 0
        %s374 = scalar_lea.vmem %s7, %s373
      $region36: #{transformer_forward.5} parent=11 // pred_fallthru
        _
      // Predicated region
      $region37: #{transformer_forward.5} parent=11 // pred_check
        %p375 = pneg %p264
      $region38: #{transformer_forward.5} parent=11 // pred_check_branch
        %377 = sbr.rel (%p375) target = $region40
      $region39: #{transformer_forward.5} parent=11 // pred_region
        %p378 = scmp.lt.s32.totalorder %s25, 0
        %s379 = scalar_select %p378, %s25, 0
        %s380 = scalar_lea.vmem %s8, %s379
      $region40: #{transformer_forward.5} parent=11 // pred_fallthru
        _
      // Predicated region
      $region41: #{transformer_forward.5} parent=11 // pred_check
        %p381 = pneg %p290
      $region42: #{transformer_forward.5} parent=11 // pred_check_branch
        %383 = sbr.rel (%p381) target = $region44
      $region43: #{transformer_forward.5} parent=11 // pred_region
        %p384 = scmp.lt.s32.totalorder %s25, 0
        %s385 = scalar_select %p384, %s25, 0
        %s386 = scalar_lea.vmem %s9, %s385
      $region44: #{transformer_forward.5} parent=11 // pred_fallthru
        _
    $region12: #{transformer_forward.5} parent=5 // pred_fallthru
      _
    %p387 = scmp.lt.s32.totalorder %s16, 2
    // Predicated region
    $region45: #{transformer_forward.5} parent=5 // pred_check
      %p388 = pneg %p387
    $region46: #{transformer_forward.5} parent=5 // pred_check_branch
      %390 = sbr.rel (%p388) target = $region48
    $region47: #{transformer_forward.5} parent=5 // pred_region
      // Predicated region
      $region49: #{transformer_forward.5} parent=47 // pred_check
        %p391 = pneg %p50
      $region50: #{transformer_forward.5} parent=47 // pred_check_branch
        %393 = sbr.rel (%p391) target = $region52
      $region51: #{transformer_forward.5} parent=47 // pred_region
        %p394 = scmp.lt.s32.totalorder %s23, 0
        %s395 = scalar_select %p394, %s23, 0
        %p396 = scmp.lt.s32.totalorder %s24, 1
        %s397 = scalar_select %p396, %s24, 1
        %s398 = smul.addr %s397, 5
        %s399 = smul.addr %s395, 10
        %s400 = sadd.s32 %s398, %s399
        %s401 = smul.addr %s400, 8
        %s402 = scalar_lea.vmem %s0, %s401
      $region52: #{transformer_forward.5} parent=47 // pred_fallthru
        _
      // Predicated region
      $region53: #{transformer_forward.5} parent=47 // pred_check
        %p403 = pneg %p76
      $region54: #{transformer_forward.5} parent=47 // pred_check_branch
        %405 = sbr.rel (%p403) target = $region56
      $region55: #{transformer_forward.5} parent=47 // pred_region
        %p406 = scmp.lt.s32.totalorder %s24, 1
        %s407 = scalar_select %p406, %s24, 1
        %s408 = smul.addr %s407, 4
        %s409 = smul.addr %s408, 8
        %s410 = scalar_lea.vmem %s1, %s409
      $region56: #{transformer_forward.5} parent=47 // pred_fallthru
        _
    $region48: #{transformer_forward.5} parent=5 // pred_fallthru
      _
    %p411 = scmp.le.s32.totalorder 1, %s16
    %p412 = scmp.lt.s32.totalorder %s16, 3
    %p413 = pnand %p411, %p412
    %p414 = pneg %p413
    // Predicated region
    $region57: #{transformer_forward.5} parent=5 // pred_check
      _
    $region58: #{transformer_forward.5} parent=5 // pred_check_branch
      %416 = sbr.rel (%p413) target = $region60
    $region59: #{transformer_forward.5} parent=5 // pred_region
      %s417 = ssub.s32 %s16, 1
      %p418 = scmp.lt.s32.totalorder %s25, 0
      %s419 = scalar_select %p418, %s25, 0
      %p420 = scmp.lt.s32.totalorder %s26, 1
      %s421 = scalar_select %p420, %s26, 1
      %s422 = smul.addr %s421, 5
      %s423 = smul.addr %s419, 10
      %s424 = sadd.s32 %s422, %s423
      %s425 = smul.addr %s424, 8
      %s426 = scalar_lea.vmem %s0, %s425
      %p427 = pneg %p56
      %p428 = pneg %p53
      %p429 = scmp.lt.s32.totalorder %s26, 1
      %s430 = scalar_select %p429, %s26, 1
      %s431 = smul.addr %s430, 4
      %s432 = smul.addr %s431, 8
      %s433 = scalar_lea.vmem %s1, %s432
      %p434 = pneg %p82
      %p435 = pneg %p79
      %p436 = scmp.lt.s32.totalorder %s25, 0
      %s437 = scalar_select %p436, %s25, 0
      %s438 = smul.addr %s437, 4
      %s439 = smul.addr %s438, 4
      %s440 = scalar_lea.vmem %s2, %s439
      %p441 = pneg %p108
      %p442 = pneg %p105
      %p443 = scmp.lt.s32.totalorder %s25, 0
      %s444 = scalar_select %p443, %s25, 0
      %s445 = scalar_lea.vmem %s3, %s444
      %p446 = pneg %p134
      %p447 = pneg %p131
      %p448 = scmp.lt.s32.totalorder %s25, 0
      %s449 = scalar_select %p448, %s25, 0
      %s450 = smul.addr %s449, 4
      %s451 = smul.addr %s450, 4
      %s452 = scalar_lea.vmem %s4, %s451
      %p453 = pneg %p160
      %p454 = pneg %p157
      %p455 = scmp.lt.s32.totalorder %s25, 0
      %s456 = scalar_select %p455, %s25, 0
      %s457 = scalar_lea.vmem %s5, %s456
      %p458 = pneg %p186
      %p459 = pneg %p183
      %p460 = scmp.lt.s32.totalorder %s25, 0
      %s461 = scalar_select %p460, %s25, 0
      %s462 = smul.addr %s461, 4
      %s463 = smul.addr %s462, 4
      %s464 = scalar_lea.vmem %s6, %s463
      %p465 = pneg %p212
      %p466 = pneg %p209
      %p467 = scmp.lt.s32.totalorder %s25, 0
      %s468 = scalar_select %p467, %s25, 0
      %s469 = scalar_lea.vmem %s7, %s468
      %p470 = pneg %p238
      %p471 = pneg %p235
      %p472 = scmp.lt.s32.totalorder %s25, 0
      %s473 = scalar_select %p472, %s25, 0
      %s474 = scalar_lea.vmem %s8, %s473
      %p475 = pneg %p264
      %p476 = pneg %p261
      %p477 = scmp.lt.s32.totalorder %s25, 0
      %s478 = scalar_select %p477, %s25, 0
      %s479 = scalar_lea.vmem %s9, %s478
      %p480 = pneg %p290
      %p481 = pneg %p287
      %p482 = pneg %p318
      %p483 = pneg %p315
      %p484 = scmp.lt.s32.totalorder %s25, 0
      %s485 = scalar_select %p484, %s25, 0
      %p486 = scmp.lt.s32.totalorder %s26, 1
      %s487 = scalar_select %p486, %s26, 1
      %s488 = smul.addr %s487, 5
      %s489 = smul.addr %s485, 10
      %s490 = sadd.s32 %s488, %s489
      %s491 = smul.addr %s490, 8
      %s492 = scalar_lea.vmem %s10, %s491
      %p493 = scmp.lt.s32.totalorder %s25, 0
      %s494 = scalar_select %p493, %s25, 0
      %p495 = scmp.lt.s32.totalorder %s26, 1
      %s496 = scalar_select %p495, %s26, 1
      %s497 = smul.addr %s496, 5
      %s498 = smul.addr %s494, 10
      %s499 = sadd.s32 %s497, %s498
      %s500 = smul.addr %s499, 8
      %s501 = scalar_lea.vmem %s0, %s500
      %p502 = scmp.lt.s32.totalorder %s26, 1
      %s503 = scalar_select %p502, %s26, 1
      %s504 = smul.addr %s503, 4
      %s505 = smul.addr %s504, 8
      %s506 = scalar_lea.vmem %s1, %s505
      %p507 = scmp.lt.s32.totalorder %s25, 0
      %s508 = scalar_select %p507, %s25, 0
      %s509 = smul.addr %s508, 4
      %s510 = smul.addr %s509, 4
      %s511 = scalar_lea.vmem %s2, %s510
      %p512 = scmp.lt.s32.totalorder %s25, 0
      %s513 = scalar_select %p512, %s25, 0
      %s514 = scalar_lea.vmem %s3, %s513
      %p515 = scmp.lt.s32.totalorder %s25, 0
      %s516 = scalar_select %p515, %s25, 0
      %s517 = smul.addr %s516, 4
      %s518 = smul.addr %s517, 4
      %s519 = scalar_lea.vmem %s4, %s518
      %p520 = scmp.lt.s32.totalorder %s25, 0
      %s521 = scalar_select %p520, %s25, 0
      %s522 = scalar_lea.vmem %s5, %s521
      %p523 = scmp.lt.s32.totalorder %s25, 0
      %s524 = scalar_select %p523, %s25, 0
      %s525 = smul.addr %s524, 4
      %s526 = smul.addr %s525, 4
      %s527 = scalar_lea.vmem %s6, %s526
      %p528 = scmp.lt.s32.totalorder %s25, 0
      %s529 = scalar_select %p528, %s25, 0
      %s530 = scalar_lea.vmem %s7, %s529
      %p531 = scmp.lt.s32.totalorder %s25, 0
      %s532 = scalar_select %p531, %s25, 0
      %s533 = scalar_lea.vmem %s8, %s532
      %p534 = scmp.lt.s32.totalorder %s25, 0
      %s535 = scalar_select %p534, %s25, 0
      %s536 = scalar_lea.vmem %s9, %s535
      %p537 = scmp.lt.s32.totalorder %s25, 0
      %s538 = scalar_select %p537, %s25, 0
      %p539 = scmp.lt.s32.totalorder %s26, 1
      %s540 = scalar_select %p539, %s26, 1
      %s541 = smul.addr %s540, 5
      %s542 = smul.addr %s538, 10
      %s543 = sadd.s32 %s541, %s542
      %s544 = smul.addr %s543, 8
      %s545 = scalar_lea.vmem %s10, %s544
      %v547 = vld [vmem:[%s501] sm:$0xff]
      %v548 = vld [vmem:[%s501 + $0x8] sm:$0xff]
      %v549 = vld [vmem:[%s501 + $0x10] sm:$0xff]
      %v550 = vld [vmem:[%s501 + $0x18] sm:$0xff]
      %v551 = vld [vmem:[%s501 + $0x20] sm:$0xff]
      %v552 = vld [vmem:[%s506] sm:$0xff]
      %v553 = vld [vmem:[%s506 + $0x8] sm:$0xff]
      %v554 = vld [vmem:[%s506 + $0x10] sm:$0xff]
      %v555 = vld [vmem:[%s506 + $0x18] sm:$0xff]
      %v556 = vpack.c.bf16 %v548, %v547
      %v557 = vpack.c.bf16 %v550, %v549
      %v558 = vpack.c.bf16 %v551, %v551
      %v559 = vld [vmem:[%s511] sm:$0xf]
      %v560 = vld [vmem:[%s511 + $0x4] sm:$0xf]
      %v561 = vld [vmem:[%s511 + $0x8] sm:$0xf]
      %v562 = vld [vmem:[%s511 + $0xc] sm:$0xf]
      %v563 = vld [vmem:[%s514] sm:$0x1]
      %v565 = vlaneseq
      %v566 = vshrl.u32 %v565, 7
      %v567 = vsub.s32 0, %v566
      %v568 = vrot.slane %v563, %v567
      %v574 = vunpack.c.l.b16 %v559
      %v575 = vunpack.c.l.b16 %v560
      %v576 = vunpack.c.l.b16 %v561
      %v577 = vunpack.c.l.b16 %v562
      %v578 = vpack.c.b16 %v575, %v574
      %v579 = vpack.c.b16 %v577, %v576
      %vm582 = vcmask 261120
      %v584 = vsel %vm582, %v556, 0
      %v587 = vsel %vm582, %v557, 0
      %v590 = vsel %vm582, %v558, 0
      %592 = vmatprep.subr.bf16.mxu0 0
      %593 = vmatpush1.bf16.msra.mxu0 %v578
      %594 = vmatprep.subr.bf16.mxu0 0
      %595 = vmatpush1.bf16.msra.mxu0 %v579
      %596 = vmatprep.subr.bf16.mxu0 0
      %597 = vmatpush1.bf16.msra.mxu0 0
      %598 = vmatprep.subr.bf16.mxu0 0
      %599 = vmatpush1.bf16.msra.mxu0 0
      %600 = vmatprep.subr.bf16.mxu0 0
      %601 = vmatpush1.bf16.msra.mxu0 0
      %602 = vmatprep.subr.bf16.mxu0 0
      %603 = vmatpush1.bf16.msra.mxu0 0
      %604 = vmatprep.subr.bf16.mxu0 0
      %605 = vmatpush1.bf16.msra.mxu0 0
      %606 = vmatprep.subr.bf16.mxu0 0
      %607 = vmatpush1.bf16.msra.mxu0 0
      %608 = vmatprep.subr.bf16.mxu0 0
      %609 = vmatpush1.bf16.msra.mxu0 0
      %610 = vmatprep.subr.bf16.mxu0 0
      %611 = vmatpush1.bf16.msra.mxu0 0
      %612 = vmatprep.subr.bf16.mxu0 0
      %613 = vmatpush1.bf16.msra.mxu0 0
      %614 = vmatprep.subr.bf16.mxu0 0
      %615 = vmatpush1.bf16.msra.mxu0 0
      %616 = vmatprep.subr.bf16.mxu0 0
      %617 = vmatpush1.bf16.msra.mxu0 0
      %618 = vmatprep.subr.bf16.mxu0 0
      %619 = vmatpush1.bf16.msra.mxu0 0
      %620 = vmatprep.subr.bf16.mxu0 0
      %621 = vmatpush1.bf16.msra.mxu0 0
      %622 = vmatprep.subr.bf16.mxu0 0
      %623 = vmatpush1.bf16.msra.mxu0 0
      %624 = vmatprep.mubr.bf16.mxu0 0
      %625 = vmatmul.mubr.bf16.gmra.mrb[0].mxu0 %v584
      %v626 = vpop.f32.mrb[0].mxu0
      %v627 = vadd.f32 %v568, %v626
      %v628 = vpop.f32.mrb[0].mxu0
      %v629 = vpop.f32.mrb[0].mxu0
      %v630 = vadd.f32 %v568, %v629
      %v631 = vpop.f32.mrb[0].mxu0
      %632 = vmatprep.mubr.bf16.mxu0 0
      %633 = vmatmul.mubr.bf16.gmra.mrb[0].mxu0 %v587
      %v634 = vpop.f32.mrb[0].mxu0
      %v635 = vadd.f32 %v568, %v634
      %v636 = vpop.f32.mrb[0].mxu0
      %v637 = vpop.f32.mrb[0].mxu0
      %v638 = vadd.f32 %v568, %v637
      %v639 = vpop.f32.mrb[0].mxu0
      %640 = vmatprep.mubr.bf16.mxu0 0
      %641 = vmatmul.mubr.bf16.gmra.mrb[0].mxu0 %v590
      %v642 = vpop.f32.mrb[0].mxu0
      %v643 = vadd.f32 %v568, %v642
      %v644 = vpop.f32.mrb[0].mxu0
      %v645 = vpop.f32.mrb[0].mxu0
      %v646 = vpop.f32.mrb[0].mxu0
      %647 = vdwg.mxu0
      %v648 = vmul.f32 %v627, 0.35355338
      %v649 = vmul.f32 %v630, 0.35355338
      %v650 = vmul.f32 %v635, 0.35355338
      %v651 = vmul.f32 %v638, 0.35355338
      %v652 = vmul.f32 %v643, 0.35355338
      %v653 = vpack.c.bf16 %v553, %v552
      %v654 = vpack.c.bf16 %v555, %v554
      %v655 = vld [vmem:[%s519] sm:$0xf]
      %v656 = vld [vmem:[%s519 + $0x4] sm:$0xf]
      %v657 = vld [vmem:[%s519 + $0x8] sm:$0xf]
      %v658 = vld [vmem:[%s519 + $0xc] sm:$0xf]
      %v659 = vld [vmem:[%s522] sm:$0x1]
      %v661 = vlaneseq
      %v662 = vshrl.u32 %v661, 7
      %v663 = vsub.s32 0, %v662
      %v664 = vrot.slane %v659, %v663
      %v670 = vunpack.c.l.b16 %v655
      %v671 = vunpack.c.l.b16 %v656
      %v672 = vunpack.c.l.b16 %v657
      %v673 = vunpack.c.l.b16 %v658
      %v674 = vpack.c.b16 %v671, %v670
      %v675 = vpack.c.b16 %v673, %v672
      %v679 = vsel %vm582, %v653, 0
      %v682 = vsel %vm582, %v654, 0
      %684 = vmatprep.subr.bf16.mxu0 0
      %685 = vmatpush1.bf16.msra.mxu0 %v674
      %686 = vmatprep.subr.bf16.mxu0 0
      %687 = vmatpush1.bf16.msra.mxu0 %v675
      %688 = vmatprep.subr.bf16.mxu0 0
      %689 = vmatpush1.bf16.msra.mxu0 0
      %690 = vmatprep.subr.bf16.mxu0 0
      %691 = vmatpush1.bf16.msra.mxu0 0
      %692 = vmatprep.subr.bf16.mxu0 0
      %693 = vmatpush1.bf16.msra.mxu0 0
      %694 = vmatprep.subr.bf16.mxu0 0
      %695 = vmatpush1.bf16.msra.mxu0 0
      %696 = vmatprep.subr.bf16.mxu0 0
      %697 = vmatpush1.bf16.msra.mxu0 0
      %698 = vmatprep.subr.bf16.mxu0 0
      %699 = vmatpush1.bf16.msra.mxu0 0
      %700 = vmatprep.subr.bf16.mxu0 0
      %701 = vmatpush1.bf16.msra.mxu0 0
      %702 = vmatprep.subr.bf16.mxu0 0
      %703 = vmatpush1.bf16.msra.mxu0 0
      %704 = vmatprep.subr.bf16.mxu0 0
      %705 = vmatpush1.bf16.msra.mxu0 0
      %706 = vmatprep.subr.bf16.mxu0 0
      %707 = vmatpush1.bf16.msra.mxu0 0
      %708 = vmatprep.subr.bf16.mxu0 0
      %709 = vmatpush1.bf16.msra.mxu0 0
      %710 = vmatprep.subr.bf16.mxu0 0
      %711 = vmatpush1.bf16.msra.mxu0 0
      %712 = vmatprep.subr.bf16.mxu0 0
      %713 = vmatpush1.bf16.msra.mxu0 0
      %714 = vmatprep.subr.bf16.mxu0 0
      %715 = vmatpush1.bf16.msra.mxu0 0
      %716 = vmatprep.mubr.bf16.mxu0 0
      %717 = vmatmul.mubr.bf16.gmra.mrb[0].mxu0 %v679
      %v718 = vpop.f32.mrb[0].mxu0
      %v719 = vadd.f32 %v664, %v718
      %v720 = vpop.f32.mrb[0].mxu0
      %v721 = vpop.f32.mrb[0].mxu0
      %v722 = vadd.f32 %v664, %v721
      %v723 = vpop.f32.mrb[0].mxu0
      %724 = vmatprep.mubr.bf16.mxu0 0
      %725 = vmatmul.mubr.bf16.gmra.mrb[0].mxu0 %v682
      %v726 = vpop.f32.mrb[0].mxu0
      %v727 = vadd.f32 %v664, %v726
      %v728 = vpop.f32.mrb[0].mxu0
      %v729 = vpop.f32.mrb[0].mxu0
      %v730 = vadd.f32 %v664, %v729
      %v731 = vpop.f32.mrb[0].mxu0
      %732 = vdwg.mxu0
      %733 = vxpose.xlu0.b32.start [1/16] %v719, 128
      %734 = vxpose.xlu0.b32.cont [2/16] %v722, 128
      %735 = vxpose.xlu0.b32.cont [3/16] %v727, 128
      %736 = vxpose.xlu0.b32.cont [4/16] %v730, 128
      %737 = vxpose.xlu0.b32.cont [5/16] 0.0, 128
      %738 = vxpose.xlu0.b32.cont [6/16] 0.0, 128
      %739 = vxpose.xlu0.b32.cont [7/16] 0.0, 128
      %740 = vxpose.xlu0.b32.cont [8/16] 0.0, 128
      %741 = vxpose.xlu0.b32.cont [9/16] 0.0, 128
      %742 = vxpose.xlu0.b32.cont [10/16] 0.0, 128
      %743 = vxpose.xlu0.b32.cont [11/16] 0.0, 128
      %744 = vxpose.xlu0.b32.cont [12/16] 0.0, 128
      %745 = vxpose.xlu0.b32.cont [13/16] 0.0, 128
      %746 = vxpose.xlu0.b32.cont [14/16] 0.0, 128
      %747 = vxpose.xlu0.b32.cont [15/16] 0.0, 128
      %748 = vxpose.xlu0.b32.end [16/16] 0.0, 128
      %v749 = vpop.trf.xlu0
      %v750 = vpop.trf.xlu0
      %v751 = vpop.trf.xlu0
      %v752 = vpop.trf.xlu0
      %v753 = vpop.trf.xlu0
      %v754 = vpop.trf.xlu0
      %v755 = vpop.trf.xlu0
      %v756 = vpop.trf.xlu0
      %v757 = vpop.trf.xlu0
      %v758 = vpop.trf.xlu0
      %v759 = vpop.trf.xlu0
      %v760 = vpop.trf.xlu0
      %v761 = vpop.trf.xlu0
      %v762 = vpop.trf.xlu0
      %v763 = vpop.trf.xlu0
      %v764 = vpop.trf.xlu0
      %v765 = vpack.c.bf16 %v750, %v749
      %v766 = vpack.c.bf16 %v752, %v751
      %v767 = vpack.c.bf16 %v722, %v719
      %v768 = vpack.c.bf16 %v730, %v727
      %v769 = vlaneseq
      %v770 = vand.u32 %v769, 127
      %vm771 = vcmp.lt.s32.totalorder %v770, 25
      %v772 = vsel %vm771, 0.0, -1e+30
      %v773 = vpack.c.bf16 %v649, %v648
      %v774 = vpack.c.bf16 %v651, %v650
      %v775 = vpack.c.bf16 %v652, %v652
      %vm776 = vcmask 64512
      %v778 = vsel %vm776, %v773, 0
      %v781 = vsel %vm776, %v774, 0
      %v784 = vsel %vm776, %v775, 0
      %vm786 = vcmask 1043456
      %v788 = vsel %vm786, %v765, 0
      %790 = vmatprep.subr.bf16.mxu0 0
      %791 = vmatpush1.bf16.msra.mxu0 %v788
      %792 = vmatprep.subr.bf16.mxu0 0
      %793 = vmatpush1.bf16.msra.mxu0 0
      %794 = vmatprep.subr.bf16.mxu0 0
      %795 = vmatpush1.bf16.msra.mxu0 0
      %796 = vmatprep.subr.bf16.mxu0 0
      %797 = vmatpush1.bf16.msra.mxu0 0
      %798 = vmatprep.subr.bf16.mxu0 0
      %799 = vmatpush1.bf16.msra.mxu0 0
      %800 = vmatprep.subr.bf16.mxu0 0
      %801 = vmatpush1.bf16.msra.mxu0 0
      %802 = vmatprep.subr.bf16.mxu0 0
      %803 = vmatpush1.bf16.msra.mxu0 0
      %804 = vmatprep.subr.bf16.mxu0 0
      %805 = vmatpush1.bf16.msra.mxu0 0
      %806 = vmatprep.subr.bf16.mxu0 0
      %807 = vmatpush1.bf16.msra.mxu0 0
      %808 = vmatprep.subr.bf16.mxu0 0
      %809 = vmatpush1.bf16.msra.mxu0 0
      %810 = vmatprep.subr.bf16.mxu0 0
      %811 = vmatpush1.bf16.msra.mxu0 0
      %812 = vmatprep.subr.bf16.mxu0 0
      %813 = vmatpush1.bf16.msra.mxu0 0
      %814 = vmatprep.subr.bf16.mxu0 0
      %815 = vmatpush1.bf16.msra.mxu0 0
      %816 = vmatprep.subr.bf16.mxu0 0
      %817 = vmatpush1.bf16.msra.mxu0 0
      %818 = vmatprep.subr.bf16.mxu0 0
      %819 = vmatpush1.bf16.msra.mxu0 0
      %820 = vmatprep.subr.bf16.mxu0 0
      %821 = vmatpush1.bf16.msra.mxu0 0
      %822 = vmatprep.mubr.bf16.mxu0 0
      %823 = vmatmul.mubr.bf16.gmra.mrb[0].mxu0 %v778
      %v824 = vpop.f32.mrb[0].mxu0
      %v825 = vadd.f32 %v772, %v824
      %v826 = vpop.f32.mrb[0].mxu0
      %v827 = vpop.f32.mrb[0].mxu0
      %v828 = vadd.f32 %v772, %v827
      %v829 = vpop.f32.mrb[0].mxu0
      %830 = vmatprep.mubr.bf16.mxu0 0
      %831 = vmatmul.mubr.bf16.gmra.mrb[0].mxu0 %v781
      %v832 = vpop.f32.mrb[0].mxu0
      %v833 = vadd.f32 %v772, %v832
      %v834 = vpop.f32.mrb[0].mxu0
      %v835 = vpop.f32.mrb[0].mxu0
      %v836 = vadd.f32 %v772, %v835
      %v837 = vpop.f32.mrb[0].mxu0
      %838 = vmatprep.mubr.bf16.mxu0 0
      %839 = vmatmul.mubr.bf16.gmra.mrb[0].mxu0 %v784
      %v840 = vpop.f32.mrb[0].mxu0
      %v841 = vadd.f32 %v772, %v840
      %v842 = vpop.f32.mrb[0].mxu0
      %v843 = vpop.f32.mrb[0].mxu0
      %v844 = vpop.f32.mrb[0].mxu0
      %845 = vdwg.mxu0
      %v846 = vsel %vm582, %v825, -inf
      %847 = vmax.xlane.f32.xlu0 %v846
      %v848 = vpop.xlane.xlu0 %847
      %v849 = vsel %vm582, %v828, -inf
      %850 = vmax.xlane.f32.xlu0 %v849
      %v851 = vpop.xlane.xlu0 %850
      %v852 = vsel %vm582, %v833, -inf
      %853 = vmax.xlane.f32.xlu0 %v852
      %v854 = vpop.xlane.xlu0 %853
      %v855 = vsel %vm582, %v836, -inf
      %856 = vmax.xlane.f32.xlu0 %v855
      %v857 = vpop.xlane.xlu0 %856
      %v858 = vsel %vm582, %v841, -inf
      %859 = vmax.xlane.f32.xlu0 %v858
      %v860 = vpop.xlane.xlu0 %859
      %v861 = vsub.f32 %v825, %v848
      %v862 = vsub.f32 %v828, %v851
      %v863 = vsub.f32 %v833, %v854
      %v864 = vsub.f32 %v836, %v857
      %v865 = vsub.f32 %v841, %v860
      %v866 = vmul.f32 %v861, 1.442695
      %v867 = vpow.pop %v866
      %v868 = vmul.f32 %v862, 1.442695
      %v869 = vpow.pop %v868
      %v870 = vmul.f32 %v863, 1.442695
      %v871 = vpow.pop %v870
      %v872 = vmul.f32 %v864, 1.442695
      %v873 = vpow.pop %v872
      %v874 = vmul.f32 %v865, 1.442695
      %v875 = vpow.pop %v874
      %v876 = vsel %vm582, %v867, 0.0
      %877 = vadd.xlane.f32.xlu0 %v876
      %v878 = vpop.xlane.xlu0 %877
      %v879 = vsel %vm582, %v869, 0.0
      %880 = vadd.xlane.f32.xlu0 %v879
      %v881 = vpop.xlane.xlu0 %880
      %v882 = vsel %vm582, %v871, 0.0
      %883 = vadd.xlane.f32.xlu0 %v882
      %v884 = vpop.xlane.xlu0 %883
      %v885 = vsel %vm582, %v873, 0.0
      %886 = vadd.xlane.f32.xlu0 %v885
      %v887 = vpop.xlane.xlu0 %886
      %v888 = vsel %vm582, %v875, 0.0
      %889 = vadd.xlane.f32.xlu0 %v888
      %v890 = vpop.xlane.xlu0 %889
      %v891 = vrcp.pop %v878
      %v892 = vrcp.pop %v881
      %v893 = vrcp.pop %v884
      %v894 = vrcp.pop %v887
      %v895 = vrcp.pop %v890
      %v896 = vpack.c.bf16 %v869, %v867
      %v897 = vpack.c.bf16 %v873, %v871
      %v898 = vpack.c.bf16 %v875, %v875
      %901 = vrot.lane.b32.xlu0 %v767, 96
      %v902 = vpop.permute.xlu0 %901
      %903 = vrot.lane.b32.xlu0 %v768, 96
      %v904 = vpop.permute.xlu0 %903
      %v908 = vsel %vm582, %v896, 0
      %v911 = vsel %vm582, %v897, 0
      %v914 = vsel %vm582, %v898, 0
      %916 = vmatprep.subr.bf16.mxu0 0
      %917 = vmatpush1.bf16.msra.mxu0 %v902
      %918 = vmatprep.subr.bf16.mxu0 0
      %919 = vmatpush1.bf16.msra.mxu0 %v904
      %920 = vmatprep.subr.bf16.mxu0 0
      %921 = vmatpush1.bf16.msra.mxu0 0
      %922 = vmatprep.subr.bf16.mxu0 0
      %923 = vmatpush1.bf16.msra.mxu0 0
      %924 = vmatprep.subr.bf16.mxu0 0
      %925 = vmatpush1.bf16.msra.mxu0 0
      %926 = vmatprep.subr.bf16.mxu0 0
      %927 = vmatpush1.bf16.msra.mxu0 0
      %928 = vmatprep.subr.bf16.mxu0 0
      %929 = vmatpush1.bf16.msra.mxu0 0
      %930 = vmatprep.subr.bf16.mxu0 0
      %931 = vmatpush1.bf16.msra.mxu0 0
      %932 = vmatprep.subr.bf16.mxu0 0
      %933 = vmatpush1.bf16.msra.mxu0 0
      %934 = vmatprep.subr.bf16.mxu0 0
      %935 = vmatpush1.bf16.msra.mxu0 0
      %936 = vmatprep.subr.bf16.mxu0 0
      %937 = vmatpush1.bf16.msra.mxu0 0
      %938 = vmatprep.subr.bf16.mxu0 0
      %939 = vmatpush1.bf16.msra.mxu0 0
      %940 = vmatprep.subr.bf16.mxu0 0
      %941 = vmatpush1.bf16.msra.mxu0 0
      %942 = vmatprep.subr.bf16.mxu0 0
      %943 = vmatpush1.bf16.msra.mxu0 0
      %944 = vmatprep.subr.bf16.mxu0 0
      %945 = vmatpush1.bf16.msra.mxu0 0
      %946 = vmatprep.subr.bf16.mxu0 0
      %947 = vmatpush1.bf16.msra.mxu0 0
      %948 = vmatprep.mubr.bf16.mxu0 0
      %949 = vmatmul.mubr.bf16.gmra.mrb[0].mxu0 %v908
      %v950 = vpop.f32.mrb[0].mxu0
      %v951 = vadd.f32 0.0, %v950
      %v952 = vpop.f32.mrb[0].mxu0
      %v953 = vpop.f32.mrb[0].mxu0
      %v954 = vadd.f32 0.0, %v953
      %v955 = vpop.f32.mrb[0].mxu0
      %956 = vmatprep.mubr.bf16.mxu0 0
      %957 = vmatmul.mubr.bf16.gmra.mrb[0].mxu0 %v911
      %v958 = vpop.f32.mrb[0].mxu0
      %v959 = vadd.f32 0.0, %v958
      %v960 = vpop.f32.mrb[0].mxu0
      %v961 = vpop.f32.mrb[0].mxu0
      %v962 = vadd.f32 0.0, %v961
      %v963 = vpop.f32.mrb[0].mxu0
      %964 = vmatprep.mubr.bf16.mxu0 0
      %965 = vmatmul.mubr.bf16.gmra.mrb[0].mxu0 %v914
      %v966 = vpop.f32.mrb[0].mxu0
      %v967 = vadd.f32 0.0, %v966
      %v968 = vpop.f32.mrb[0].mxu0
      %v969 = vpop.f32.mrb[0].mxu0
      %v970 = vpop.f32.mrb[0].mxu0
      %971 = vdwg.mxu0
      %v972 = vmul.f32 %v951, %v891
      %v973 = vmul.f32 %v954, %v892
      %v974 = vmul.f32 %v959, %v893
      %v975 = vmul.f32 %v962, %v894
      %v976 = vmul.f32 %v967, %v895
      %980 = vrot.lane.b32.xlu0 %v773, 120
      %v981 = vpop.permute.xlu0 %980
      %982 = vrot.lane.b32.xlu0 %v774, 120
      %v983 = vpop.permute.xlu0 %982
      %984 = vrot.lane.b32.xlu0 %v775, 120
      %v985 = vpop.permute.xlu0 %984
      %v987 = vrot.slane %v765, 4
      %v989 = vsel %vm776, %v981, 0
      %v992 = vsel %vm776, %v983, 0
      %v995 = vsel %vm776, %v985, 0
      %v998 = vsel %vm786, %v987, 0
      %1000 = vmatprep.subr.bf16.mxu0 0
      %1001 = vmatpush1.bf16.msra.mxu0 %v998
      %1002 = vmatprep.subr.bf16.mxu0 0
      %1003 = vmatpush1.bf16.msra.mxu0 0
      %1004 = vmatprep.subr.bf16.mxu0 0
      %1005 = vmatpush1.bf16.msra.mxu0 0
      %1006 = vmatprep.subr.bf16.mxu0 0
      %1007 = vmatpush1.bf16.msra.mxu0 0
      %1008 = vmatprep.subr.bf16.mxu0 0
      %1009 = vmatpush1.bf16.msra.mxu0 0
      %1010 = vmatprep.subr.bf16.mxu0 0
      %1011 = vmatpush1.bf16.msra.mxu0 0
      %1012 = vmatprep.subr.bf16.mxu0 0
      %1013 = vmatpush1.bf16.msra.mxu0 0
      %1014 = vmatprep.subr.bf16.mxu0 0
      %1015 = vmatpush1.bf16.msra.mxu0 0
      %1016 = vmatprep.subr.bf16.mxu0 0
      %1017 = vmatpush1.bf16.msra.mxu0 0
      %1018 = vmatprep.subr.bf16.mxu0 0
      %1019 = vmatpush1.bf16.msra.mxu0 0
      %1020 = vmatprep.subr.bf16.mxu0 0
      %1021 = vmatpush1.bf16.msra.mxu0 0
      %1022 = vmatprep.subr.bf16.mxu0 0
      %1023 = vmatpush1.bf16.msra.mxu0 0
      %1024 = vmatprep.subr.bf16.mxu0 0
      %1025 = vmatpush1.bf16.msra.mxu0 0
      %1026 = vmatprep.subr.bf16.mxu0 0
      %1027 = vmatpush1.bf16.msra.mxu0 0
      %1028 = vmatprep.subr.bf16.mxu0 0
      %1029 = vmatpush1.bf16.msra.mxu0 0
      %1030 = vmatprep.subr.bf16.mxu0 0
      %1031 = vmatpush1.bf16.msra.mxu0 0
      %1032 = vmatprep.mubr.bf16.mxu0 0
      %1033 = vmatmul.mubr.bf16.gmra.mrb[0].mxu0 %v989
      %v1034 = vpop.f32.mrb[0].mxu0
      %v1035 = vadd.f32 %v772, %v1034
      %v1036 = vpop.f32.mrb[0].mxu0
      %v1037 = vpop.f32.mrb[0].mxu0
      %v1038 = vadd.f32 %v772, %v1037
      %v1039 = vpop.f32.mrb[0].mxu0
      %1040 = vmatprep.mubr.bf16.mxu0 0
      %1041 = vmatmul.mubr.bf16.gmra.mrb[0].mxu0 %v992
      %v1042 = vpop.f32.mrb[0].mxu0
      %v1043 = vadd.f32 %v772, %v1042
      %v1044 = vpop.f32.mrb[0].mxu0
      %v1045 = vpop.f32.mrb[0].mxu0
      %v1046 = vadd.f32 %v772, %v1045
      %v1047 = vpop.f32.mrb[0].mxu0
      %1048 = vmatprep.mubr.bf16.mxu0 0
      %1049 = vmatmul.mubr.bf16.gmra.mrb[0].mxu0 %v995
      %v1050 = vpop.f32.mrb[0].mxu0
      %v1051 = vadd.f32 %v772, %v1050
      %v1052 = vpop.f32.mrb[0].mxu0
      %v1053 = vpop.f32.mrb[0].mxu0
      %v1054 = vpop.f32.mrb[0].mxu0
      %1055 = vdwg.mxu0
      %v1056 = vsel %vm582, %v1035, -inf
      %1057 = vmax.xlane.f32.xlu0 %v1056
      %v1058 = vpop.xlane.xlu0 %1057
      %v1059 = vsel %vm582, %v1038, -inf
      %1060 = vmax.xlane.f32.xlu0 %v1059
      %v1061 = vpop.xlane.xlu0 %1060
      %v1062 = vsel %vm582, %v1043, -inf
      %1063 = vmax.xlane.f32.xlu0 %v1062
      %v1064 = vpop.xlane.xlu0 %1063
      %v1065 = vsel %vm582, %v1046, -inf
      %1066 = vmax.xlane.f32.xlu0 %v1065
      %v1067 = vpop.xlane.xlu0 %1066
      %v1068 = vsel %vm582, %v1051, -inf
      %1069 = vmax.xlane.f32.xlu0 %v1068
      %v1070 = vpop.xlane.xlu0 %1069
      %v1071 = vsub.f32 %v1035, %v1058
      %v1072 = vsub.f32 %v1038, %v1061
      %v1073 = vsub.f32 %v1043, %v1064
      %v1074 = vsub.f32 %v1046, %v1067
      %v1075 = vsub.f32 %v1051, %v1070
      %v1076 = vmul.f32 %v1071, 1.442695
      %v1077 = vpow.pop %v1076
      %v1078 = vmul.f32 %v1072, 1.442695
      %v1079 = vpow.pop %v1078
      %v1080 = vmul.f32 %v1073, 1.442695
      %v1081 = vpow.pop %v1080
      %v1082 = vmul.f32 %v1074, 1.442695
      %v1083 = vpow.pop %v1082
      %v1084 = vmul.f32 %v1075, 1.442695
      %v1085 = vpow.pop %v1084
      %v1086 = vsel %vm582, %v1077, 0.0
      %1087 = vadd.xlane.f32.xlu0 %v1086
      %v1088 = vpop.xlane.xlu0 %1087
      %v1089 = vsel %vm582, %v1079, 0.0
      %1090 = vadd.xlane.f32.xlu0 %v1089
      %v1091 = vpop.xlane.xlu0 %1090
      %v1092 = vsel %vm582, %v1081, 0.0
      %1093 = vadd.xlane.f32.xlu0 %v1092
      %v1094 = vpop.xlane.xlu0 %1093
      %v1095 = vsel %vm582, %v1083, 0.0
      %1096 = vadd.xlane.f32.xlu0 %v1095
      %v1097 = vpop.xlane.xlu0 %1096
      %v1098 = vsel %vm582, %v1085, 0.0
      %1099 = vadd.xlane.f32.xlu0 %v1098
      %v1100 = vpop.xlane.xlu0 %1099
      %v1101 = vrcp.pop %v1088
      %v1102 = vrcp.pop %v1091
      %v1103 = vrcp.pop %v1094
      %v1104 = vrcp.pop %v1097
      %v1105 = vrcp.pop %v1100
      %v1106 = vpack.c.bf16 %v1079, %v1077
      %v1107 = vpack.c.bf16 %v1083, %v1081
      %v1108 = vpack.c.bf16 %v1085, %v1085
      %1109 = vrot.lane.b32.xlu0 %v767, 88
      %v1110 = vpop.permute.xlu0 %1109
      %1111 = vrot.lane.b32.xlu0 %v768, 88
      %v1112 = vpop.permute.xlu0 %1111
      %v1116 = vsel %vm582, %v1106, 0
      %v1119 = vsel %vm582, %v1107, 0
      %v1122 = vsel %vm582, %v1108, 0
      %1124 = vmatprep.subr.bf16.mxu0 0
      %1125 = vmatpush1.bf16.msra.mxu0 %v1110
      %1126 = vmatprep.subr.bf16.mxu0 0
      %1127 = vmatpush1.bf16.msra.mxu0 %v1112
      %1128 = vmatprep.subr.bf16.mxu0 0
      %1129 = vmatpush1.bf16.msra.mxu0 0
      %1130 = vmatprep.subr.bf16.mxu0 0
      %1131 = vmatpush1.bf16.msra.mxu0 0
      %1132 = vmatprep.subr.bf16.mxu0 0
      %1133 = vmatpush1.bf16.msra.mxu0 0
      %1134 = vmatprep.subr.bf16.mxu0 0
      %1135 = vmatpush1.bf16.msra.mxu0 0
      %1136 = vmatprep.subr.bf16.mxu0 0
      %1137 = vmatpush1.bf16.msra.mxu0 0
      %1138 = vmatprep.subr.bf16.mxu0 0
      %1139 = vmatpush1.bf16.msra.mxu0 0
      %1140 = vmatprep.subr.bf16.mxu0 0
      %1141 = vmatpush1.bf16.msra.mxu0 0
      %1142 = vmatprep.subr.bf16.mxu0 0
      %1143 = vmatpush1.bf16.msra.mxu0 0
      %1144 = vmatprep.subr.bf16.mxu0 0
      %1145 = vmatpush1.bf16.msra.mxu0 0
      %1146 = vmatprep.subr.bf16.mxu0 0
      %1147 = vmatpush1.bf16.msra.mxu0 0
      %1148 = vmatprep.subr.bf16.mxu0 0
      %1149 = vmatpush1.bf16.msra.mxu0 0
      %1150 = vmatprep.subr.bf16.mxu0 0
      %1151 = vmatpush1.bf16.msra.mxu0 0
      %1152 = vmatprep.subr.bf16.mxu0 0
      %1153 = vmatpush1.bf16.msra.mxu0 0
      %1154 = vmatprep.subr.bf16.mxu0 0
      %1155 = vmatpush1.bf16.msra.mxu0 0
      %1156 = vmatprep.mubr.bf16.mxu0 0
      %1157 = vmatmul.mubr.bf16.gmra.mrb[0].mxu0 %v1116
      %v1158 = vpop.f32.mrb[0].mxu0
      %v1159 = vadd.f32 0.0, %v1158
      %v1160 = vpop.f32.mrb[0].mxu0
      %v1161 = vpop.f32.mrb[0].mxu0
      %v1162 = vadd.f32 0.0, %v1161
      %v1163 = vpop.f32.mrb[0].mxu0
      %1164 = vmatprep.mubr.bf16.mxu0 0
      %1165 = vmatmul.mubr.bf16.gmra.mrb[0].mxu0 %v1119
      %v1166 = vpop.f32.mrb[0].mxu0
      %v1167 = vadd.f32 0.0, %v1166
      %v1168 = vpop.f32.mrb[0].mxu0
      %v1169 = vpop.f32.mrb[0].mxu0
      %v1170 = vadd.f32 0.0, %v1169
      %v1171 = vpop.f32.mrb[0].mxu0
      %1172 = vmatprep.mubr.bf16.mxu0 0
      %1173 = vmatmul.mubr.bf16.gmra.mrb[0].mxu0 %v1122
      %v1174 = vpop.f32.mrb[0].mxu0
      %v1175 = vadd.f32 0.0, %v1174
      %v1176 = vpop.f32.mrb[0].mxu0
      %v1177 = vpop.f32.mrb[0].mxu0
      %v1178 = vpop.f32.mrb[0].mxu0
      %1179 = vdwg.mxu0
      %v1180 = vmul.f32 %v1159, %v1101
      %v1181 = vmul.f32 %v1162, %v1102
      %v1182 = vmul.f32 %v1167, %v1103
      %v1183 = vmul.f32 %v1170, %v1104
      %v1184 = vmul.f32 %v1175, %v1105
      %1185 = vrot.lane.b32.xlu0 %v773, 112
      %v1186 = vpop.permute.xlu0 %1185
      %1187 = vrot.lane.b32.xlu0 %v774, 112
      %v1188 = vpop.permute.xlu0 %1187
      %1189 = vrot.lane.b32.xlu0 %v775, 112
      %v1190 = vpop.permute.xlu0 %1189
      %v1192 = vsel %vm776, %v1186, 0
      %v1195 = vsel %vm776, %v1188, 0
      %v1198 = vsel %vm776, %v1190, 0
      %v1201 = vsel %vm786, %v766, 0
      %1203 = vmatprep.subr.bf16.mxu0 0
      %1204 = vmatpush1.bf16.msra.mxu0 %v1201
      %1205 = vmatprep.subr.bf16.mxu0 0
      %1206 = vmatpush1.bf16.msra.mxu0 0
      %1207 = vmatprep.subr.bf16.mxu0 0
      %1208 = vmatpush1.bf16.msra.mxu0 0
      %1209 = vmatprep.subr.bf16.mxu0 0
      %1210 = vmatpush1.bf16.msra.mxu0 0
      %1211 = vmatprep.subr.bf16.mxu0 0
      %1212 = vmatpush1.bf16.msra.mxu0 0
      %1213 = vmatprep.subr.bf16.mxu0 0
      %1214 = vmatpush1.bf16.msra.mxu0 0
      %1215 = vmatprep.subr.bf16.mxu0 0
      %1216 = vmatpush1.bf16.msra.mxu0 0
      %1217 = vmatprep.subr.bf16.mxu0 0
      %1218 = vmatpush1.bf16.msra.mxu0 0
      %1219 = vmatprep.subr.bf16.mxu0 0
      %1220 = vmatpush1.bf16.msra.mxu0 0
      %1221 = vmatprep.subr.bf16.mxu0 0
      %1222 = vmatpush1.bf16.msra.mxu0 0
      %1223 = vmatprep.subr.bf16.mxu0 0
      %1224 = vmatpush1.bf16.msra.mxu0 0
      %1225 = vmatprep.subr.bf16.mxu0 0
      %1226 = vmatpush1.bf16.msra.mxu0 0
      %1227 = vmatprep.subr.bf16.mxu0 0
      %1228 = vmatpush1.bf16.msra.mxu0 0
      %1229 = vmatprep.subr.bf16.mxu0 0
      %1230 = vmatpush1.bf16.msra.mxu0 0
      %1231 = vmatprep.subr.bf16.mxu0 0
      %1232 = vmatpush1.bf16.msra.mxu0 0
      %1233 = vmatprep.subr.bf16.mxu0 0
      %1234 = vmatpush1.bf16.msra.mxu0 0
      %1235 = vmatprep.mubr.bf16.mxu0 0
      %1236 = vmatmul.mubr.bf16.gmra.mrb[0].mxu0 %v1192
      %v1237 = vpop.f32.mrb[0].mxu0
      %v1238 = vadd.f32 %v772, %v1237
      %v1239 = vpop.f32.mrb[0].mxu0
      %v1240 = vpop.f32.mrb[0].mxu0
      %v1241 = vadd.f32 %v772, %v1240
      %v1242 = vpop.f32.mrb[0].mxu0
      %1243 = vmatprep.mubr.bf16.mxu0 0
      %1244 = vmatmul.mubr.bf16.gmra.mrb[0].mxu0 %v1195
      %v1245 = vpop.f32.mrb[0].mxu0
      %v1246 = vadd.f32 %v772, %v1245
      %v1247 = vpop.f32.mrb[0].mxu0
      %v1248 = vpop.f32.mrb[0].mxu0
      %v1249 = vadd.f32 %v772, %v1248
      %v1250 = vpop.f32.mrb[0].mxu0
      %1251 = vmatprep.mubr.bf16.mxu0 0
      %1252 = vmatmul.mubr.bf16.gmra.mrb[0].mxu0 %v1198
      %v1253 = vpop.f32.mrb[0].mxu0
      %v1254 = vadd.f32 %v772, %v1253
      %v1255 = vpop.f32.mrb[0].mxu0
      %v1256 = vpop.f32.mrb[0].mxu0
      %v1257 = vpop.f32.mrb[0].mxu0
      %1258 = vdwg.mxu0
      %v1259 = vsel %vm582, %v1238, -inf
      %1260 = vmax.xlane.f32.xlu0 %v1259
      %v1261 = vpop.xlane.xlu0 %1260
      %v1262 = vsel %vm582, %v1241, -inf
      %1263 = vmax.xlane.f32.xlu0 %v1262
      %v1264 = vpop.xlane.xlu0 %1263
      %v1265 = vsel %vm582, %v1246, -inf
      %1266 = vmax.xlane.f32.xlu0 %v1265
      %v1267 = vpop.xlane.xlu0 %1266
      %v1268 = vsel %vm582, %v1249, -inf
      %1269 = vmax.xlane.f32.xlu0 %v1268
      %v1270 = vpop.xlane.xlu0 %1269
      %v1271 = vsel %vm582, %v1254, -inf
      %1272 = vmax.xlane.f32.xlu0 %v1271
      %v1273 = vpop.xlane.xlu0 %1272
      %v1274 = vsub.f32 %v1238, %v1261
      %v1275 = vsub.f32 %v1241, %v1264
      %v1276 = vsub.f32 %v1246, %v1267
      %v1277 = vsub.f32 %v1249, %v1270
      %v1278 = vsub.f32 %v1254, %v1273
      %v1279 = vmul.f32 %v1274, 1.442695
      %v1280 = vpow.pop %v1279
      %v1281 = vmul.f32 %v1275, 1.442695
      %v1282 = vpow.pop %v1281
      %v1283 = vmul.f32 %v1276, 1.442695
      %v1284 = vpow.pop %v1283
      %v1285 = vmul.f32 %v1277, 1.442695
      %v1286 = vpow.pop %v1285
      %v1287 = vmul.f32 %v1278, 1.442695
      %v1288 = vpow.pop %v1287
      %v1289 = vsel %vm582, %v1280, 0.0
      %1290 = vadd.xlane.f32.xlu0 %v1289
      %v1291 = vpop.xlane.xlu0 %1290
      %v1292 = vsel %vm582, %v1282, 0.0
      %1293 = vadd.xlane.f32.xlu0 %v1292
      %v1294 = vpop.xlane.xlu0 %1293
      %v1295 = vsel %vm582, %v1284, 0.0
      %1296 = vadd.xlane.f32.xlu0 %v1295
      %v1297 = vpop.xlane.xlu0 %1296
      %v1298 = vsel %vm582, %v1286, 0.0
      %1299 = vadd.xlane.f32.xlu0 %v1298
      %v1300 = vpop.xlane.xlu0 %1299
      %v1301 = vsel %vm582, %v1288, 0.0
      %1302 = vadd.xlane.f32.xlu0 %v1301
      %v1303 = vpop.xlane.xlu0 %1302
      %v1304 = vrcp.pop %v1291
      %v1305 = vrcp.pop %v1294
      %v1306 = vrcp.pop %v1297
      %v1307 = vrcp.pop %v1300
      %v1308 = vrcp.pop %v1303
      %v1309 = vpack.c.bf16 %v1282, %v1280
      %v1310 = vpack.c.bf16 %v1286, %v1284
      %v1311 = vpack.c.bf16 %v1288, %v1288
      %1312 = vrot.lane.b32.xlu0 %v767, 80
      %v1313 = vpop.permute.xlu0 %1312
      %1314 = vrot.lane.b32.xlu0 %v768, 80
      %v1315 = vpop.permute.xlu0 %1314
      %v1319 = vsel %vm582, %v1309, 0
      %v1322 = vsel %vm582, %v1310, 0
      %v1325 = vsel %vm582, %v1311, 0
      %1327 = vmatprep.subr.bf16.mxu0 0
      %1328 = vmatpush1.bf16.msra.mxu0 %v1313
      %1329 = vmatprep.subr.bf16.mxu0 0
      %1330 = vmatpush1.bf16.msra.mxu0 %v1315
      %1331 = vmatprep.subr.bf16.mxu0 0
      %1332 = vmatpush1.bf16.msra.mxu0 0
      %1333 = vmatprep.subr.bf16.mxu0 0
      %1334 = vmatpush1.bf16.msra.mxu0 0
      %1335 = vmatprep.subr.bf16.mxu0 0
      %1336 = vmatpush1.bf16.msra.mxu0 0
      %1337 = vmatprep.subr.bf16.mxu0 0
      %1338 = vmatpush1.bf16.msra.mxu0 0
      %1339 = vmatprep.subr.bf16.mxu0 0
      %1340 = vmatpush1.bf16.msra.mxu0 0
      %1341 = vmatprep.subr.bf16.mxu0 0
      %1342 = vmatpush1.bf16.msra.mxu0 0
      %1343 = vmatprep.subr.bf16.mxu0 0
      %1344 = vmatpush1.bf16.msra.mxu0 0
      %1345 = vmatprep.subr.bf16.mxu0 0
      %1346 = vmatpush1.bf16.msra.mxu0 0
      %1347 = vmatprep.subr.bf16.mxu0 0
      %1348 = vmatpush1.bf16.msra.mxu0 0
      %1349 = vmatprep.subr.bf16.mxu0 0
      %1350 = vmatpush1.bf16.msra.mxu0 0
      %1351 = vmatprep.subr.bf16.mxu0 0
      %1352 = vmatpush1.bf16.msra.mxu0 0
      %1353 = vmatprep.subr.bf16.mxu0 0
      %1354 = vmatpush1.bf16.msra.mxu0 0
      %1355 = vmatprep.subr.bf16.mxu0 0
      %1356 = vmatpush1.bf16.msra.mxu0 0
      %1357 = vmatprep.subr.bf16.mxu0 0
      %1358 = vmatpush1.bf16.msra.mxu0 0
      %1359 = vmatprep.mubr.bf16.mxu0 0
      %1360 = vmatmul.mubr.bf16.gmra.mrb[0].mxu0 %v1319
      %v1361 = vpop.f32.mrb[0].mxu0
      %v1362 = vadd.f32 0.0, %v1361
      %v1363 = vpop.f32.mrb[0].mxu0
      %v1364 = vpop.f32.mrb[0].mxu0
      %v1365 = vadd.f32 0.0, %v1364
      %v1366 = vpop.f32.mrb[0].mxu0
      %1367 = vmatprep.mubr.bf16.mxu0 0
      %1368 = vmatmul.mubr.bf16.gmra.mrb[0].mxu0 %v1322
      %v1369 = vpop.f32.mrb[0].mxu0
      %v1370 = vadd.f32 0.0, %v1369
      %v1371 = vpop.f32.mrb[0].mxu0
      %v1372 = vpop.f32.mrb[0].mxu0
      %v1373 = vadd.f32 0.0, %v1372
      %v1374 = vpop.f32.mrb[0].mxu0
      %1375 = vmatprep.mubr.bf16.mxu0 0
      %1376 = vmatmul.mubr.bf16.gmra.mrb[0].mxu0 %v1325
      %v1377 = vpop.f32.mrb[0].mxu0
      %v1378 = vadd.f32 0.0, %v1377
      %v1379 = vpop.f32.mrb[0].mxu0
      %v1380 = vpop.f32.mrb[0].mxu0
      %v1381 = vpop.f32.mrb[0].mxu0
      %1382 = vdwg.mxu0
      %v1383 = vmul.f32 %v1362, %v1304
      %v1384 = vmul.f32 %v1365, %v1305
      %v1385 = vmul.f32 %v1370, %v1306
      %v1386 = vmul.f32 %v1373, %v1307
      %v1387 = vmul.f32 %v1378, %v1308
      %1388 = vrot.lane.b32.xlu0 %v773, 104
      %v1389 = vpop.permute.xlu0 %1388
      %1390 = vrot.lane.b32.xlu0 %v774, 104
      %v1391 = vpop.permute.xlu0 %1390
      %1392 = vrot.lane.b32.xlu0 %v775, 104
      %v1393 = vpop.permute.xlu0 %1392
      %v1395 = vrot.slane %v766, 4
      %v1397 = vsel %vm776, %v1389, 0
      %v1400 = vsel %vm776, %v1391, 0
      %v1403 = vsel %vm776, %v1393, 0
      %v1406 = vsel %vm786, %v1395, 0
      %1408 = vmatprep.subr.bf16.mxu0 0
      %1409 = vmatpush1.bf16.msra.mxu0 %v1406
      %1410 = vmatprep.subr.bf16.mxu0 0
      %1411 = vmatpush1.bf16.msra.mxu0 0
      %1412 = vmatprep.subr.bf16.mxu0 0
      %1413 = vmatpush1.bf16.msra.mxu0 0
      %1414 = vmatprep.subr.bf16.mxu0 0
      %1415 = vmatpush1.bf16.msra.mxu0 0
      %1416 = vmatprep.subr.bf16.mxu0 0
      %1417 = vmatpush1.bf16.msra.mxu0 0
      %1418 = vmatprep.subr.bf16.mxu0 0
      %1419 = vmatpush1.bf16.msra.mxu0 0
      %1420 = vmatprep.subr.bf16.mxu0 0
      %1421 = vmatpush1.bf16.msra.mxu0 0
      %1422 = vmatprep.subr.bf16.mxu0 0
      %1423 = vmatpush1.bf16.msra.mxu0 0
      %1424 = vmatprep.subr.bf16.mxu0 0
      %1425 = vmatpush1.bf16.msra.mxu0 0
      %1426 = vmatprep.subr.bf16.mxu0 0
      %1427 = vmatpush1.bf16.msra.mxu0 0
      %1428 = vmatprep.subr.bf16.mxu0 0
      %1429 = vmatpush1.bf16.msra.mxu0 0
      %1430 = vmatprep.subr.bf16.mxu0 0
      %1431 = vmatpush1.bf16.msra.mxu0 0
      %1432 = vmatprep.subr.bf16.mxu0 0
      %1433 = vmatpush1.bf16.msra.mxu0 0
      %1434 = vmatprep.subr.bf16.mxu0 0
      %1435 = vmatpush1.bf16.msra.mxu0 0
      %1436 = vmatprep.subr.bf16.mxu0 0
      %1437 = vmatpush1.bf16.msra.mxu0 0
      %1438 = vmatprep.subr.bf16.mxu0 0
      %1439 = vmatpush1.bf16.msra.mxu0 0
      %1440 = vmatprep.mubr.bf16.mxu0 0
      %1441 = vmatmul.mubr.bf16.gmra.mrb[0].mxu0 %v1397
      %v1442 = vpop.f32.mrb[0].mxu0
      %v1443 = vadd.f32 %v772, %v1442
      %v1444 = vpop.f32.mrb[0].mxu0
      %v1445 = vpop.f32.mrb[0].mxu0
      %v1446 = vadd.f32 %v772, %v1445
      %v1447 = vpop.f32.mrb[0].mxu0
      %1448 = vmatprep.mubr.bf16.mxu0 0
      %1449 = vmatmul.mubr.bf16.gmra.mrb[0].mxu0 %v1400
      %v1450 = vpop.f32.mrb[0].mxu0
      %v1451 = vadd.f32 %v772, %v1450
      %v1452 = vpop.f32.mrb[0].mxu0
      %v1453 = vpop.f32.mrb[0].mxu0
      %v1454 = vadd.f32 %v772, %v1453
      %v1455 = vpop.f32.mrb[0].mxu0
      %1456 = vmatprep.mubr.bf16.mxu0 0
      %1457 = vmatmul.mubr.bf16.gmra.mrb[0].mxu0 %v1403
      %v1458 = vpop.f32.mrb[0].mxu0
      %v1459 = vadd.f32 %v772, %v1458
      %v1460 = vpop.f32.mrb[0].mxu0
      %v1461 = vpop.f32.mrb[0].mxu0
      %v1462 = vpop.f32.mrb[0].mxu0
      %1463 = vdwg.mxu0
      %v1464 = vsel %vm582, %v1443, -inf
      %1465 = vmax.xlane.f32.xlu0 %v1464
      %v1466 = vpop.xlane.xlu0 %1465
      %v1467 = vsel %vm582, %v1446, -inf
      %1468 = vmax.xlane.f32.xlu0 %v1467
      %v1469 = vpop.xlane.xlu0 %1468
      %v1470 = vsel %vm582, %v1451, -inf
      %1471 = vmax.xlane.f32.xlu0 %v1470
      %v1472 = vpop.xlane.xlu0 %1471
      %v1473 = vsel %vm582, %v1454, -inf
      %1474 = vmax.xlane.f32.xlu0 %v1473
      %v1475 = vpop.xlane.xlu0 %1474
      %v1476 = vsel %vm582, %v1459, -inf
      %1477 = vmax.xlane.f32.xlu0 %v1476
      %v1478 = vpop.xlane.xlu0 %1477
      %v1479 = vsub.f32 %v1443, %v1466
      %v1480 = vsub.f32 %v1446, %v1469
      %v1481 = vsub.f32 %v1451, %v1472
      %v1482 = vsub.f32 %v1454, %v1475
      %v1483 = vsub.f32 %v1459, %v1478
      %v1484 = vmul.f32 %v1479, 1.442695
      %v1485 = vpow.pop %v1484
      %v1486 = vmul.f32 %v1480, 1.442695
      %v1487 = vpow.pop %v1486
      %v1488 = vmul.f32 %v1481, 1.442695
      %v1489 = vpow.pop %v1488
      %v1490 = vmul.f32 %v1482, 1.442695
      %v1491 = vpow.pop %v1490
      %v1492 = vmul.f32 %v1483, 1.442695
      %v1493 = vpow.pop %v1492
      %v1494 = vsel %vm582, %v1485, 0.0
      %1495 = vadd.xlane.f32.xlu0 %v1494
      %v1496 = vpop.xlane.xlu0 %1495
      %v1497 = vsel %vm582, %v1487, 0.0
      %1498 = vadd.xlane.f32.xlu0 %v1497
      %v1499 = vpop.xlane.xlu0 %1498
      %v1500 = vsel %vm582, %v1489, 0.0
      %1501 = vadd.xlane.f32.xlu0 %v1500
      %v1502 = vpop.xlane.xlu0 %1501
      %v1503 = vsel %vm582, %v1491, 0.0
      %1504 = vadd.xlane.f32.xlu0 %v1503
      %v1505 = vpop.xlane.xlu0 %1504
      %v1506 = vsel %vm582, %v1493, 0.0
      %1507 = vadd.xlane.f32.xlu0 %v1506
      %v1508 = vpop.xlane.xlu0 %1507
      %v1509 = vrcp.pop %v1496
      %v1510 = vrcp.pop %v1499
      %v1511 = vrcp.pop %v1502
      %v1512 = vrcp.pop %v1505
      %v1513 = vrcp.pop %v1508
      %v1514 = vpack.c.bf16 %v1487, %v1485
      %v1515 = vpack.c.bf16 %v1491, %v1489
      %v1516 = vpack.c.bf16 %v1493, %v1493
      %1517 = vrot.lane.b32.xlu0 %v767, 72
      %v1518 = vpop.permute.xlu0 %1517
      %1519 = vrot.lane.b32.xlu0 %v768, 72
      %v1520 = vpop.permute.xlu0 %1519
      %v1524 = vsel %vm582, %v1514, 0
      %v1527 = vsel %vm582, %v1515, 0
      %v1530 = vsel %vm582, %v1516, 0
      %1532 = vmatprep.subr.bf16.mxu0 0
      %1533 = vmatpush1.bf16.msra.mxu0 %v1518
      %1534 = vmatprep.subr.bf16.mxu0 0
      %1535 = vmatpush1.bf16.msra.mxu0 %v1520
      %1536 = vmatprep.subr.bf16.mxu0 0
      %1537 = vmatpush1.bf16.msra.mxu0 0
      %1538 = vmatprep.subr.bf16.mxu0 0
      %1539 = vmatpush1.bf16.msra.mxu0 0
      %1540 = vmatprep.subr.bf16.mxu0 0
      %1541 = vmatpush1.bf16.msra.mxu0 0
      %1542 = vmatprep.subr.bf16.mxu0 0
      %1543 = vmatpush1.bf16.msra.mxu0 0
      %1544 = vmatprep.subr.bf16.mxu0 0
      %1545 = vmatpush1.bf16.msra.mxu0 0
      %1546 = vmatprep.subr.bf16.mxu0 0
      %1547 = vmatpush1.bf16.msra.mxu0 0
      %1548 = vmatprep.subr.bf16.mxu0 0
      %1549 = vmatpush1.bf16.msra.mxu0 0
      %1550 = vmatprep.subr.bf16.mxu0 0
      %1551 = vmatpush1.bf16.msra.mxu0 0
      %1552 = vmatprep.subr.bf16.mxu0 0
      %1553 = vmatpush1.bf16.msra.mxu0 0
      %1554 = vmatprep.subr.bf16.mxu0 0
      %1555 = vmatpush1.bf16.msra.mxu0 0
      %1556 = vmatprep.subr.bf16.mxu0 0
      %1557 = vmatpush1.bf16.msra.mxu0 0
      %1558 = vmatprep.subr.bf16.mxu0 0
      %1559 = vmatpush1.bf16.msra.mxu0 0
      %1560 = vmatprep.subr.bf16.mxu0 0
      %1561 = vmatpush1.bf16.msra.mxu0 0
      %1562 = vmatprep.subr.bf16.mxu0 0
      %1563 = vmatpush1.bf16.msra.mxu0 0
      %1564 = vmatprep.mubr.bf16.mxu0 0
      %1565 = vmatmul.mubr.bf16.gmra.mrb[0].mxu0 %v1524
      %v1566 = vpop.f32.mrb[0].mxu0
      %v1567 = vadd.f32 0.0, %v1566
      %v1568 = vpop.f32.mrb[0].mxu0
      %v1569 = vpop.f32.mrb[0].mxu0
      %v1570 = vadd.f32 0.0, %v1569
      %v1571 = vpop.f32.mrb[0].mxu0
      %1572 = vmatprep.mubr.bf16.mxu0 0
      %1573 = vmatmul.mubr.bf16.gmra.mrb[0].mxu0 %v1527
      %v1574 = vpop.f32.mrb[0].mxu0
      %v1575 = vadd.f32 0.0, %v1574
      %v1576 = vpop.f32.mrb[0].mxu0
      %v1577 = vpop.f32.mrb[0].mxu0
      %v1578 = vadd.f32 0.0, %v1577
      %v1579 = vpop.f32.mrb[0].mxu0
      %1580 = vmatprep.mubr.bf16.mxu0 0
      %1581 = vmatmul.mubr.bf16.gmra.mrb[0].mxu0 %v1530
      %v1582 = vpop.f32.mrb[0].mxu0
      %v1583 = vadd.f32 0.0, %v1582
      %v1584 = vpop.f32.mrb[0].mxu0
      %v1585 = vpop.f32.mrb[0].mxu0
      %v1586 = vpop.f32.mrb[0].mxu0
      %1587 = vdwg.mxu0
      %v1588 = vmul.f32 %v1567, %v1509
      %v1589 = vmul.f32 %v1570, %v1510
      %v1590 = vmul.f32 %v1575, %v1511
      %v1591 = vmul.f32 %v1578, %v1512
      %v1592 = vmul.f32 %v1583, %v1513
      %1598 = vrot.lane.b32.xlu0 %v1180, 8
      %v1599 = vpop.permute.xlu0 %1598
      %1600 = vrot.lane.b32.xlu0 %v1181, 8
      %v1601 = vpop.permute.xlu0 %1600
      %1602 = vrot.lane.b32.xlu0 %v1182, 8
      %v1603 = vpop.permute.xlu0 %1602
      %1604 = vrot.lane.b32.xlu0 %v1183, 8
      %v1605 = vpop.permute.xlu0 %1604
      %1606 = vrot.lane.b32.xlu0 %v1184, 8
      %v1607 = vpop.permute.xlu0 %1606
      %1618 = vrot.lane.b32.xlu0 %v1383, 16
      %v1619 = vpop.permute.xlu0 %1618
      %1620 = vrot.lane.b32.xlu0 %v1384, 16
      %v1621 = vpop.permute.xlu0 %1620
      %1622 = vrot.lane.b32.xlu0 %v1385, 16
      %v1623 = vpop.permute.xlu0 %1622
      %1624 = vrot.lane.b32.xlu0 %v1386, 16
      %v1625 = vpop.permute.xlu0 %1624
      %1626 = vrot.lane.b32.xlu0 %v1387, 16
      %v1627 = vpop.permute.xlu0 %1626
      %1638 = vrot.lane.b32.xlu0 %v1588, 24
      %v1639 = vpop.permute.xlu0 %1638
      %1640 = vrot.lane.b32.xlu0 %v1589, 24
      %v1641 = vpop.permute.xlu0 %1640
      %1642 = vrot.lane.b32.xlu0 %v1590, 24
      %v1643 = vpop.permute.xlu0 %1642
      %1644 = vrot.lane.b32.xlu0 %v1591, 24
      %v1645 = vpop.permute.xlu0 %1644
      %1646 = vrot.lane.b32.xlu0 %v1592, 24
      %v1647 = vpop.permute.xlu0 %1646
      %v1653 = vsel %vm776, %v972, %v1599
      %v1654 = vsel %vm776, %v973, %v1601
      %v1655 = vsel %vm776, %v974, %v1603
      %v1656 = vsel %vm776, %v975, %v1605
      %v1657 = vsel %vm776, %v976, %v1607
      %vm1658 = vcmask 130048
      %v1659 = vsel %vm1658, %v1653, %v1619
      %v1660 = vsel %vm1658, %v1654, %v1621
      %v1661 = vsel %vm1658, %v1655, %v1623
      %v1662 = vsel %vm1658, %v1656, %v1625
      %v1663 = vsel %vm1658, %v1657, %v1627
      %vm1664 = vcmask 195584
      %v1665 = vsel %vm1664, %v1659, %v1639
      %v1666 = vsel %vm1664, %v1660, %v1641
      %v1667 = vsel %vm1664, %v1661, %v1643
      %v1668 = vsel %vm1664, %v1662, %v1645
      %v1669 = vsel %vm1664, %v1663, %v1647
      %v1670 = vpack.c.bf16 %v1666, %v1665
      %v1671 = vpack.c.bf16 %v1668, %v1667
      %v1672 = vpack.c.bf16 %v1669, %v1669
      %v1673 = vld [vmem:[%s527] sm:$0xf]
      %v1674 = vld [vmem:[%s527 + $0x4] sm:$0xf]
      %v1675 = vld [vmem:[%s527 + $0x8] sm:$0xf]
      %v1676 = vld [vmem:[%s527 + $0xc] sm:$0xf]
      %v1677 = vld [vmem:[%s530] sm:$0x1]
      %v1679 = vlaneseq
      %v1680 = vshrl.u32 %v1679, 7
      %v1681 = vsub.s32 0, %v1680
      %v1682 = vrot.slane %v1677, %v1681
      %v1688 = vunpack.c.l.b16 %v1673
      %v1689 = vunpack.c.l.b16 %v1674
      %v1690 = vunpack.c.l.b16 %v1675
      %v1691 = vunpack.c.l.b16 %v1676
      %v1692 = vpack.c.b16 %v1689, %v1688
      %v1693 = vpack.c.b16 %v1691, %v1690
      %v1697 = vsel %vm582, %v1670, 0
      %v1700 = vsel %vm582, %v1671, 0
      %v1703 = vsel %vm582, %v1672, 0
      %1705 = vmatprep.subr.bf16.mxu0 0
      %1706 = vmatpush1.bf16.msra.mxu0 %v1692
      %1707 = vmatprep.subr.bf16.mxu0 0
      %1708 = vmatpush1.bf16.msra.mxu0 %v1693
      %1709 = vmatprep.subr.bf16.mxu0 0
      %1710 = vmatpush1.bf16.msra.mxu0 0
      %1711 = vmatprep.subr.bf16.mxu0 0
      %1712 = vmatpush1.bf16.msra.mxu0 0
      %1713 = vmatprep.subr.bf16.mxu0 0
      %1714 = vmatpush1.bf16.msra.mxu0 0
      %1715 = vmatprep.subr.bf16.mxu0 0
      %1716 = vmatpush1.bf16.msra.mxu0 0
      %1717 = vmatprep.subr.bf16.mxu0 0
      %1718 = vmatpush1.bf16.msra.mxu0 0
      %1719 = vmatprep.subr.bf16.mxu0 0
      %1720 = vmatpush1.bf16.msra.mxu0 0
      %1721 = vmatprep.subr.bf16.mxu0 0
      %1722 = vmatpush1.bf16.msra.mxu0 0
      %1723 = vmatprep.subr.bf16.mxu0 0
      %1724 = vmatpush1.bf16.msra.mxu0 0
      %1725 = vmatprep.subr.bf16.mxu0 0
      %1726 = vmatpush1.bf16.msra.mxu0 0
      %1727 = vmatprep.subr.bf16.mxu0 0
      %1728 = vmatpush1.bf16.msra.mxu0 0
      %1729 = vmatprep.subr.bf16.mxu0 0
      %1730 = vmatpush1.bf16.msra.mxu0 0
      %1731 = vmatprep.subr.bf16.mxu0 0
      %1732 = vmatpush1.bf16.msra.mxu0 0
      %1733 = vmatprep.subr.bf16.mxu0 0
      %1734 = vmatpush1.bf16.msra.mxu0 0
      %1735 = vmatprep.subr.bf16.mxu0 0
      %1736 = vmatpush1.bf16.msra.mxu0 0
      %1737 = vmatprep.mubr.bf16.mxu0 0
      %1738 = vmatmul.mubr.bf16.gmra.mrb[0].mxu0 %v1697
      %v1739 = vpop.f32.mrb[0].mxu0
      %v1740 = vadd.f32 %v1682, %v1739
      %v1741 = vpop.f32.mrb[0].mxu0
      %v1742 = vpop.f32.mrb[0].mxu0
      %v1743 = vadd.f32 %v1682, %v1742
      %v1744 = vpop.f32.mrb[0].mxu0
      %1745 = vmatprep.mubr.bf16.mxu0 0
      %1746 = vmatmul.mubr.bf16.gmra.mrb[0].mxu0 %v1700
      %v1747 = vpop.f32.mrb[0].mxu0
      %v1748 = vadd.f32 %v1682, %v1747
      %v1749 = vpop.f32.mrb[0].mxu0
      %v1750 = vpop.f32.mrb[0].mxu0
      %v1751 = vadd.f32 %v1682, %v1750
      %v1752 = vpop.f32.mrb[0].mxu0
      %1753 = vmatprep.mubr.bf16.mxu0 0
      %1754 = vmatmul.mubr.bf16.gmra.mrb[0].mxu0 %v1703
      %v1755 = vpop.f32.mrb[0].mxu0
      %v1756 = vadd.f32 %v1682, %v1755
      %v1757 = vpop.f32.mrb[0].mxu0
      %v1758 = vpop.f32.mrb[0].mxu0
      %v1759 = vpop.f32.mrb[0].mxu0
      %1760 = vdwg.mxu0
      %v1761 = vadd.f32 %v547, %v1740
      %v1762 = vadd.f32 %v548, %v1743
      %v1763 = vadd.f32 %v549, %v1748
      %v1764 = vadd.f32 %v550, %v1751
      %v1765 = vadd.f32 %v551, %v1756
      %v1766 = vld [vmem:[%s533] sm:$0x1]
      %v1767 = vld [vmem:[%s536] sm:$0x1]
      %v1768 = vsel %vm582, %v1761, 0.0
      %1769 = vadd.xlane.f32.xlu0 %v1768
      %v1770 = vpop.xlane.xlu0 %1769
      %v1771 = vsel %vm582, %v1762, 0.0
      %1772 = vadd.xlane.f32.xlu0 %v1771
      %v1773 = vpop.xlane.xlu0 %1772
      %v1774 = vsel %vm582, %v1763, 0.0
      %1775 = vadd.xlane.f32.xlu0 %v1774
      %v1776 = vpop.xlane.xlu0 %1775
      %v1777 = vsel %vm582, %v1764, 0.0
      %1778 = vadd.xlane.f32.xlu0 %v1777
      %v1779 = vpop.xlane.xlu0 %1778
      %v1780 = vsel %vm582, %v1765, 0.0
      %1781 = vadd.xlane.f32.xlu0 %v1780
      %v1782 = vpop.xlane.xlu0 %1781
      %v1783 = vrcp.pop 32.0
      %v1784 = vmul.f32 %v1770, %v1783
      %v1785 = vmul.f32 %v1773, %v1783
      %v1786 = vmul.f32 %v1776, %v1783
      %v1787 = vmul.f32 %v1779, %v1783
      %v1788 = vmul.f32 %v1782, %v1783
      %v1789 = vsub.f32 %v1761, %v1784
      %v1790 = vsub.f32 %v1762, %v1785
      %v1791 = vsub.f32 %v1763, %v1786
      %v1792 = vsub.f32 %v1764, %v1787
      %v1793 = vsub.f32 %v1765, %v1788
      %v1794 = vmul.f32 %v1789, %v1789
      %v1795 = vmul.f32 %v1790, %v1790
      %v1796 = vmul.f32 %v1791, %v1791
      %v1797 = vmul.f32 %v1792, %v1792
      %v1798 = vmul.f32 %v1793, %v1793
      %v1799 = vsel %vm582, %v1794, 0.0
      %1800 = vadd.xlane.f32.xlu0 %v1799
      %v1801 = vpop.xlane.xlu0 %1800
      %v1802 = vsel %vm582, %v1795, 0.0
      %1803 = vadd.xlane.f32.xlu0 %v1802
      %v1804 = vpop.xlane.xlu0 %1803
      %v1805 = vsel %vm582, %v1796, 0.0
      %1806 = vadd.xlane.f32.xlu0 %v1805
      %v1807 = vpop.xlane.xlu0 %1806
      %v1808 = vsel %vm582, %v1797, 0.0
      %1809 = vadd.xlane.f32.xlu0 %v1808
      %v1810 = vpop.xlane.xlu0 %1809
      %v1811 = vsel %vm582, %v1798, 0.0
      %1812 = vadd.xlane.f32.xlu0 %v1811
      %v1813 = vpop.xlane.xlu0 %1812
      %v1814 = vmul.f32 %v1801, %v1783
      %v1815 = vmul.f32 %v1804, %v1783
      %v1816 = vmul.f32 %v1807, %v1783
      %v1817 = vmul.f32 %v1810, %v1783
      %v1818 = vmul.f32 %v1813, %v1783
      %v1819 = vadd.f32 %v1814, 1e-05
      %v1820 = vadd.f32 %v1815, 1e-05
      %v1821 = vadd.f32 %v1816, 1e-05
      %v1822 = vadd.f32 %v1817, 1e-05
      %v1823 = vadd.f32 %v1818, 1e-05
      %v1824 = vrsqrt.pop %v1819
      %v1825 = vrsqrt.pop %v1820
      %v1826 = vrsqrt.pop %v1821
      %v1827 = vrsqrt.pop %v1822
      %v1828 = vrsqrt.pop %v1823
      %v1829 = vmul.f32 %v1789, %v1824
      %v1830 = vmul.f32 %v1790, %v1825
      %v1831 = vmul.f32 %v1791, %v1826
      %v1832 = vmul.f32 %v1792, %v1827
      %v1833 = vmul.f32 %v1793, %v1828
      %v1835 = vlaneseq
      %v1836 = vshrl.u32 %v1835, 7
      %v1837 = vsub.s32 0, %v1836
      %v1838 = vrot.slane %v1766, %v1837
      %v1840 = vmul.f32 %v1829, %v1838
      %v1841 = vmul.f32 %v1830, %v1838
      %v1842 = vmul.f32 %v1831, %v1838
      %v1843 = vmul.f32 %v1832, %v1838
      %v1844 = vmul.f32 %v1833, %v1838
      %v1846 = vlaneseq
      %v1847 = vshrl.u32 %v1846, 7
      %v1848 = vsub.s32 0, %v1847
      %v1849 = vrot.slane %v1767, %v1848
      %v1851 = vadd.f32 %v1840, %v1849
      %v1852 = vadd.f32 %v1841, %v1849
      %v1853 = vadd.f32 %v1842, %v1849
      %v1854 = vadd.f32 %v1843, %v1849
      %v1855 = vadd.f32 %v1844, %v1849
      %1856 = vst.msk [vmem:[%s545] sm:$0xff] %vm582, %v1851
      %1857 = vst.msk [vmem:[%s545 + $0x8] sm:$0xff] %vm582, %v1852
      %1858 = vst.msk [vmem:[%s545 + $0x10] sm:$0xff] %vm582, %v1853
      %1859 = vst.msk [vmem:[%s545 + $0x18] sm:$0xff] %vm582, %v1854
      %1860 = vst.msk [vmem:[%s545 + $0x20] sm:$0xff] %vm582, %v1855
      %p1861 = scmp.lt.s32.totalorder %s25, 0
      %s1862 = scalar_select %p1861, %s25, 0
      %p1863 = scmp.lt.s32.totalorder %s26, 1
      %s1864 = scalar_select %p1863, %s26, 1
      %s1865 = smul.addr %s1864, 5
      %s1866 = smul.addr %s1862, 10
      %s1867 = sadd.s32 %s1865, %s1866
      %s1868 = smul.addr %s1867, 8
      %s1869 = scalar_lea.vmem %s10, %s1868
      // Predicated region
      $region61: #{transformer_forward.5} parent=59 // pred_check
        %p1870 = pneg %p315
      $region62: #{transformer_forward.5} parent=59 // pred_check_branch
        %1872 = sbr.rel (%p1870) target = $region64
      $region63: #{transformer_forward.5} parent=59 // pred_region
        _
      $region64: #{transformer_forward.5} parent=59 // pred_fallthru
        _
    $region60: #{transformer_forward.5} parent=5 // pred_fallthru
      _
    %p1873 = scmp.le.s32.totalorder 2, %s16
    // Predicated region
    $region65: #{transformer_forward.5} parent=5 // pred_check
      %p1874 = pneg %p1873
    $region66: #{transformer_forward.5} parent=5 // pred_check_branch
      %1876 = sbr.rel (%p1874) target = $region68
    $region67: #{transformer_forward.5} parent=5 // pred_region
      %s1877 = ssub.s32 %s16, 2
      // Predicated region
      $region69: #{transformer_forward.5} parent=67 // pred_check
        %p1878 = pneg %p321
      $region70: #{transformer_forward.5} parent=67 // pred_check_branch
        %1880 = sbr.rel (%p1878) target = $region72
      $region71: #{transformer_forward.5} parent=67 // pred_region
        %p1881 = scmp.lt.s32.totalorder %s27, 0
        %s1882 = scalar_select %p1881, %s27, 0
        %p1883 = scmp.lt.s32.totalorder %s28, 1
        %s1884 = scalar_select %p1883, %s28, 1
        %s1885 = smul.addr %s1884, 5
        %s1886 = smul.addr %s1882, 10
        %s1887 = sadd.s32 %s1885, %s1886
        %s1888 = smul.addr %s1887, 8
        %s1889 = scalar_lea.vmem %s10, %s1888
      $region72: #{transformer_forward.5} parent=67 // pred_fallthru
        _
    $region68: #{transformer_forward.5} parent=5 // pred_fallthru
      _
  $region6: #{transformer_forward.5} parent=0 // loop_footer
    %s20 = sadd.s32 1, %s16
  $region7: #{transformer_forward.5} parent=0 // loop_footer_branch
    %15 = sbr.rel target = $region3
  $region8: #{transformer_forward.5} parent=0 // loop_exit
    _

// kernel: transformer_forward.8
$region0: #{transformer_forward.8}
  #allocation0 [shape = 'u32[]', space=smem, size = 0x4, offset = 0x4, fixed_abs, tag = 'smem constant byte address 0x4 - core index']
  #allocation1 [shape = 'u32[144,128]{1,0:T(1,128)}', space=vmem, size = 0x12000, scoped, tag = 'internal scratch']
  %s0 = inlined_call_operand.vmem [shape: f32[2,2,32,32], index: 0, kind: input, shape index: {}]
  %s1 = inlined_call_operand.vmem [shape: f32[2,32,32], index: 1, kind: input, shape index: {}]
  %s2 = inlined_call_operand.vmem [shape: bf16[2,32,32], index: 2, kind: input, shape index: {}]
  %s3 = inlined_call_operand.vmem [shape: f32[2,1,32], index: 3, kind: input, shape index: {}]
  %s4 = inlined_call_operand.vmem [shape: bf16[2,32,64], index: 4, kind: input, shape index: {}]
  %s5 = inlined_call_operand.vmem [shape: f32[2,1,64], index: 5, kind: input, shape index: {}]
  %s6 = inlined_call_operand.vmem [shape: bf16[2,32,32], index: 6, kind: input, shape index: {}]
  %s7 = inlined_call_operand.vmem [shape: f32[2,1,32], index: 7, kind: input, shape index: {}]
  %s8 = inlined_call_operand.vmem [shape: f32[2,1,32], index: 8, kind: input, shape index: {}]
  %s9 = inlined_call_operand.vmem [shape: f32[2,1,32], index: 9, kind: input, shape index: {}]
  %s10 = inlined_call_operand.vmem [shape: f32[2,2,32,32], index: 10, kind: output, shape index: {}]
  %s11 = sld [smem:[#allocation0]]
  $region73: #{transformer_forward.8} parent=0
    _
  %s13 = ssub.s32 1, %s11
  %s14 = scalar_select 0, %s13, %s11
  loop: start=0, step=1, limit=6
  $region2: #{transformer_forward.8} parent=0 // loop_pre_header
    _
  $region3: #{transformer_forward.8} parent=0 // loop_header
    %s16 = sphi 0, %s20
    %p17 = scmp.ge.s32.totalorder %s16, 6
    %s23 = sphi 0, %s35
    %s24 = sphi 0, %s31
    %s25 = sphi 0, %s23
    %s26 = sphi 0, %s24
    %s27 = sphi 0, %s25
    %s28 = sphi 0, %s26
    %s40 = sphi 0, %s42
    %s43 = sphi 0, %s40
    %s44 = sphi 0, %s43
    %s60 = sphi 0, %s44
    %s66 = sphi 0, %s68
    %s69 = sphi 0, %s66
    %s70 = sphi 0, %s69
    %s86 = sphi 0, %s70
    %s92 = sphi 0, %s94
    %s95 = sphi 0, %s92
    %s96 = sphi 0, %s95
    %s112 = sphi 0, %s96
    %s118 = sphi 0, %s120
    %s121 = sphi 0, %s118
    %s122 = sphi 0, %s121
    %s138 = sphi 0, %s122
    %s144 = sphi 0, %s146
    %s147 = sphi 0, %s144
    %s148 = sphi 0, %s147
    %s164 = sphi 0, %s148
    %s170 = sphi 0, %s172
    %s173 = sphi 0, %s170
    %s174 = sphi 0, %s173
    %s190 = sphi 0, %s174
    %s196 = sphi 0, %s198
    %s199 = sphi 0, %s196
    %s200 = sphi 0, %s199
    %s216 = sphi 0, %s200
    %s222 = sphi 0, %s224
    %s225 = sphi 0, %s222
    %s226 = sphi 0, %s225
    %s242 = sphi 0, %s226
    %s248 = sphi 0, %s250
    %s251 = sphi 0, %s248
    %s252 = sphi 0, %s251
    %s268 = sphi 0, %s252
    %s274 = sphi 0, %s276
    %s277 = sphi 0, %s274
    %s278 = sphi 0, %s277
    %s294 = sphi 0, %s278
    %s302 = sphi 0, %s304
    %s305 = sphi 0, %s302
    %s306 = sphi 0, %s305
    %s322 = sphi 0, %s306
  $region4: #{transformer_forward.8} parent=0 // loop_header_branch
    %19 = sbr.rel (%p17) target = $region8
  $region5: #{transformer_forward.8} parent=0 // loop_body
    %s21 = ssub.s32 %s16, 1
    %s22 = ssub.s32 %s16, 2
    %s29 = sadd.s32 1, %s24
    %p30 = scmp.ge.s32.totalorder %s29, 2
    %s31 = scalar_select %p30, 0, %s29
    %s32 = sadd.s32 1, %s23
    %s33 = scalar_select %p30, %s32, %s23
    %p34 = scmp.ge.s32.totalorder %s33, 2
    %s35 = scalar_select %p34, 0, %s33
    %s36 = ssub.s32 %s23, %s35
    %s37 = ssub.s32 %s24, %s31
    %s38 = sor.u32 %s36, %s37
    %p39 = scmp.eq.s32.totalorder %s38, 0
    %s41 = sadd.s32 %s40, 1
    %s42 = scalar_select %p39, %s40, %s41
    %p45 = pneg %p39
    %p46 = scmp.eq.s32.totalorder %s16, 3
    %p47 = por %p45, %p46
    %p48 = scmp.ne.s32.totalorder %s40, %s43
    %p49 = scmp.eq.s32.totalorder %s16, 0
    %p50 = por %p48, %p49
    %p51 = scmp.ne.s32.totalorder %s40, %s43
    %p52 = scmp.eq.s32.totalorder %s21, 3
    %p53 = por %p51, %p52
    %p54 = scmp.ne.s32.totalorder %s43, %s44
    %p55 = scmp.eq.s32.totalorder %s21, 0
    %p56 = por %p54, %p55
    %p57 = scmp.ne.s32.totalorder %s43, %s44
    %p58 = scmp.eq.s32.totalorder %s22, 3
    %p59 = por %p57, %p58
    %p61 = scmp.ne.s32.totalorder %s44, %s60
    %p62 = scmp.eq.s32.totalorder %s22, 0
    %p63 = por %p61, %p62
    %s64 = ssub.s32 %s24, %s31
    %p65 = scmp.eq.s32.totalorder %s64, 0
    %s67 = sadd.s32 %s66, 1
    %s68 = scalar_select %p65, %s66, %s67
    %p71 = pneg %p65
    %p72 = scmp.eq.s32.totalorder %s16, 3
    %p73 = por %p71, %p72
    %p74 = scmp.ne.s32.totalorder %s66, %s69
    %p75 = scmp.eq.s32.totalorder %s16, 0
    %p76 = por %p74, %p75
    %p77 = scmp.ne.s32.totalorder %s66, %s69
    %p78 = scmp.eq.s32.totalorder %s21, 3
    %p79 = por %p77, %p78
    %p80 = scmp.ne.s32.totalorder %s69, %s70
    %p81 = scmp.eq.s32.totalorder %s21, 0
    %p82 = por %p80, %p81
    %p83 = scmp.ne.s32.totalorder %s69, %s70
    %p84 = scmp.eq.s32.totalorder %s22, 3
    %p85 = por %p83, %p84
    %p87 = scmp.ne.s32.totalorder %s70, %s86
    %p88 = scmp.eq.s32.totalorder %s22, 0
    %p89 = por %p87, %p88
    %s90 = ssub.s32 %s23, %s35
    %p91 = scmp.eq.s32.totalorder %s90, 0
    %s93 = sadd.s32 %s92, 1
    %s94 = scalar_select %p91, %s92, %s93
    %p97 = pneg %p91
    %p98 = scmp.eq.s32.totalorder %s16, 3
    %p99 = por %p97, %p98
    %p100 = scmp.ne.s32.totalorder %s92, %s95
    %p101 = scmp.eq.s32.totalorder %s16, 0
    %p102 = por %p100, %p101
    %p103 = scmp.ne.s32.totalorder %s92, %s95
    %p104 = scmp.eq.s32.totalorder %s21, 3
    %p105 = por %p103, %p104
    %p106 = scmp.ne.s32.totalorder %s95, %s96
    %p107 = scmp.eq.s32.totalorder %s21, 0
    %p108 = por %p106, %p107
    %p109 = scmp.ne.s32.totalorder %s95, %s96
    %p110 = scmp.eq.s32.totalorder %s22, 3
    %p111 = por %p109, %p110
    %p113 = scmp.ne.s32.totalorder %s96, %s112
    %p114 = scmp.eq.s32.totalorder %s22, 0
    %p115 = por %p113, %p114
    %s116 = ssub.s32 %s23, %s35
    %p117 = scmp.eq.s32.totalorder %s116, 0
    %s119 = sadd.s32 %s118, 1
    %s120 = scalar_select %p117, %s118, %s119
    %p123 = pneg %p117
    %p124 = scmp.eq.s32.totalorder %s16, 3
    %p125 = por %p123, %p124
    %p126 = scmp.ne.s32.totalorder %s118, %s121
    %p127 = scmp.eq.s32.totalorder %s16, 0
    %p128 = por %p126, %p127
    %p129 = scmp.ne.s32.totalorder %s118, %s121
    %p130 = scmp.eq.s32.totalorder %s21, 3
    %p131 = por %p129, %p130
    %p132 = scmp.ne.s32.totalorder %s121, %s122
    %p133 = scmp.eq.s32.totalorder %s21, 0
    %p134 = por %p132, %p133
    %p135 = scmp.ne.s32.totalorder %s121, %s122
    %p136 = scmp.eq.s32.totalorder %s22, 3
    %p137 = por %p135, %p136
    %p139 = scmp.ne.s32.totalorder %s122, %s138
    %p140 = scmp.eq.s32.totalorder %s22, 0
    %p141 = por %p139, %p140
    %s142 = ssub.s32 %s23, %s35
    %p143 = scmp.eq.s32.totalorder %s142, 0
    %s145 = sadd.s32 %s144, 1
    %s146 = scalar_select %p143, %s144, %s145
    %p149 = pneg %p143
    %p150 = scmp.eq.s32.totalorder %s16, 3
    %p151 = por %p149, %p150
    %p152 = scmp.ne.s32.totalorder %s144, %s147
    %p153 = scmp.eq.s32.totalorder %s16, 0
    %p154 = por %p152, %p153
    %p155 = scmp.ne.s32.totalorder %s144, %s147
    %p156 = scmp.eq.s32.totalorder %s21, 3
    %p157 = por %p155, %p156
    %p158 = scmp.ne.s32.totalorder %s147, %s148
    %p159 = scmp.eq.s32.totalorder %s21, 0
    %p160 = por %p158, %p159
    %p161 = scmp.ne.s32.totalorder %s147, %s148
    %p162 = scmp.eq.s32.totalorder %s22, 3
    %p163 = por %p161, %p162
    %p165 = scmp.ne.s32.totalorder %s148, %s164
    %p166 = scmp.eq.s32.totalorder %s22, 0
    %p167 = por %p165, %p166
    %s168 = ssub.s32 %s23, %s35
    %p169 = scmp.eq.s32.totalorder %s168, 0
    %s171 = sadd.s32 %s170, 1
    %s172 = scalar_select %p169, %s170, %s171
    %p175 = pneg %p169
    %p176 = scmp.eq.s32.totalorder %s16, 3
    %p177 = por %p175, %p176
    %p178 = scmp.ne.s32.totalorder %s170, %s173
    %p179 = scmp.eq.s32.totalorder %s16, 0
    %p180 = por %p178, %p179
    %p181 = scmp.ne.s32.totalorder %s170, %s173
    %p182 = scmp.eq.s32.totalorder %s21, 3
    %p183 = por %p181, %p182
    %p184 = scmp.ne.s32.totalorder %s173, %s174
    %p185 = scmp.eq.s32.totalorder %s21, 0
    %p186 = por %p184, %p185
    %p187 = scmp.ne.s32.totalorder %s173, %s174
    %p188 = scmp.eq.s32.totalorder %s22, 3
    %p189 = por %p187, %p188
    %p191 = scmp.ne.s32.totalorder %s174, %s190
    %p192 = scmp.eq.s32.totalorder %s22, 0
    %p193 = por %p191, %p192
    %s194 = ssub.s32 %s23, %s35
    %p195 = scmp.eq.s32.totalorder %s194, 0
    %s197 = sadd.s32 %s196, 1
    %s198 = scalar_select %p195, %s196, %s197
    %p201 = pneg %p195
    %p202 = scmp.eq.s32.totalorder %s16, 3
    %p203 = por %p201, %p202
    %p204 = scmp.ne.s32.totalorder %s196, %s199
    %p205 = scmp.eq.s32.totalorder %s16, 0
    %p206 = por %p204, %p205
    %p207 = scmp.ne.s32.totalorder %s196, %s199
    %p208 = scmp.eq.s32.totalorder %s21, 3
    %p209 = por %p207, %p208
    %p210 = scmp.ne.s32.totalorder %s199, %s200
    %p211 = scmp.eq.s32.totalorder %s21, 0
    %p212 = por %p210, %p211
    %p213 = scmp.ne.s32.totalorder %s199, %s200
    %p214 = scmp.eq.s32.totalorder %s22, 3
    %p215 = por %p213, %p214
    %p217 = scmp.ne.s32.totalorder %s200, %s216
    %p218 = scmp.eq.s32.totalorder %s22, 0
    %p219 = por %p217, %p218
    %s220 = ssub.s32 %s23, %s35
    %p221 = scmp.eq.s32.totalorder %s220, 0
    %s223 = sadd.s32 %s222, 1
    %s224 = scalar_select %p221, %s222, %s223
    %p227 = pneg %p221
    %p228 = scmp.eq.s32.totalorder %s16, 3
    %p229 = por %p227, %p228
    %p230 = scmp.ne.s32.totalorder %s222, %s225
    %p231 = scmp.eq.s32.totalorder %s16, 0
    %p232 = por %p230, %p231
    %p233 = scmp.ne.s32.totalorder %s222, %s225
    %p234 = scmp.eq.s32.totalorder %s21, 3
    %p235 = por %p233, %p234
    %p236 = scmp.ne.s32.totalorder %s225, %s226
    %p237 = scmp.eq.s32.totalorder %s21, 0
    %p238 = por %p236, %p237
    %p239 = scmp.ne.s32.totalorder %s225, %s226
    %p240 = scmp.eq.s32.totalorder %s22, 3
    %p241 = por %p239, %p240
    %p243 = scmp.ne.s32.totalorder %s226, %s242
    %p244 = scmp.eq.s32.totalorder %s22, 0
    %p245 = por %p243, %p244
    %s246 = ssub.s32 %s23, %s35
    %p247 = scmp.eq.s32.totalorder %s246, 0
    %s249 = sadd.s32 %s248, 1
    %s250 = scalar_select %p247, %s248, %s249
    %p253 = pneg %p247
    %p254 = scmp.eq.s32.totalorder %s16, 3
    %p255 = por %p253, %p254
    %p256 = scmp.ne.s32.totalorder %s248, %s251
    %p257 = scmp.eq.s32.totalorder %s16, 0
    %p258 = por %p256, %p257
    %p259 = scmp.ne.s32.totalorder %s248, %s251
    %p260 = scmp.eq.s32.totalorder %s21, 3
    %p261 = por %p259, %p260
    %p262 = scmp.ne.s32.totalorder %s251, %s252
    %p263 = scmp.eq.s32.totalorder %s21, 0
    %p264 = por %p262, %p263
    %p265 = scmp.ne.s32.totalorder %s251, %s252
    %p266 = scmp.eq.s32.totalorder %s22, 3
    %p267 = por %p265, %p266
    %p269 = scmp.ne.s32.totalorder %s252, %s268
    %p270 = scmp.eq.s32.totalorder %s22, 0
    %p271 = por %p269, %p270
    %s272 = ssub.s32 %s23, %s35
    %p273 = scmp.eq.s32.totalorder %s272, 0
    %s275 = sadd.s32 %s274, 1
    %s276 = scalar_select %p273, %s274, %s275
    %p279 = pneg %p273
    %p280 = scmp.eq.s32.totalorder %s16, 3
    %p281 = por %p279, %p280
    %p282 = scmp.ne.s32.totalorder %s274, %s277
    %p283 = scmp.eq.s32.totalorder %s16, 0
    %p284 = por %p282, %p283
    %p285 = scmp.ne.s32.totalorder %s274, %s277
    %p286 = scmp.eq.s32.totalorder %s21, 3
    %p287 = por %p285, %p286
    %p288 = scmp.ne.s32.totalorder %s277, %s278
    %p289 = scmp.eq.s32.totalorder %s21, 0
    %p290 = por %p288, %p289
    %p291 = scmp.ne.s32.totalorder %s277, %s278
    %p292 = scmp.eq.s32.totalorder %s22, 3
    %p293 = por %p291, %p292
    %p295 = scmp.ne.s32.totalorder %s278, %s294
    %p296 = scmp.eq.s32.totalorder %s22, 0
    %p297 = por %p295, %p296
    %s298 = ssub.s32 %s23, %s35
    %s299 = ssub.s32 %s24, %s31
    %s300 = sor.u32 %s298, %s299
    %p301 = scmp.eq.s32.totalorder %s300, 0
    %s303 = sadd.s32 %s302, 1
    %s304 = scalar_select %p301, %s302, %s303
    %p307 = pneg %p301
    %p308 = scmp.eq.s32.totalorder %s16, 3
    %p309 = por %p307, %p308
    %p310 = scmp.ne.s32.totalorder %s302, %s305
    %p311 = scmp.eq.s32.totalorder %s16, 0
    %p312 = por %p310, %p311
    %p313 = scmp.ne.s32.totalorder %s302, %s305
    %p314 = scmp.eq.s32.totalorder %s21, 3
    %p315 = por %p313, %p314
    %p316 = scmp.ne.s32.totalorder %s305, %s306
    %p317 = scmp.eq.s32.totalorder %s21, 0
    %p318 = por %p316, %p317
    %p319 = scmp.ne.s32.totalorder %s305, %s306
    %p320 = scmp.eq.s32.totalorder %s22, 3
    %p321 = por %p319, %p320
    %p323 = scmp.ne.s32.totalorder %s306, %s322
    %p324 = scmp.eq.s32.totalorder %s22, 0
    %p325 = por %p323, %p324
    %p326 = scmp.le.s32.totalorder 1, %s16
    %p327 = scmp.lt.s32.totalorder %s16, 5
    %p328 = pnand %p326, %p327
    %p329 = pneg %p328
    // Predicated region
    $region9: #{transformer_forward.8} parent=5 // pred_check
      _
    $region10: #{transformer_forward.8} parent=5 // pred_check_branch
      %331 = sbr.rel (%p328) target = $region12
    $region11: #{transformer_forward.8} parent=5 // pred_region
      %s332 = ssub.s32 %s16, 1
    $region12: #{transformer_forward.8} parent=5 // pred_fallthru
      _
    %p333 = scmp.lt.s32.totalorder %s16, 4
    // Predicated region
    $region13: #{transformer_forward.8} parent=5 // pred_check
      %p334 = pneg %p333
    $region14: #{transformer_forward.8} parent=5 // pred_check_branch
      %336 = sbr.rel (%p334) target = $region16
    $region15: #{transformer_forward.8} parent=5 // pred_region
      // Predicated region
      $region17: #{transformer_forward.8} parent=15 // pred_check
        %p337 = pneg %p50
      $region18: #{transformer_forward.8} parent=15 // pred_check_branch
        %339 = sbr.rel (%p337) target = $region20
      $region19: #{transformer_forward.8} parent=15 // pred_region
        %p340 = scmp.lt.s32.totalorder %s23, 1
        %s341 = scalar_select %p340, %s23, 1
        %p342 = scmp.lt.s32.totalorder %s24, 1
        %s343 = scalar_select %p342, %s24, 1
        %s344 = smul.addr %s343, 4
        %s345 = smul.addr %s341, 8
        %s346 = sadd.s32 %s344, %s345
        %s347 = smul.addr %s346, 8
        %s348 = scalar_lea.vmem %s0, %s347
      $region20: #{transformer_forward.8} parent=15 // pred_fallthru
        _
      // Predicated region
      $region21: #{transformer_forward.8} parent=15 // pred_check
        %p349 = pneg %p76
      $region22: #{transformer_forward.8} parent=15 // pred_check_branch
        %351 = sbr.rel (%p349) target = $region24
      $region23: #{transformer_forward.8} parent=15 // pred_region
        %p352 = scmp.lt.s32.totalorder %s24, 1
        %s353 = scalar_select %p352, %s24, 1
        %s354 = smul.addr %s353, 4
        %s355 = smul.addr %s354, 8
        %s356 = scalar_lea.vmem %s1, %s355
      $region24: #{transformer_forward.8} parent=15 // pred_fallthru
        _
      // Predicated region
      $region25: #{transformer_forward.8} parent=15 // pred_check
        %p357 = pneg %p102
      $region26: #{transformer_forward.8} parent=15 // pred_check_branch
        %359 = sbr.rel (%p357) target = $region28
      $region27: #{transformer_forward.8} parent=15 // pred_region
        %p360 = scmp.lt.s32.totalorder %s23, 1
        %s361 = scalar_select %p360, %s23, 1
        %s362 = smul.addr %s361, 4
        %s363 = smul.addr %s362, 4
        %s364 = scalar_lea.vmem %s2, %s363
      $region28: #{transformer_forward.8} parent=15 // pred_fallthru
        _
      // Predicated region
      $region29: #{transformer_forward.8} parent=15 // pred_check
        %p365 = pneg %p128
      $region30: #{transformer_forward.8} parent=15 // pred_check_branch
        %367 = sbr.rel (%p365) target = $region32
      $region31: #{transformer_forward.8} parent=15 // pred_region
        %p368 = scmp.lt.s32.totalorder %s23, 1
        %s369 = scalar_select %p368, %s23, 1
        %s370 = scalar_lea.vmem %s3, %s369
      $region32: #{transformer_forward.8} parent=15 // pred_fallthru
        _
      // Predicated region
      $region33: #{transformer_forward.8} parent=15 // pred_check
        %p371 = pneg %p154
      $region34: #{transformer_forward.8} parent=15 // pred_check_branch
        %373 = sbr.rel (%p371) target = $region36
      $region35: #{transformer_forward.8} parent=15 // pred_region
        %p374 = scmp.lt.s32.totalorder %s23, 1
        %s375 = scalar_select %p374, %s23, 1
        %s376 = smul.addr %s375, 4
        %s377 = smul.addr %s376, 4
        %s378 = scalar_lea.vmem %s4, %s377
      $region36: #{transformer_forward.8} parent=15 // pred_fallthru
        _
      // Predicated region
      $region37: #{transformer_forward.8} parent=15 // pred_check
        %p379 = pneg %p180
      $region38: #{transformer_forward.8} parent=15 // pred_check_branch
        %381 = sbr.rel (%p379) target = $region40
      $region39: #{transformer_forward.8} parent=15 // pred_region
        %p382 = scmp.lt.s32.totalorder %s23, 1
        %s383 = scalar_select %p382, %s23, 1
        %s384 = scalar_lea.vmem %s5, %s383
      $region40: #{transformer_forward.8} parent=15 // pred_fallthru
        _
      // Predicated region
      $region41: #{transformer_forward.8} parent=15 // pred_check
        %p385 = pneg %p206
      $region42: #{transformer_forward.8} parent=15 // pred_check_branch
        %387 = sbr.rel (%p385) target = $region44
      $region43: #{transformer_forward.8} parent=15 // pred_region
        %p388 = scmp.lt.s32.totalorder %s23, 1
        %s389 = scalar_select %p388, %s23, 1
        %s390 = smul.addr %s389, 4
        %s391 = smul.addr %s390, 4
        %s392 = scalar_lea.vmem %s6, %s391
      $region44: #{transformer_forward.8} parent=15 // pred_fallthru
        _
      // Predicated region
      $region45: #{transformer_forward.8} parent=15 // pred_check
        %p393 = pneg %p232
      $region46: #{transformer_forward.8} parent=15 // pred_check_branch
        %395 = sbr.rel (%p393) target = $region48
      $region47: #{transformer_forward.8} parent=15 // pred_region
        %p396 = scmp.lt.s32.totalorder %s23, 1
        %s397 = scalar_select %p396, %s23, 1
        %s398 = scalar_lea.vmem %s7, %s397
      $region48: #{transformer_forward.8} parent=15 // pred_fallthru
        _
      // Predicated region
      $region49: #{transformer_forward.8} parent=15 // pred_check
        %p399 = pneg %p258
      $region50: #{transformer_forward.8} parent=15 // pred_check_branch
        %401 = sbr.rel (%p399) target = $region52
      $region51: #{transformer_forward.8} parent=15 // pred_region
        %p402 = scmp.lt.s32.totalorder %s23, 1
        %s403 = scalar_select %p402, %s23, 1
        %s404 = scalar_lea.vmem %s8, %s403
      $region52: #{transformer_forward.8} parent=15 // pred_fallthru
        _
      // Predicated region
      $region53: #{transformer_forward.8} parent=15 // pred_check
        %p405 = pneg %p284
      $region54: #{transformer_forward.8} parent=15 // pred_check_branch
        %407 = sbr.rel (%p405) target = $region56
      $region55: #{transformer_forward.8} parent=15 // pred_region
        %p408 = scmp.lt.s32.totalorder %s23, 1
        %s409 = scalar_select %p408, %s23, 1
        %s410 = scalar_lea.vmem %s9, %s409
      $region56: #{transformer_forward.8} parent=15 // pred_fallthru
        _
    $region16: #{transformer_forward.8} parent=5 // pred_fallthru
      _
    %p411 = scmp.le.s32.totalorder 1, %s16
    %p412 = scmp.lt.s32.totalorder %s16, 5
    %p413 = pnand %p411, %p412
    %p414 = pneg %p413
    // Predicated region
    $region57: #{transformer_forward.8} parent=5 // pred_check
      _
    $region58: #{transformer_forward.8} parent=5 // pred_check_branch
      %416 = sbr.rel (%p413) target = $region60
    $region59: #{transformer_forward.8} parent=5 // pred_region
      %s417 = ssub.s32 %s16, 1
      %p418 = scmp.lt.s32.totalorder %s25, 1
      %s419 = scalar_select %p418, %s25, 1
      %p420 = scmp.lt.s32.totalorder %s26, 1
      %s421 = scalar_select %p420, %s26, 1
      %s422 = smul.addr %s421, 4
      %s423 = smul.addr %s419, 8
      %s424 = sadd.s32 %s422, %s423
      %s425 = smul.addr %s424, 8
      %s426 = scalar_lea.vmem %s0, %s425
      %p427 = pneg %p56
      %p428 = pneg %p53
      %p429 = scmp.lt.s32.totalorder %s26, 1
      %s430 = scalar_select %p429, %s26, 1
      %s431 = smul.addr %s430, 4
      %s432 = smul.addr %s431, 8
      %s433 = scalar_lea.vmem %s1, %s432
      %p434 = pneg %p82
      %p435 = pneg %p79
      %p436 = scmp.lt.s32.totalorder %s25, 1
      %s437 = scalar_select %p436, %s25, 1
      %s438 = smul.addr %s437, 4
      %s439 = smul.addr %s438, 4
      %s440 = scalar_lea.vmem %s2, %s439
      %p441 = pneg %p108
      %p442 = pneg %p105
      %p443 = scmp.lt.s32.totalorder %s25, 1
      %s444 = scalar_select %p443, %s25, 1
      %s445 = scalar_lea.vmem %s3, %s444
      %p446 = pneg %p134
      %p447 = pneg %p131
      %p448 = scmp.lt.s32.totalorder %s25, 1
      %s449 = scalar_select %p448, %s25, 1
      %s450 = smul.addr %s449, 4
      %s451 = smul.addr %s450, 4
      %s452 = scalar_lea.vmem %s4, %s451
      %p453 = pneg %p160
      %p454 = pneg %p157
      %p455 = scmp.lt.s32.totalorder %s25, 1
      %s456 = scalar_select %p455, %s25, 1
      %s457 = scalar_lea.vmem %s5, %s456
      %p458 = pneg %p186
      %p459 = pneg %p183
      %p460 = scmp.lt.s32.totalorder %s25, 1
      %s461 = scalar_select %p460, %s25, 1
      %s462 = smul.addr %s461, 4
      %s463 = smul.addr %s462, 4
      %s464 = scalar_lea.vmem %s6, %s463
      %p465 = pneg %p212
      %p466 = pneg %p209
      %p467 = scmp.lt.s32.totalorder %s25, 1
      %s468 = scalar_select %p467, %s25, 1
      %s469 = scalar_lea.vmem %s7, %s468
      %p470 = pneg %p238
      %p471 = pneg %p235
      %p472 = scmp.lt.s32.totalorder %s25, 1
      %s473 = scalar_select %p472, %s25, 1
      %s474 = scalar_lea.vmem %s8, %s473
      %p475 = pneg %p264
      %p476 = pneg %p261
      %p477 = scmp.lt.s32.totalorder %s25, 1
      %s478 = scalar_select %p477, %s25, 1
      %s479 = scalar_lea.vmem %s9, %s478
      %p480 = pneg %p290
      %p481 = pneg %p287
      %p482 = pneg %p318
      %p483 = pneg %p315
      %p484 = scmp.lt.s32.totalorder %s25, 1
      %s485 = scalar_select %p484, %s25, 1
      %p486 = scmp.lt.s32.totalorder %s26, 1
      %s487 = scalar_select %p486, %s26, 1
      %s488 = smul.addr %s487, 4
      %s489 = smul.addr %s485, 8
      %s490 = sadd.s32 %s488, %s489
      %s491 = smul.addr %s490, 8
      %s492 = scalar_lea.vmem %s10, %s491
      %p493 = scmp.lt.s32.totalorder %s25, 1
      %s494 = scalar_select %p493, %s25, 1
      %p495 = scmp.lt.s32.totalorder %s26, 1
      %s496 = scalar_select %p495, %s26, 1
      %s497 = smul.addr %s496, 4
      %s498 = smul.addr %s494, 8
      %s499 = sadd.s32 %s497, %s498
      %s500 = smul.addr %s499, 8
      %s501 = scalar_lea.vmem %s0, %s500
      %p502 = scmp.lt.s32.totalorder %s26, 1
      %s503 = scalar_select %p502, %s26, 1
      %s504 = smul.addr %s503, 4
      %s505 = smul.addr %s504, 8
      %s506 = scalar_lea.vmem %s1, %s505
      %p507 = scmp.lt.s32.totalorder %s25, 1
      %s508 = scalar_select %p507, %s25, 1
      %s509 = smul.addr %s508, 4
      %s510 = smul.addr %s509, 4
      %s511 = scalar_lea.vmem %s2, %s510
      %p512 = scmp.lt.s32.totalorder %s25, 1
      %s513 = scalar_select %p512, %s25, 1
      %s514 = scalar_lea.vmem %s3, %s513
      %p515 = scmp.lt.s32.totalorder %s25, 1
      %s516 = scalar_select %p515, %s25, 1
      %s517 = smul.addr %s516, 4
      %s518 = smul.addr %s517, 4
      %s519 = scalar_lea.vmem %s4, %s518
      %p520 = scmp.lt.s32.totalorder %s25, 1
      %s521 = scalar_select %p520, %s25, 1
      %s522 = scalar_lea.vmem %s5, %s521
      %p523 = scmp.lt.s32.totalorder %s25, 1
      %s524 = scalar_select %p523, %s25, 1
      %s525 = smul.addr %s524, 4
      %s526 = smul.addr %s525, 4
      %s527 = scalar_lea.vmem %s6, %s526
      %p528 = scmp.lt.s32.totalorder %s25, 1
      %s529 = scalar_select %p528, %s25, 1
      %s530 = scalar_lea.vmem %s7, %s529
      %p531 = scmp.lt.s32.totalorder %s25, 1
      %s532 = scalar_select %p531, %s25, 1
      %s533 = scalar_lea.vmem %s8, %s532
      %p534 = scmp.lt.s32.totalorder %s25, 1
      %s535 = scalar_select %p534, %s25, 1
      %s536 = scalar_lea.vmem %s9, %s535
      %p537 = scmp.lt.s32.totalorder %s25, 1
      %s538 = scalar_select %p537, %s25, 1
      %p539 = scmp.lt.s32.totalorder %s26, 1
      %s540 = scalar_select %p539, %s26, 1
      %s541 = smul.addr %s540, 4
      %s542 = smul.addr %s538, 8
      %s543 = sadd.s32 %s541, %s542
      %s544 = smul.addr %s543, 8
      %s545 = scalar_lea.vmem %s10, %s544
      %v547 = vld [vmem:[%s501] sm:$0xff]
      %v548 = vld [vmem:[%s501 + $0x8] sm:$0xff]
      %v549 = vld [vmem:[%s501 + $0x10] sm:$0xff]
      %v550 = vld [vmem:[%s501 + $0x18] sm:$0xff]
      %v551 = vld [vmem:[%s506] sm:$0xff]
      %v552 = vld [vmem:[%s506 + $0x8] sm:$0xff]
      %v553 = vld [vmem:[%s506 + $0x10] sm:$0xff]
      %v554 = vld [vmem:[%s506 + $0x18] sm:$0xff]
      %v555 = vpack.c.bf16 %v548, %v547
      %v556 = vpack.c.bf16 %v550, %v549
      %v557 = vld [vmem:[%s511] sm:$0xf]
      %v558 = vld [vmem:[%s511 + $0x4] sm:$0xf]
      %v559 = vld [vmem:[%s511 + $0x8] sm:$0xf]
      %v560 = vld [vmem:[%s511 + $0xc] sm:$0xf]
      %v561 = vld [vmem:[%s514] sm:$0x1]
      %v563 = vlaneseq
      %v564 = vshrl.u32 %v563, 7
      %v565 = vsub.s32 0, %v564
      %v566 = vrot.slane %v561, %v565
      %v572 = vunpack.c.l.b16 %v557
      %v573 = vunpack.c.l.b16 %v558
      %v574 = vunpack.c.l.b16 %v559
      %v575 = vunpack.c.l.b16 %v560
      %v576 = vpack.c.b16 %v573, %v572
      %v577 = vpack.c.b16 %v575, %v574
      %vm580 = vcmask 261120
      %v582 = vsel %vm580, %v555, 0
      %v585 = vsel %vm580, %v556, 0
      %587 = vmatprep.subr.bf16.mxu0 0
      %588 = vmatpush1.bf16.msra.mxu0 %v576
      %589 = vmatprep.subr.bf16.mxu0 0
      %590 = vmatpush1.bf16.msra.mxu0 %v577
      %591 = vmatprep.subr.bf16.mxu0 0
      %592 = vmatpush1.bf16.msra.mxu0 0
      %593 = vmatprep.subr.bf16.mxu0 0
      %594 = vmatpush1.bf16.msra.mxu0 0
      %595 = vmatprep.subr.bf16.mxu0 0
      %596 = vmatpush1.bf16.msra.mxu0 0
      %597 = vmatprep.subr.bf16.mxu0 0
      %598 = vmatpush1.bf16.msra.mxu0 0
      %599 = vmatprep.subr.bf16.mxu0 0
      %600 = vmatpush1.bf16.msra.mxu0 0
      %601 = vmatprep.subr.bf16.mxu0 0
      %602 = vmatpush1.bf16.msra.mxu0 0
      %603 = vmatprep.subr.bf16.mxu0 0
      %604 = vmatpush1.bf16.msra.mxu0 0
      %605 = vmatprep.subr.bf16.mxu0 0
      %606 = vmatpush1.bf16.msra.mxu0 0
      %607 = vmatprep.subr.bf16.mxu0 0
      %608 = vmatpush1.bf16.msra.mxu0 0
      %609 = vmatprep.subr.bf16.mxu0 0
      %610 = vmatpush1.bf16.msra.mxu0 0
      %611 = vmatprep.subr.bf16.mxu0 0
      %612 = vmatpush1.bf16.msra.mxu0 0
      %613 = vmatprep.subr.bf16.mxu0 0
      %614 = vmatpush1.bf16.msra.mxu0 0
      %615 = vmatprep.subr.bf16.mxu0 0
      %616 = vmatpush1.bf16.msra.mxu0 0
      %617 = vmatprep.subr.bf16.mxu0 0
      %618 = vmatpush1.bf16.msra.mxu0 0
      %619 = vmatprep.mubr.bf16.mxu0 0
      %620 = vmatmul.mubr.bf16.gmra.mrb[0].mxu0 %v582
      %v621 = vpop.f32.mrb[0].mxu0
      %v622 = vadd.f32 %v566, %v621
      %v623 = vpop.f32.mrb[0].mxu0
      %v624 = vpop.f32.mrb[0].mxu0
      %v625 = vadd.f32 %v566, %v624
      %v626 = vpop.f32.mrb[0].mxu0
      %627 = vmatprep.mubr.bf16.mxu0 0
      %628 = vmatmul.mubr.bf16.gmra.mrb[0].mxu0 %v585
      %v629 = vpop.f32.mrb[0].mxu0
      %v630 = vadd.f32 %v566, %v629
      %v631 = vpop.f32.mrb[0].mxu0
      %v632 = vpop.f32.mrb[0].mxu0
      %v633 = vadd.f32 %v566, %v632
      %v634 = vpop.f32.mrb[0].mxu0
      %635 = vdwg.mxu0
      %v636 = vmul.f32 %v622, 0.35355338
      %v637 = vmul.f32 %v625, 0.35355338
      %v638 = vmul.f32 %v630, 0.35355338
      %v639 = vmul.f32 %v633, 0.35355338
      %v640 = vpack.c.bf16 %v552, %v551
      %v641 = vpack.c.bf16 %v554, %v553
      %v642 = vld [vmem:[%s519] sm:$0xf]
      %v643 = vld [vmem:[%s519 + $0x4] sm:$0xf]
      %v644 = vld [vmem:[%s519 + $0x8] sm:$0xf]
      %v645 = vld [vmem:[%s519 + $0xc] sm:$0xf]
      %v646 = vld [vmem:[%s522] sm:$0x1]
      %v648 = vlaneseq
      %v649 = vshrl.u32 %v648, 7
      %v650 = vsub.s32 0, %v649
      %v651 = vrot.slane %v646, %v650
      %v657 = vunpack.c.l.b16 %v642
      %v658 = vunpack.c.l.b16 %v643
      %v659 = vunpack.c.l.b16 %v644
      %v660 = vunpack.c.l.b16 %v645
      %v661 = vpack.c.b16 %v658, %v657
      %v662 = vpack.c.b16 %v660, %v659
      %v666 = vsel %vm580, %v640, 0
      %v669 = vsel %vm580, %v641, 0
      %671 = vmatprep.subr.bf16.mxu0 0
      %672 = vmatpush1.bf16.msra.mxu0 %v661
      %673 = vmatprep.subr.bf16.mxu0 0
      %674 = vmatpush1.bf16.msra.mxu0 %v662
      %675 = vmatprep.subr.bf16.mxu0 0
      %676 = vmatpush1.bf16.msra.mxu0 0
      %677 = vmatprep.subr.bf16.mxu0 0
      %678 = vmatpush1.bf16.msra.mxu0 0
      %679 = vmatprep.subr.bf16.mxu0 0
      %680 = vmatpush1.bf16.msra.mxu0 0
      %681 = vmatprep.subr.bf16.mxu0 0
      %682 = vmatpush1.bf16.msra.mxu0 0
      %683 = vmatprep.subr.bf16.mxu0 0
      %684 = vmatpush1.bf16.msra.mxu0 0
      %685 = vmatprep.subr.bf16.mxu0 0
      %686 = vmatpush1.bf16.msra.mxu0 0
      %687 = vmatprep.subr.bf16.mxu0 0
      %688 = vmatpush1.bf16.msra.mxu0 0
      %689 = vmatprep.subr.bf16.mxu0 0
      %690 = vmatpush1.bf16.msra.mxu0 0
      %691 = vmatprep.subr.bf16.mxu0 0
      %692 = vmatpush1.bf16.msra.mxu0 0
      %693 = vmatprep.subr.bf16.mxu0 0
      %694 = vmatpush1.bf16.msra.mxu0 0
      %695 = vmatprep.subr.bf16.mxu0 0
      %696 = vmatpush1.bf16.msra.mxu0 0
      %697 = vmatprep.subr.bf16.mxu0 0
      %698 = vmatpush1.bf16.msra.mxu0 0
      %699 = vmatprep.subr.bf16.mxu0 0
      %700 = vmatpush1.bf16.msra.mxu0 0
      %701 = vmatprep.subr.bf16.mxu0 0
      %702 = vmatpush1.bf16.msra.mxu0 0
      %703 = vmatprep.mubr.bf16.mxu0 0
      %704 = vmatmul.mubr.bf16.gmra.mrb[0].mxu0 %v666
      %v705 = vpop.f32.mrb[0].mxu0
      %v706 = vadd.f32 %v651, %v705
      %v707 = vpop.f32.mrb[0].mxu0
      %v708 = vpop.f32.mrb[0].mxu0
      %v709 = vadd.f32 %v651, %v708
      %v710 = vpop.f32.mrb[0].mxu0
      %711 = vmatprep.mubr.bf16.mxu0 0
      %712 = vmatmul.mubr.bf16.gmra.mrb[0].mxu0 %v669
      %v713 = vpop.f32.mrb[0].mxu0
      %v714 = vadd.f32 %v651, %v713
      %v715 = vpop.f32.mrb[0].mxu0
      %v716 = vpop.f32.mrb[0].mxu0
      %v717 = vadd.f32 %v651, %v716
      %v718 = vpop.f32.mrb[0].mxu0
      %719 = vdwg.mxu0
      %720 = vxpose.xlu0.b32.start [1/16] %v706, 128
      %721 = vxpose.xlu0.b32.cont [2/16] %v709, 128
      %722 = vxpose.xlu0.b32.cont [3/16] %v714, 128
      %723 = vxpose.xlu0.b32.cont [4/16] %v717, 128
      %724 = vxpose.xlu0.b32.cont [5/16] 0.0, 128
      %725 = vxpose.xlu0.b32.cont [6/16] 0.0, 128
      %726 = vxpose.xlu0.b32.cont [7/16] 0.0, 128
      %727 = vxpose.xlu0.b32.cont [8/16] 0.0, 128
      %728 = vxpose.xlu0.b32.cont [9/16] 0.0, 128
      %729 = vxpose.xlu0.b32.cont [10/16] 0.0, 128
      %730 = vxpose.xlu0.b32.cont [11/16] 0.0, 128
      %731 = vxpose.xlu0.b32.cont [12/16] 0.0, 128
      %732 = vxpose.xlu0.b32.cont [13/16] 0.0, 128
      %733 = vxpose.xlu0.b32.cont [14/16] 0.0, 128
      %734 = vxpose.xlu0.b32.cont [15/16] 0.0, 128
      %735 = vxpose.xlu0.b32.end [16/16] 0.0, 128
      %v736 = vpop.trf.xlu0
      %v737 = vpop.trf.xlu0
      %v738 = vpop.trf.xlu0
      %v739 = vpop.trf.xlu0
      %v740 = vpop.trf.xlu0
      %v741 = vpop.trf.xlu0
      %v742 = vpop.trf.xlu0
      %v743 = vpop.trf.xlu0
      %v744 = vpop.trf.xlu0
      %v745 = vpop.trf.xlu0
      %v746 = vpop.trf.xlu0
      %v747 = vpop.trf.xlu0
      %v748 = vpop.trf.xlu0
      %v749 = vpop.trf.xlu0
      %v750 = vpop.trf.xlu0
      %v751 = vpop.trf.xlu0
      %v752 = vpack.c.bf16 %v737, %v736
      %v753 = vpack.c.bf16 %v739, %v738
      %v754 = vpack.c.bf16 %v709, %v706
      %v755 = vpack.c.bf16 %v717, %v714
      %v756 = vlaneseq
      %v757 = vand.u32 %v756, 127
      %vm758 = vcmp.lt.s32.totalorder %v757, 25
      %v759 = vsel %vm758, 0.0, -1e+30
      %v760 = vpack.c.bf16 %v637, %v636
      %v761 = vpack.c.bf16 %v639, %v638
      %vm762 = vcmask 64512
      %v764 = vsel %vm762, %v760, 0
      %v767 = vsel %vm762, %v761, 0
      %vm769 = vcmask 1043456
      %v771 = vsel %vm769, %v752, 0
      %773 = vmatprep.subr.bf16.mxu0 0
      %774 = vmatpush1.bf16.msra.mxu0 %v771
      %775 = vmatprep.subr.bf16.mxu0 0
      %776 = vmatpush1.bf16.msra.mxu0 0
      %777 = vmatprep.subr.bf16.mxu0 0
      %778 = vmatpush1.bf16.msra.mxu0 0
      %779 = vmatprep.subr.bf16.mxu0 0
      %780 = vmatpush1.bf16.msra.mxu0 0
      %781 = vmatprep.subr.bf16.mxu0 0
      %782 = vmatpush1.bf16.msra.mxu0 0
      %783 = vmatprep.subr.bf16.mxu0 0
      %784 = vmatpush1.bf16.msra.mxu0 0
      %785 = vmatprep.subr.bf16.mxu0 0
      %786 = vmatpush1.bf16.msra.mxu0 0
      %787 = vmatprep.subr.bf16.mxu0 0
      %788 = vmatpush1.bf16.msra.mxu0 0
      %789 = vmatprep.subr.bf16.mxu0 0
      %790 = vmatpush1.bf16.msra.mxu0 0
      %791 = vmatprep.subr.bf16.mxu0 0
      %792 = vmatpush1.bf16.msra.mxu0 0
      %793 = vmatprep.subr.bf16.mxu0 0
      %794 = vmatpush1.bf16.msra.mxu0 0
      %795 = vmatprep.subr.bf16.mxu0 0
      %796 = vmatpush1.bf16.msra.mxu0 0
      %797 = vmatprep.subr.bf16.mxu0 0
      %798 = vmatpush1.bf16.msra.mxu0 0
      %799 = vmatprep.subr.bf16.mxu0 0
      %800 = vmatpush1.bf16.msra.mxu0 0
      %801 = vmatprep.subr.bf16.mxu0 0
      %802 = vmatpush1.bf16.msra.mxu0 0
      %803 = vmatprep.subr.bf16.mxu0 0
      %804 = vmatpush1.bf16.msra.mxu0 0
      %805 = vmatprep.mubr.bf16.mxu0 0
      %806 = vmatmul.mubr.bf16.gmra.mrb[0].mxu0 %v764
      %v807 = vpop.f32.mrb[0].mxu0
      %v808 = vadd.f32 %v759, %v807
      %v809 = vpop.f32.mrb[0].mxu0
      %v810 = vpop.f32.mrb[0].mxu0
      %v811 = vadd.f32 %v759, %v810
      %v812 = vpop.f32.mrb[0].mxu0
      %813 = vmatprep.mubr.bf16.mxu0 0
      %814 = vmatmul.mubr.bf16.gmra.mrb[0].mxu0 %v767
      %v815 = vpop.f32.mrb[0].mxu0
      %v816 = vadd.f32 %v759, %v815
      %v817 = vpop.f32.mrb[0].mxu0
      %v818 = vpop.f32.mrb[0].mxu0
      %v819 = vadd.f32 %v759, %v818
      %v820 = vpop.f32.mrb[0].mxu0
      %821 = vdwg.mxu0
      %v822 = vsel %vm580, %v808, -inf
      %823 = vmax.xlane.f32.xlu0 %v822
      %v824 = vpop.xlane.xlu0 %823
      %v825 = vsel %vm580, %v811, -inf
      %826 = vmax.xlane.f32.xlu0 %v825
      %v827 = vpop.xlane.xlu0 %826
      %v828 = vsel %vm580, %v816, -inf
      %829 = vmax.xlane.f32.xlu0 %v828
      %v830 = vpop.xlane.xlu0 %829
      %v831 = vsel %vm580, %v819, -inf
      %832 = vmax.xlane.f32.xlu0 %v831
      %v833 = vpop.xlane.xlu0 %832
      %v834 = vsub.f32 %v808, %v824
      %v835 = vsub.f32 %v811, %v827
      %v836 = vsub.f32 %v816, %v830
      %v837 = vsub.f32 %v819, %v833
      %v838 = vmul.f32 %v834, 1.442695
      %v839 = vpow.pop %v838
      %v840 = vmul.f32 %v835, 1.442695
      %v841 = vpow.pop %v840
      %v842 = vmul.f32 %v836, 1.442695
      %v843 = vpow.pop %v842
      %v844 = vmul.f32 %v837, 1.442695
      %v845 = vpow.pop %v844
      %v846 = vsel %vm580, %v839, 0.0
      %847 = vadd.xlane.f32.xlu0 %v846
      %v848 = vpop.xlane.xlu0 %847
      %v849 = vsel %vm580, %v841, 0.0
      %850 = vadd.xlane.f32.xlu0 %v849
      %v851 = vpop.xlane.xlu0 %850
      %v852 = vsel %vm580, %v843, 0.0
      %853 = vadd.xlane.f32.xlu0 %v852
      %v854 = vpop.xlane.xlu0 %853
      %v855 = vsel %vm580, %v845, 0.0
      %856 = vadd.xlane.f32.xlu0 %v855
      %v857 = vpop.xlane.xlu0 %856
      %v858 = vrcp.pop %v848
      %v859 = vrcp.pop %v851
      %v860 = vrcp.pop %v854
      %v861 = vrcp.pop %v857
      %v862 = vpack.c.bf16 %v841, %v839
      %v863 = vpack.c.bf16 %v845, %v843
      %866 = vrot.lane.b32.xlu0 %v754, 96
      %v867 = vpop.permute.xlu0 %866
      %868 = vrot.lane.b32.xlu0 %v755, 96
      %v869 = vpop.permute.xlu0 %868
      %v873 = vsel %vm580, %v862, 0
      %v876 = vsel %vm580, %v863, 0
      %878 = vmatprep.subr.bf16.mxu0 0
      %879 = vmatpush1.bf16.msra.mxu0 %v867
      %880 = vmatprep.subr.bf16.mxu0 0
      %881 = vmatpush1.bf16.msra.mxu0 %v869
      %882 = vmatprep.subr.bf16.mxu0 0
      %883 = vmatpush1.bf16.msra.mxu0 0
      %884 = vmatprep.subr.bf16.mxu0 0
      %885 = vmatpush1.bf16.msra.mxu0 0
      %886 = vmatprep.subr.bf16.mxu0 0
      %887 = vmatpush1.bf16.msra.mxu0 0
      %888 = vmatprep.subr.bf16.mxu0 0
      %889 = vmatpush1.bf16.msra.mxu0 0
      %890 = vmatprep.subr.bf16.mxu0 0
      %891 = vmatpush1.bf16.msra.mxu0 0
      %892 = vmatprep.subr.bf16.mxu0 0
      %893 = vmatpush1.bf16.msra.mxu0 0
      %894 = vmatprep.subr.bf16.mxu0 0
      %895 = vmatpush1.bf16.msra.mxu0 0
      %896 = vmatprep.subr.bf16.mxu0 0
      %897 = vmatpush1.bf16.msra.mxu0 0
      %898 = vmatprep.subr.bf16.mxu0 0
      %899 = vmatpush1.bf16.msra.mxu0 0
      %900 = vmatprep.subr.bf16.mxu0 0
      %901 = vmatpush1.bf16.msra.mxu0 0
      %902 = vmatprep.subr.bf16.mxu0 0
      %903 = vmatpush1.bf16.msra.mxu0 0
      %904 = vmatprep.subr.bf16.mxu0 0
      %905 = vmatpush1.bf16.msra.mxu0 0
      %906 = vmatprep.subr.bf16.mxu0 0
      %907 = vmatpush1.bf16.msra.mxu0 0
      %908 = vmatprep.subr.bf16.mxu0 0
      %909 = vmatpush1.bf16.msra.mxu0 0
      %910 = vmatprep.mubr.bf16.mxu0 0
      %911 = vmatmul.mubr.bf16.gmra.mrb[0].mxu0 %v873
      %v912 = vpop.f32.mrb[0].mxu0
      %v913 = vadd.f32 0.0, %v912
      %v914 = vpop.f32.mrb[0].mxu0
      %v915 = vpop.f32.mrb[0].mxu0
      %v916 = vadd.f32 0.0, %v915
      %v917 = vpop.f32.mrb[0].mxu0
      %918 = vmatprep.mubr.bf16.mxu0 0
      %919 = vmatmul.mubr.bf16.gmra.mrb[0].mxu0 %v876
      %v920 = vpop.f32.mrb[0].mxu0
      %v921 = vadd.f32 0.0, %v920
      %v922 = vpop.f32.mrb[0].mxu0
      %v923 = vpop.f32.mrb[0].mxu0
      %v924 = vadd.f32 0.0, %v923
      %v925 = vpop.f32.mrb[0].mxu0
      %926 = vdwg.mxu0
      %v927 = vmul.f32 %v913, %v858
      %v928 = vmul.f32 %v916, %v859
      %v929 = vmul.f32 %v921, %v860
      %v930 = vmul.f32 %v924, %v861
      %933 = vrot.lane.b32.xlu0 %v760, 120
      %v934 = vpop.permute.xlu0 %933
      %935 = vrot.lane.b32.xlu0 %v761, 120
      %v936 = vpop.permute.xlu0 %935
      %v938 = vrot.slane %v752, 4
      %v940 = vsel %vm762, %v934, 0
      %v943 = vsel %vm762, %v936, 0
      %v946 = vsel %vm769, %v938, 0
      %948 = vmatprep.subr.bf16.mxu0 0
      %949 = vmatpush1.bf16.msra.mxu0 %v946
      %950 = vmatprep.subr.bf16.mxu0 0
      %951 = vmatpush1.bf16.msra.mxu0 0
      %952 = vmatprep.subr.bf16.mxu0 0
      %953 = vmatpush1.bf16.msra.mxu0 0
      %954 = vmatprep.subr.bf16.mxu0 0
      %955 = vmatpush1.bf16.msra.mxu0 0
      %956 = vmatprep.subr.bf16.mxu0 0
      %957 = vmatpush1.bf16.msra.mxu0 0
      %958 = vmatprep.subr.bf16.mxu0 0
      %959 = vmatpush1.bf16.msra.mxu0 0
      %960 = vmatprep.subr.bf16.mxu0 0
      %961 = vmatpush1.bf16.msra.mxu0 0
      %962 = vmatprep.subr.bf16.mxu0 0
      %963 = vmatpush1.bf16.msra.mxu0 0
      %964 = vmatprep.subr.bf16.mxu0 0
      %965 = vmatpush1.bf16.msra.mxu0 0
      %966 = vmatprep.subr.bf16.mxu0 0
      %967 = vmatpush1.bf16.msra.mxu0 0
      %968 = vmatprep.subr.bf16.mxu0 0
      %969 = vmatpush1.bf16.msra.mxu0 0
      %970 = vmatprep.subr.bf16.mxu0 0
      %971 = vmatpush1.bf16.msra.mxu0 0
      %972 = vmatprep.subr.bf16.mxu0 0
      %973 = vmatpush1.bf16.msra.mxu0 0
      %974 = vmatprep.subr.bf16.mxu0 0
      %975 = vmatpush1.bf16.msra.mxu0 0
      %976 = vmatprep.subr.bf16.mxu0 0
      %977 = vmatpush1.bf16.msra.mxu0 0
      %978 = vmatprep.subr.bf16.mxu0 0
      %979 = vmatpush1.bf16.msra.mxu0 0
      %980 = vmatprep.mubr.bf16.mxu0 0
      %981 = vmatmul.mubr.bf16.gmra.mrb[0].mxu0 %v940
      %v982 = vpop.f32.mrb[0].mxu0
      %v983 = vadd.f32 %v759, %v982
      %v984 = vpop.f32.mrb[0].mxu0
      %v985 = vpop.f32.mrb[0].mxu0
      %v986 = vadd.f32 %v759, %v985
      %v987 = vpop.f32.mrb[0].mxu0
      %988 = vmatprep.mubr.bf16.mxu0 0
      %989 = vmatmul.mubr.bf16.gmra.mrb[0].mxu0 %v943
      %v990 = vpop.f32.mrb[0].mxu0
      %v991 = vadd.f32 %v759, %v990
      %v992 = vpop.f32.mrb[0].mxu0
      %v993 = vpop.f32.mrb[0].mxu0
      %v994 = vadd.f32 %v759, %v993
      %v995 = vpop.f32.mrb[0].mxu0
      %996 = vdwg.mxu0
      %v997 = vsel %vm580, %v983, -inf
      %998 = vmax.xlane.f32.xlu0 %v997
      %v999 = vpop.xlane.xlu0 %998
      %v1000 = vsel %vm580, %v986, -inf
      %1001 = vmax.xlane.f32.xlu0 %v1000
      %v1002 = vpop.xlane.xlu0 %1001
      %v1003 = vsel %vm580, %v991, -inf
      %1004 = vmax.xlane.f32.xlu0 %v1003
      %v1005 = vpop.xlane.xlu0 %1004
      %v1006 = vsel %vm580, %v994, -inf
      %1007 = vmax.xlane.f32.xlu0 %v1006
      %v1008 = vpop.xlane.xlu0 %1007
      %v1009 = vsub.f32 %v983, %v999
      %v1010 = vsub.f32 %v986, %v1002
      %v1011 = vsub.f32 %v991, %v1005
      %v1012 = vsub.f32 %v994, %v1008
      %v1013 = vmul.f32 %v1009, 1.442695
      %v1014 = vpow.pop %v1013
      %v1015 = vmul.f32 %v1010, 1.442695
      %v1016 = vpow.pop %v1015
      %v1017 = vmul.f32 %v1011, 1.442695
      %v1018 = vpow.pop %v1017
      %v1019 = vmul.f32 %v1012, 1.442695
      %v1020 = vpow.pop %v1019
      %v1021 = vsel %vm580, %v1014, 0.0
      %1022 = vadd.xlane.f32.xlu0 %v1021
      %v1023 = vpop.xlane.xlu0 %1022
      %v1024 = vsel %vm580, %v1016, 0.0
      %1025 = vadd.xlane.f32.xlu0 %v1024
      %v1026 = vpop.xlane.xlu0 %1025
      %v1027 = vsel %vm580, %v1018, 0.0
      %1028 = vadd.xlane.f32.xlu0 %v1027
      %v1029 = vpop.xlane.xlu0 %1028
      %v1030 = vsel %vm580, %v1020, 0.0
      %1031 = vadd.xlane.f32.xlu0 %v1030
      %v1032 = vpop.xlane.xlu0 %1031
      %v1033 = vrcp.pop %v1023
      %v1034 = vrcp.pop %v1026
      %v1035 = vrcp.pop %v1029
      %v1036 = vrcp.pop %v1032
      %v1037 = vpack.c.bf16 %v1016, %v1014
      %v1038 = vpack.c.bf16 %v1020, %v1018
      %1039 = vrot.lane.b32.xlu0 %v754, 88
      %v1040 = vpop.permute.xlu0 %1039
      %1041 = vrot.lane.b32.xlu0 %v755, 88
      %v1042 = vpop.permute.xlu0 %1041
      %v1046 = vsel %vm580, %v1037, 0
      %v1049 = vsel %vm580, %v1038, 0
      %1051 = vmatprep.subr.bf16.mxu0 0
      %1052 = vmatpush1.bf16.msra.mxu0 %v1040
      %1053 = vmatprep.subr.bf16.mxu0 0
      %1054 = vmatpush1.bf16.msra.mxu0 %v1042
      %1055 = vmatprep.subr.bf16.mxu0 0
      %1056 = vmatpush1.bf16.msra.mxu0 0
      %1057 = vmatprep.subr.bf16.mxu0 0
      %1058 = vmatpush1.bf16.msra.mxu0 0
      %1059 = vmatprep.subr.bf16.mxu0 0
      %1060 = vmatpush1.bf16.msra.mxu0 0
      %1061 = vmatprep.subr.bf16.mxu0 0
      %1062 = vmatpush1.bf16.msra.mxu0 0
      %1063 = vmatprep.subr.bf16.mxu0 0
      %1064 = vmatpush1.bf16.msra.mxu0 0
      %1065 = vmatprep.subr.bf16.mxu0 0
      %1066 = vmatpush1.bf16.msra.mxu0 0
      %1067 = vmatprep.subr.bf16.mxu0 0
      %1068 = vmatpush1.bf16.msra.mxu0 0
      %1069 = vmatprep.subr.bf16.mxu0 0
      %1070 = vmatpush1.bf16.msra.mxu0 0
      %1071 = vmatprep.subr.bf16.mxu0 0
      %1072 = vmatpush1.bf16.msra.mxu0 0
      %1073 = vmatprep.subr.bf16.mxu0 0
      %1074 = vmatpush1.bf16.msra.mxu0 0
      %1075 = vmatprep.subr.bf16.mxu0 0
      %1076 = vmatpush1.bf16.msra.mxu0 0
      %1077 = vmatprep.subr.bf16.mxu0 0
      %1078 = vmatpush1.bf16.msra.mxu0 0
      %1079 = vmatprep.subr.bf16.mxu0 0
      %1080 = vmatpush1.bf16.msra.mxu0 0
      %1081 = vmatprep.subr.bf16.mxu0 0
      %1082 = vmatpush1.bf16.msra.mxu0 0
      %1083 = vmatprep.mubr.bf16.mxu0 0
      %1084 = vmatmul.mubr.bf16.gmra.mrb[0].mxu0 %v1046
      %v1085 = vpop.f32.mrb[0].mxu0
      %v1086 = vadd.f32 0.0, %v1085
      %v1087 = vpop.f32.mrb[0].mxu0
      %v1088 = vpop.f32.mrb[0].mxu0
      %v1089 = vadd.f32 0.0, %v1088
      %v1090 = vpop.f32.mrb[0].mxu0
      %1091 = vmatprep.mubr.bf16.mxu0 0
      %1092 = vmatmul.mubr.bf16.gmra.mrb[0].mxu0 %v1049
      %v1093 = vpop.f32.mrb[0].mxu0
      %v1094 = vadd.f32 0.0, %v1093
      %v1095 = vpop.f32.mrb[0].mxu0
      %v1096 = vpop.f32.mrb[0].mxu0
      %v1097 = vadd.f32 0.0, %v1096
      %v1098 = vpop.f32.mrb[0].mxu0
      %1099 = vdwg.mxu0
      %v1100 = vmul.f32 %v1086, %v1033
      %v1101 = vmul.f32 %v1089, %v1034
      %v1102 = vmul.f32 %v1094, %v1035
      %v1103 = vmul.f32 %v1097, %v1036
      %1104 = vrot.lane.b32.xlu0 %v760, 112
      %v1105 = vpop.permute.xlu0 %1104
      %1106 = vrot.lane.b32.xlu0 %v761, 112
      %v1107 = vpop.permute.xlu0 %1106
      %v1109 = vsel %vm762, %v1105, 0
      %v1112 = vsel %vm762, %v1107, 0
      %v1115 = vsel %vm769, %v753, 0
      %1117 = vmatprep.subr.bf16.mxu0 0
      %1118 = vmatpush1.bf16.msra.mxu0 %v1115
      %1119 = vmatprep.subr.bf16.mxu0 0
      %1120 = vmatpush1.bf16.msra.mxu0 0
      %1121 = vmatprep.subr.bf16.mxu0 0
      %1122 = vmatpush1.bf16.msra.mxu0 0
      %1123 = vmatprep.subr.bf16.mxu0 0
      %1124 = vmatpush1.bf16.msra.mxu0 0
      %1125 = vmatprep.subr.bf16.mxu0 0
      %1126 = vmatpush1.bf16.msra.mxu0 0
      %1127 = vmatprep.subr.bf16.mxu0 0
      %1128 = vmatpush1.bf16.msra.mxu0 0
      %1129 = vmatprep.subr.bf16.mxu0 0
      %1130 = vmatpush1.bf16.msra.mxu0 0
      %1131 = vmatprep.subr.bf16.mxu0 0
      %1132 = vmatpush1.bf16.msra.mxu0 0
      %1133 = vmatprep.subr.bf16.mxu0 0
      %1134 = vmatpush1.bf16.msra.mxu0 0
      %1135 = vmatprep.subr.bf16.mxu0 0
      %1136 = vmatpush1.bf16.msra.mxu0 0
      %1137 = vmatprep.subr.bf16.mxu0 0
      %1138 = vmatpush1.bf16.msra.mxu0 0
      %1139 = vmatprep.subr.bf16.mxu0 0
      %1140 = vmatpush1.bf16.msra.mxu0 0
      %1141 = vmatprep.subr.bf16.mxu0 0
      %1142 = vmatpush1.bf16.msra.mxu0 0
      %1143 = vmatprep.subr.bf16.mxu0 0
      %1144 = vmatpush1.bf16.msra.mxu0 0
      %1145 = vmatprep.subr.bf16.mxu0 0
      %1146 = vmatpush1.bf16.msra.mxu0 0
      %1147 = vmatprep.subr.bf16.mxu0 0
      %1148 = vmatpush1.bf16.msra.mxu0 0
      %1149 = vmatprep.mubr.bf16.mxu0 0
      %1150 = vmatmul.mubr.bf16.gmra.mrb[0].mxu0 %v1109
      %v1151 = vpop.f32.mrb[0].mxu0
      %v1152 = vadd.f32 %v759, %v1151
      %v1153 = vpop.f32.mrb[0].mxu0
      %v1154 = vpop.f32.mrb[0].mxu0
      %v1155 = vadd.f32 %v759, %v1154
      %v1156 = vpop.f32.mrb[0].mxu0
      %1157 = vmatprep.mubr.bf16.mxu0 0
      %1158 = vmatmul.mubr.bf16.gmra.mrb[0].mxu0 %v1112
      %v1159 = vpop.f32.mrb[0].mxu0
      %v1160 = vadd.f32 %v759, %v1159
      %v1161 = vpop.f32.mrb[0].mxu0
      %v1162 = vpop.f32.mrb[0].mxu0
      %v1163 = vadd.f32 %v759, %v1162
      %v1164 = vpop.f32.mrb[0].mxu0
      %1165 = vdwg.mxu0
      %v1166 = vsel %vm580, %v1152, -inf
      %1167 = vmax.xlane.f32.xlu0 %v1166
      %v1168 = vpop.xlane.xlu0 %1167
      %v1169 = vsel %vm580, %v1155, -inf
      %1170 = vmax.xlane.f32.xlu0 %v1169
      %v1171 = vpop.xlane.xlu0 %1170
      %v1172 = vsel %vm580, %v1160, -inf
      %1173 = vmax.xlane.f32.xlu0 %v1172
      %v1174 = vpop.xlane.xlu0 %1173
      %v1175 = vsel %vm580, %v1163, -inf
      %1176 = vmax.xlane.f32.xlu0 %v1175
      %v1177 = vpop.xlane.xlu0 %1176
      %v1178 = vsub.f32 %v1152, %v1168
      %v1179 = vsub.f32 %v1155, %v1171
      %v1180 = vsub.f32 %v1160, %v1174
      %v1181 = vsub.f32 %v1163, %v1177
      %v1182 = vmul.f32 %v1178, 1.442695
      %v1183 = vpow.pop %v1182
      %v1184 = vmul.f32 %v1179, 1.442695
      %v1185 = vpow.pop %v1184
      %v1186 = vmul.f32 %v1180, 1.442695
      %v1187 = vpow.pop %v1186
      %v1188 = vmul.f32 %v1181, 1.442695
      %v1189 = vpow.pop %v1188
      %v1190 = vsel %vm580, %v1183, 0.0
      %1191 = vadd.xlane.f32.xlu0 %v1190
      %v1192 = vpop.xlane.xlu0 %1191
      %v1193 = vsel %vm580, %v1185, 0.0
      %1194 = vadd.xlane.f32.xlu0 %v1193
      %v1195 = vpop.xlane.xlu0 %1194
      %v1196 = vsel %vm580, %v1187, 0.0
      %1197 = vadd.xlane.f32.xlu0 %v1196
      %v1198 = vpop.xlane.xlu0 %1197
      %v1199 = vsel %vm580, %v1189, 0.0
      %1200 = vadd.xlane.f32.xlu0 %v1199
      %v1201 = vpop.xlane.xlu0 %1200
      %v1202 = vrcp.pop %v1192
      %v1203 = vrcp.pop %v1195
      %v1204 = vrcp.pop %v1198
      %v1205 = vrcp.pop %v1201
      %v1206 = vpack.c.bf16 %v1185, %v1183
      %v1207 = vpack.c.bf16 %v1189, %v1187
      %1208 = vrot.lane.b32.xlu0 %v754, 80
      %v1209 = vpop.permute.xlu0 %1208
      %1210 = vrot.lane.b32.xlu0 %v755, 80
      %v1211 = vpop.permute.xlu0 %1210
      %v1215 = vsel %vm580, %v1206, 0
      %v1218 = vsel %vm580, %v1207, 0
      %1220 = vmatprep.subr.bf16.mxu0 0
      %1221 = vmatpush1.bf16.msra.mxu0 %v1209
      %1222 = vmatprep.subr.bf16.mxu0 0
      %1223 = vmatpush1.bf16.msra.mxu0 %v1211
      %1224 = vmatprep.subr.bf16.mxu0 0
      %1225 = vmatpush1.bf16.msra.mxu0 0
      %1226 = vmatprep.subr.bf16.mxu0 0
      %1227 = vmatpush1.bf16.msra.mxu0 0
      %1228 = vmatprep.subr.bf16.mxu0 0
      %1229 = vmatpush1.bf16.msra.mxu0 0
      %1230 = vmatprep.subr.bf16.mxu0 0
      %1231 = vmatpush1.bf16.msra.mxu0 0
      %1232 = vmatprep.subr.bf16.mxu0 0
      %1233 = vmatpush1.bf16.msra.mxu0 0
      %1234 = vmatprep.subr.bf16.mxu0 0
      %1235 = vmatpush1.bf16.msra.mxu0 0
      %1236 = vmatprep.subr.bf16.mxu0 0
      %1237 = vmatpush1.bf16.msra.mxu0 0
      %1238 = vmatprep.subr.bf16.mxu0 0
      %1239 = vmatpush1.bf16.msra.mxu0 0
      %1240 = vmatprep.subr.bf16.mxu0 0
      %1241 = vmatpush1.bf16.msra.mxu0 0
      %1242 = vmatprep.subr.bf16.mxu0 0
      %1243 = vmatpush1.bf16.msra.mxu0 0
      %1244 = vmatprep.subr.bf16.mxu0 0
      %1245 = vmatpush1.bf16.msra.mxu0 0
      %1246 = vmatprep.subr.bf16.mxu0 0
      %1247 = vmatpush1.bf16.msra.mxu0 0
      %1248 = vmatprep.subr.bf16.mxu0 0
      %1249 = vmatpush1.bf16.msra.mxu0 0
      %1250 = vmatprep.subr.bf16.mxu0 0
      %1251 = vmatpush1.bf16.msra.mxu0 0
      %1252 = vmatprep.mubr.bf16.mxu0 0
      %1253 = vmatmul.mubr.bf16.gmra.mrb[0].mxu0 %v1215
      %v1254 = vpop.f32.mrb[0].mxu0
      %v1255 = vadd.f32 0.0, %v1254
      %v1256 = vpop.f32.mrb[0].mxu0
      %v1257 = vpop.f32.mrb[0].mxu0
      %v1258 = vadd.f32 0.0, %v1257
      %v1259 = vpop.f32.mrb[0].mxu0
      %1260 = vmatprep.mubr.bf16.mxu0 0
      %1261 = vmatmul.mubr.bf16.gmra.mrb[0].mxu0 %v1218
      %v1262 = vpop.f32.mrb[0].mxu0
      %v1263 = vadd.f32 0.0, %v1262
      %v1264 = vpop.f32.mrb[0].mxu0
      %v1265 = vpop.f32.mrb[0].mxu0
      %v1266 = vadd.f32 0.0, %v1265
      %v1267 = vpop.f32.mrb[0].mxu0
      %1268 = vdwg.mxu0
      %v1269 = vmul.f32 %v1255, %v1202
      %v1270 = vmul.f32 %v1258, %v1203
      %v1271 = vmul.f32 %v1263, %v1204
      %v1272 = vmul.f32 %v1266, %v1205
      %1273 = vrot.lane.b32.xlu0 %v760, 104
      %v1274 = vpop.permute.xlu0 %1273
      %1275 = vrot.lane.b32.xlu0 %v761, 104
      %v1276 = vpop.permute.xlu0 %1275
      %v1278 = vrot.slane %v753, 4
      %v1280 = vsel %vm762, %v1274, 0
      %v1283 = vsel %vm762, %v1276, 0
      %v1286 = vsel %vm769, %v1278, 0
      %1288 = vmatprep.subr.bf16.mxu0 0
      %1289 = vmatpush1.bf16.msra.mxu0 %v1286
      %1290 = vmatprep.subr.bf16.mxu0 0
      %1291 = vmatpush1.bf16.msra.mxu0 0
      %1292 = vmatprep.subr.bf16.mxu0 0
      %1293 = vmatpush1.bf16.msra.mxu0 0
      %1294 = vmatprep.subr.bf16.mxu0 0
      %1295 = vmatpush1.bf16.msra.mxu0 0
      %1296 = vmatprep.subr.bf16.mxu0 0
      %1297 = vmatpush1.bf16.msra.mxu0 0
      %1298 = vmatprep.subr.bf16.mxu0 0
      %1299 = vmatpush1.bf16.msra.mxu0 0
      %1300 = vmatprep.subr.bf16.mxu0 0
      %1301 = vmatpush1.bf16.msra.mxu0 0
      %1302 = vmatprep.subr.bf16.mxu0 0
      %1303 = vmatpush1.bf16.msra.mxu0 0
      %1304 = vmatprep.subr.bf16.mxu0 0
      %1305 = vmatpush1.bf16.msra.mxu0 0
      %1306 = vmatprep.subr.bf16.mxu0 0
      %1307 = vmatpush1.bf16.msra.mxu0 0
      %1308 = vmatprep.subr.bf16.mxu0 0
      %1309 = vmatpush1.bf16.msra.mxu0 0
      %1310 = vmatprep.subr.bf16.mxu0 0
      %1311 = vmatpush1.bf16.msra.mxu0 0
      %1312 = vmatprep.subr.bf16.mxu0 0
      %1313 = vmatpush1.bf16.msra.mxu0 0
      %1314 = vmatprep.subr.bf16.mxu0 0
      %1315 = vmatpush1.bf16.msra.mxu0 0
      %1316 = vmatprep.subr.bf16.mxu0 0
      %1317 = vmatpush1.bf16.msra.mxu0 0
      %1318 = vmatprep.subr.bf16.mxu0 0
      %1319 = vmatpush1.bf16.msra.mxu0 0
      %1320 = vmatprep.mubr.bf16.mxu0 0
      %1321 = vmatmul.mubr.bf16.gmra.mrb[0].mxu0 %v1280
      %v1322 = vpop.f32.mrb[0].mxu0
      %v1323 = vadd.f32 %v759, %v1322
      %v1324 = vpop.f32.mrb[0].mxu0
      %v1325 = vpop.f32.mrb[0].mxu0
      %v1326 = vadd.f32 %v759, %v1325
      %v1327 = vpop.f32.mrb[0].mxu0
      %1328 = vmatprep.mubr.bf16.mxu0 0
      %1329 = vmatmul.mubr.bf16.gmra.mrb[0].mxu0 %v1283
      %v1330 = vpop.f32.mrb[0].mxu0
      %v1331 = vadd.f32 %v759, %v1330
      %v1332 = vpop.f32.mrb[0].mxu0
      %v1333 = vpop.f32.mrb[0].mxu0
      %v1334 = vadd.f32 %v759, %v1333
      %v1335 = vpop.f32.mrb[0].mxu0
      %1336 = vdwg.mxu0
      %v1337 = vsel %vm580, %v1323, -inf
      %1338 = vmax.xlane.f32.xlu0 %v1337
      %v1339 = vpop.xlane.xlu0 %1338
      %v1340 = vsel %vm580, %v1326, -inf
      %1341 = vmax.xlane.f32.xlu0 %v1340
      %v1342 = vpop.xlane.xlu0 %1341
      %v1343 = vsel %vm580, %v1331, -inf
      %1344 = vmax.xlane.f32.xlu0 %v1343
      %v1345 = vpop.xlane.xlu0 %1344
      %v1346 = vsel %vm580, %v1334, -inf
      %1347 = vmax.xlane.f32.xlu0 %v1346
      %v1348 = vpop.xlane.xlu0 %1347
      %v1349 = vsub.f32 %v1323, %v1339
      %v1350 = vsub.f32 %v1326, %v1342
      %v1351 = vsub.f32 %v1331, %v1345
      %v1352 = vsub.f32 %v1334, %v1348
      %v1353 = vmul.f32 %v1349, 1.442695
      %v1354 = vpow.pop %v1353
      %v1355 = vmul.f32 %v1350, 1.442695
      %v1356 = vpow.pop %v1355
      %v1357 = vmul.f32 %v1351, 1.442695
      %v1358 = vpow.pop %v1357
      %v1359 = vmul.f32 %v1352, 1.442695
      %v1360 = vpow.pop %v1359
      %v1361 = vsel %vm580, %v1354, 0.0
      %1362 = vadd.xlane.f32.xlu0 %v1361
      %v1363 = vpop.xlane.xlu0 %1362
      %v1364 = vsel %vm580, %v1356, 0.0
      %1365 = vadd.xlane.f32.xlu0 %v1364
      %v1366 = vpop.xlane.xlu0 %1365
      %v1367 = vsel %vm580, %v1358, 0.0
      %1368 = vadd.xlane.f32.xlu0 %v1367
      %v1369 = vpop.xlane.xlu0 %1368
      %v1370 = vsel %vm580, %v1360, 0.0
      %1371 = vadd.xlane.f32.xlu0 %v1370
      %v1372 = vpop.xlane.xlu0 %1371
      %v1373 = vrcp.pop %v1363
      %v1374 = vrcp.pop %v1366
      %v1375 = vrcp.pop %v1369
      %v1376 = vrcp.pop %v1372
      %v1377 = vpack.c.bf16 %v1356, %v1354
      %v1378 = vpack.c.bf16 %v1360, %v1358
      %1379 = vrot.lane.b32.xlu0 %v754, 72
      %v1380 = vpop.permute.xlu0 %1379
      %1381 = vrot.lane.b32.xlu0 %v755, 72
      %v1382 = vpop.permute.xlu0 %1381
      %v1386 = vsel %vm580, %v1377, 0
      %v1389 = vsel %vm580, %v1378, 0
      %1391 = vmatprep.subr.bf16.mxu0 0
      %1392 = vmatpush1.bf16.msra.mxu0 %v1380
      %1393 = vmatprep.subr.bf16.mxu0 0
      %1394 = vmatpush1.bf16.msra.mxu0 %v1382
      %1395 = vmatprep.subr.bf16.mxu0 0
      %1396 = vmatpush1.bf16.msra.mxu0 0
      %1397 = vmatprep.subr.bf16.mxu0 0
      %1398 = vmatpush1.bf16.msra.mxu0 0
      %1399 = vmatprep.subr.bf16.mxu0 0
      %1400 = vmatpush1.bf16.msra.mxu0 0
      %1401 = vmatprep.subr.bf16.mxu0 0
      %1402 = vmatpush1.bf16.msra.mxu0 0
      %1403 = vmatprep.subr.bf16.mxu0 0
      %1404 = vmatpush1.bf16.msra.mxu0 0
      %1405 = vmatprep.subr.bf16.mxu0 0
      %1406 = vmatpush1.bf16.msra.mxu0 0
      %1407 = vmatprep.subr.bf16.mxu0 0
      %1408 = vmatpush1.bf16.msra.mxu0 0
      %1409 = vmatprep.subr.bf16.mxu0 0
      %1410 = vmatpush1.bf16.msra.mxu0 0
      %1411 = vmatprep.subr.bf16.mxu0 0
      %1412 = vmatpush1.bf16.msra.mxu0 0
      %1413 = vmatprep.subr.bf16.mxu0 0
      %1414 = vmatpush1.bf16.msra.mxu0 0
      %1415 = vmatprep.subr.bf16.mxu0 0
      %1416 = vmatpush1.bf16.msra.mxu0 0
      %1417 = vmatprep.subr.bf16.mxu0 0
      %1418 = vmatpush1.bf16.msra.mxu0 0
      %1419 = vmatprep.subr.bf16.mxu0 0
      %1420 = vmatpush1.bf16.msra.mxu0 0
      %1421 = vmatprep.subr.bf16.mxu0 0
      %1422 = vmatpush1.bf16.msra.mxu0 0
      %1423 = vmatprep.mubr.bf16.mxu0 0
      %1424 = vmatmul.mubr.bf16.gmra.mrb[0].mxu0 %v1386
      %v1425 = vpop.f32.mrb[0].mxu0
      %v1426 = vadd.f32 0.0, %v1425
      %v1427 = vpop.f32.mrb[0].mxu0
      %v1428 = vpop.f32.mrb[0].mxu0
      %v1429 = vadd.f32 0.0, %v1428
      %v1430 = vpop.f32.mrb[0].mxu0
      %1431 = vmatprep.mubr.bf16.mxu0 0
      %1432 = vmatmul.mubr.bf16.gmra.mrb[0].mxu0 %v1389
      %v1433 = vpop.f32.mrb[0].mxu0
      %v1434 = vadd.f32 0.0, %v1433
      %v1435 = vpop.f32.mrb[0].mxu0
      %v1436 = vpop.f32.mrb[0].mxu0
      %v1437 = vadd.f32 0.0, %v1436
      %v1438 = vpop.f32.mrb[0].mxu0
      %1439 = vdwg.mxu0
      %v1440 = vmul.f32 %v1426, %v1373
      %v1441 = vmul.f32 %v1429, %v1374
      %v1442 = vmul.f32 %v1434, %v1375
      %v1443 = vmul.f32 %v1437, %v1376
      %1448 = vrot.lane.b32.xlu0 %v1100, 8
      %v1449 = vpop.permute.xlu0 %1448
      %1450 = vrot.lane.b32.xlu0 %v1101, 8
      %v1451 = vpop.permute.xlu0 %1450
      %1452 = vrot.lane.b32.xlu0 %v1102, 8
      %v1453 = vpop.permute.xlu0 %1452
      %1454 = vrot.lane.b32.xlu0 %v1103, 8
      %v1455 = vpop.permute.xlu0 %1454
      %1464 = vrot.lane.b32.xlu0 %v1269, 16
      %v1465 = vpop.permute.xlu0 %1464
      %1466 = vrot.lane.b32.xlu0 %v1270, 16
      %v1467 = vpop.permute.xlu0 %1466
      %1468 = vrot.lane.b32.xlu0 %v1271, 16
      %v1469 = vpop.permute.xlu0 %1468
      %1470 = vrot.lane.b32.xlu0 %v1272, 16
      %v1471 = vpop.permute.xlu0 %1470
      %1480 = vrot.lane.b32.xlu0 %v1440, 24
      %v1481 = vpop.permute.xlu0 %1480
      %1482 = vrot.lane.b32.xlu0 %v1441, 24
      %v1483 = vpop.permute.xlu0 %1482
      %1484 = vrot.lane.b32.xlu0 %v1442, 24
      %v1485 = vpop.permute.xlu0 %1484
      %1486 = vrot.lane.b32.xlu0 %v1443, 24
      %v1487 = vpop.permute.xlu0 %1486
      %v1492 = vsel %vm762, %v927, %v1449
      %v1493 = vsel %vm762, %v928, %v1451
      %v1494 = vsel %vm762, %v929, %v1453
      %v1495 = vsel %vm762, %v930, %v1455
      %vm1496 = vcmask 130048
      %v1497 = vsel %vm1496, %v1492, %v1465
      %v1498 = vsel %vm1496, %v1493, %v1467
      %v1499 = vsel %vm1496, %v1494, %v1469
      %v1500 = vsel %vm1496, %v1495, %v1471
      %vm1501 = vcmask 195584
      %v1502 = vsel %vm1501, %v1497, %v1481
      %v1503 = vsel %vm1501, %v1498, %v1483
      %v1504 = vsel %vm1501, %v1499, %v1485
      %v1505 = vsel %vm1501, %v1500, %v1487
      %v1506 = vpack.c.bf16 %v1503, %v1502
      %v1507 = vpack.c.bf16 %v1505, %v1504
      %v1508 = vld [vmem:[%s527] sm:$0xf]
      %v1509 = vld [vmem:[%s527 + $0x4] sm:$0xf]
      %v1510 = vld [vmem:[%s527 + $0x8] sm:$0xf]
      %v1511 = vld [vmem:[%s527 + $0xc] sm:$0xf]
      %v1512 = vld [vmem:[%s530] sm:$0x1]
      %v1514 = vlaneseq
      %v1515 = vshrl.u32 %v1514, 7
      %v1516 = vsub.s32 0, %v1515
      %v1517 = vrot.slane %v1512, %v1516
      %v1523 = vunpack.c.l.b16 %v1508
      %v1524 = vunpack.c.l.b16 %v1509
      %v1525 = vunpack.c.l.b16 %v1510
      %v1526 = vunpack.c.l.b16 %v1511
      %v1527 = vpack.c.b16 %v1524, %v1523
      %v1528 = vpack.c.b16 %v1526, %v1525
      %v1532 = vsel %vm580, %v1506, 0
      %v1535 = vsel %vm580, %v1507, 0
      %1537 = vmatprep.subr.bf16.mxu0 0
      %1538 = vmatpush1.bf16.msra.mxu0 %v1527
      %1539 = vmatprep.subr.bf16.mxu0 0
      %1540 = vmatpush1.bf16.msra.mxu0 %v1528
      %1541 = vmatprep.subr.bf16.mxu0 0
      %1542 = vmatpush1.bf16.msra.mxu0 0
      %1543 = vmatprep.subr.bf16.mxu0 0
      %1544 = vmatpush1.bf16.msra.mxu0 0
      %1545 = vmatprep.subr.bf16.mxu0 0
      %1546 = vmatpush1.bf16.msra.mxu0 0
      %1547 = vmatprep.subr.bf16.mxu0 0
      %1548 = vmatpush1.bf16.msra.mxu0 0
      %1549 = vmatprep.subr.bf16.mxu0 0
      %1550 = vmatpush1.bf16.msra.mxu0 0
      %1551 = vmatprep.subr.bf16.mxu0 0
      %1552 = vmatpush1.bf16.msra.mxu0 0
      %1553 = vmatprep.subr.bf16.mxu0 0
      %1554 = vmatpush1.bf16.msra.mxu0 0
      %1555 = vmatprep.subr.bf16.mxu0 0
      %1556 = vmatpush1.bf16.msra.mxu0 0
      %1557 = vmatprep.subr.bf16.mxu0 0
      %1558 = vmatpush1.bf16.msra.mxu0 0
      %1559 = vmatprep.subr.bf16.mxu0 0
      %1560 = vmatpush1.bf16.msra.mxu0 0
      %1561 = vmatprep.subr.bf16.mxu0 0
      %1562 = vmatpush1.bf16.msra.mxu0 0
      %1563 = vmatprep.subr.bf16.mxu0 0
      %1564 = vmatpush1.bf16.msra.mxu0 0
      %1565 = vmatprep.subr.bf16.mxu0 0
      %1566 = vmatpush1.bf16.msra.mxu0 0
      %1567 = vmatprep.subr.bf16.mxu0 0
      %1568 = vmatpush1.bf16.msra.mxu0 0
      %1569 = vmatprep.mubr.bf16.mxu0 0
      %1570 = vmatmul.mubr.bf16.gmra.mrb[0].mxu0 %v1532
      %v1571 = vpop.f32.mrb[0].mxu0
      %v1572 = vadd.f32 %v1517, %v1571
      %v1573 = vpop.f32.mrb[0].mxu0
      %v1574 = vpop.f32.mrb[0].mxu0
      %v1575 = vadd.f32 %v1517, %v1574
      %v1576 = vpop.f32.mrb[0].mxu0
      %1577 = vmatprep.mubr.bf16.mxu0 0
      %1578 = vmatmul.mubr.bf16.gmra.mrb[0].mxu0 %v1535
      %v1579 = vpop.f32.mrb[0].mxu0
      %v1580 = vadd.f32 %v1517, %v1579
      %v1581 = vpop.f32.mrb[0].mxu0
      %v1582 = vpop.f32.mrb[0].mxu0
      %v1583 = vadd.f32 %v1517, %v1582
      %v1584 = vpop.f32.mrb[0].mxu0
      %1585 = vdwg.mxu0
      %v1586 = vadd.f32 %v547, %v1572
      %v1587 = vadd.f32 %v548, %v1575
      %v1588 = vadd.f32 %v549, %v1580
      %v1589 = vadd.f32 %v550, %v1583
      %v1590 = vld [vmem:[%s533] sm:$0x1]
      %v1591 = vld [vmem:[%s536] sm:$0x1]
      %v1592 = vsel %vm580, %v1586, 0.0
      %1593 = vadd.xlane.f32.xlu0 %v1592
      %v1594 = vpop.xlane.xlu0 %1593
      %v1595 = vsel %vm580, %v1587, 0.0
      %1596 = vadd.xlane.f32.xlu0 %v1595
      %v1597 = vpop.xlane.xlu0 %1596
      %v1598 = vsel %vm580, %v1588, 0.0
      %1599 = vadd.xlane.f32.xlu0 %v1598
      %v1600 = vpop.xlane.xlu0 %1599
      %v1601 = vsel %vm580, %v1589, 0.0
      %1602 = vadd.xlane.f32.xlu0 %v1601
      %v1603 = vpop.xlane.xlu0 %1602
      %v1604 = vrcp.pop 32.0
      %v1605 = vmul.f32 %v1594, %v1604
      %v1606 = vmul.f32 %v1597, %v1604
      %v1607 = vmul.f32 %v1600, %v1604
      %v1608 = vmul.f32 %v1603, %v1604
      %v1609 = vsub.f32 %v1586, %v1605
      %v1610 = vsub.f32 %v1587, %v1606
      %v1611 = vsub.f32 %v1588, %v1607
      %v1612 = vsub.f32 %v1589, %v1608
      %v1613 = vmul.f32 %v1609, %v1609
      %v1614 = vmul.f32 %v1610, %v1610
      %v1615 = vmul.f32 %v1611, %v1611
      %v1616 = vmul.f32 %v1612, %v1612
      %v1617 = vsel %vm580, %v1613, 0.0
      %1618 = vadd.xlane.f32.xlu0 %v1617
      %v1619 = vpop.xlane.xlu0 %1618
      %v1620 = vsel %vm580, %v1614, 0.0
      %1621 = vadd.xlane.f32.xlu0 %v1620
      %v1622 = vpop.xlane.xlu0 %1621
      %v1623 = vsel %vm580, %v1615, 0.0
      %1624 = vadd.xlane.f32.xlu0 %v1623
      %v1625 = vpop.xlane.xlu0 %1624
      %v1626 = vsel %vm580, %v1616, 0.0
      %1627 = vadd.xlane.f32.xlu0 %v1626
      %v1628 = vpop.xlane.xlu0 %1627
      %v1629 = vmul.f32 %v1619, %v1604
      %v1630 = vmul.f32 %v1622, %v1604
      %v1631 = vmul.f32 %v1625, %v1604
      %v1632 = vmul.f32 %v1628, %v1604
      %v1633 = vadd.f32 %v1629, 1e-05
      %v1634 = vadd.f32 %v1630, 1e-05
      %v1635 = vadd.f32 %v1631, 1e-05
      %v1636 = vadd.f32 %v1632, 1e-05
      %v1637 = vrsqrt.pop %v1633
      %v1638 = vrsqrt.pop %v1634
      %v1639 = vrsqrt.pop %v1635
      %v1640 = vrsqrt.pop %v1636
      %v1641 = vmul.f32 %v1609, %v1637
      %v1642 = vmul.f32 %v1610, %v1638
      %v1643 = vmul.f32 %v1611, %v1639
      %v1644 = vmul.f32 %v1612, %v1640
      %v1646 = vlaneseq
      %v1647 = vshrl.u32 %v1646, 7
      %v1648 = vsub.s32 0, %v1647
      %v1649 = vrot.slane %v1590, %v1648
      %v1651 = vmul.f32 %v1641, %v1649
      %v1652 = vmul.f32 %v1642, %v1649
      %v1653 = vmul.f32 %v1643, %v1649
      %v1654 = vmul.f32 %v1644, %v1649
      %v1656 = vlaneseq
      %v1657 = vshrl.u32 %v1656, 7
      %v1658 = vsub.s32 0, %v1657
      %v1659 = vrot.slane %v1591, %v1658
      %v1661 = vadd.f32 %v1651, %v1659
      %v1662 = vadd.f32 %v1652, %v1659
      %v1663 = vadd.f32 %v1653, %v1659
      %v1664 = vadd.f32 %v1654, %v1659
      %1665 = vst.msk [vmem:[%s545] sm:$0xff] %vm580, %v1661
      %1666 = vst.msk [vmem:[%s545 + $0x8] sm:$0xff] %vm580, %v1662
      %1667 = vst.msk [vmem:[%s545 + $0x10] sm:$0xff] %vm580, %v1663
      %1668 = vst.msk [vmem:[%s545 + $0x18] sm:$0xff] %vm580, %v1664
      %p1669 = scmp.lt.s32.totalorder %s25, 1
      %s1670 = scalar_select %p1669, %s25, 1
      %p1671 = scmp.lt.s32.totalorder %s26, 1
      %s1672 = scalar_select %p1671, %s26, 1
      %s1673 = smul.addr %s1672, 4
      %s1674 = smul.addr %s1670, 8
      %s1675 = sadd.s32 %s1673, %s1674
      %s1676 = smul.addr %s1675, 8
      %s1677 = scalar_lea.vmem %s10, %s1676
      // Predicated region
      $region61: #{transformer_forward.8} parent=59 // pred_check
        %p1678 = pneg %p315
      $region62: #{transformer_forward.8} parent=59 // pred_check_branch
        %1680 = sbr.rel (%p1678) target = $region64
      $region63: #{transformer_forward.8} parent=59 // pred_region
        _
      $region64: #{transformer_forward.8} parent=59 // pred_fallthru
        _
    $region60: #{transformer_forward.8} parent=5 // pred_fallthru
      _
    %p1681 = scmp.le.s32.totalorder 2, %s16
    // Predicated region
    $region65: #{transformer_forward.8} parent=5 // pred_check
      %p1682 = pneg %p1681
    $region66: #{transformer_forward.8} parent=5 // pred_check_branch
      %1684 = sbr.rel (%p1682) target = $region68
    $region67: #{transformer_forward.8} parent=5 // pred_region
      %s1685 = ssub.s32 %s16, 2
      // Predicated region
      $region69: #{transformer_forward.8} parent=67 // pred_check
        %p1686 = pneg %p321
      $region70: #{transformer_forward.8} parent=67 // pred_check_branch
        %1688 = sbr.rel (%p1686) target = $region72
      $region71: #{transformer_forward.8} parent=67 // pred_region
        %p1689 = scmp.lt.s32.totalorder %s27, 1
        %s1690 = scalar_select %p1689, %s27, 1
        %p1691 = scmp.lt.s32.totalorder %s28, 1
        %s1692 = scalar_select %p1691, %s28, 1
        %s1693 = smul.addr %s1692, 4
        %s1694 = smul.addr %s1690, 8
        %s1695 = sadd.s32 %s1693, %s1694
        %s1696 = smul.addr %s1695, 8
        %s1697 = scalar_lea.vmem %s10, %s1696
      $region72: #{transformer_forward.8} parent=67 // pred_fallthru
        _
    $region68: #{transformer_forward.8} parent=5 // pred_fallthru
      _
  $region6: #{transformer_forward.8} parent=0 // loop_footer
    %s20 = sadd.s32 1, %s16
  $region7: #{transformer_forward.8} parent=0 // loop_footer_branch
    %15 = sbr.rel target = $region3
  $region8: #{transformer_forward.8} parent=0 // loop_exit
    _

// kernel: transformer_forward.9
$region0: #{transformer_forward.9}
  #allocation0 [shape = 'u32[]', space=smem, size = 0x4, offset = 0x4, fixed_abs, tag = 'smem constant byte address 0x4 - core index']
  #allocation1 [shape = 'u32[144,128]{1,0:T(1,128)}', space=vmem, size = 0x12000, scoped, tag = 'internal scratch']
  #allocation2 [shape = 'f32[1,1]{1,0:T(1,128)S(6)}', space=smem, size = 0x200, scoped, tag = 'scoped memory for transformer_forward.9']
  %s0 = inlined_call_operand.<no memory space> [shape: f32[1,1], index: 0, kind: input, shape index: {}]
  %s1 = inlined_call_operand.vmem [shape: f32[2,32,32], index: 1, kind: input, shape index: {}]
  %s2 = inlined_call_operand.vmem [shape: f32[2,1,32], index: 2, kind: input, shape index: {}]
  %s3 = inlined_call_operand.vmem [shape: bf16[32,64], index: 3, kind: input, shape index: {}]
  %s4 = inlined_call_operand.vmem [shape: f32[1,64], index: 4, kind: input, shape index: {}]
  %s5 = inlined_call_operand.vmem [shape: bf16[64,32], index: 5, kind: input, shape index: {}]
  %s6 = inlined_call_operand.vmem [shape: f32[1,32], index: 6, kind: input, shape index: {}]
  %s7 = inlined_call_operand.vmem [shape: f32[1,32], index: 7, kind: input, shape index: {}]
  %s8 = inlined_call_operand.vmem [shape: f32[1,32], index: 8, kind: input, shape index: {}]
  %s9 = inlined_call_operand.vmem [shape: f32[1,32], index: 9, kind: input, shape index: {}]
  %s10 = inlined_call_operand.vmem [shape: f32[1,32], index: 10, kind: input, shape index: {}]
  %s11 = inlined_call_operand.vmem [shape: f32[2,32,32], index: 11, kind: output, shape index: {}]
  %s12 = sld [smem:[#allocation0]]
  $region77: #{transformer_forward.9} parent=0
    _
  %s14 = ssub.s32 1, %s12
  %s15 = scalar_select 0, %s14, %s12
  %16 = sst [smem:[#allocation2]] %s0
  loop: start=0, step=1, limit=4
  $region2: #{transformer_forward.9} parent=0 // loop_pre_header
    _
  $region3: #{transformer_forward.9} parent=0 // loop_header
    %s18 = sphi 0, %s22
    %p19 = scmp.ge.s32.totalorder %s18, 4
    %s25 = sphi 0, %s37
    %s26 = sphi 0, %s33
    %s27 = sphi 0, %s25
    %s28 = sphi 0, %s26
    %s29 = sphi 0, %s27
    %s30 = sphi 0, %s28
    %s38 = sphi 0, %s38
    %s40 = sphi 0, %s38
    %s41 = sphi 0, %s40
    %s55 = sphi 0, %s41
    %s63 = sphi 0, %s65
    %s66 = sphi 0, %s63
    %s67 = sphi 0, %s66
    %s83 = sphi 0, %s67
    %s89 = sphi 0, %s91
    %s92 = sphi 0, %s89
    %s93 = sphi 0, %s92
    %s109 = sphi 0, %s93
    %s113 = sphi 0, %s113
    %s115 = sphi 0, %s113
    %s116 = sphi 0, %s115
    %s130 = sphi 0, %s116
    %s134 = sphi 0, %s134
    %s136 = sphi 0, %s134
    %s137 = sphi 0, %s136
    %s151 = sphi 0, %s137
    %s155 = sphi 0, %s155
    %s157 = sphi 0, %s155
    %s158 = sphi 0, %s157
    %s172 = sphi 0, %s158
    %s176 = sphi 0, %s176
    %s178 = sphi 0, %s176
    %s179 = sphi 0, %s178
    %s193 = sphi 0, %s179
    %s197 = sphi 0, %s197
    %s199 = sphi 0, %s197
    %s200 = sphi 0, %s199
    %s214 = sphi 0, %s200
    %s218 = sphi 0, %s218
    %s220 = sphi 0, %s218
    %s221 = sphi 0, %s220
    %s235 = sphi 0, %s221
    %s239 = sphi 0, %s239
    %s241 = sphi 0, %s239
    %s242 = sphi 0, %s241
    %s256 = sphi 0, %s242
    %s260 = sphi 0, %s260
    %s262 = sphi 0, %s260
    %s263 = sphi 0, %s262
    %s277 = sphi 0, %s263
    %s285 = sphi 0, %s287
    %s288 = sphi 0, %s285
    %s289 = sphi 0, %s288
    %s305 = sphi 0, %s289
  $region4: #{transformer_forward.9} parent=0 // loop_header_branch
    %21 = sbr.rel (%p19) target = $region8
  $region5: #{transformer_forward.9} parent=0 // loop_body
    %s23 = ssub.s32 %s18, 1
    %s24 = ssub.s32 %s18, 2
    %s31 = sadd.s32 1, %s26
    %p32 = scmp.ge.s32.totalorder %s31, 1
    %s33 = scalar_select %p32, 0, %s31
    %s34 = sadd.s32 1, %s25
    %s35 = scalar_select %p32, %s34, %s25
    %p36 = scmp.ge.s32.totalorder %s35, 2
    %s37 = scalar_select %p36, 0, %s35
    %s39 = sadd.s32 %s38, 1
    %p42 = scmp.eq.s32.totalorder %s18, 1
    %p43 = scmp.ne.s32.totalorder %s38, %s40
    %p44 = scmp.eq.s32.totalorder %s18, 0
    %p45 = por %p43, %p44
    %p46 = scmp.ne.s32.totalorder %s38, %s40
    %p47 = scmp.eq.s32.totalorder %s23, 1
    %p48 = por %p46, %p47
    %p49 = scmp.ne.s32.totalorder %s40, %s41
    %p50 = scmp.eq.s32.totalorder %s23, 0
    %p51 = por %p49, %p50
    %p52 = scmp.ne.s32.totalorder %s40, %s41
    %p53 = scmp.eq.s32.totalorder %s24, 1
    %p54 = por %p52, %p53
    %p56 = scmp.ne.s32.totalorder %s41, %s55
    %p57 = scmp.eq.s32.totalorder %s24, 0
    %p58 = por %p56, %p57
    %s59 = ssub.s32 %s25, %s37
    %s60 = ssub.s32 %s26, %s33
    %s61 = sor.u32 %s59, %s60
    %p62 = scmp.eq.s32.totalorder %s61, 0
    %s64 = sadd.s32 %s63, 1
    %s65 = scalar_select %p62, %s63, %s64
    %p68 = pneg %p62
    %p69 = scmp.eq.s32.totalorder %s18, 1
    %p70 = por %p68, %p69
    %p71 = scmp.ne.s32.totalorder %s63, %s66
    %p72 = scmp.eq.s32.totalorder %s18, 0
    %p73 = por %p71, %p72
    %p74 = scmp.ne.s32.totalorder %s63, %s66
    %p75 = scmp.eq.s32.totalorder %s23, 1
    %p76 = por %p74, %p75
    %p77 = scmp.ne.s32.totalorder %s66, %s67
    %p78 = scmp.eq.s32.totalorder %s23, 0
    %p79 = por %p77, %p78
    %p80 = scmp.ne.s32.totalorder %s66, %s67
    %p81 = scmp.eq.s32.totalorder %s24, 1
    %p82 = por %p80, %p81
    %p84 = scmp.ne.s32.totalorder %s67, %s83
    %p85 = scmp.eq.s32.totalorder %s24, 0
    %p86 = por %p84, %p85
    %s87 = ssub.s32 %s25, %s37
    %p88 = scmp.eq.s32.totalorder %s87, 0
    %s90 = sadd.s32 %s89, 1
    %s91 = scalar_select %p88, %s89, %s90
    %p94 = pneg %p88
    %p95 = scmp.eq.s32.totalorder %s18, 1
    %p96 = por %p94, %p95
    %p97 = scmp.ne.s32.totalorder %s89, %s92
    %p98 = scmp.eq.s32.totalorder %s18, 0
    %p99 = por %p97, %p98
    %p100 = scmp.ne.s32.totalorder %s89, %s92
    %p101 = scmp.eq.s32.totalorder %s23, 1
    %p102 = por %p100, %p101
    %p103 = scmp.ne.s32.totalorder %s92, %s93
    %p104 = scmp.eq.s32.totalorder %s23, 0
    %p105 = por %p103, %p104
    %p106 = scmp.ne.s32.totalorder %s92, %s93
    %p107 = scmp.eq.s32.totalorder %s24, 1
    %p108 = por %p106, %p107
    %p110 = scmp.ne.s32.totalorder %s93, %s109
    %p111 = scmp.eq.s32.totalorder %s24, 0
    %p112 = por %p110, %p111
    %s114 = sadd.s32 %s113, 1
    %p117 = scmp.eq.s32.totalorder %s18, 1
    %p118 = scmp.ne.s32.totalorder %s113, %s115
    %p119 = scmp.eq.s32.totalorder %s18, 0
    %p120 = por %p118, %p119
    %p121 = scmp.ne.s32.totalorder %s113, %s115
    %p122 = scmp.eq.s32.totalorder %s23, 1
    %p123 = por %p121, %p122
    %p124 = scmp.ne.s32.totalorder %s115, %s116
    %p125 = scmp.eq.s32.totalorder %s23, 0
    %p126 = por %p124, %p125
    %p127 = scmp.ne.s32.totalorder %s115, %s116
    %p128 = scmp.eq.s32.totalorder %s24, 1
    %p129 = por %p127, %p128
    %p131 = scmp.ne.s32.totalorder %s116, %s130
    %p132 = scmp.eq.s32.totalorder %s24, 0
    %p133 = por %p131, %p132
    %s135 = sadd.s32 %s134, 1
    %p138 = scmp.eq.s32.totalorder %s18, 1
    %p139 = scmp.ne.s32.totalorder %s134, %s136
    %p140 = scmp.eq.s32.totalorder %s18, 0
    %p141 = por %p139, %p140
    %p142 = scmp.ne.s32.totalorder %s134, %s136
    %p143 = scmp.eq.s32.totalorder %s23, 1
    %p144 = por %p142, %p143
    %p145 = scmp.ne.s32.totalorder %s136, %s137
    %p146 = scmp.eq.s32.totalorder %s23, 0
    %p147 = por %p145, %p146
    %p148 = scmp.ne.s32.totalorder %s136, %s137
    %p149 = scmp.eq.s32.totalorder %s24, 1
    %p150 = por %p148, %p149
    %p152 = scmp.ne.s32.totalorder %s137, %s151
    %p153 = scmp.eq.s32.totalorder %s24, 0
    %p154 = por %p152, %p153
    %s156 = sadd.s32 %s155, 1
    %p159 = scmp.eq.s32.totalorder %s18, 1
    %p160 = scmp.ne.s32.totalorder %s155, %s157
    %p161 = scmp.eq.s32.totalorder %s18, 0
    %p162 = por %p160, %p161
    %p163 = scmp.ne.s32.totalorder %s155, %s157
    %p164 = scmp.eq.s32.totalorder %s23, 1
    %p165 = por %p163, %p164
    %p166 = scmp.ne.s32.totalorder %s157, %s158
    %p167 = scmp.eq.s32.totalorder %s23, 0
    %p168 = por %p166, %p167
    %p169 = scmp.ne.s32.totalorder %s157, %s158
    %p170 = scmp.eq.s32.totalorder %s24, 1
    %p171 = por %p169, %p170
    %p173 = scmp.ne.s32.totalorder %s158, %s172
    %p174 = scmp.eq.s32.totalorder %s24, 0
    %p175 = por %p173, %p174
    %s177 = sadd.s32 %s176, 1
    %p180 = scmp.eq.s32.totalorder %s18, 1
    %p181 = scmp.ne.s32.totalorder %s176, %s178
    %p182 = scmp.eq.s32.totalorder %s18, 0
    %p183 = por %p181, %p182
    %p184 = scmp.ne.s32.totalorder %s176, %s178
    %p185 = scmp.eq.s32.totalorder %s23, 1
    %p186 = por %p184, %p185
    %p187 = scmp.ne.s32.totalorder %s178, %s179
    %p188 = scmp.eq.s32.totalorder %s23, 0
    %p189 = por %p187, %p188
    %p190 = scmp.ne.s32.totalorder %s178, %s179
    %p191 = scmp.eq.s32.totalorder %s24, 1
    %p192 = por %p190, %p191
    %p194 = scmp.ne.s32.totalorder %s179, %s193
    %p195 = scmp.eq.s32.totalorder %s24, 0
    %p196 = por %p194, %p195
    %s198 = sadd.s32 %s197, 1
    %p201 = scmp.eq.s32.totalorder %s18, 1
    %p202 = scmp.ne.s32.totalorder %s197, %s199
    %p203 = scmp.eq.s32.totalorder %s18, 0
    %p204 = por %p202, %p203
    %p205 = scmp.ne.s32.totalorder %s197, %s199
    %p206 = scmp.eq.s32.totalorder %s23, 1
    %p207 = por %p205, %p206
    %p208 = scmp.ne.s32.totalorder %s199, %s200
    %p209 = scmp.eq.s32.totalorder %s23, 0
    %p210 = por %p208, %p209
    %p211 = scmp.ne.s32.totalorder %s199, %s200
    %p212 = scmp.eq.s32.totalorder %s24, 1
    %p213 = por %p211, %p212
    %p215 = scmp.ne.s32.totalorder %s200, %s214
    %p216 = scmp.eq.s32.totalorder %s24, 0
    %p217 = por %p215, %p216
    %s219 = sadd.s32 %s218, 1
    %p222 = scmp.eq.s32.totalorder %s18, 1
    %p223 = scmp.ne.s32.totalorder %s218, %s220
    %p224 = scmp.eq.s32.totalorder %s18, 0
    %p225 = por %p223, %p224
    %p226 = scmp.ne.s32.totalorder %s218, %s220
    %p227 = scmp.eq.s32.totalorder %s23, 1
    %p228 = por %p226, %p227
    %p229 = scmp.ne.s32.totalorder %s220, %s221
    %p230 = scmp.eq.s32.totalorder %s23, 0
    %p231 = por %p229, %p230
    %p232 = scmp.ne.s32.totalorder %s220, %s221
    %p233 = scmp.eq.s32.totalorder %s24, 1
    %p234 = por %p232, %p233
    %p236 = scmp.ne.s32.totalorder %s221, %s235
    %p237 = scmp.eq.s32.totalorder %s24, 0
    %p238 = por %p236, %p237
    %s240 = sadd.s32 %s239, 1
    %p243 = scmp.eq.s32.totalorder %s18, 1
    %p244 = scmp.ne.s32.totalorder %s239, %s241
    %p245 = scmp.eq.s32.totalorder %s18, 0
    %p246 = por %p244, %p245
    %p247 = scmp.ne.s32.totalorder %s239, %s241
    %p248 = scmp.eq.s32.totalorder %s23, 1
    %p249 = por %p247, %p248
    %p250 = scmp.ne.s32.totalorder %s241, %s242
    %p251 = scmp.eq.s32.totalorder %s23, 0
    %p252 = por %p250, %p251
    %p253 = scmp.ne.s32.totalorder %s241, %s242
    %p254 = scmp.eq.s32.totalorder %s24, 1
    %p255 = por %p253, %p254
    %p257 = scmp.ne.s32.totalorder %s242, %s256
    %p258 = scmp.eq.s32.totalorder %s24, 0
    %p259 = por %p257, %p258
    %s261 = sadd.s32 %s260, 1
    %p264 = scmp.eq.s32.totalorder %s18, 1
    %p265 = scmp.ne.s32.totalorder %s260, %s262
    %p266 = scmp.eq.s32.totalorder %s18, 0
    %p267 = por %p265, %p266
    %p268 = scmp.ne.s32.totalorder %s260, %s262
    %p269 = scmp.eq.s32.totalorder %s23, 1
    %p270 = por %p268, %p269
    %p271 = scmp.ne.s32.totalorder %s262, %s263
    %p272 = scmp.eq.s32.totalorder %s23, 0
    %p273 = por %p271, %p272
    %p274 = scmp.ne.s32.totalorder %s262, %s263
    %p275 = scmp.eq.s32.totalorder %s24, 1
    %p276 = por %p274, %p275
    %p278 = scmp.ne.s32.totalorder %s263, %s277
    %p279 = scmp.eq.s32.totalorder %s24, 0
    %p280 = por %p278, %p279
    %s281 = ssub.s32 %s25, %s37
    %s282 = ssub.s32 %s26, %s33
    %s283 = sor.u32 %s281, %s282
    %p284 = scmp.eq.s32.totalorder %s283, 0
    %s286 = sadd.s32 %s285, 1
    %s287 = scalar_select %p284, %s285, %s286
    %p290 = pneg %p284
    %p291 = scmp.eq.s32.totalorder %s18, 1
    %p292 = por %p290, %p291
    %p293 = scmp.ne.s32.totalorder %s285, %s288
    %p294 = scmp.eq.s32.totalorder %s18, 0
    %p295 = por %p293, %p294
    %p296 = scmp.ne.s32.totalorder %s285, %s288
    %p297 = scmp.eq.s32.totalorder %s23, 1
    %p298 = por %p296, %p297
    %p299 = scmp.ne.s32.totalorder %s288, %s289
    %p300 = scmp.eq.s32.totalorder %s23, 0
    %p301 = por %p299, %p300
    %p302 = scmp.ne.s32.totalorder %s288, %s289
    %p303 = scmp.eq.s32.totalorder %s24, 1
    %p304 = por %p302, %p303
    %p306 = scmp.ne.s32.totalorder %s289, %s305
    %p307 = scmp.eq.s32.totalorder %s24, 0
    %p308 = por %p306, %p307
    %p309 = scmp.le.s32.totalorder 1, %s18
    %p310 = scmp.lt.s32.totalorder %s18, 3
    %p311 = pnand %p309, %p310
    %p312 = pneg %p311
    // Predicated region
    $region9: #{transformer_forward.9} parent=5 // pred_check
      _
    $region10: #{transformer_forward.9} parent=5 // pred_check_branch
      %314 = sbr.rel (%p311) target = $region12
    $region11: #{transformer_forward.9} parent=5 // pred_region
      %s315 = ssub.s32 %s18, 1
      // Predicated region
      $region13: #{transformer_forward.9} parent=11 // pred_check
        %p316 = pneg %p51
      $region14: #{transformer_forward.9} parent=11 // pred_check_branch
        %318 = sbr.rel (%p316) target = $region16
      $region15: #{transformer_forward.9} parent=11 // pred_region
        _
      $region16: #{transformer_forward.9} parent=11 // pred_fallthru
        _
      // Predicated region
      $region17: #{transformer_forward.9} parent=11 // pred_check
        %p319 = pneg %p126
      $region18: #{transformer_forward.9} parent=11 // pred_check_branch
        %321 = sbr.rel (%p319) target = $region20
      $region19: #{transformer_forward.9} parent=11 // pred_region
        _
      $region20: #{transformer_forward.9} parent=11 // pred_fallthru
        _
      // Predicated region
      $region21: #{transformer_forward.9} parent=11 // pred_check
        %p322 = pneg %p147
      $region22: #{transformer_forward.9} parent=11 // pred_check_branch
        %324 = sbr.rel (%p322) target = $region24
      $region23: #{transformer_forward.9} parent=11 // pred_region
        _
      $region24: #{transformer_forward.9} parent=11 // pred_fallthru
        _
      // Predicated region
      $region25: #{transformer_forward.9} parent=11 // pred_check
        %p325 = pneg %p168
      $region26: #{transformer_forward.9} parent=11 // pred_check_branch
        %327 = sbr.rel (%p325) target = $region28
      $region27: #{transformer_forward.9} parent=11 // pred_region
        _
      $region28: #{transformer_forward.9} parent=11 // pred_fallthru
        _
      // Predicated region
      $region29: #{transformer_forward.9} parent=11 // pred_check
        %p328 = pneg %p189
      $region30: #{transformer_forward.9} parent=11 // pred_check_branch
        %330 = sbr.rel (%p328) target = $region32
      $region31: #{transformer_forward.9} parent=11 // pred_region
        _
      $region32: #{transformer_forward.9} parent=11 // pred_fallthru
        _
      // Predicated region
      $region33: #{transformer_forward.9} parent=11 // pred_check
        %p331 = pneg %p210
      $region34: #{transformer_forward.9} parent=11 // pred_check_branch
        %333 = sbr.rel (%p331) target = $region36
      $region35: #{transformer_forward.9} parent=11 // pred_region
        _
      $region36: #{transformer_forward.9} parent=11 // pred_fallthru
        _
      // Predicated region
      $region37: #{transformer_forward.9} parent=11 // pred_check
        %p334 = pneg %p231
      $region38: #{transformer_forward.9} parent=11 // pred_check_branch
        %336 = sbr.rel (%p334) target = $region40
      $region39: #{transformer_forward.9} parent=11 // pred_region
        _
      $region40: #{transformer_forward.9} parent=11 // pred_fallthru
        _
      // Predicated region
      $region41: #{transformer_forward.9} parent=11 // pred_check
        %p337 = pneg %p252
      $region42: #{transformer_forward.9} parent=11 // pred_check_branch
        %339 = sbr.rel (%p337) target = $region44
      $region43: #{transformer_forward.9} parent=11 // pred_region
        _
      $region44: #{transformer_forward.9} parent=11 // pred_fallthru
        _
      // Predicated region
      $region45: #{transformer_forward.9} parent=11 // pred_check
        %p340 = pneg %p273
      $region46: #{transformer_forward.9} parent=11 // pred_check_branch
        %342 = sbr.rel (%p340) target = $region48
      $region47: #{transformer_forward.9} parent=11 // pred_region
        _
      $region48: #{transformer_forward.9} parent=11 // pred_fallthru
        _
    $region12: #{transformer_forward.9} parent=5 // pred_fallthru
      _
    %p343 = scmp.lt.s32.totalorder %s18, 2
    // Predicated region
    $region49: #{transformer_forward.9} parent=5 // pred_check
      %p344 = pneg %p343
    $region50: #{transformer_forward.9} parent=5 // pred_check_branch
      %346 = sbr.rel (%p344) target = $region52
    $region51: #{transformer_forward.9} parent=5 // pred_region
      // Predicated region
      $region53: #{transformer_forward.9} parent=51 // pred_check
        %p347 = pneg %p73
      $region54: #{transformer_forward.9} parent=51 // pred_check_branch
        %349 = sbr.rel (%p347) target = $region56
      $region55: #{transformer_forward.9} parent=51 // pred_region
        %s350 = smul.u32 4, %s26
        %p351 = scmp.lt.s32.totalorder %s25, 1
        %s352 = scalar_select %p351, %s25, 1
        %p353 = scmp.lt.s32.totalorder %s350, 3
        %s354 = scalar_select %p353, %s350, 3
        %s355 = smul.addr %s352, 4
        %s356 = sadd.s32 %s354, %s355
        %s357 = smul.addr %s356, 8
        %s358 = scalar_lea.vmem %s1, %s357
        %s359 = smul.u32 4, %s26
      $region56: #{transformer_forward.9} parent=51 // pred_fallthru
        _
      // Predicated region
      $region57: #{transformer_forward.9} parent=51 // pred_check
        %p360 = pneg %p99
      $region58: #{transformer_forward.9} parent=51 // pred_check_branch
        %362 = sbr.rel (%p360) target = $region60
      $region59: #{transformer_forward.9} parent=51 // pred_region
        %p363 = scmp.lt.s32.totalorder %s25, 1
        %s364 = scalar_select %p363, %s25, 1
        %s365 = scalar_lea.vmem %s2, %s364
      $region60: #{transformer_forward.9} parent=51 // pred_fallthru
        _
    $region52: #{transformer_forward.9} parent=5 // pred_fallthru
      _
    %p366 = scmp.le.s32.totalorder 1, %s18
    %p367 = scmp.lt.s32.totalorder %s18, 3
    %p368 = pnand %p366, %p367
    %p369 = pneg %p368
    // Predicated region
    $region61: #{transformer_forward.9} parent=5 // pred_check
      _
    $region62: #{transformer_forward.9} parent=5 // pred_check_branch
      %371 = sbr.rel (%p368) target = $region64
    $region63: #{transformer_forward.9} parent=5 // pred_region
      %s372 = ssub.s32 %s18, 1
      %p373 = pneg %p51
      %p374 = pneg %p48
      %s375 = smul.u32 4, %s28
      %p376 = scmp.lt.s32.totalorder %s27, 1
      %s377 = scalar_select %p376, %s27, 1
      %p378 = scmp.lt.s32.totalorder %s375, 3
      %s379 = scalar_select %p378, %s375, 3
      %s380 = smul.addr %s377, 4
      %s381 = sadd.s32 %s379, %s380
      %s382 = smul.addr %s381, 8
      %s383 = scalar_lea.vmem %s1, %s382
      %p384 = pneg %p79
      %p385 = pneg %p76
      %p386 = scmp.lt.s32.totalorder %s27, 1
      %s387 = scalar_select %p386, %s27, 1
      %s388 = scalar_lea.vmem %s2, %s387
      %p389 = pneg %p105
      %p390 = pneg %p102
      %p391 = pneg %p126
      %p392 = pneg %p123
      %p393 = pneg %p147
      %p394 = pneg %p144
      %p395 = pneg %p168
      %p396 = pneg %p165
      %p397 = pneg %p189
      %p398 = pneg %p186
      %p399 = pneg %p210
      %p400 = pneg %p207
      %p401 = pneg %p231
      %p402 = pneg %p228
      %p403 = pneg %p252
      %p404 = pneg %p249
      %p405 = pneg %p273
      %p406 = pneg %p270
      %p407 = pneg %p301
      %p408 = pneg %p298
      %s409 = smul.u32 4, %s28
      %p410 = scmp.lt.s32.totalorder %s27, 1
      %s411 = scalar_select %p410, %s27, 1
      %p412 = scmp.lt.s32.totalorder %s409, 3
      %s413 = scalar_select %p412, %s409, 3
      %s414 = smul.addr %s411, 4
      %s415 = sadd.s32 %s413, %s414
      %s416 = smul.addr %s415, 8
      %s417 = scalar_lea.vmem %s11, %s416
      %s418 = smul.u32 4, %s28
      %p419 = scmp.lt.s32.totalorder %s27, 1
      %s420 = scalar_select %p419, %s27, 1
      %p421 = scmp.lt.s32.totalorder %s418, 3
      %s422 = scalar_select %p421, %s418, 3
      %s423 = smul.addr %s420, 4
      %s424 = sadd.s32 %s422, %s423
      %s425 = smul.addr %s424, 8
      %s426 = scalar_lea.vmem %s1, %s425
      %s427 = smul.u32 4, %s28
      %p428 = scmp.lt.s32.totalorder %s27, 1
      %s429 = scalar_select %p428, %s27, 1
      %s430 = scalar_lea.vmem %s2, %s429
      %s431 = smul.u32 4, %s28
      %p432 = scmp.lt.s32.totalorder %s27, 1
      %s433 = scalar_select %p432, %s27, 1
      %p434 = scmp.lt.s32.totalorder %s431, 3
      %s435 = scalar_select %p434, %s431, 3
      %s436 = smul.addr %s433, 4
      %s437 = sadd.s32 %s435, %s436
      %s438 = smul.addr %s437, 8
      %s439 = scalar_lea.vmem %s11, %s438
      %s440 = smul.u32 4, %s28
      %v442 = vld [vmem:[%s426] sm:$0xff]
      %v443 = vld [vmem:[%s426 + $0x8] sm:$0xff]
      %v444 = vld [vmem:[%s426 + $0x10] sm:$0xff]
      %v445 = vld [vmem:[%s426 + $0x18] sm:$0xff]
      %s446 = sld [smem:[#allocation2]]
      %v447 = vld [vmem:[%s430] sm:$0x1]
      %v448 = vstv %s446
      %v449 = vmul.f32 %v448, %v447
      %v451 = vlaneseq
      %v452 = vshrl.u32 %v451, 7
      %v453 = vsub.s32 0, %v452
      %v454 = vrot.slane %v449, %v453
      %v456 = vmul.f32 %v454, %v442
      %v457 = vmul.f32 %v454, %v443
      %v458 = vmul.f32 %v454, %v444
      %v459 = vmul.f32 %v454, %v445
      %v460 = vadd.f32 %v442, %v456
      %v461 = vadd.f32 %v443, %v457
      %v462 = vadd.f32 %v444, %v458
      %v463 = vadd.f32 %v445, %v459
      %v464 = vpack.c.bf16 %v461, %v460
      %v465 = vpack.c.bf16 %v463, %v462
      %v466 = vld [vmem:[%s3] sm:$0xf]
      %v467 = vld [vmem:[%s3 + $0x4] sm:$0xf]
      %v468 = vld [vmem:[%s3 + $0x8] sm:$0xf]
      %v469 = vld [vmem:[%s3 + $0xc] sm:$0xf]
      %v470 = vld [vmem:[%s4] sm:$0x1]
      %v472 = vlaneseq
      %v473 = vshrl.u32 %v472, 7
      %v474 = vsub.s32 0, %v473
      %v475 = vrot.slane %v470, %v474
      %v481 = vunpack.c.l.b16 %v466
      %v482 = vunpack.c.l.b16 %v467
      %v483 = vunpack.c.l.b16 %v468
      %v484 = vunpack.c.l.b16 %v469
      %v485 = vpack.c.b16 %v482, %v481
      %v486 = vpack.c.b16 %v484, %v483
      %vm489 = vcmask 261120
      %v491 = vsel %vm489, %v464, 0
      %v494 = vsel %vm489, %v465, 0
      %496 = vmatprep.subr.bf16.mxu0 0
      %497 = vmatpush1.bf16.msra.mxu0 %v485
      %498 = vmatprep.subr.bf16.mxu0 0
      %499 = vmatpush1.bf16.msra.mxu0 %v486
      %500 = vmatprep.subr.bf16.mxu0 0
      %501 = vmatpush1.bf16.msra.mxu0 0
      %502 = vmatprep.subr.bf16.mxu0 0
      %503 = vmatpush1.bf16.msra.mxu0 0
      %504 = vmatprep.subr.bf16.mxu0 0
      %505 = vmatpush1.bf16.msra.mxu0 0
      %506 = vmatprep.subr.bf16.mxu0 0
      %507 = vmatpush1.bf16.msra.mxu0 0
      %508 = vmatprep.subr.bf16.mxu0 0
      %509 = vmatpush1.bf16.msra.mxu0 0
      %510 = vmatprep.subr.bf16.mxu0 0
      %511 = vmatpush1.bf16.msra.mxu0 0
      %512 = vmatprep.subr.bf16.mxu0 0
      %513 = vmatpush1.bf16.msra.mxu0 0
      %514 = vmatprep.subr.bf16.mxu0 0
      %515 = vmatpush1.bf16.msra.mxu0 0
      %516 = vmatprep.subr.bf16.mxu0 0
      %517 = vmatpush1.bf16.msra.mxu0 0
      %518 = vmatprep.subr.bf16.mxu0 0
      %519 = vmatpush1.bf16.msra.mxu0 0
      %520 = vmatprep.subr.bf16.mxu0 0
      %521 = vmatpush1.bf16.msra.mxu0 0
      %522 = vmatprep.subr.bf16.mxu0 0
      %523 = vmatpush1.bf16.msra.mxu0 0
      %524 = vmatprep.subr.bf16.mxu0 0
      %525 = vmatpush1.bf16.msra.mxu0 0
      %526 = vmatprep.subr.bf16.mxu0 0
      %527 = vmatpush1.bf16.msra.mxu0 0
      %528 = vmatprep.mubr.bf16.mxu0 0
      %529 = vmatmul.mubr.bf16.gmra.mrb[0].mxu0 %v491
      %v530 = vpop.f32.mrb[0].mxu0
      %v531 = vadd.f32 %v475, %v530
      %v532 = vpop.f32.mrb[0].mxu0
      %v533 = vpop.f32.mrb[0].mxu0
      %v534 = vadd.f32 %v475, %v533
      %v535 = vpop.f32.mrb[0].mxu0
      %536 = vmatprep.mubr.bf16.mxu0 0
      %537 = vmatmul.mubr.bf16.gmra.mrb[0].mxu0 %v494
      %v538 = vpop.f32.mrb[0].mxu0
      %v539 = vadd.f32 %v475, %v538
      %v540 = vpop.f32.mrb[0].mxu0
      %v541 = vpop.f32.mrb[0].mxu0
      %v542 = vadd.f32 %v475, %v541
      %v543 = vpop.f32.mrb[0].mxu0
      %544 = vdwg.mxu0
      %v545 = vmax.f32 %v531, 0.0
      %v546 = vmax.f32 %v534, 0.0
      %v547 = vmax.f32 %v539, 0.0
      %v548 = vmax.f32 %v542, 0.0
      %v549 = vpack.c.bf16 %v546, %v545
      %v550 = vpack.c.bf16 %v548, %v547
      %v551 = vld [vmem:[%s5] sm:$0xf]
      %v552 = vld [vmem:[%s5 + $0x4] sm:$0xf]
      %v553 = vld [vmem:[%s5 + $0x8] sm:$0xf]
      %v554 = vld [vmem:[%s5 + $0xc] sm:$0xf]
      %v555 = vld [vmem:[%s5 + $0x10] sm:$0xf]
      %v556 = vld [vmem:[%s5 + $0x14] sm:$0xf]
      %v557 = vld [vmem:[%s5 + $0x18] sm:$0xf]
      %v558 = vld [vmem:[%s5 + $0x1c] sm:$0xf]
      %v559 = vld [vmem:[%s6] sm:$0x1]
      %v561 = vlaneseq
      %v562 = vshrl.u32 %v561, 7
      %v563 = vsub.s32 0, %v562
      %v564 = vrot.slane %v559, %v563
      %v574 = vunpack.c.l.b16 %v551
      %v575 = vunpack.c.l.b16 %v552
      %v576 = vunpack.c.l.b16 %v553
      %v577 = vunpack.c.l.b16 %v554
      %v578 = vunpack.c.l.b16 %v555
      %v579 = vunpack.c.l.b16 %v556
      %v580 = vunpack.c.l.b16 %v557
      %v581 = vunpack.c.l.b16 %v558
      %v582 = vpack.c.b16 %v575, %v574
      %v583 = vpack.c.b16 %v577, %v576
      %v584 = vpack.c.b16 %v579, %v578
      %v585 = vpack.c.b16 %v581, %v580
      %vm590 = vcmask 523264
      %v592 = vsel %vm590, %v549, 0
      %v595 = vsel %vm590, %v550, 0
      %597 = vmatprep.subr.bf16.mxu0 0
      %598 = vmatpush1.bf16.msra.mxu0 %v582
      %599 = vmatprep.subr.bf16.mxu0 0
      %600 = vmatpush1.bf16.msra.mxu0 %v583
      %601 = vmatprep.subr.bf16.mxu0 0
      %602 = vmatpush1.bf16.msra.mxu0 %v584
      %603 = vmatprep.subr.bf16.mxu0 0
      %604 = vmatpush1.bf16.msra.mxu0 %v585
      %605 = vmatprep.subr.bf16.mxu0 0
      %606 = vmatpush1.bf16.msra.mxu0 0
      %607 = vmatprep.subr.bf16.mxu0 0
      %608 = vmatpush1.bf16.msra.mxu0 0
      %609 = vmatprep.subr.bf16.mxu0 0
      %610 = vmatpush1.bf16.msra.mxu0 0
      %611 = vmatprep.subr.bf16.mxu0 0
      %612 = vmatpush1.bf16.msra.mxu0 0
      %613 = vmatprep.subr.bf16.mxu0 0
      %614 = vmatpush1.bf16.msra.mxu0 0
      %615 = vmatprep.subr.bf16.mxu0 0
      %616 = vmatpush1.bf16.msra.mxu0 0
      %617 = vmatprep.subr.bf16.mxu0 0
      %618 = vmatpush1.bf16.msra.mxu0 0
      %619 = vmatprep.subr.bf16.mxu0 0
      %620 = vmatpush1.bf16.msra.mxu0 0
      %621 = vmatprep.subr.bf16.mxu0 0
      %622 = vmatpush1.bf16.msra.mxu0 0
      %623 = vmatprep.subr.bf16.mxu0 0
      %624 = vmatpush1.bf16.msra.mxu0 0
      %625 = vmatprep.subr.bf16.mxu0 0
      %626 = vmatpush1.bf16.msra.mxu0 0
      %627 = vmatprep.subr.bf16.mxu0 0
      %628 = vmatpush1.bf16.msra.mxu0 0
      %629 = vmatprep.mubr.bf16.mxu0 0
      %630 = vmatmul.mubr.bf16.gmra.mrb[0].mxu0 %v592
      %v631 = vpop.f32.mrb[0].mxu0
      %v632 = vadd.f32 %v564, %v631
      %v633 = vpop.f32.mrb[0].mxu0
      %v634 = vpop.f32.mrb[0].mxu0
      %v635 = vadd.f32 %v564, %v634
      %v636 = vpop.f32.mrb[0].mxu0
      %637 = vmatprep.mubr.bf16.mxu0 0
      %638 = vmatmul.mubr.bf16.gmra.mrb[0].mxu0 %v595
      %v639 = vpop.f32.mrb[0].mxu0
      %v640 = vadd.f32 %v564, %v639
      %v641 = vpop.f32.mrb[0].mxu0
      %v642 = vpop.f32.mrb[0].mxu0
      %v643 = vadd.f32 %v564, %v642
      %v644 = vpop.f32.mrb[0].mxu0
      %645 = vdwg.mxu0
      %v646 = vadd.f32 %v460, %v632
      %v647 = vadd.f32 %v461, %v635
      %v648 = vadd.f32 %v462, %v640
      %v649 = vadd.f32 %v463, %v643
      %v650 = vld [vmem:[%s7] sm:$0x1]
      %v651 = vld [vmem:[%s8] sm:$0x1]
      %v652 = vsel %vm489, %v646, 0.0
      %653 = vadd.xlane.f32.xlu0 %v652
      %v654 = vpop.xlane.xlu0 %653
      %v655 = vsel %vm489, %v647, 0.0
      %656 = vadd.xlane.f32.xlu0 %v655
      %v657 = vpop.xlane.xlu0 %656
      %v658 = vsel %vm489, %v648, 0.0
      %659 = vadd.xlane.f32.xlu0 %v658
      %v660 = vpop.xlane.xlu0 %659
      %v661 = vsel %vm489, %v649, 0.0
      %662 = vadd.xlane.f32.xlu0 %v661
      %v663 = vpop.xlane.xlu0 %662
      %v664 = vrcp.pop 32.0
      %v665 = vmul.f32 %v654, %v664
      %v666 = vmul.f32 %v657, %v664
      %v667 = vmul.f32 %v660, %v664
      %v668 = vmul.f32 %v663, %v664
      %v669 = vsub.f32 %v646, %v665
      %v670 = vsub.f32 %v647, %v666
      %v671 = vsub.f32 %v648, %v667
      %v672 = vsub.f32 %v649, %v668
      %v673 = vmul.f32 %v669, %v669
      %v674 = vmul.f32 %v670, %v670
      %v675 = vmul.f32 %v671, %v671
      %v676 = vmul.f32 %v672, %v672
      %v677 = vsel %vm489, %v673, 0.0
      %678 = vadd.xlane.f32.xlu0 %v677
      %v679 = vpop.xlane.xlu0 %678
      %v680 = vsel %vm489, %v674, 0.0
      %681 = vadd.xlane.f32.xlu0 %v680
      %v682 = vpop.xlane.xlu0 %681
      %v683 = vsel %vm489, %v675, 0.0
      %684 = vadd.xlane.f32.xlu0 %v683
      %v685 = vpop.xlane.xlu0 %684
      %v686 = vsel %vm489, %v676, 0.0
      %687 = vadd.xlane.f32.xlu0 %v686
      %v688 = vpop.xlane.xlu0 %687
      %v689 = vmul.f32 %v679, %v664
      %v690 = vmul.f32 %v682, %v664
      %v691 = vmul.f32 %v685, %v664
      %v692 = vmul.f32 %v688, %v664
      %v693 = vadd.f32 %v689, 1e-05
      %v694 = vadd.f32 %v690, 1e-05
      %v695 = vadd.f32 %v691, 1e-05
      %v696 = vadd.f32 %v692, 1e-05
      %v697 = vrsqrt.pop %v693
      %v698 = vrsqrt.pop %v694
      %v699 = vrsqrt.pop %v695
      %v700 = vrsqrt.pop %v696
      %v701 = vmul.f32 %v669, %v697
      %v702 = vmul.f32 %v670, %v698
      %v703 = vmul.f32 %v671, %v699
      %v704 = vmul.f32 %v672, %v700
      %v706 = vlaneseq
      %v707 = vshrl.u32 %v706, 7
      %v708 = vsub.s32 0, %v707
      %v709 = vrot.slane %v650, %v708
      %v711 = vmul.f32 %v701, %v709
      %v712 = vmul.f32 %v702, %v709
      %v713 = vmul.f32 %v703, %v709
      %v714 = vmul.f32 %v704, %v709
      %v716 = vlaneseq
      %v717 = vshrl.u32 %v716, 7
      %v718 = vsub.s32 0, %v717
      %v719 = vrot.slane %v651, %v718
      %v721 = vadd.f32 %v711, %v719
      %v722 = vadd.f32 %v712, %v719
      %v723 = vadd.f32 %v713, %v719
      %v724 = vadd.f32 %v714, %v719
      %v725 = vld [vmem:[%s9] sm:$0x1]
      %v726 = vld [vmem:[%s10] sm:$0x1]
      %v727 = vsel %vm489, %v721, 0.0
      %728 = vadd.xlane.f32.xlu0 %v727
      %v729 = vpop.xlane.xlu0 %728
      %v730 = vsel %vm489, %v722, 0.0
      %731 = vadd.xlane.f32.xlu0 %v730
      %v732 = vpop.xlane.xlu0 %731
      %v733 = vsel %vm489, %v723, 0.0
      %734 = vadd.xlane.f32.xlu0 %v733
      %v735 = vpop.xlane.xlu0 %734
      %v736 = vsel %vm489, %v724, 0.0
      %737 = vadd.xlane.f32.xlu0 %v736
      %v738 = vpop.xlane.xlu0 %737
      %v739 = vmul.f32 %v729, %v664
      %v740 = vmul.f32 %v732, %v664
      %v741 = vmul.f32 %v735, %v664
      %v742 = vmul.f32 %v738, %v664
      %v743 = vsub.f32 %v721, %v739
      %v744 = vsub.f32 %v722, %v740
      %v745 = vsub.f32 %v723, %v741
      %v746 = vsub.f32 %v724, %v742
      %v747 = vmul.f32 %v743, %v743
      %v748 = vmul.f32 %v744, %v744
      %v749 = vmul.f32 %v745, %v745
      %v750 = vmul.f32 %v746, %v746
      %v751 = vsel %vm489, %v747, 0.0
      %752 = vadd.xlane.f32.xlu0 %v751
      %v753 = vpop.xlane.xlu0 %752
      %v754 = vsel %vm489, %v748, 0.0
      %755 = vadd.xlane.f32.xlu0 %v754
      %v756 = vpop.xlane.xlu0 %755
      %v757 = vsel %vm489, %v749, 0.0
      %758 = vadd.xlane.f32.xlu0 %v757
      %v759 = vpop.xlane.xlu0 %758
      %v760 = vsel %vm489, %v750, 0.0
      %761 = vadd.xlane.f32.xlu0 %v760
      %v762 = vpop.xlane.xlu0 %761
      %v763 = vmul.f32 %v753, %v664
      %v764 = vmul.f32 %v756, %v664
      %v765 = vmul.f32 %v759, %v664
      %v766 = vmul.f32 %v762, %v664
      %v767 = vadd.f32 %v763, 1e-05
      %v768 = vadd.f32 %v764, 1e-05
      %v769 = vadd.f32 %v765, 1e-05
      %v770 = vadd.f32 %v766, 1e-05
      %v771 = vrsqrt.pop %v767
      %v772 = vrsqrt.pop %v768
      %v773 = vrsqrt.pop %v769
      %v774 = vrsqrt.pop %v770
      %v775 = vmul.f32 %v743, %v771
      %v776 = vmul.f32 %v744, %v772
      %v777 = vmul.f32 %v745, %v773
      %v778 = vmul.f32 %v746, %v774
      %v780 = vlaneseq
      %v781 = vshrl.u32 %v780, 7
      %v782 = vsub.s32 0, %v781
      %v783 = vrot.slane %v725, %v782
      %v785 = vmul.f32 %v775, %v783
      %v786 = vmul.f32 %v776, %v783
      %v787 = vmul.f32 %v777, %v783
      %v788 = vmul.f32 %v778, %v783
      %v790 = vlaneseq
      %v791 = vshrl.u32 %v790, 7
      %v792 = vsub.s32 0, %v791
      %v793 = vrot.slane %v726, %v792
      %v795 = vadd.f32 %v785, %v793
      %v796 = vadd.f32 %v786, %v793
      %v797 = vadd.f32 %v787, %v793
      %v798 = vadd.f32 %v788, %v793
      %799 = vst.msk [vmem:[%s439] sm:$0xff] %vm489, %v795
      %800 = vst.msk [vmem:[%s439 + $0x8] sm:$0xff] %vm489, %v796
      %801 = vst.msk [vmem:[%s439 + $0x10] sm:$0xff] %vm489, %v797
      %802 = vst.msk [vmem:[%s439 + $0x18] sm:$0xff] %vm489, %v798
      %s803 = smul.u32 4, %s28
      %p804 = scmp.lt.s32.totalorder %s27, 1
      %s805 = scalar_select %p804, %s27, 1
      %p806 = scmp.lt.s32.totalorder %s803, 3
      %s807 = scalar_select %p806, %s803, 3
      %s808 = smul.addr %s805, 4
      %s809 = sadd.s32 %s807, %s808
      %s810 = smul.addr %s809, 8
      %s811 = scalar_lea.vmem %s11, %s810
      // Predicated region
      $region65: #{transformer_forward.9} parent=63 // pred_check
        %p812 = pneg %p298
      $region66: #{transformer_forward.9} parent=63 // pred_check_branch
        %814 = sbr.rel (%p812) target = $region68
      $region67: #{transformer_forward.9} parent=63 // pred_region
        %s815 = smul.u32 4, %s28
      $region68: #{transformer_forward.9} parent=63 // pred_fallthru
        _
    $region64: #{transformer_forward.9} parent=5 // pred_fallthru
      _
    %p816 = scmp.le.s32.totalorder 2, %s18
    // Predicated region
    $region69: #{transformer_forward.9} parent=5 // pred_check
      %p817 = pneg %p816
    $region70: #{transformer_forward.9} parent=5 // pred_check_branch
      %819 = sbr.rel (%p817) target = $region72
    $region71: #{transformer_forward.9} parent=5 // pred_region
      %s820 = ssub.s32 %s18, 2
      // Predicated region
      $region73: #{transformer_forward.9} parent=71 // pred_check
        %p821 = pneg %p304
      $region74: #{transformer_forward.9} parent=71 // pred_check_branch
        %823 = sbr.rel (%p821) target = $region76
      $region75: #{transformer_forward.9} parent=71 // pred_region
        %s824 = smul.u32 4, %s30
        %p825 = scmp.lt.s32.totalorder %s29, 1
        %s826 = scalar_select %p825, %s29, 1
        %p827 = scmp.lt.s32.totalorder %s824, 3
        %s828 = scalar_select %p827, %s824, 3
        %s829 = smul.addr %s826, 4
        %s830 = sadd.s32 %s828, %s829
        %s831 = smul.addr %s830, 8
        %s832 = scalar_lea.vmem %s11, %s831
      $region76: #{transformer_forward.9} parent=71 // pred_fallthru
        _
    $region72: #{transformer_forward.9} parent=5 // pred_fallthru
      _
  $region6: #{transformer_forward.9} parent=0 // loop_footer
    %s22 = sadd.s32 1, %s18
  $region7: #{transformer_forward.9} parent=0 // loop_footer_branch
    %17 = sbr.rel target = $region3
  $region8: #{transformer_forward.9} parent=0 // loop_exit
    _

</llo_original>
